<compile_context>
chip_gen: v5e
topology: v5e:2x2
jax: 0.10.0
libtpu: 0.0.40
codegen_flags: <defaults>
</compile_context>

<pallas_src>
import functools
import math

import jax
import jax.numpy as jnp
from jax.experimental import pallas as pl
from jax.experimental.pallas import tpu as pltpu

# ----------------------------- configuration ------------------------------
B = 2            # batch
SEQ_LEN = 16     # encoder sequence length
LABEL_LEN = 8
PRED_LEN = 8
DEC_LEN = LABEL_LEN + PRED_LEN   # decoder sequence length = 16
ENC_IN = 4
DEC_IN = 4
C_OUT = 4
D_MODEL = 32
N_HEADS = 4
D_FF = 64
E_LAYERS = 2
D_LAYERS = 1
D_TIME = 4       # 'timeF' temporal embedding, freq='h' -> 4 features
ACTIVATION = "relu"


# ------------------------- in-kernel helper functions ----------------------
def _mm(a, w):
    """bf16 MXU matmul with f32 accumulation."""
    return jnp.dot(a.astype(jnp.bfloat16), w.astype(jnp.bfloat16),
                   preferred_element_type=jnp.float32)


def _bmm(a, b, eq):
    """Batched (single batch dim) bf16 einsum with f32 accumulation."""
    return jnp.einsum(eq, a.astype(jnp.bfloat16), b.astype(jnp.bfloat16),
                      preferred_element_type=jnp.float32)


def _layernorm(x, g_ref, b_ref):
    mu = jnp.mean(x, axis=-1, keepdims=True)
    var = jnp.mean(jnp.square(x - mu), axis=-1, keepdims=True)
    return (x - mu) * jax.lax.rsqrt(var + 1e-5) * g_ref[...] + b_ref[...]


def _softmax_lastdim(s):
    m = jnp.max(s, axis=-1, keepdims=True)
    e = jnp.exp(s - m)
    return e * pl.reciprocal(jnp.sum(e, axis=-1, keepdims=True), approx=True)


def _mha_core(q_heads, k_heads, v_heads, wo_h_ref, bo_ref, Lq, Lkv, mask):
    """q/k/v_heads: lists of per-head (B*L, E) slices.  Output projection (wo)
    is fused as per-head accumulation: out = sum_h ctx_h @ wo[h*E:(h+1)*E] + bo."""
    E = D_MODEL // N_HEADS
    scale = 1.0 / math.sqrt(E)
    Bb = q_heads[0].shape[0] // Lq
    acc = None
    for h in range(N_HEADS):
        q = q_heads[h].reshape(Bb, Lq, E)
        k = k_heads[h].reshape(Bb, Lkv, E)
        v = v_heads[h].reshape(Bb, Lkv, E)
        s = _bmm(q, k, "ble,bse->bls") * scale          # (B, Lq, Lkv) f32
        if mask is not None:
            s = s + mask                                # (Lq, Lkv) broadcast
        p = _softmax_lastdim(s)
        ctx = _bmm(p, v, "bls,bse->ble").reshape(-1, E)  # (B*Lq, E) f32
        contrib = _mm(ctx, wo_h_ref[h])                  # (B*Lq, D) f32
        acc = contrib if acc is None else acc + contrib
    return acc + bo_ref[...]


def _self_attention(x2d, p, L, mask):
    """FullAttention with fused QKV projection.  x2d: (B*L, D)."""
    qkv = _mm(x2d, p["wqkv"][...]) + p["bqkv"][...]      # (B*L, 3D) f32
    D = D_MODEL
    E = D // N_HEADS
    qh = [qkv[:, h * E:(h + 1) * E] for h in range(N_HEADS)]
    kh = [qkv[:, D + h * E:D + (h + 1) * E] for h in range(N_HEADS)]
    vh = [qkv[:, 2 * D + h * E:2 * D + (h + 1) * E] for h in range(N_HEADS)]
    return _mha_core(qh, kh, vh, p["wo_h"], p["bo"], L, L, mask)


def _cross_attention(xq2d, xkv2d, p, Lq, Lkv):
    q = _mm(xq2d, p["wq"][...]) + p["bq"][...]           # (B*Lq, D)
    kv = _mm(xkv2d, p["wkv"][...]) + p["bkv"][...]       # (B*Lkv, 2D)
    D = D_MODEL
    E = D // N_HEADS
    qh = [q[:, h * E:(h + 1) * E] for h in range(N_HEADS)]
    kh = [kv[:, h * E:(h + 1) * E] for h in range(N_HEADS)]
    vh = [kv[:, D + h * E:D + (h + 1) * E] for h in range(N_HEADS)]
    return _mha_core(qh, kh, vh, p["wo_h"], p["bo"], Lq, Lkv, None)


def _ffn(x2d, p):
    y = _mm(x2d, p["w1"][...]) + p["b1"][...]
    if ACTIVATION == "relu":
        y = jnp.maximum(y, 0.0)
    else:
        y = jax.nn.gelu(y, approximate=True)
    return _mm(y, p["w2"][...]) + p["b2"][...]


def _encoder_layer(x, p):
    a = _self_attention(x, p["attn"], SEQ_LEN, mask=None)
    x = _layernorm(x + a, p["norm1_g"], p["norm1_b"])          # residual + LN fused
    y = _ffn(x, p)
    return _layernorm(x + y, p["norm2_g"], p["norm2_b"])


def _decoder_layer(x, enc_out, causal_mask, p):
    a = _self_attention(x, p["self_attn"], DEC_LEN, mask=causal_mask)
    x = _layernorm(x + a, p["norm1_g"], p["norm1_b"])
    a = _cross_attention(x, enc_out, p["cross_attn"], DEC_LEN, SEQ_LEN)
    x = _layernorm(x + a, p["norm2_g"], p["norm2_b"])
    y = _ffn(x, p)
    return _layernorm(x + y, p["norm3_g"], p["norm3_b"])


# ------------------------------ fused kernel -------------------------------
def _proformer_kernel(*refs, treedef, n_data):
    out_ref = refs[-1]
    (enc_win_ref, enc_mark_ref, pe_enc_ref,
     dec_win_ref, dec_mark_ref, pe_dec_ref) = refs[:n_data]
    # Rebuild the params pytree of *refs* (weights stay in VMEM, loaded at use).
    params = jax.tree_util.tree_unflatten(treedef, refs[n_data:-1])

    # Causal mask for decoder self-attention (hoisted, finite fill value).
    row = jax.lax.broadcasted_iota(jnp.int32, (DEC_LEN, DEC_LEN), 0)
    col = jax.lax.broadcasted_iota(jnp.int32, (DEC_LEN, DEC_LEN), 1)
    causal_mask = jnp.where(col > row, jnp.float32(-1e30), jnp.float32(0.0))

    # ---------------- encoder ----------------
    ep = params["enc_emb"]
    x = (_mm(enc_win_ref[...], ep["token_w"][...])
         + _mm(enc_mark_ref[...], ep["temporal_w"][...])
         + pe_enc_ref[...])                                     # (B*SEQ_LEN, D)
    for lp in params["encoder"]["layers"]:
        x = _encoder_layer(x, lp)
    enc_out = _layernorm(x, params["encoder"]["norm_g"], params["encoder"]["norm_b"])

    # ---------------- decoder ----------------
    dp = params["dec_emb"]
    x = (_mm(dec_win_ref[...], dp["token_w"][...])
         + _mm(dec_mark_ref[...], dp["temporal_w"][...])
         + pe_dec_ref[...])                                     # (B*DEC_LEN, D)
    for lp in params["decoder"]["layers"]:
        x = _decoder_layer(x, enc_out, causal_mask, lp)
    x = _layernorm(x, params["decoder"]["norm_g"], params["decoder"]["norm_b"])
    out = _mm(x, params["decoder"]["proj_w"][...]) + params["decoder"]["proj_b"][...]
    out_ref[...] = out                                          # (B*DEC_LEN, C_OUT)


# --------------------------- wrapper-side helpers ---------------------------
def positional_embedding(L, d_model):
    pos = jnp.arange(L, dtype=jnp.float32)[:, None]
    div = jnp.exp(jnp.arange(0, d_model, 2, dtype=jnp.float32)
                  * (-math.log(10000.0) / d_model))
    pe = jnp.zeros((L, d_model), jnp.float32)
    pe = pe.at[:, 0::2].set(jnp.sin(pos * div))
    pe = pe.at[:, 1::2].set(jnp.cos(pos * div))
    return pe


def circular_unfold(x):
    """Circular k=3 unfold, tap-major: window l = [x[l-1] | x[l] | x[l+1]]."""
    Bb, L, C = x.shape
    win = jnp.concatenate(
        [jnp.roll(x, 1, axis=1), x, jnp.roll(x, -1, axis=1)], axis=-1)
    return win.reshape(Bb * L, 3 * C)


def prepare_kernel_params(params):
    """Restructure params for the fused kernel: fused QKV / KV weights (bf16),
    wo reshaped to (H, E, D) for per-head output-projection accumulation,
    1-D biases / LN params as (1, N) rows (f32)."""
    E = D_MODEL // N_HEADS
    bf = lambda a: a.astype(jnp.bfloat16)
    rw = lambda a: a.reshape(1, -1)

    def self_attn(p):
        return {"wqkv": bf(jnp.concatenate([p["wq"], p["wk"], p["wv"]], axis=1)),
                "bqkv": rw(jnp.concatenate([p["bq"], p["bk"], p["bv"]], axis=0)),
                "wo_h": bf(p["wo"].reshape(N_HEADS, E, D_MODEL)),
                "bo": rw(p["bo"])}

    def cross_attn(p):
        return {"wq": bf(p["wq"]), "bq": rw(p["bq"]),
                "wkv": bf(jnp.concatenate([p["wk"], p["wv"]], axis=1)),
                "bkv": rw(jnp.concatenate([p["bk"], p["bv"]], axis=0)),
                "wo_h": bf(p["wo"].reshape(N_HEADS, E, D_MODEL)),
                "bo": rw(p["bo"])}

    def ffn_norm(p, n_norms):
        out = {"w1": bf(p["w1"]), "b1": rw(p["b1"]),
               "w2": bf(p["w2"]), "b2": rw(p["b2"])}
        for i in range(1, n_norms + 1):
            out[f"norm{i}_g"] = rw(p[f"norm{i}_g"])
            out[f"norm{i}_b"] = rw(p[f"norm{i}_b"])
        return out

    return {
        "enc_emb": {"token_w": bf(params["enc_emb"]["token_w"]),
                    "temporal_w": bf(params["enc_emb"]["temporal_w"])},
        "dec_emb": {"token_w": bf(params["dec_emb"]["token_w"]),
                    "temporal_w": bf(params["dec_emb"]["temporal_w"])},
        "encoder": {
            "layers": [dict(ffn_norm(lp, 2), attn=self_attn(lp["attn"]))
                       for lp in params["encoder"]["layers"]],
            "norm_g": rw(params["encoder"]["norm_g"]),
            "norm_b": rw(params["encoder"]["norm_b"]),
        },
        "decoder": {
            "layers": [dict(ffn_norm(lp, 3),
                            self_attn=self_attn(lp["self_attn"]),
                            cross_attn=cross_attn(lp["cross_attn"]))
                       for lp in params["decoder"]["layers"]],
            "norm_g": rw(params["decoder"]["norm_g"]),
            "norm_b": rw(params["decoder"]["norm_b"]),
            "proj_w": bf(params["decoder"]["proj_w"]),
            "proj_b": rw(params["decoder"]["proj_b"]),
        },
    }


def proformer_forward(params, x_enc, x_mark_enc, x_dec, x_mark_dec, pred_len):
    Bb = x_enc.shape[0]
    kparams = prepare_kernel_params(params)
    leaves, treedef = jax.tree_util.tree_flatten(kparams)

    # Trivial input preprocessing (once, on the raw inputs) done in XLA:
    # circular conv unfold + precomputed sinusoidal positional table.
    data = (
        circular_unfold(x_enc),                                   # (B*SEQ_LEN, 3*ENC_IN)
        x_mark_enc.reshape(Bb * SEQ_LEN, x_mark_enc.shape[-1]),   # (B*SEQ_LEN, D_TIME)
        jnp.tile(positional_embedding(SEQ_LEN, D_MODEL), (Bb, 1)),
        circular_unfold(x_dec),                                   # (B*DEC_LEN, 3*DEC_IN)
        x_mark_dec.reshape(Bb * DEC_LEN, x_mark_dec.shape[-1]),
        jnp.tile(positional_embedding(DEC_LEN, D_MODEL), (Bb, 1)),
    )

    kernel = functools.partial(_proformer_kernel, treedef=treedef, n_data=len(data))
    out2d = pl.pallas_call(
        kernel,
        out_shape=jax.ShapeDtypeStruct((Bb * DEC_LEN, C_OUT), jnp.float32),
        compiler_params=pltpu.CompilerParams(vmem_limit_bytes=32 * 1024 * 1024),
    )(*data, *leaves)

    dec_out = out2d.reshape(Bb, DEC_LEN, C_OUT)
    # criterion='MSE', output_attention=False -> plain slice.
    # TODO(synk): GEV branch (out_gamma/out_sigma/final heads) unused under 'MSE'.
    return dec_out[:, -pred_len:, :]


# ----------------------------- parameter init ------------------------------
class KeyGen:
    def __init__(self, key):
        self.key = key

    def __call__(self):
        self.key, sub = jax.random.split(self.key)
        return sub


def _dense(kg, din, dout, bias=True):
    w = 0.02 * jax.random.normal(kg(), (din, dout), jnp.float32)
    b = jnp.zeros((dout,), jnp.float32) if bias else None
    return w, b


def _attn_params(kg, d_model):
    p = {}
    for name in ("q", "k", "v", "o"):
        w, b = _dense(kg, d_model, d_model)
        p["w" + name] = w
        p["b" + name] = b
    return p


def _embedding_params(kg, c_in, d_time, d_model):
    # token_w encodes Conv1d weight (d_model, c_in, 3) as (3*c_in, d_model), tap-major.
    token_w = 0.02 * jax.random.normal(kg(), (3 * c_in, d_model), jnp.float32)
    temporal_w = 0.02 * jax.random.normal(kg(), (d_time, d_model), jnp.float32)
    return {"token_w": token_w, "temporal_w": temporal_w}


def _ffn_norm_params(kg, d_model, d_ff, n_norms):
    p = {}
    p["w1"], p["b1"] = _dense(kg, d_model, d_ff)
    p["w2"], p["b2"] = _dense(kg, d_ff, d_model)
    for i in range(1, n_norms + 1):
        p[f"norm{i}_g"] = jnp.ones((d_model,), jnp.float32)
        p[f"norm{i}_b"] = jnp.zeros((d_model,), jnp.float32)
    return p


def init_params(seed=0):
    kg = KeyGen(jax.random.PRNGKey(seed))
    params = {
        "enc_emb": _embedding_params(kg, ENC_IN, D_TIME, D_MODEL),
        "dec_emb": _embedding_params(kg, DEC_IN, D_TIME, D_MODEL),
        "encoder": {"layers": [], "norm_g": jnp.ones((D_MODEL,), jnp.float32),
                    "norm_b": jnp.zeros((D_MODEL,), jnp.float32)},
        "decoder": {"layers": [], "norm_g": jnp.ones((D_MODEL,), jnp.float32),
                    "norm_b": jnp.zeros((D_MODEL,), jnp.float32)},
    }
    for _ in range(E_LAYERS):
        lp = _ffn_norm_params(kg, D_MODEL, D_FF, n_norms=2)
        lp["attn"] = _attn_params(kg, D_MODEL)
        params["encoder"]["layers"].append(lp)
    for _ in range(D_LAYERS):
        lp = _ffn_norm_params(kg, D_MODEL, D_FF, n_norms=3)
        lp["self_attn"] = _attn_params(kg, D_MODEL)
        lp["cross_attn"] = _attn_params(kg, D_MODEL)
        params["decoder"]["layers"].append(lp)
    pw, pb = _dense(kg, D_MODEL, C_OUT)
    params["decoder"]["proj_w"] = pw
    params["decoder"]["proj_b"] = pb
    return params


# ----------------------------------- main ----------------------------------
if __name__ == "__main__":
    params = init_params(seed=0)

    key = jax.random.PRNGKey(0)
    k1, k2, k3, k4 = jax.random.split(key, 4)
    x_enc = jax.random.normal(k1, (B, SEQ_LEN, ENC_IN), jnp.float32)
    x_mark_enc = jax.random.normal(k2, (B, SEQ_LEN, D_TIME), jnp.float32)
    x_dec = jax.random.normal(k3, (B, DEC_LEN, DEC_IN), jnp.float32)
    x_mark_dec = jax.random.normal(k4, (B, DEC_LEN, D_TIME), jnp.float32)

    fwd = jax.jit(functools.partial(proformer_forward, pred_len=PRED_LEN))
    out = fwd(params, x_enc, x_mark_enc, x_dec, x_mark_dec)
    out = jax.block_until_ready(out)
    assert out.shape == (B, PRED_LEN, C_OUT), out.shape
    assert bool(jnp.all(jnp.isfinite(out)))
    print("KERNEL_OK")
</pallas_src>

<mosaic_0001>
module attributes {stable_mosaic.version = 11 : i64} {
  func.func @_proformer_kernel(%arg0: memref<32x12xf32, #tpu.memory_space<vmem>>, %arg1: memref<32x4xf32, #tpu.memory_space<vmem>>, %arg2: memref<32x32xf32, #tpu.memory_space<vmem>>, %arg3: memref<32x12xf32, #tpu.memory_space<vmem>>, %arg4: memref<32x4xf32, #tpu.memory_space<vmem>>, %arg5: memref<32x32xf32, #tpu.memory_space<vmem>>, %arg6: memref<4x32xbf16, #tpu.memory_space<vmem>>, %arg7: memref<12x32xbf16, #tpu.memory_space<vmem>>, %arg8: memref<1x64xf32, #tpu.memory_space<vmem>>, %arg9: memref<1x32xf32, #tpu.memory_space<vmem>>, %arg10: memref<1x64xf32, #tpu.memory_space<vmem>>, %arg11: memref<1x32xf32, #tpu.memory_space<vmem>>, %arg12: memref<1x32xf32, #tpu.memory_space<vmem>>, %arg13: memref<32x64xbf16, #tpu.memory_space<vmem>>, %arg14: memref<4x8x32xbf16, #tpu.memory_space<vmem>>, %arg15: memref<32x32xbf16, #tpu.memory_space<vmem>>, %arg16: memref<1x32xf32, #tpu.memory_space<vmem>>, %arg17: memref<1x32xf32, #tpu.memory_space<vmem>>, %arg18: memref<1x32xf32, #tpu.memory_space<vmem>>, %arg19: memref<1x32xf32, #tpu.memory_space<vmem>>, %arg20: memref<1x32xf32, #tpu.memory_space<vmem>>, %arg21: memref<1x32xf32, #tpu.memory_space<vmem>>, %arg22: memref<1x32xf32, #tpu.memory_space<vmem>>, %arg23: memref<1x96xf32, #tpu.memory_space<vmem>>, %arg24: memref<4x8x32xbf16, #tpu.memory_space<vmem>>, %arg25: memref<32x96xbf16, #tpu.memory_space<vmem>>, %arg26: memref<32x64xbf16, #tpu.memory_space<vmem>>, %arg27: memref<64x32xbf16, #tpu.memory_space<vmem>>, %arg28: memref<1x32xf32, #tpu.memory_space<vmem>>, %arg29: memref<1x32xf32, #tpu.memory_space<vmem>>, %arg30: memref<1x4xf32, #tpu.memory_space<vmem>>, %arg31: memref<32x4xbf16, #tpu.memory_space<vmem>>, %arg32: memref<4x32xbf16, #tpu.memory_space<vmem>>, %arg33: memref<12x32xbf16, #tpu.memory_space<vmem>>, %arg34: memref<1x32xf32, #tpu.memory_space<vmem>>, %arg35: memref<1x96xf32, #tpu.memory_space<vmem>>, %arg36: memref<4x8x32xbf16, #tpu.memory_space<vmem>>, %arg37: memref<32x96xbf16, #tpu.memory_space<vmem>>, %arg38: memref<1x64xf32, #tpu.memory_space<vmem>>, %arg39: memref<1x32xf32, #tpu.memory_space<vmem>>, %arg40: memref<1x32xf32, #tpu.memory_space<vmem>>, %arg41: memref<1x32xf32, #tpu.memory_space<vmem>>, %arg42: memref<1x32xf32, #tpu.memory_space<vmem>>, %arg43: memref<1x32xf32, #tpu.memory_space<vmem>>, %arg44: memref<32x64xbf16, #tpu.memory_space<vmem>>, %arg45: memref<64x32xbf16, #tpu.memory_space<vmem>>, %arg46: memref<1x32xf32, #tpu.memory_space<vmem>>, %arg47: memref<1x96xf32, #tpu.memory_space<vmem>>, %arg48: memref<4x8x32xbf16, #tpu.memory_space<vmem>>, %arg49: memref<32x96xbf16, #tpu.memory_space<vmem>>, %arg50: memref<1x64xf32, #tpu.memory_space<vmem>>, %arg51: memref<1x32xf32, #tpu.memory_space<vmem>>, %arg52: memref<1x32xf32, #tpu.memory_space<vmem>>, %arg53: memref<1x32xf32, #tpu.memory_space<vmem>>, %arg54: memref<1x32xf32, #tpu.memory_space<vmem>>, %arg55: memref<1x32xf32, #tpu.memory_space<vmem>>, %arg56: memref<32x64xbf16, #tpu.memory_space<vmem>>, %arg57: memref<64x32xbf16, #tpu.memory_space<vmem>>, %arg58: memref<1x32xf32, #tpu.memory_space<vmem>>, %arg59: memref<1x32xf32, #tpu.memory_space<vmem>>, %arg60: memref<32x4xf32, #tpu.memory_space<vmem>>) attributes {dimension_semantics = [], scalar_prefetch = 0 : i64, scratch_operands = 0 : i64, tpu.core_type = #tpu.core_type<tc>} {
    %0 = tpu.iota {dimensions = array<i32: 0>} : vector<16x16xi32>
    %1 = tpu.iota {dimensions = array<i32: 1>} : vector<16x16xi32>
    %2 = arith.cmpi sgt, %1, %0 : vector<16x16xi32>
    %cst = arith.constant -1.000000e+30 : f32
    %cst_0 = arith.constant 0.000000e+00 : f32
    %3 = vector.broadcast %cst : f32 to vector<16x16xf32>
    %4 = vector.broadcast %cst_0 : f32 to vector<16x16xf32>
    %5 = arith.select %2, %3, %4 : vector<16x16xi1>, vector<16x16xf32>
    %c0 = arith.constant 0 : index
    %c0_1 = arith.constant 0 : index
    %6 = vector.load %arg0[%c0, %c0_1] : memref<32x12xf32, #tpu.memory_space<vmem>>, vector<32x12xf32>
    %c0_2 = arith.constant 0 : index
    %c0_3 = arith.constant 0 : index
    %7 = vector.load %arg33[%c0_2, %c0_3] : memref<12x32xbf16, #tpu.memory_space<vmem>>, vector<12x32xbf16>
    %8 = arith.truncf %6 : vector<32x12xf32> to vector<32x12xbf16>
    %cst_4 = arith.constant dense<0.000000e+00> : vector<32x32xf32>
    %9 = tpu.matmul %8, %7, %cst_4 {dimension_numbers = #tpu.dot_dimension_numbers<[1], [0], [0], [1], [0, 0, 1, 1], [], []>} : vector<32x12xbf16>, vector<12x32xbf16>, vector<32x32xf32> -> vector<32x32xf32>
    %c0_5 = arith.constant 0 : index
    %c0_6 = arith.constant 0 : index
    %10 = vector.load %arg1[%c0_5, %c0_6] : memref<32x4xf32, #tpu.memory_space<vmem>>, vector<32x4xf32>
    %c0_7 = arith.constant 0 : index
    %c0_8 = arith.constant 0 : index
    %11 = vector.load %arg32[%c0_7, %c0_8] : memref<4x32xbf16, #tpu.memory_space<vmem>>, vector<4x32xbf16>
    %12 = arith.truncf %10 : vector<32x4xf32> to vector<32x4xbf16>
    %cst_9 = arith.constant dense<0.000000e+00> : vector<32x32xf32>
    %13 = tpu.matmul %12, %11, %cst_9 {dimension_numbers = #tpu.dot_dimension_numbers<[1], [0], [0], [1], [0, 0, 1, 1], [], []>} : vector<32x4xbf16>, vector<4x32xbf16>, vector<32x32xf32> -> vector<32x32xf32>
    %14 = arith.addf %9, %13 : vector<32x32xf32>
    %c0_10 = arith.constant 0 : index
    %c0_11 = arith.constant 0 : index
    %15 = vector.load %arg2[%c0_10, %c0_11] : memref<32x32xf32, #tpu.memory_space<vmem>>, vector<32x32xf32>
    %16 = arith.addf %14, %15 : vector<32x32xf32>
    %c0_12 = arith.constant 0 : index
    %c0_13 = arith.constant 0 : index
    %17 = vector.load %arg37[%c0_12, %c0_13] : memref<32x96xbf16, #tpu.memory_space<vmem>>, vector<32x96xbf16>
    %18 = arith.truncf %16 : vector<32x32xf32> to vector<32x32xbf16>
    %cst_14 = arith.constant dense<0.000000e+00> : vector<32x96xf32>
    %19 = tpu.matmul %18, %17, %cst_14 {dimension_numbers = #tpu.dot_dimension_numbers<[1], [0], [0], [1], [0, 0, 1, 1], [], []>} : vector<32x32xbf16>, vector<32x96xbf16>, vector<32x96xf32> -> vector<32x96xf32>
    %c0_15 = arith.constant 0 : index
    %c0_16 = arith.constant 0 : index
    %20 = vector.load %arg35[%c0_15, %c0_16] : memref<1x96xf32, #tpu.memory_space<vmem>>, vector<1x96xf32>
    %21 = vector.broadcast %20 : vector<1x96xf32> to vector<32x96xf32>
    %22 = arith.addf %19, %21 : vector<32x96xf32>
    %23 = vector.extract_strided_slice %22 {offsets = [0, 0], sizes = [32, 8], strides = [1, 1]} : vector<32x96xf32> to vector<32x8xf32>
    %24 = vector.extract_strided_slice %22 {offsets = [0, 8], sizes = [32, 8], strides = [1, 1]} : vector<32x96xf32> to vector<32x8xf32>
    %25 = vector.extract_strided_slice %22 {offsets = [0, 16], sizes = [32, 8], strides = [1, 1]} : vector<32x96xf32> to vector<32x8xf32>
    %26 = vector.extract_strided_slice %22 {offsets = [0, 24], sizes = [32, 8], strides = [1, 1]} : vector<32x96xf32> to vector<32x8xf32>
    %27 = vector.extract_strided_slice %22 {offsets = [0, 32], sizes = [32, 8], strides = [1, 1]} : vector<32x96xf32> to vector<32x8xf32>
    %28 = vector.extract_strided_slice %22 {offsets = [0, 40], sizes = [32, 8], strides = [1, 1]} : vector<32x96xf32> to vector<32x8xf32>
    %29 = vector.extract_strided_slice %22 {offsets = [0, 48], sizes = [32, 8], strides = [1, 1]} : vector<32x96xf32> to vector<32x8xf32>
    %30 = vector.extract_strided_slice %22 {offsets = [0, 56], sizes = [32, 8], strides = [1, 1]} : vector<32x96xf32> to vector<32x8xf32>
    %31 = vector.extract_strided_slice %22 {offsets = [0, 64], sizes = [32, 8], strides = [1, 1]} : vector<32x96xf32> to vector<32x8xf32>
    %32 = vector.extract_strided_slice %22 {offsets = [0, 72], sizes = [32, 8], strides = [1, 1]} : vector<32x96xf32> to vector<32x8xf32>
    %33 = vector.extract_strided_slice %22 {offsets = [0, 80], sizes = [32, 8], strides = [1, 1]} : vector<32x96xf32> to vector<32x8xf32>
    %34 = vector.extract_strided_slice %22 {offsets = [0, 88], sizes = [32, 8], strides = [1, 1]} : vector<32x96xf32> to vector<32x8xf32>
    %35 = vector.shape_cast %23 : vector<32x8xf32> to vector<2x16x8xf32>
    %36 = vector.shape_cast %27 : vector<32x8xf32> to vector<2x16x8xf32>
    %37 = vector.shape_cast %31 : vector<32x8xf32> to vector<2x16x8xf32>
    %38 = arith.truncf %35 : vector<2x16x8xf32> to vector<2x16x8xbf16>
    %39 = arith.truncf %36 : vector<2x16x8xf32> to vector<2x16x8xbf16>
    "tpu.trace_start"() <{level = 10 : i32, message = "ble,bse->bls"}> : () -> ()
    %cst_17 = arith.constant dense<0.000000e+00> : vector<2x16x16xf32>
    %40 = tpu.matmul %38, %39, %cst_17 {dimension_numbers = #tpu.dot_dimension_numbers<[2], [2], [1], [1], [0, 0, 0, 1, 1, 1], [0], [0]>} : vector<2x16x8xbf16>, vector<2x16x8xbf16>, vector<2x16x16xf32> -> vector<2x16x16xf32>
    "tpu.trace_stop"() : () -> ()
    %cst_18 = arith.constant 0.353553385 : f32
    %41 = vector.broadcast %cst_18 : f32 to vector<2x16x16xf32>
    %42 = arith.mulf %40, %41 : vector<2x16x16xf32>
    %cst_19 = arith.constant dense<0xFF800000> : vector<2x16xf32>
    %43 = vector.multi_reduction <maximumf>, %42, %cst_19 [2] : vector<2x16x16xf32> to vector<2x16xf32>
    %44 = vector.shape_cast %43 : vector<2x16xf32> to vector<2x16x1xf32>
    %45 = vector.broadcast %44 : vector<2x16x1xf32> to vector<2x16x16xf32>
    %46 = arith.subf %42, %45 : vector<2x16x16xf32>
    %47 = math.exp %46 : vector<2x16x16xf32>
    %cst_20 = arith.constant dense<0.000000e+00> : vector<2x16xf32>
    %48 = vector.multi_reduction <add>, %47, %cst_20 [2] : vector<2x16x16xf32> to vector<2x16xf32>
    %49 = vector.shape_cast %48 : vector<2x16xf32> to vector<2x16x1xf32>
    %50 = tpu.reciprocal %49 {approx = true} : vector<2x16x1xf32> -> vector<2x16x1xf32>
    %51 = vector.broadcast %50 : vector<2x16x1xf32> to vector<2x16x16xf32>
    %52 = arith.mulf %47, %51 : vector<2x16x16xf32>
    %53 = arith.truncf %52 : vector<2x16x16xf32> to vector<2x16x16xbf16>
    %54 = arith.truncf %37 : vector<2x16x8xf32> to vector<2x16x8xbf16>
    "tpu.trace_start"() <{level = 10 : i32, message = "bls,bse->ble"}> : () -> ()
    %cst_21 = arith.constant dense<0.000000e+00> : vector<2x16x8xf32>
    %55 = tpu.matmul %53, %54, %cst_21 {dimension_numbers = #tpu.dot_dimension_numbers<[2], [1], [1], [2], [0, 0, 0, 1, 1, 2], [0], [0]>} : vector<2x16x16xbf16>, vector<2x16x8xbf16>, vector<2x16x8xf32> -> vector<2x16x8xf32>
    "tpu.trace_stop"() : () -> ()
    %56 = vector.shape_cast %55 : vector<2x16x8xf32> to vector<32x8xf32>
    %c0_22 = arith.constant 0 : index
    %c0_23 = arith.constant 0 : index
    %c0_24 = arith.constant 0 : index
    %57 = vector.load %arg36[%c0_22, %c0_23, %c0_24] : memref<4x8x32xbf16, #tpu.memory_space<vmem>>, vector<1x8x32xbf16>
    %58 = vector.shape_cast %57 : vector<1x8x32xbf16> to vector<8x32xbf16>
    %59 = arith.truncf %56 : vector<32x8xf32> to vector<32x8xbf16>
    %cst_25 = arith.constant dense<0.000000e+00> : vector<32x32xf32>
    %60 = tpu.matmul %59, %58, %cst_25 {dimension_numbers = #tpu.dot_dimension_numbers<[1], [0], [0], [1], [0, 0, 1, 1], [], []>} : vector<32x8xbf16>, vector<8x32xbf16>, vector<32x32xf32> -> vector<32x32xf32>
    %61 = vector.shape_cast %24 : vector<32x8xf32> to vector<2x16x8xf32>
    %62 = vector.shape_cast %28 : vector<32x8xf32> to vector<2x16x8xf32>
    %63 = vector.shape_cast %32 : vector<32x8xf32> to vector<2x16x8xf32>
    %64 = arith.truncf %61 : vector<2x16x8xf32> to vector<2x16x8xbf16>
    %65 = arith.truncf %62 : vector<2x16x8xf32> to vector<2x16x8xbf16>
    "tpu.trace_start"() <{level = 10 : i32, message = "ble,bse->bls"}> : () -> ()
    %cst_26 = arith.constant dense<0.000000e+00> : vector<2x16x16xf32>
    %66 = tpu.matmul %64, %65, %cst_26 {dimension_numbers = #tpu.dot_dimension_numbers<[2], [2], [1], [1], [0, 0, 0, 1, 1, 1], [0], [0]>} : vector<2x16x8xbf16>, vector<2x16x8xbf16>, vector<2x16x16xf32> -> vector<2x16x16xf32>
    "tpu.trace_stop"() : () -> ()
    %cst_27 = arith.constant 0.353553385 : f32
    %67 = vector.broadcast %cst_27 : f32 to vector<2x16x16xf32>
    %68 = arith.mulf %66, %67 : vector<2x16x16xf32>
    %cst_28 = arith.constant dense<0xFF800000> : vector<2x16xf32>
    %69 = vector.multi_reduction <maximumf>, %68, %cst_28 [2] : vector<2x16x16xf32> to vector<2x16xf32>
    %70 = vector.shape_cast %69 : vector<2x16xf32> to vector<2x16x1xf32>
    %71 = vector.broadcast %70 : vector<2x16x1xf32> to vector<2x16x16xf32>
    %72 = arith.subf %68, %71 : vector<2x16x16xf32>
    %73 = math.exp %72 : vector<2x16x16xf32>
    %cst_29 = arith.constant dense<0.000000e+00> : vector<2x16xf32>
    %74 = vector.multi_reduction <add>, %73, %cst_29 [2] : vector<2x16x16xf32> to vector<2x16xf32>
    %75 = vector.shape_cast %74 : vector<2x16xf32> to vector<2x16x1xf32>
    %76 = tpu.reciprocal %75 {approx = true} : vector<2x16x1xf32> -> vector<2x16x1xf32>
    %77 = vector.broadcast %76 : vector<2x16x1xf32> to vector<2x16x16xf32>
    %78 = arith.mulf %73, %77 : vector<2x16x16xf32>
    %79 = arith.truncf %78 : vector<2x16x16xf32> to vector<2x16x16xbf16>
    %80 = arith.truncf %63 : vector<2x16x8xf32> to vector<2x16x8xbf16>
    "tpu.trace_start"() <{level = 10 : i32, message = "bls,bse->ble"}> : () -> ()
    %cst_30 = arith.constant dense<0.000000e+00> : vector<2x16x8xf32>
    %81 = tpu.matmul %79, %80, %cst_30 {dimension_numbers = #tpu.dot_dimension_numbers<[2], [1], [1], [2], [0, 0, 0, 1, 1, 2], [0], [0]>} : vector<2x16x16xbf16>, vector<2x16x8xbf16>, vector<2x16x8xf32> -> vector<2x16x8xf32>
    "tpu.trace_stop"() : () -> ()
    %82 = vector.shape_cast %81 : vector<2x16x8xf32> to vector<32x8xf32>
    %c1 = arith.constant 1 : index
    %c0_31 = arith.constant 0 : index
    %c0_32 = arith.constant 0 : index
    %83 = vector.load %arg36[%c1, %c0_31, %c0_32] : memref<4x8x32xbf16, #tpu.memory_space<vmem>>, vector<1x8x32xbf16>
    %84 = vector.shape_cast %83 : vector<1x8x32xbf16> to vector<8x32xbf16>
    %85 = arith.truncf %82 : vector<32x8xf32> to vector<32x8xbf16>
    %cst_33 = arith.constant dense<0.000000e+00> : vector<32x32xf32>
    %86 = tpu.matmul %85, %84, %cst_33 {dimension_numbers = #tpu.dot_dimension_numbers<[1], [0], [0], [1], [0, 0, 1, 1], [], []>} : vector<32x8xbf16>, vector<8x32xbf16>, vector<32x32xf32> -> vector<32x32xf32>
    %87 = arith.addf %60, %86 : vector<32x32xf32>
    %88 = vector.shape_cast %25 : vector<32x8xf32> to vector<2x16x8xf32>
    %89 = vector.shape_cast %29 : vector<32x8xf32> to vector<2x16x8xf32>
    %90 = vector.shape_cast %33 : vector<32x8xf32> to vector<2x16x8xf32>
    %91 = arith.truncf %88 : vector<2x16x8xf32> to vector<2x16x8xbf16>
    %92 = arith.truncf %89 : vector<2x16x8xf32> to vector<2x16x8xbf16>
    "tpu.trace_start"() <{level = 10 : i32, message = "ble,bse->bls"}> : () -> ()
    %cst_34 = arith.constant dense<0.000000e+00> : vector<2x16x16xf32>
    %93 = tpu.matmul %91, %92, %cst_34 {dimension_numbers = #tpu.dot_dimension_numbers<[2], [2], [1], [1], [0, 0, 0, 1, 1, 1], [0], [0]>} : vector<2x16x8xbf16>, vector<2x16x8xbf16>, vector<2x16x16xf32> -> vector<2x16x16xf32>
    "tpu.trace_stop"() : () -> ()
    %cst_35 = arith.constant 0.353553385 : f32
    %94 = vector.broadcast %cst_35 : f32 to vector<2x16x16xf32>
    %95 = arith.mulf %93, %94 : vector<2x16x16xf32>
    %cst_36 = arith.constant dense<0xFF800000> : vector<2x16xf32>
    %96 = vector.multi_reduction <maximumf>, %95, %cst_36 [2] : vector<2x16x16xf32> to vector<2x16xf32>
    %97 = vector.shape_cast %96 : vector<2x16xf32> to vector<2x16x1xf32>
    %98 = vector.broadcast %97 : vector<2x16x1xf32> to vector<2x16x16xf32>
    %99 = arith.subf %95, %98 : vector<2x16x16xf32>
    %100 = math.exp %99 : vector<2x16x16xf32>
    %cst_37 = arith.constant dense<0.000000e+00> : vector<2x16xf32>
    %101 = vector.multi_reduction <add>, %100, %cst_37 [2] : vector<2x16x16xf32> to vector<2x16xf32>
    %102 = vector.shape_cast %101 : vector<2x16xf32> to vector<2x16x1xf32>
    %103 = tpu.reciprocal %102 {approx = true} : vector<2x16x1xf32> -> vector<2x16x1xf32>
    %104 = vector.broadcast %103 : vector<2x16x1xf32> to vector<2x16x16xf32>
    %105 = arith.mulf %100, %104 : vector<2x16x16xf32>
    %106 = arith.truncf %105 : vector<2x16x16xf32> to vector<2x16x16xbf16>
    %107 = arith.truncf %90 : vector<2x16x8xf32> to vector<2x16x8xbf16>
    "tpu.trace_start"() <{level = 10 : i32, message = "bls,bse->ble"}> : () -> ()
    %cst_38 = arith.constant dense<0.000000e+00> : vector<2x16x8xf32>
    %108 = tpu.matmul %106, %107, %cst_38 {dimension_numbers = #tpu.dot_dimension_numbers<[2], [1], [1], [2], [0, 0, 0, 1, 1, 2], [0], [0]>} : vector<2x16x16xbf16>, vector<2x16x8xbf16>, vector<2x16x8xf32> -> vector<2x16x8xf32>
    "tpu.trace_stop"() : () -> ()
    %109 = vector.shape_cast %108 : vector<2x16x8xf32> to vector<32x8xf32>
    %c2 = arith.constant 2 : index
    %c0_39 = arith.constant 0 : index
    %c0_40 = arith.constant 0 : index
    %110 = vector.load %arg36[%c2, %c0_39, %c0_40] : memref<4x8x32xbf16, #tpu.memory_space<vmem>>, vector<1x8x32xbf16>
    %111 = vector.shape_cast %110 : vector<1x8x32xbf16> to vector<8x32xbf16>
    %112 = arith.truncf %109 : vector<32x8xf32> to vector<32x8xbf16>
    %cst_41 = arith.constant dense<0.000000e+00> : vector<32x32xf32>
    %113 = tpu.matmul %112, %111, %cst_41 {dimension_numbers = #tpu.dot_dimension_numbers<[1], [0], [0], [1], [0, 0, 1, 1], [], []>} : vector<32x8xbf16>, vector<8x32xbf16>, vector<32x32xf32> -> vector<32x32xf32>
    %114 = arith.addf %87, %113 : vector<32x32xf32>
    %115 = vector.shape_cast %26 : vector<32x8xf32> to vector<2x16x8xf32>
    %116 = vector.shape_cast %30 : vector<32x8xf32> to vector<2x16x8xf32>
    %117 = vector.shape_cast %34 : vector<32x8xf32> to vector<2x16x8xf32>
    %118 = arith.truncf %115 : vector<2x16x8xf32> to vector<2x16x8xbf16>
    %119 = arith.truncf %116 : vector<2x16x8xf32> to vector<2x16x8xbf16>
    "tpu.trace_start"() <{level = 10 : i32, message = "ble,bse->bls"}> : () -> ()
    %cst_42 = arith.constant dense<0.000000e+00> : vector<2x16x16xf32>
    %120 = tpu.matmul %118, %119, %cst_42 {dimension_numbers = #tpu.dot_dimension_numbers<[2], [2], [1], [1], [0, 0, 0, 1, 1, 1], [0], [0]>} : vector<2x16x8xbf16>, vector<2x16x8xbf16>, vector<2x16x16xf32> -> vector<2x16x16xf32>
    "tpu.trace_stop"() : () -> ()
    %cst_43 = arith.constant 0.353553385 : f32
    %121 = vector.broadcast %cst_43 : f32 to vector<2x16x16xf32>
    %122 = arith.mulf %120, %121 : vector<2x16x16xf32>
    %cst_44 = arith.constant dense<0xFF800000> : vector<2x16xf32>
    %123 = vector.multi_reduction <maximumf>, %122, %cst_44 [2] : vector<2x16x16xf32> to vector<2x16xf32>
    %124 = vector.shape_cast %123 : vector<2x16xf32> to vector<2x16x1xf32>
    %125 = vector.broadcast %124 : vector<2x16x1xf32> to vector<2x16x16xf32>
    %126 = arith.subf %122, %125 : vector<2x16x16xf32>
    %127 = math.exp %126 : vector<2x16x16xf32>
    %cst_45 = arith.constant dense<0.000000e+00> : vector<2x16xf32>
    %128 = vector.multi_reduction <add>, %127, %cst_45 [2] : vector<2x16x16xf32> to vector<2x16xf32>
    %129 = vector.shape_cast %128 : vector<2x16xf32> to vector<2x16x1xf32>
    %130 = tpu.reciprocal %129 {approx = true} : vector<2x16x1xf32> -> vector<2x16x1xf32>
    %131 = vector.broadcast %130 : vector<2x16x1xf32> to vector<2x16x16xf32>
    %132 = arith.mulf %127, %131 : vector<2x16x16xf32>
    %133 = arith.truncf %132 : vector<2x16x16xf32> to vector<2x16x16xbf16>
    %134 = arith.truncf %117 : vector<2x16x8xf32> to vector<2x16x8xbf16>
    "tpu.trace_start"() <{level = 10 : i32, message = "bls,bse->ble"}> : () -> ()
    %cst_46 = arith.constant dense<0.000000e+00> : vector<2x16x8xf32>
    %135 = tpu.matmul %133, %134, %cst_46 {dimension_numbers = #tpu.dot_dimension_numbers<[2], [1], [1], [2], [0, 0, 0, 1, 1, 2], [0], [0]>} : vector<2x16x16xbf16>, vector<2x16x8xbf16>, vector<2x16x8xf32> -> vector<2x16x8xf32>
    "tpu.trace_stop"() : () -> ()
    %136 = vector.shape_cast %135 : vector<2x16x8xf32> to vector<32x8xf32>
    %c3 = arith.constant 3 : index
    %c0_47 = arith.constant 0 : index
    %c0_48 = arith.constant 0 : index
    %137 = vector.load %arg36[%c3, %c0_47, %c0_48] : memref<4x8x32xbf16, #tpu.memory_space<vmem>>, vector<1x8x32xbf16>
    %138 = vector.shape_cast %137 : vector<1x8x32xbf16> to vector<8x32xbf16>
    %139 = arith.truncf %136 : vector<32x8xf32> to vector<32x8xbf16>
    %cst_49 = arith.constant dense<0.000000e+00> : vector<32x32xf32>
    %140 = tpu.matmul %139, %138, %cst_49 {dimension_numbers = #tpu.dot_dimension_numbers<[1], [0], [0], [1], [0, 0, 1, 1], [], []>} : vector<32x8xbf16>, vector<8x32xbf16>, vector<32x32xf32> -> vector<32x32xf32>
    %141 = arith.addf %114, %140 : vector<32x32xf32>
    %c0_50 = arith.constant 0 : index
    %c0_51 = arith.constant 0 : index
    %142 = vector.load %arg34[%c0_50, %c0_51] : memref<1x32xf32, #tpu.memory_space<vmem>>, vector<1x32xf32>
    %143 = vector.broadcast %142 : vector<1x32xf32> to vector<32x32xf32>
    %144 = arith.addf %141, %143 : vector<32x32xf32>
    %145 = arith.addf %16, %144 : vector<32x32xf32>
    %cst_52 = arith.constant dense<0.000000e+00> : vector<32xf32>
    %146 = vector.multi_reduction <add>, %145, %cst_52 [1] : vector<32x32xf32> to vector<32xf32>
    %147 = vector.shape_cast %146 : vector<32xf32> to vector<32x1xf32>
    %cst_53 = arith.constant 3.200000e+01 : f32
    %148 = vector.broadcast %cst_53 : f32 to vector<32x1xf32>
    %149 = arith.divf %147, %148 : vector<32x1xf32>
    %150 = vector.broadcast %149 : vector<32x1xf32> to vector<32x32xf32>
    %151 = arith.subf %145, %150 : vector<32x32xf32>
    %152 = arith.mulf %151, %151 : vector<32x32xf32>
    %cst_54 = arith.constant dense<0.000000e+00> : vector<32xf32>
    %153 = vector.multi_reduction <add>, %152, %cst_54 [1] : vector<32x32xf32> to vector<32xf32>
    %154 = vector.shape_cast %153 : vector<32xf32> to vector<32x1xf32>
    %cst_55 = arith.constant 3.200000e+01 : f32
    %155 = vector.broadcast %cst_55 : f32 to vector<32x1xf32>
    %156 = arith.divf %154, %155 : vector<32x1xf32>
    %157 = vector.broadcast %149 : vector<32x1xf32> to vector<32x32xf32>
    %158 = arith.subf %145, %157 : vector<32x32xf32>
    %cst_56 = arith.constant 9.99999974E-6 : f32
    %159 = vector.broadcast %cst_56 : f32 to vector<32x1xf32>
    %160 = arith.addf %156, %159 : vector<32x1xf32>
    %161 = math.rsqrt %160 : vector<32x1xf32>
    %162 = vector.broadcast %161 : vector<32x1xf32> to vector<32x32xf32>
    %163 = arith.mulf %158, %162 : vector<32x32xf32>
    %c0_57 = arith.constant 0 : index
    %c0_58 = arith.constant 0 : index
    %164 = vector.load %arg41[%c0_57, %c0_58] : memref<1x32xf32, #tpu.memory_space<vmem>>, vector<1x32xf32>
    %165 = vector.broadcast %164 : vector<1x32xf32> to vector<32x32xf32>
    %166 = arith.mulf %163, %165 : vector<32x32xf32>
    %c0_59 = arith.constant 0 : index
    %c0_60 = arith.constant 0 : index
    %167 = vector.load %arg40[%c0_59, %c0_60] : memref<1x32xf32, #tpu.memory_space<vmem>>, vector<1x32xf32>
    %168 = vector.broadcast %167 : vector<1x32xf32> to vector<32x32xf32>
    %169 = arith.addf %166, %168 : vector<32x32xf32>
    %c0_61 = arith.constant 0 : index
    %c0_62 = arith.constant 0 : index
    %170 = vector.load %arg44[%c0_61, %c0_62] : memref<32x64xbf16, #tpu.memory_space<vmem>>, vector<32x64xbf16>
    %171 = arith.truncf %169 : vector<32x32xf32> to vector<32x32xbf16>
    %cst_63 = arith.constant dense<0.000000e+00> : vector<32x64xf32>
    %172 = tpu.matmul %171, %170, %cst_63 {dimension_numbers = #tpu.dot_dimension_numbers<[1], [0], [0], [1], [0, 0, 1, 1], [], []>} : vector<32x32xbf16>, vector<32x64xbf16>, vector<32x64xf32> -> vector<32x64xf32>
    %c0_64 = arith.constant 0 : index
    %c0_65 = arith.constant 0 : index
    %173 = vector.load %arg38[%c0_64, %c0_65] : memref<1x64xf32, #tpu.memory_space<vmem>>, vector<1x64xf32>
    %174 = vector.broadcast %173 : vector<1x64xf32> to vector<32x64xf32>
    %175 = arith.addf %172, %174 : vector<32x64xf32>
    %cst_66 = arith.constant 0.000000e+00 : f32
    %176 = vector.broadcast %cst_66 : f32 to vector<32x64xf32>
    %177 = arith.maximumf %175, %176 : vector<32x64xf32>
    %c0_67 = arith.constant 0 : index
    %c0_68 = arith.constant 0 : index
    %178 = vector.load %arg45[%c0_67, %c0_68] : memref<64x32xbf16, #tpu.memory_space<vmem>>, vector<64x32xbf16>
    %179 = arith.truncf %177 : vector<32x64xf32> to vector<32x64xbf16>
    %cst_69 = arith.constant dense<0.000000e+00> : vector<32x32xf32>
    %180 = tpu.matmul %179, %178, %cst_69 {dimension_numbers = #tpu.dot_dimension_numbers<[1], [0], [0], [1], [0, 0, 1, 1], [], []>} : vector<32x64xbf16>, vector<64x32xbf16>, vector<32x32xf32> -> vector<32x32xf32>
    %c0_70 = arith.constant 0 : index
    %c0_71 = arith.constant 0 : index
    %181 = vector.load %arg39[%c0_70, %c0_71] : memref<1x32xf32, #tpu.memory_space<vmem>>, vector<1x32xf32>
    %182 = vector.broadcast %181 : vector<1x32xf32> to vector<32x32xf32>
    %183 = arith.addf %180, %182 : vector<32x32xf32>
    %184 = arith.addf %169, %183 : vector<32x32xf32>
    %cst_72 = arith.constant dense<0.000000e+00> : vector<32xf32>
    %185 = vector.multi_reduction <add>, %184, %cst_72 [1] : vector<32x32xf32> to vector<32xf32>
    %186 = vector.shape_cast %185 : vector<32xf32> to vector<32x1xf32>
    %cst_73 = arith.constant 3.200000e+01 : f32
    %187 = vector.broadcast %cst_73 : f32 to vector<32x1xf32>
    %188 = arith.divf %186, %187 : vector<32x1xf32>
    %189 = vector.broadcast %188 : vector<32x1xf32> to vector<32x32xf32>
    %190 = arith.subf %184, %189 : vector<32x32xf32>
    %191 = arith.mulf %190, %190 : vector<32x32xf32>
    %cst_74 = arith.constant dense<0.000000e+00> : vector<32xf32>
    %192 = vector.multi_reduction <add>, %191, %cst_74 [1] : vector<32x32xf32> to vector<32xf32>
    %193 = vector.shape_cast %192 : vector<32xf32> to vector<32x1xf32>
    %cst_75 = arith.constant 3.200000e+01 : f32
    %194 = vector.broadcast %cst_75 : f32 to vector<32x1xf32>
    %195 = arith.divf %193, %194 : vector<32x1xf32>
    %196 = vector.broadcast %188 : vector<32x1xf32> to vector<32x32xf32>
    %197 = arith.subf %184, %196 : vector<32x32xf32>
    %cst_76 = arith.constant 9.99999974E-6 : f32
    %198 = vector.broadcast %cst_76 : f32 to vector<32x1xf32>
    %199 = arith.addf %195, %198 : vector<32x1xf32>
    %200 = math.rsqrt %199 : vector<32x1xf32>
    %201 = vector.broadcast %200 : vector<32x1xf32> to vector<32x32xf32>
    %202 = arith.mulf %197, %201 : vector<32x32xf32>
    %c0_77 = arith.constant 0 : index
    %c0_78 = arith.constant 0 : index
    %203 = vector.load %arg43[%c0_77, %c0_78] : memref<1x32xf32, #tpu.memory_space<vmem>>, vector<1x32xf32>
    %204 = vector.broadcast %203 : vector<1x32xf32> to vector<32x32xf32>
    %205 = arith.mulf %202, %204 : vector<32x32xf32>
    %c0_79 = arith.constant 0 : index
    %c0_80 = arith.constant 0 : index
    %206 = vector.load %arg42[%c0_79, %c0_80] : memref<1x32xf32, #tpu.memory_space<vmem>>, vector<1x32xf32>
    %207 = vector.broadcast %206 : vector<1x32xf32> to vector<32x32xf32>
    %208 = arith.addf %205, %207 : vector<32x32xf32>
    %c0_81 = arith.constant 0 : index
    %c0_82 = arith.constant 0 : index
    %209 = vector.load %arg49[%c0_81, %c0_82] : memref<32x96xbf16, #tpu.memory_space<vmem>>, vector<32x96xbf16>
    %210 = arith.truncf %208 : vector<32x32xf32> to vector<32x32xbf16>
    %cst_83 = arith.constant dense<0.000000e+00> : vector<32x96xf32>
    %211 = tpu.matmul %210, %209, %cst_83 {dimension_numbers = #tpu.dot_dimension_numbers<[1], [0], [0], [1], [0, 0, 1, 1], [], []>} : vector<32x32xbf16>, vector<32x96xbf16>, vector<32x96xf32> -> vector<32x96xf32>
    %c0_84 = arith.constant 0 : index
    %c0_85 = arith.constant 0 : index
    %212 = vector.load %arg47[%c0_84, %c0_85] : memref<1x96xf32, #tpu.memory_space<vmem>>, vector<1x96xf32>
    %213 = vector.broadcast %212 : vector<1x96xf32> to vector<32x96xf32>
    %214 = arith.addf %211, %213 : vector<32x96xf32>
    %215 = vector.extract_strided_slice %214 {offsets = [0, 0], sizes = [32, 8], strides = [1, 1]} : vector<32x96xf32> to vector<32x8xf32>
    %216 = vector.extract_strided_slice %214 {offsets = [0, 8], sizes = [32, 8], strides = [1, 1]} : vector<32x96xf32> to vector<32x8xf32>
    %217 = vector.extract_strided_slice %214 {offsets = [0, 16], sizes = [32, 8], strides = [1, 1]} : vector<32x96xf32> to vector<32x8xf32>
    %218 = vector.extract_strided_slice %214 {offsets = [0, 24], sizes = [32, 8], strides = [1, 1]} : vector<32x96xf32> to vector<32x8xf32>
    %219 = vector.extract_strided_slice %214 {offsets = [0, 32], sizes = [32, 8], strides = [1, 1]} : vector<32x96xf32> to vector<32x8xf32>
    %220 = vector.extract_strided_slice %214 {offsets = [0, 40], sizes = [32, 8], strides = [1, 1]} : vector<32x96xf32> to vector<32x8xf32>
    %221 = vector.extract_strided_slice %214 {offsets = [0, 48], sizes = [32, 8], strides = [1, 1]} : vector<32x96xf32> to vector<32x8xf32>
    %222 = vector.extract_strided_slice %214 {offsets = [0, 56], sizes = [32, 8], strides = [1, 1]} : vector<32x96xf32> to vector<32x8xf32>
    %223 = vector.extract_strided_slice %214 {offsets = [0, 64], sizes = [32, 8], strides = [1, 1]} : vector<32x96xf32> to vector<32x8xf32>
    %224 = vector.extract_strided_slice %214 {offsets = [0, 72], sizes = [32, 8], strides = [1, 1]} : vector<32x96xf32> to vector<32x8xf32>
    %225 = vector.extract_strided_slice %214 {offsets = [0, 80], sizes = [32, 8], strides = [1, 1]} : vector<32x96xf32> to vector<32x8xf32>
    %226 = vector.extract_strided_slice %214 {offsets = [0, 88], sizes = [32, 8], strides = [1, 1]} : vector<32x96xf32> to vector<32x8xf32>
    %227 = vector.shape_cast %215 : vector<32x8xf32> to vector<2x16x8xf32>
    %228 = vector.shape_cast %219 : vector<32x8xf32> to vector<2x16x8xf32>
    %229 = vector.shape_cast %223 : vector<32x8xf32> to vector<2x16x8xf32>
    %230 = arith.truncf %227 : vector<2x16x8xf32> to vector<2x16x8xbf16>
    %231 = arith.truncf %228 : vector<2x16x8xf32> to vector<2x16x8xbf16>
    "tpu.trace_start"() <{level = 10 : i32, message = "ble,bse->bls"}> : () -> ()
    %cst_86 = arith.constant dense<0.000000e+00> : vector<2x16x16xf32>
    %232 = tpu.matmul %230, %231, %cst_86 {dimension_numbers = #tpu.dot_dimension_numbers<[2], [2], [1], [1], [0, 0, 0, 1, 1, 1], [0], [0]>} : vector<2x16x8xbf16>, vector<2x16x8xbf16>, vector<2x16x16xf32> -> vector<2x16x16xf32>
    "tpu.trace_stop"() : () -> ()
    %cst_87 = arith.constant 0.353553385 : f32
    %233 = vector.broadcast %cst_87 : f32 to vector<2x16x16xf32>
    %234 = arith.mulf %232, %233 : vector<2x16x16xf32>
    %cst_88 = arith.constant dense<0xFF800000> : vector<2x16xf32>
    %235 = vector.multi_reduction <maximumf>, %234, %cst_88 [2] : vector<2x16x16xf32> to vector<2x16xf32>
    %236 = vector.shape_cast %235 : vector<2x16xf32> to vector<2x16x1xf32>
    %237 = vector.broadcast %236 : vector<2x16x1xf32> to vector<2x16x16xf32>
    %238 = arith.subf %234, %237 : vector<2x16x16xf32>
    %239 = math.exp %238 : vector<2x16x16xf32>
    %cst_89 = arith.constant dense<0.000000e+00> : vector<2x16xf32>
    %240 = vector.multi_reduction <add>, %239, %cst_89 [2] : vector<2x16x16xf32> to vector<2x16xf32>
    %241 = vector.shape_cast %240 : vector<2x16xf32> to vector<2x16x1xf32>
    %242 = tpu.reciprocal %241 {approx = true} : vector<2x16x1xf32> -> vector<2x16x1xf32>
    %243 = vector.broadcast %242 : vector<2x16x1xf32> to vector<2x16x16xf32>
    %244 = arith.mulf %239, %243 : vector<2x16x16xf32>
    %245 = arith.truncf %244 : vector<2x16x16xf32> to vector<2x16x16xbf16>
    %246 = arith.truncf %229 : vector<2x16x8xf32> to vector<2x16x8xbf16>
    "tpu.trace_start"() <{level = 10 : i32, message = "bls,bse->ble"}> : () -> ()
    %cst_90 = arith.constant dense<0.000000e+00> : vector<2x16x8xf32>
    %247 = tpu.matmul %245, %246, %cst_90 {dimension_numbers = #tpu.dot_dimension_numbers<[2], [1], [1], [2], [0, 0, 0, 1, 1, 2], [0], [0]>} : vector<2x16x16xbf16>, vector<2x16x8xbf16>, vector<2x16x8xf32> -> vector<2x16x8xf32>
    "tpu.trace_stop"() : () -> ()
    %248 = vector.shape_cast %247 : vector<2x16x8xf32> to vector<32x8xf32>
    %c0_91 = arith.constant 0 : index
    %c0_92 = arith.constant 0 : index
    %c0_93 = arith.constant 0 : index
    %249 = vector.load %arg48[%c0_91, %c0_92, %c0_93] : memref<4x8x32xbf16, #tpu.memory_space<vmem>>, vector<1x8x32xbf16>
    %250 = vector.shape_cast %249 : vector<1x8x32xbf16> to vector<8x32xbf16>
    %251 = arith.truncf %248 : vector<32x8xf32> to vector<32x8xbf16>
    %cst_94 = arith.constant dense<0.000000e+00> : vector<32x32xf32>
    %252 = tpu.matmul %251, %250, %cst_94 {dimension_numbers = #tpu.dot_dimension_numbers<[1], [0], [0], [1], [0, 0, 1, 1], [], []>} : vector<32x8xbf16>, vector<8x32xbf16>, vector<32x32xf32> -> vector<32x32xf32>
    %253 = vector.shape_cast %216 : vector<32x8xf32> to vector<2x16x8xf32>
    %254 = vector.shape_cast %220 : vector<32x8xf32> to vector<2x16x8xf32>
    %255 = vector.shape_cast %224 : vector<32x8xf32> to vector<2x16x8xf32>
    %256 = arith.truncf %253 : vector<2x16x8xf32> to vector<2x16x8xbf16>
    %257 = arith.truncf %254 : vector<2x16x8xf32> to vector<2x16x8xbf16>
    "tpu.trace_start"() <{level = 10 : i32, message = "ble,bse->bls"}> : () -> ()
    %cst_95 = arith.constant dense<0.000000e+00> : vector<2x16x16xf32>
    %258 = tpu.matmul %256, %257, %cst_95 {dimension_numbers = #tpu.dot_dimension_numbers<[2], [2], [1], [1], [0, 0, 0, 1, 1, 1], [0], [0]>} : vector<2x16x8xbf16>, vector<2x16x8xbf16>, vector<2x16x16xf32> -> vector<2x16x16xf32>
    "tpu.trace_stop"() : () -> ()
    %cst_96 = arith.constant 0.353553385 : f32
    %259 = vector.broadcast %cst_96 : f32 to vector<2x16x16xf32>
    %260 = arith.mulf %258, %259 : vector<2x16x16xf32>
    %cst_97 = arith.constant dense<0xFF800000> : vector<2x16xf32>
    %261 = vector.multi_reduction <maximumf>, %260, %cst_97 [2] : vector<2x16x16xf32> to vector<2x16xf32>
    %262 = vector.shape_cast %261 : vector<2x16xf32> to vector<2x16x1xf32>
    %263 = vector.broadcast %262 : vector<2x16x1xf32> to vector<2x16x16xf32>
    %264 = arith.subf %260, %263 : vector<2x16x16xf32>
    %265 = math.exp %264 : vector<2x16x16xf32>
    %cst_98 = arith.constant dense<0.000000e+00> : vector<2x16xf32>
    %266 = vector.multi_reduction <add>, %265, %cst_98 [2] : vector<2x16x16xf32> to vector<2x16xf32>
    %267 = vector.shape_cast %266 : vector<2x16xf32> to vector<2x16x1xf32>
    %268 = tpu.reciprocal %267 {approx = true} : vector<2x16x1xf32> -> vector<2x16x1xf32>
    %269 = vector.broadcast %268 : vector<2x16x1xf32> to vector<2x16x16xf32>
    %270 = arith.mulf %265, %269 : vector<2x16x16xf32>
    %271 = arith.truncf %270 : vector<2x16x16xf32> to vector<2x16x16xbf16>
    %272 = arith.truncf %255 : vector<2x16x8xf32> to vector<2x16x8xbf16>
    "tpu.trace_start"() <{level = 10 : i32, message = "bls,bse->ble"}> : () -> ()
    %cst_99 = arith.constant dense<0.000000e+00> : vector<2x16x8xf32>
    %273 = tpu.matmul %271, %272, %cst_99 {dimension_numbers = #tpu.dot_dimension_numbers<[2], [1], [1], [2], [0, 0, 0, 1, 1, 2], [0], [0]>} : vector<2x16x16xbf16>, vector<2x16x8xbf16>, vector<2x16x8xf32> -> vector<2x16x8xf32>
    "tpu.trace_stop"() : () -> ()
    %274 = vector.shape_cast %273 : vector<2x16x8xf32> to vector<32x8xf32>
    %c1_100 = arith.constant 1 : index
    %c0_101 = arith.constant 0 : index
    %c0_102 = arith.constant 0 : index
    %275 = vector.load %arg48[%c1_100, %c0_101, %c0_102] : memref<4x8x32xbf16, #tpu.memory_space<vmem>>, vector<1x8x32xbf16>
    %276 = vector.shape_cast %275 : vector<1x8x32xbf16> to vector<8x32xbf16>
    %277 = arith.truncf %274 : vector<32x8xf32> to vector<32x8xbf16>
    %cst_103 = arith.constant dense<0.000000e+00> : vector<32x32xf32>
    %278 = tpu.matmul %277, %276, %cst_103 {dimension_numbers = #tpu.dot_dimension_numbers<[1], [0], [0], [1], [0, 0, 1, 1], [], []>} : vector<32x8xbf16>, vector<8x32xbf16>, vector<32x32xf32> -> vector<32x32xf32>
    %279 = arith.addf %252, %278 : vector<32x32xf32>
    %280 = vector.shape_cast %217 : vector<32x8xf32> to vector<2x16x8xf32>
    %281 = vector.shape_cast %221 : vector<32x8xf32> to vector<2x16x8xf32>
    %282 = vector.shape_cast %225 : vector<32x8xf32> to vector<2x16x8xf32>
    %283 = arith.truncf %280 : vector<2x16x8xf32> to vector<2x16x8xbf16>
    %284 = arith.truncf %281 : vector<2x16x8xf32> to vector<2x16x8xbf16>
    "tpu.trace_start"() <{level = 10 : i32, message = "ble,bse->bls"}> : () -> ()
    %cst_104 = arith.constant dense<0.000000e+00> : vector<2x16x16xf32>
    %285 = tpu.matmul %283, %284, %cst_104 {dimension_numbers = #tpu.dot_dimension_numbers<[2], [2], [1], [1], [0, 0, 0, 1, 1, 1], [0], [0]>} : vector<2x16x8xbf16>, vector<2x16x8xbf16>, vector<2x16x16xf32> -> vector<2x16x16xf32>
    "tpu.trace_stop"() : () -> ()
    %cst_105 = arith.constant 0.353553385 : f32
    %286 = vector.broadcast %cst_105 : f32 to vector<2x16x16xf32>
    %287 = arith.mulf %285, %286 : vector<2x16x16xf32>
    %cst_106 = arith.constant dense<0xFF800000> : vector<2x16xf32>
    %288 = vector.multi_reduction <maximumf>, %287, %cst_106 [2] : vector<2x16x16xf32> to vector<2x16xf32>
    %289 = vector.shape_cast %288 : vector<2x16xf32> to vector<2x16x1xf32>
    %290 = vector.broadcast %289 : vector<2x16x1xf32> to vector<2x16x16xf32>
    %291 = arith.subf %287, %290 : vector<2x16x16xf32>
    %292 = math.exp %291 : vector<2x16x16xf32>
    %cst_107 = arith.constant dense<0.000000e+00> : vector<2x16xf32>
    %293 = vector.multi_reduction <add>, %292, %cst_107 [2] : vector<2x16x16xf32> to vector<2x16xf32>
    %294 = vector.shape_cast %293 : vector<2x16xf32> to vector<2x16x1xf32>
    %295 = tpu.reciprocal %294 {approx = true} : vector<2x16x1xf32> -> vector<2x16x1xf32>
    %296 = vector.broadcast %295 : vector<2x16x1xf32> to vector<2x16x16xf32>
    %297 = arith.mulf %292, %296 : vector<2x16x16xf32>
    %298 = arith.truncf %297 : vector<2x16x16xf32> to vector<2x16x16xbf16>
    %299 = arith.truncf %282 : vector<2x16x8xf32> to vector<2x16x8xbf16>
    "tpu.trace_start"() <{level = 10 : i32, message = "bls,bse->ble"}> : () -> ()
    %cst_108 = arith.constant dense<0.000000e+00> : vector<2x16x8xf32>
    %300 = tpu.matmul %298, %299, %cst_108 {dimension_numbers = #tpu.dot_dimension_numbers<[2], [1], [1], [2], [0, 0, 0, 1, 1, 2], [0], [0]>} : vector<2x16x16xbf16>, vector<2x16x8xbf16>, vector<2x16x8xf32> -> vector<2x16x8xf32>
    "tpu.trace_stop"() : () -> ()
    %301 = vector.shape_cast %300 : vector<2x16x8xf32> to vector<32x8xf32>
    %c2_109 = arith.constant 2 : index
    %c0_110 = arith.constant 0 : index
    %c0_111 = arith.constant 0 : index
    %302 = vector.load %arg48[%c2_109, %c0_110, %c0_111] : memref<4x8x32xbf16, #tpu.memory_space<vmem>>, vector<1x8x32xbf16>
    %303 = vector.shape_cast %302 : vector<1x8x32xbf16> to vector<8x32xbf16>
    %304 = arith.truncf %301 : vector<32x8xf32> to vector<32x8xbf16>
    %cst_112 = arith.constant dense<0.000000e+00> : vector<32x32xf32>
    %305 = tpu.matmul %304, %303, %cst_112 {dimension_numbers = #tpu.dot_dimension_numbers<[1], [0], [0], [1], [0, 0, 1, 1], [], []>} : vector<32x8xbf16>, vector<8x32xbf16>, vector<32x32xf32> -> vector<32x32xf32>
    %306 = arith.addf %279, %305 : vector<32x32xf32>
    %307 = vector.shape_cast %218 : vector<32x8xf32> to vector<2x16x8xf32>
    %308 = vector.shape_cast %222 : vector<32x8xf32> to vector<2x16x8xf32>
    %309 = vector.shape_cast %226 : vector<32x8xf32> to vector<2x16x8xf32>
    %310 = arith.truncf %307 : vector<2x16x8xf32> to vector<2x16x8xbf16>
    %311 = arith.truncf %308 : vector<2x16x8xf32> to vector<2x16x8xbf16>
    "tpu.trace_start"() <{level = 10 : i32, message = "ble,bse->bls"}> : () -> ()
    %cst_113 = arith.constant dense<0.000000e+00> : vector<2x16x16xf32>
    %312 = tpu.matmul %310, %311, %cst_113 {dimension_numbers = #tpu.dot_dimension_numbers<[2], [2], [1], [1], [0, 0, 0, 1, 1, 1], [0], [0]>} : vector<2x16x8xbf16>, vector<2x16x8xbf16>, vector<2x16x16xf32> -> vector<2x16x16xf32>
    "tpu.trace_stop"() : () -> ()
    %cst_114 = arith.constant 0.353553385 : f32
    %313 = vector.broadcast %cst_114 : f32 to vector<2x16x16xf32>
    %314 = arith.mulf %312, %313 : vector<2x16x16xf32>
    %cst_115 = arith.constant dense<0xFF800000> : vector<2x16xf32>
    %315 = vector.multi_reduction <maximumf>, %314, %cst_115 [2] : vector<2x16x16xf32> to vector<2x16xf32>
    %316 = vector.shape_cast %315 : vector<2x16xf32> to vector<2x16x1xf32>
    %317 = vector.broadcast %316 : vector<2x16x1xf32> to vector<2x16x16xf32>
    %318 = arith.subf %314, %317 : vector<2x16x16xf32>
    %319 = math.exp %318 : vector<2x16x16xf32>
    %cst_116 = arith.constant dense<0.000000e+00> : vector<2x16xf32>
    %320 = vector.multi_reduction <add>, %319, %cst_116 [2] : vector<2x16x16xf32> to vector<2x16xf32>
    %321 = vector.shape_cast %320 : vector<2x16xf32> to vector<2x16x1xf32>
    %322 = tpu.reciprocal %321 {approx = true} : vector<2x16x1xf32> -> vector<2x16x1xf32>
    %323 = vector.broadcast %322 : vector<2x16x1xf32> to vector<2x16x16xf32>
    %324 = arith.mulf %319, %323 : vector<2x16x16xf32>
    %325 = arith.truncf %324 : vector<2x16x16xf32> to vector<2x16x16xbf16>
    %326 = arith.truncf %309 : vector<2x16x8xf32> to vector<2x16x8xbf16>
    "tpu.trace_start"() <{level = 10 : i32, message = "bls,bse->ble"}> : () -> ()
    %cst_117 = arith.constant dense<0.000000e+00> : vector<2x16x8xf32>
    %327 = tpu.matmul %325, %326, %cst_117 {dimension_numbers = #tpu.dot_dimension_numbers<[2], [1], [1], [2], [0, 0, 0, 1, 1, 2], [0], [0]>} : vector<2x16x16xbf16>, vector<2x16x8xbf16>, vector<2x16x8xf32> -> vector<2x16x8xf32>
    "tpu.trace_stop"() : () -> ()
    %328 = vector.shape_cast %327 : vector<2x16x8xf32> to vector<32x8xf32>
    %c3_118 = arith.constant 3 : index
    %c0_119 = arith.constant 0 : index
    %c0_120 = arith.constant 0 : index
    %329 = vector.load %arg48[%c3_118, %c0_119, %c0_120] : memref<4x8x32xbf16, #tpu.memory_space<vmem>>, vector<1x8x32xbf16>
    %330 = vector.shape_cast %329 : vector<1x8x32xbf16> to vector<8x32xbf16>
    %331 = arith.truncf %328 : vector<32x8xf32> to vector<32x8xbf16>
    %cst_121 = arith.constant dense<0.000000e+00> : vector<32x32xf32>
    %332 = tpu.matmul %331, %330, %cst_121 {dimension_numbers = #tpu.dot_dimension_numbers<[1], [0], [0], [1], [0, 0, 1, 1], [], []>} : vector<32x8xbf16>, vector<8x32xbf16>, vector<32x32xf32> -> vector<32x32xf32>
    %333 = arith.addf %306, %332 : vector<32x32xf32>
    %c0_122 = arith.constant 0 : index
    %c0_123 = arith.constant 0 : index
    %334 = vector.load %arg46[%c0_122, %c0_123] : memref<1x32xf32, #tpu.memory_space<vmem>>, vector<1x32xf32>
    %335 = vector.broadcast %334 : vector<1x32xf32> to vector<32x32xf32>
    %336 = arith.addf %333, %335 : vector<32x32xf32>
    %337 = arith.addf %208, %336 : vector<32x32xf32>
    %cst_124 = arith.constant dense<0.000000e+00> : vector<32xf32>
    %338 = vector.multi_reduction <add>, %337, %cst_124 [1] : vector<32x32xf32> to vector<32xf32>
    %339 = vector.shape_cast %338 : vector<32xf32> to vector<32x1xf32>
    %cst_125 = arith.constant 3.200000e+01 : f32
    %340 = vector.broadcast %cst_125 : f32 to vector<32x1xf32>
    %341 = arith.divf %339, %340 : vector<32x1xf32>
    %342 = vector.broadcast %341 : vector<32x1xf32> to vector<32x32xf32>
    %343 = arith.subf %337, %342 : vector<32x32xf32>
    %344 = arith.mulf %343, %343 : vector<32x32xf32>
    %cst_126 = arith.constant dense<0.000000e+00> : vector<32xf32>
    %345 = vector.multi_reduction <add>, %344, %cst_126 [1] : vector<32x32xf32> to vector<32xf32>
    %346 = vector.shape_cast %345 : vector<32xf32> to vector<32x1xf32>
    %cst_127 = arith.constant 3.200000e+01 : f32
    %347 = vector.broadcast %cst_127 : f32 to vector<32x1xf32>
    %348 = arith.divf %346, %347 : vector<32x1xf32>
    %349 = vector.broadcast %341 : vector<32x1xf32> to vector<32x32xf32>
    %350 = arith.subf %337, %349 : vector<32x32xf32>
    %cst_128 = arith.constant 9.99999974E-6 : f32
    %351 = vector.broadcast %cst_128 : f32 to vector<32x1xf32>
    %352 = arith.addf %348, %351 : vector<32x1xf32>
    %353 = math.rsqrt %352 : vector<32x1xf32>
    %354 = vector.broadcast %353 : vector<32x1xf32> to vector<32x32xf32>
    %355 = arith.mulf %350, %354 : vector<32x32xf32>
    %c0_129 = arith.constant 0 : index
    %c0_130 = arith.constant 0 : index
    %356 = vector.load %arg53[%c0_129, %c0_130] : memref<1x32xf32, #tpu.memory_space<vmem>>, vector<1x32xf32>
    %357 = vector.broadcast %356 : vector<1x32xf32> to vector<32x32xf32>
    %358 = arith.mulf %355, %357 : vector<32x32xf32>
    %c0_131 = arith.constant 0 : index
    %c0_132 = arith.constant 0 : index
    %359 = vector.load %arg52[%c0_131, %c0_132] : memref<1x32xf32, #tpu.memory_space<vmem>>, vector<1x32xf32>
    %360 = vector.broadcast %359 : vector<1x32xf32> to vector<32x32xf32>
    %361 = arith.addf %358, %360 : vector<32x32xf32>
    %c0_133 = arith.constant 0 : index
    %c0_134 = arith.constant 0 : index
    %362 = vector.load %arg56[%c0_133, %c0_134] : memref<32x64xbf16, #tpu.memory_space<vmem>>, vector<32x64xbf16>
    %363 = arith.truncf %361 : vector<32x32xf32> to vector<32x32xbf16>
    %cst_135 = arith.constant dense<0.000000e+00> : vector<32x64xf32>
    %364 = tpu.matmul %363, %362, %cst_135 {dimension_numbers = #tpu.dot_dimension_numbers<[1], [0], [0], [1], [0, 0, 1, 1], [], []>} : vector<32x32xbf16>, vector<32x64xbf16>, vector<32x64xf32> -> vector<32x64xf32>
    %c0_136 = arith.constant 0 : index
    %c0_137 = arith.constant 0 : index
    %365 = vector.load %arg50[%c0_136, %c0_137] : memref<1x64xf32, #tpu.memory_space<vmem>>, vector<1x64xf32>
    %366 = vector.broadcast %365 : vector<1x64xf32> to vector<32x64xf32>
    %367 = arith.addf %364, %366 : vector<32x64xf32>
    %cst_138 = arith.constant 0.000000e+00 : f32
    %368 = vector.broadcast %cst_138 : f32 to vector<32x64xf32>
    %369 = arith.maximumf %367, %368 : vector<32x64xf32>
    %c0_139 = arith.constant 0 : index
    %c0_140 = arith.constant 0 : index
    %370 = vector.load %arg57[%c0_139, %c0_140] : memref<64x32xbf16, #tpu.memory_space<vmem>>, vector<64x32xbf16>
    %371 = arith.truncf %369 : vector<32x64xf32> to vector<32x64xbf16>
    %cst_141 = arith.constant dense<0.000000e+00> : vector<32x32xf32>
    %372 = tpu.matmul %371, %370, %cst_141 {dimension_numbers = #tpu.dot_dimension_numbers<[1], [0], [0], [1], [0, 0, 1, 1], [], []>} : vector<32x64xbf16>, vector<64x32xbf16>, vector<32x32xf32> -> vector<32x32xf32>
    %c0_142 = arith.constant 0 : index
    %c0_143 = arith.constant 0 : index
    %373 = vector.load %arg51[%c0_142, %c0_143] : memref<1x32xf32, #tpu.memory_space<vmem>>, vector<1x32xf32>
    %374 = vector.broadcast %373 : vector<1x32xf32> to vector<32x32xf32>
    %375 = arith.addf %372, %374 : vector<32x32xf32>
    %376 = arith.addf %361, %375 : vector<32x32xf32>
    %cst_144 = arith.constant dense<0.000000e+00> : vector<32xf32>
    %377 = vector.multi_reduction <add>, %376, %cst_144 [1] : vector<32x32xf32> to vector<32xf32>
    %378 = vector.shape_cast %377 : vector<32xf32> to vector<32x1xf32>
    %cst_145 = arith.constant 3.200000e+01 : f32
    %379 = vector.broadcast %cst_145 : f32 to vector<32x1xf32>
    %380 = arith.divf %378, %379 : vector<32x1xf32>
    %381 = vector.broadcast %380 : vector<32x1xf32> to vector<32x32xf32>
    %382 = arith.subf %376, %381 : vector<32x32xf32>
    %383 = arith.mulf %382, %382 : vector<32x32xf32>
    %cst_146 = arith.constant dense<0.000000e+00> : vector<32xf32>
    %384 = vector.multi_reduction <add>, %383, %cst_146 [1] : vector<32x32xf32> to vector<32xf32>
    %385 = vector.shape_cast %384 : vector<32xf32> to vector<32x1xf32>
    %cst_147 = arith.constant 3.200000e+01 : f32
    %386 = vector.broadcast %cst_147 : f32 to vector<32x1xf32>
    %387 = arith.divf %385, %386 : vector<32x1xf32>
    %388 = vector.broadcast %380 : vector<32x1xf32> to vector<32x32xf32>
    %389 = arith.subf %376, %388 : vector<32x32xf32>
    %cst_148 = arith.constant 9.99999974E-6 : f32
    %390 = vector.broadcast %cst_148 : f32 to vector<32x1xf32>
    %391 = arith.addf %387, %390 : vector<32x1xf32>
    %392 = math.rsqrt %391 : vector<32x1xf32>
    %393 = vector.broadcast %392 : vector<32x1xf32> to vector<32x32xf32>
    %394 = arith.mulf %389, %393 : vector<32x32xf32>
    %c0_149 = arith.constant 0 : index
    %c0_150 = arith.constant 0 : index
    %395 = vector.load %arg55[%c0_149, %c0_150] : memref<1x32xf32, #tpu.memory_space<vmem>>, vector<1x32xf32>
    %396 = vector.broadcast %395 : vector<1x32xf32> to vector<32x32xf32>
    %397 = arith.mulf %394, %396 : vector<32x32xf32>
    %c0_151 = arith.constant 0 : index
    %c0_152 = arith.constant 0 : index
    %398 = vector.load %arg54[%c0_151, %c0_152] : memref<1x32xf32, #tpu.memory_space<vmem>>, vector<1x32xf32>
    %399 = vector.broadcast %398 : vector<1x32xf32> to vector<32x32xf32>
    %400 = arith.addf %397, %399 : vector<32x32xf32>
    %cst_153 = arith.constant dense<0.000000e+00> : vector<32xf32>
    %401 = vector.multi_reduction <add>, %400, %cst_153 [1] : vector<32x32xf32> to vector<32xf32>
    %402 = vector.shape_cast %401 : vector<32xf32> to vector<32x1xf32>
    %cst_154 = arith.constant 3.200000e+01 : f32
    %403 = vector.broadcast %cst_154 : f32 to vector<32x1xf32>
    %404 = arith.divf %402, %403 : vector<32x1xf32>
    %405 = vector.broadcast %404 : vector<32x1xf32> to vector<32x32xf32>
    %406 = arith.subf %400, %405 : vector<32x32xf32>
    %407 = arith.mulf %406, %406 : vector<32x32xf32>
    %cst_155 = arith.constant dense<0.000000e+00> : vector<32xf32>
    %408 = vector.multi_reduction <add>, %407, %cst_155 [1] : vector<32x32xf32> to vector<32xf32>
    %409 = vector.shape_cast %408 : vector<32xf32> to vector<32x1xf32>
    %cst_156 = arith.constant 3.200000e+01 : f32
    %410 = vector.broadcast %cst_156 : f32 to vector<32x1xf32>
    %411 = arith.divf %409, %410 : vector<32x1xf32>
    %412 = vector.broadcast %404 : vector<32x1xf32> to vector<32x32xf32>
    %413 = arith.subf %400, %412 : vector<32x32xf32>
    %cst_157 = arith.constant 9.99999974E-6 : f32
    %414 = vector.broadcast %cst_157 : f32 to vector<32x1xf32>
    %415 = arith.addf %411, %414 : vector<32x1xf32>
    %416 = math.rsqrt %415 : vector<32x1xf32>
    %417 = vector.broadcast %416 : vector<32x1xf32> to vector<32x32xf32>
    %418 = arith.mulf %413, %417 : vector<32x32xf32>
    %c0_158 = arith.constant 0 : index
    %c0_159 = arith.constant 0 : index
    %419 = vector.load %arg59[%c0_158, %c0_159] : memref<1x32xf32, #tpu.memory_space<vmem>>, vector<1x32xf32>
    %420 = vector.broadcast %419 : vector<1x32xf32> to vector<32x32xf32>
    %421 = arith.mulf %418, %420 : vector<32x32xf32>
    %c0_160 = arith.constant 0 : index
    %c0_161 = arith.constant 0 : index
    %422 = vector.load %arg58[%c0_160, %c0_161] : memref<1x32xf32, #tpu.memory_space<vmem>>, vector<1x32xf32>
    %423 = vector.broadcast %422 : vector<1x32xf32> to vector<32x32xf32>
    %424 = arith.addf %421, %423 : vector<32x32xf32>
    %c0_162 = arith.constant 0 : index
    %c0_163 = arith.constant 0 : index
    %425 = vector.load %arg3[%c0_162, %c0_163] : memref<32x12xf32, #tpu.memory_space<vmem>>, vector<32x12xf32>
    %c0_164 = arith.constant 0 : index
    %c0_165 = arith.constant 0 : index
    %426 = vector.load %arg7[%c0_164, %c0_165] : memref<12x32xbf16, #tpu.memory_space<vmem>>, vector<12x32xbf16>
    %427 = arith.truncf %425 : vector<32x12xf32> to vector<32x12xbf16>
    %cst_166 = arith.constant dense<0.000000e+00> : vector<32x32xf32>
    %428 = tpu.matmul %427, %426, %cst_166 {dimension_numbers = #tpu.dot_dimension_numbers<[1], [0], [0], [1], [0, 0, 1, 1], [], []>} : vector<32x12xbf16>, vector<12x32xbf16>, vector<32x32xf32> -> vector<32x32xf32>
    %c0_167 = arith.constant 0 : index
    %c0_168 = arith.constant 0 : index
    %429 = vector.load %arg4[%c0_167, %c0_168] : memref<32x4xf32, #tpu.memory_space<vmem>>, vector<32x4xf32>
    %c0_169 = arith.constant 0 : index
    %c0_170 = arith.constant 0 : index
    %430 = vector.load %arg6[%c0_169, %c0_170] : memref<4x32xbf16, #tpu.memory_space<vmem>>, vector<4x32xbf16>
    %431 = arith.truncf %429 : vector<32x4xf32> to vector<32x4xbf16>
    %cst_171 = arith.constant dense<0.000000e+00> : vector<32x32xf32>
    %432 = tpu.matmul %431, %430, %cst_171 {dimension_numbers = #tpu.dot_dimension_numbers<[1], [0], [0], [1], [0, 0, 1, 1], [], []>} : vector<32x4xbf16>, vector<4x32xbf16>, vector<32x32xf32> -> vector<32x32xf32>
    %433 = arith.addf %428, %432 : vector<32x32xf32>
    %c0_172 = arith.constant 0 : index
    %c0_173 = arith.constant 0 : index
    %434 = vector.load %arg5[%c0_172, %c0_173] : memref<32x32xf32, #tpu.memory_space<vmem>>, vector<32x32xf32>
    %435 = arith.addf %433, %434 : vector<32x32xf32>
    %c0_174 = arith.constant 0 : index
    %c0_175 = arith.constant 0 : index
    %436 = vector.load %arg25[%c0_174, %c0_175] : memref<32x96xbf16, #tpu.memory_space<vmem>>, vector<32x96xbf16>
    %437 = arith.truncf %435 : vector<32x32xf32> to vector<32x32xbf16>
    %cst_176 = arith.constant dense<0.000000e+00> : vector<32x96xf32>
    %438 = tpu.matmul %437, %436, %cst_176 {dimension_numbers = #tpu.dot_dimension_numbers<[1], [0], [0], [1], [0, 0, 1, 1], [], []>} : vector<32x32xbf16>, vector<32x96xbf16>, vector<32x96xf32> -> vector<32x96xf32>
    %c0_177 = arith.constant 0 : index
    %c0_178 = arith.constant 0 : index
    %439 = vector.load %arg23[%c0_177, %c0_178] : memref<1x96xf32, #tpu.memory_space<vmem>>, vector<1x96xf32>
    %440 = vector.broadcast %439 : vector<1x96xf32> to vector<32x96xf32>
    %441 = arith.addf %438, %440 : vector<32x96xf32>
    %442 = vector.extract_strided_slice %441 {offsets = [0, 0], sizes = [32, 8], strides = [1, 1]} : vector<32x96xf32> to vector<32x8xf32>
    %443 = vector.extract_strided_slice %441 {offsets = [0, 8], sizes = [32, 8], strides = [1, 1]} : vector<32x96xf32> to vector<32x8xf32>
    %444 = vector.extract_strided_slice %441 {offsets = [0, 16], sizes = [32, 8], strides = [1, 1]} : vector<32x96xf32> to vector<32x8xf32>
    %445 = vector.extract_strided_slice %441 {offsets = [0, 24], sizes = [32, 8], strides = [1, 1]} : vector<32x96xf32> to vector<32x8xf32>
    %446 = vector.extract_strided_slice %441 {offsets = [0, 32], sizes = [32, 8], strides = [1, 1]} : vector<32x96xf32> to vector<32x8xf32>
    %447 = vector.extract_strided_slice %441 {offsets = [0, 40], sizes = [32, 8], strides = [1, 1]} : vector<32x96xf32> to vector<32x8xf32>
    %448 = vector.extract_strided_slice %441 {offsets = [0, 48], sizes = [32, 8], strides = [1, 1]} : vector<32x96xf32> to vector<32x8xf32>
    %449 = vector.extract_strided_slice %441 {offsets = [0, 56], sizes = [32, 8], strides = [1, 1]} : vector<32x96xf32> to vector<32x8xf32>
    %450 = vector.extract_strided_slice %441 {offsets = [0, 64], sizes = [32, 8], strides = [1, 1]} : vector<32x96xf32> to vector<32x8xf32>
    %451 = vector.extract_strided_slice %441 {offsets = [0, 72], sizes = [32, 8], strides = [1, 1]} : vector<32x96xf32> to vector<32x8xf32>
    %452 = vector.extract_strided_slice %441 {offsets = [0, 80], sizes = [32, 8], strides = [1, 1]} : vector<32x96xf32> to vector<32x8xf32>
    %453 = vector.extract_strided_slice %441 {offsets = [0, 88], sizes = [32, 8], strides = [1, 1]} : vector<32x96xf32> to vector<32x8xf32>
    %454 = vector.shape_cast %442 : vector<32x8xf32> to vector<2x16x8xf32>
    %455 = vector.shape_cast %446 : vector<32x8xf32> to vector<2x16x8xf32>
    %456 = vector.shape_cast %450 : vector<32x8xf32> to vector<2x16x8xf32>
    %457 = arith.truncf %454 : vector<2x16x8xf32> to vector<2x16x8xbf16>
    %458 = arith.truncf %455 : vector<2x16x8xf32> to vector<2x16x8xbf16>
    "tpu.trace_start"() <{level = 10 : i32, message = "ble,bse->bls"}> : () -> ()
    %cst_179 = arith.constant dense<0.000000e+00> : vector<2x16x16xf32>
    %459 = tpu.matmul %457, %458, %cst_179 {dimension_numbers = #tpu.dot_dimension_numbers<[2], [2], [1], [1], [0, 0, 0, 1, 1, 1], [0], [0]>} : vector<2x16x8xbf16>, vector<2x16x8xbf16>, vector<2x16x16xf32> -> vector<2x16x16xf32>
    "tpu.trace_stop"() : () -> ()
    %cst_180 = arith.constant 0.353553385 : f32
    %460 = vector.broadcast %cst_180 : f32 to vector<2x16x16xf32>
    %461 = arith.mulf %459, %460 : vector<2x16x16xf32>
    %462 = vector.shape_cast %5 : vector<16x16xf32> to vector<1x16x16xf32>
    %463 = vector.broadcast %462 : vector<1x16x16xf32> to vector<2x16x16xf32>
    %464 = arith.addf %461, %463 : vector<2x16x16xf32>
    %cst_181 = arith.constant dense<0xFF800000> : vector<2x16xf32>
    %465 = vector.multi_reduction <maximumf>, %464, %cst_181 [2] : vector<2x16x16xf32> to vector<2x16xf32>
    %466 = vector.shape_cast %465 : vector<2x16xf32> to vector<2x16x1xf32>
    %467 = vector.broadcast %466 : vector<2x16x1xf32> to vector<2x16x16xf32>
    %468 = arith.subf %464, %467 : vector<2x16x16xf32>
    %469 = math.exp %468 : vector<2x16x16xf32>
    %cst_182 = arith.constant dense<0.000000e+00> : vector<2x16xf32>
    %470 = vector.multi_reduction <add>, %469, %cst_182 [2] : vector<2x16x16xf32> to vector<2x16xf32>
    %471 = vector.shape_cast %470 : vector<2x16xf32> to vector<2x16x1xf32>
    %472 = tpu.reciprocal %471 {approx = true} : vector<2x16x1xf32> -> vector<2x16x1xf32>
    %473 = vector.broadcast %472 : vector<2x16x1xf32> to vector<2x16x16xf32>
    %474 = arith.mulf %469, %473 : vector<2x16x16xf32>
    %475 = arith.truncf %474 : vector<2x16x16xf32> to vector<2x16x16xbf16>
    %476 = arith.truncf %456 : vector<2x16x8xf32> to vector<2x16x8xbf16>
    "tpu.trace_start"() <{level = 10 : i32, message = "bls,bse->ble"}> : () -> ()
    %cst_183 = arith.constant dense<0.000000e+00> : vector<2x16x8xf32>
    %477 = tpu.matmul %475, %476, %cst_183 {dimension_numbers = #tpu.dot_dimension_numbers<[2], [1], [1], [2], [0, 0, 0, 1, 1, 2], [0], [0]>} : vector<2x16x16xbf16>, vector<2x16x8xbf16>, vector<2x16x8xf32> -> vector<2x16x8xf32>
    "tpu.trace_stop"() : () -> ()
    %478 = vector.shape_cast %477 : vector<2x16x8xf32> to vector<32x8xf32>
    %c0_184 = arith.constant 0 : index
    %c0_185 = arith.constant 0 : index
    %c0_186 = arith.constant 0 : index
    %479 = vector.load %arg24[%c0_184, %c0_185, %c0_186] : memref<4x8x32xbf16, #tpu.memory_space<vmem>>, vector<1x8x32xbf16>
    %480 = vector.shape_cast %479 : vector<1x8x32xbf16> to vector<8x32xbf16>
    %481 = arith.truncf %478 : vector<32x8xf32> to vector<32x8xbf16>
    %cst_187 = arith.constant dense<0.000000e+00> : vector<32x32xf32>
    %482 = tpu.matmul %481, %480, %cst_187 {dimension_numbers = #tpu.dot_dimension_numbers<[1], [0], [0], [1], [0, 0, 1, 1], [], []>} : vector<32x8xbf16>, vector<8x32xbf16>, vector<32x32xf32> -> vector<32x32xf32>
    %483 = vector.shape_cast %443 : vector<32x8xf32> to vector<2x16x8xf32>
    %484 = vector.shape_cast %447 : vector<32x8xf32> to vector<2x16x8xf32>
    %485 = vector.shape_cast %451 : vector<32x8xf32> to vector<2x16x8xf32>
    %486 = arith.truncf %483 : vector<2x16x8xf32> to vector<2x16x8xbf16>
    %487 = arith.truncf %484 : vector<2x16x8xf32> to vector<2x16x8xbf16>
    "tpu.trace_start"() <{level = 10 : i32, message = "ble,bse->bls"}> : () -> ()
    %cst_188 = arith.constant dense<0.000000e+00> : vector<2x16x16xf32>
    %488 = tpu.matmul %486, %487, %cst_188 {dimension_numbers = #tpu.dot_dimension_numbers<[2], [2], [1], [1], [0, 0, 0, 1, 1, 1], [0], [0]>} : vector<2x16x8xbf16>, vector<2x16x8xbf16>, vector<2x16x16xf32> -> vector<2x16x16xf32>
    "tpu.trace_stop"() : () -> ()
    %cst_189 = arith.constant 0.353553385 : f32
    %489 = vector.broadcast %cst_189 : f32 to vector<2x16x16xf32>
    %490 = arith.mulf %488, %489 : vector<2x16x16xf32>
    %491 = vector.shape_cast %5 : vector<16x16xf32> to vector<1x16x16xf32>
    %492 = vector.broadcast %491 : vector<1x16x16xf32> to vector<2x16x16xf32>
    %493 = arith.addf %490, %492 : vector<2x16x16xf32>
    %cst_190 = arith.constant dense<0xFF800000> : vector<2x16xf32>
    %494 = vector.multi_reduction <maximumf>, %493, %cst_190 [2] : vector<2x16x16xf32> to vector<2x16xf32>
    %495 = vector.shape_cast %494 : vector<2x16xf32> to vector<2x16x1xf32>
    %496 = vector.broadcast %495 : vector<2x16x1xf32> to vector<2x16x16xf32>
    %497 = arith.subf %493, %496 : vector<2x16x16xf32>
    %498 = math.exp %497 : vector<2x16x16xf32>
    %cst_191 = arith.constant dense<0.000000e+00> : vector<2x16xf32>
    %499 = vector.multi_reduction <add>, %498, %cst_191 [2] : vector<2x16x16xf32> to vector<2x16xf32>
    %500 = vector.shape_cast %499 : vector<2x16xf32> to vector<2x16x1xf32>
    %501 = tpu.reciprocal %500 {approx = true} : vector<2x16x1xf32> -> vector<2x16x1xf32>
    %502 = vector.broadcast %501 : vector<2x16x1xf32> to vector<2x16x16xf32>
    %503 = arith.mulf %498, %502 : vector<2x16x16xf32>
    %504 = arith.truncf %503 : vector<2x16x16xf32> to vector<2x16x16xbf16>
    %505 = arith.truncf %485 : vector<2x16x8xf32> to vector<2x16x8xbf16>
    "tpu.trace_start"() <{level = 10 : i32, message = "bls,bse->ble"}> : () -> ()
    %cst_192 = arith.constant dense<0.000000e+00> : vector<2x16x8xf32>
    %506 = tpu.matmul %504, %505, %cst_192 {dimension_numbers = #tpu.dot_dimension_numbers<[2], [1], [1], [2], [0, 0, 0, 1, 1, 2], [0], [0]>} : vector<2x16x16xbf16>, vector<2x16x8xbf16>, vector<2x16x8xf32> -> vector<2x16x8xf32>
    "tpu.trace_stop"() : () -> ()
    %507 = vector.shape_cast %506 : vector<2x16x8xf32> to vector<32x8xf32>
    %c1_193 = arith.constant 1 : index
    %c0_194 = arith.constant 0 : index
    %c0_195 = arith.constant 0 : index
    %508 = vector.load %arg24[%c1_193, %c0_194, %c0_195] : memref<4x8x32xbf16, #tpu.memory_space<vmem>>, vector<1x8x32xbf16>
    %509 = vector.shape_cast %508 : vector<1x8x32xbf16> to vector<8x32xbf16>
    %510 = arith.truncf %507 : vector<32x8xf32> to vector<32x8xbf16>
    %cst_196 = arith.constant dense<0.000000e+00> : vector<32x32xf32>
    %511 = tpu.matmul %510, %509, %cst_196 {dimension_numbers = #tpu.dot_dimension_numbers<[1], [0], [0], [1], [0, 0, 1, 1], [], []>} : vector<32x8xbf16>, vector<8x32xbf16>, vector<32x32xf32> -> vector<32x32xf32>
    %512 = arith.addf %482, %511 : vector<32x32xf32>
    %513 = vector.shape_cast %444 : vector<32x8xf32> to vector<2x16x8xf32>
    %514 = vector.shape_cast %448 : vector<32x8xf32> to vector<2x16x8xf32>
    %515 = vector.shape_cast %452 : vector<32x8xf32> to vector<2x16x8xf32>
    %516 = arith.truncf %513 : vector<2x16x8xf32> to vector<2x16x8xbf16>
    %517 = arith.truncf %514 : vector<2x16x8xf32> to vector<2x16x8xbf16>
    "tpu.trace_start"() <{level = 10 : i32, message = "ble,bse->bls"}> : () -> ()
    %cst_197 = arith.constant dense<0.000000e+00> : vector<2x16x16xf32>
    %518 = tpu.matmul %516, %517, %cst_197 {dimension_numbers = #tpu.dot_dimension_numbers<[2], [2], [1], [1], [0, 0, 0, 1, 1, 1], [0], [0]>} : vector<2x16x8xbf16>, vector<2x16x8xbf16>, vector<2x16x16xf32> -> vector<2x16x16xf32>
    "tpu.trace_stop"() : () -> ()
    %cst_198 = arith.constant 0.353553385 : f32
    %519 = vector.broadcast %cst_198 : f32 to vector<2x16x16xf32>
    %520 = arith.mulf %518, %519 : vector<2x16x16xf32>
    %521 = vector.shape_cast %5 : vector<16x16xf32> to vector<1x16x16xf32>
    %522 = vector.broadcast %521 : vector<1x16x16xf32> to vector<2x16x16xf32>
    %523 = arith.addf %520, %522 : vector<2x16x16xf32>
    %cst_199 = arith.constant dense<0xFF800000> : vector<2x16xf32>
    %524 = vector.multi_reduction <maximumf>, %523, %cst_199 [2] : vector<2x16x16xf32> to vector<2x16xf32>
    %525 = vector.shape_cast %524 : vector<2x16xf32> to vector<2x16x1xf32>
    %526 = vector.broadcast %525 : vector<2x16x1xf32> to vector<2x16x16xf32>
    %527 = arith.subf %523, %526 : vector<2x16x16xf32>
    %528 = math.exp %527 : vector<2x16x16xf32>
    %cst_200 = arith.constant dense<0.000000e+00> : vector<2x16xf32>
    %529 = vector.multi_reduction <add>, %528, %cst_200 [2] : vector<2x16x16xf32> to vector<2x16xf32>
    %530 = vector.shape_cast %529 : vector<2x16xf32> to vector<2x16x1xf32>
    %531 = tpu.reciprocal %530 {approx = true} : vector<2x16x1xf32> -> vector<2x16x1xf32>
    %532 = vector.broadcast %531 : vector<2x16x1xf32> to vector<2x16x16xf32>
    %533 = arith.mulf %528, %532 : vector<2x16x16xf32>
    %534 = arith.truncf %533 : vector<2x16x16xf32> to vector<2x16x16xbf16>
    %535 = arith.truncf %515 : vector<2x16x8xf32> to vector<2x16x8xbf16>
    "tpu.trace_start"() <{level = 10 : i32, message = "bls,bse->ble"}> : () -> ()
    %cst_201 = arith.constant dense<0.000000e+00> : vector<2x16x8xf32>
    %536 = tpu.matmul %534, %535, %cst_201 {dimension_numbers = #tpu.dot_dimension_numbers<[2], [1], [1], [2], [0, 0, 0, 1, 1, 2], [0], [0]>} : vector<2x16x16xbf16>, vector<2x16x8xbf16>, vector<2x16x8xf32> -> vector<2x16x8xf32>
    "tpu.trace_stop"() : () -> ()
    %537 = vector.shape_cast %536 : vector<2x16x8xf32> to vector<32x8xf32>
    %c2_202 = arith.constant 2 : index
    %c0_203 = arith.constant 0 : index
    %c0_204 = arith.constant 0 : index
    %538 = vector.load %arg24[%c2_202, %c0_203, %c0_204] : memref<4x8x32xbf16, #tpu.memory_space<vmem>>, vector<1x8x32xbf16>
    %539 = vector.shape_cast %538 : vector<1x8x32xbf16> to vector<8x32xbf16>
    %540 = arith.truncf %537 : vector<32x8xf32> to vector<32x8xbf16>
    %cst_205 = arith.constant dense<0.000000e+00> : vector<32x32xf32>
    %541 = tpu.matmul %540, %539, %cst_205 {dimension_numbers = #tpu.dot_dimension_numbers<[1], [0], [0], [1], [0, 0, 1, 1], [], []>} : vector<32x8xbf16>, vector<8x32xbf16>, vector<32x32xf32> -> vector<32x32xf32>
    %542 = arith.addf %512, %541 : vector<32x32xf32>
    %543 = vector.shape_cast %445 : vector<32x8xf32> to vector<2x16x8xf32>
    %544 = vector.shape_cast %449 : vector<32x8xf32> to vector<2x16x8xf32>
    %545 = vector.shape_cast %453 : vector<32x8xf32> to vector<2x16x8xf32>
    %546 = arith.truncf %543 : vector<2x16x8xf32> to vector<2x16x8xbf16>
    %547 = arith.truncf %544 : vector<2x16x8xf32> to vector<2x16x8xbf16>
    "tpu.trace_start"() <{level = 10 : i32, message = "ble,bse->bls"}> : () -> ()
    %cst_206 = arith.constant dense<0.000000e+00> : vector<2x16x16xf32>
    %548 = tpu.matmul %546, %547, %cst_206 {dimension_numbers = #tpu.dot_dimension_numbers<[2], [2], [1], [1], [0, 0, 0, 1, 1, 1], [0], [0]>} : vector<2x16x8xbf16>, vector<2x16x8xbf16>, vector<2x16x16xf32> -> vector<2x16x16xf32>
    "tpu.trace_stop"() : () -> ()
    %cst_207 = arith.constant 0.353553385 : f32
    %549 = vector.broadcast %cst_207 : f32 to vector<2x16x16xf32>
    %550 = arith.mulf %548, %549 : vector<2x16x16xf32>
    %551 = vector.shape_cast %5 : vector<16x16xf32> to vector<1x16x16xf32>
    %552 = vector.broadcast %551 : vector<1x16x16xf32> to vector<2x16x16xf32>
    %553 = arith.addf %550, %552 : vector<2x16x16xf32>
    %cst_208 = arith.constant dense<0xFF800000> : vector<2x16xf32>
    %554 = vector.multi_reduction <maximumf>, %553, %cst_208 [2] : vector<2x16x16xf32> to vector<2x16xf32>
    %555 = vector.shape_cast %554 : vector<2x16xf32> to vector<2x16x1xf32>
    %556 = vector.broadcast %555 : vector<2x16x1xf32> to vector<2x16x16xf32>
    %557 = arith.subf %553, %556 : vector<2x16x16xf32>
    %558 = math.exp %557 : vector<2x16x16xf32>
    %cst_209 = arith.constant dense<0.000000e+00> : vector<2x16xf32>
    %559 = vector.multi_reduction <add>, %558, %cst_209 [2] : vector<2x16x16xf32> to vector<2x16xf32>
    %560 = vector.shape_cast %559 : vector<2x16xf32> to vector<2x16x1xf32>
    %561 = tpu.reciprocal %560 {approx = true} : vector<2x16x1xf32> -> vector<2x16x1xf32>
    %562 = vector.broadcast %561 : vector<2x16x1xf32> to vector<2x16x16xf32>
    %563 = arith.mulf %558, %562 : vector<2x16x16xf32>
    %564 = arith.truncf %563 : vector<2x16x16xf32> to vector<2x16x16xbf16>
    %565 = arith.truncf %545 : vector<2x16x8xf32> to vector<2x16x8xbf16>
    "tpu.trace_start"() <{level = 10 : i32, message = "bls,bse->ble"}> : () -> ()
    %cst_210 = arith.constant dense<0.000000e+00> : vector<2x16x8xf32>
    %566 = tpu.matmul %564, %565, %cst_210 {dimension_numbers = #tpu.dot_dimension_numbers<[2], [1], [1], [2], [0, 0, 0, 1, 1, 2], [0], [0]>} : vector<2x16x16xbf16>, vector<2x16x8xbf16>, vector<2x16x8xf32> -> vector<2x16x8xf32>
    "tpu.trace_stop"() : () -> ()
    %567 = vector.shape_cast %566 : vector<2x16x8xf32> to vector<32x8xf32>
    %c3_211 = arith.constant 3 : index
    %c0_212 = arith.constant 0 : index
    %c0_213 = arith.constant 0 : index
    %568 = vector.load %arg24[%c3_211, %c0_212, %c0_213] : memref<4x8x32xbf16, #tpu.memory_space<vmem>>, vector<1x8x32xbf16>
    %569 = vector.shape_cast %568 : vector<1x8x32xbf16> to vector<8x32xbf16>
    %570 = arith.truncf %567 : vector<32x8xf32> to vector<32x8xbf16>
    %cst_214 = arith.constant dense<0.000000e+00> : vector<32x32xf32>
    %571 = tpu.matmul %570, %569, %cst_214 {dimension_numbers = #tpu.dot_dimension_numbers<[1], [0], [0], [1], [0, 0, 1, 1], [], []>} : vector<32x8xbf16>, vector<8x32xbf16>, vector<32x32xf32> -> vector<32x32xf32>
    %572 = arith.addf %542, %571 : vector<32x32xf32>
    %c0_215 = arith.constant 0 : index
    %c0_216 = arith.constant 0 : index
    %573 = vector.load %arg22[%c0_215, %c0_216] : memref<1x32xf32, #tpu.memory_space<vmem>>, vector<1x32xf32>
    %574 = vector.broadcast %573 : vector<1x32xf32> to vector<32x32xf32>
    %575 = arith.addf %572, %574 : vector<32x32xf32>
    %576 = arith.addf %435, %575 : vector<32x32xf32>
    %cst_217 = arith.constant dense<0.000000e+00> : vector<32xf32>
    %577 = vector.multi_reduction <add>, %576, %cst_217 [1] : vector<32x32xf32> to vector<32xf32>
    %578 = vector.shape_cast %577 : vector<32xf32> to vector<32x1xf32>
    %cst_218 = arith.constant 3.200000e+01 : f32
    %579 = vector.broadcast %cst_218 : f32 to vector<32x1xf32>
    %580 = arith.divf %578, %579 : vector<32x1xf32>
    %581 = vector.broadcast %580 : vector<32x1xf32> to vector<32x32xf32>
    %582 = arith.subf %576, %581 : vector<32x32xf32>
    %583 = arith.mulf %582, %582 : vector<32x32xf32>
    %cst_219 = arith.constant dense<0.000000e+00> : vector<32xf32>
    %584 = vector.multi_reduction <add>, %583, %cst_219 [1] : vector<32x32xf32> to vector<32xf32>
    %585 = vector.shape_cast %584 : vector<32xf32> to vector<32x1xf32>
    %cst_220 = arith.constant 3.200000e+01 : f32
    %586 = vector.broadcast %cst_220 : f32 to vector<32x1xf32>
    %587 = arith.divf %585, %586 : vector<32x1xf32>
    %588 = vector.broadcast %580 : vector<32x1xf32> to vector<32x32xf32>
    %589 = arith.subf %576, %588 : vector<32x32xf32>
    %cst_221 = arith.constant 9.99999974E-6 : f32
    %590 = vector.broadcast %cst_221 : f32 to vector<32x1xf32>
    %591 = arith.addf %587, %590 : vector<32x1xf32>
    %592 = math.rsqrt %591 : vector<32x1xf32>
    %593 = vector.broadcast %592 : vector<32x1xf32> to vector<32x32xf32>
    %594 = arith.mulf %589, %593 : vector<32x32xf32>
    %c0_222 = arith.constant 0 : index
    %c0_223 = arith.constant 0 : index
    %595 = vector.load %arg17[%c0_222, %c0_223] : memref<1x32xf32, #tpu.memory_space<vmem>>, vector<1x32xf32>
    %596 = vector.broadcast %595 : vector<1x32xf32> to vector<32x32xf32>
    %597 = arith.mulf %594, %596 : vector<32x32xf32>
    %c0_224 = arith.constant 0 : index
    %c0_225 = arith.constant 0 : index
    %598 = vector.load %arg16[%c0_224, %c0_225] : memref<1x32xf32, #tpu.memory_space<vmem>>, vector<1x32xf32>
    %599 = vector.broadcast %598 : vector<1x32xf32> to vector<32x32xf32>
    %600 = arith.addf %597, %599 : vector<32x32xf32>
    %c0_226 = arith.constant 0 : index
    %c0_227 = arith.constant 0 : index
    %601 = vector.load %arg15[%c0_226, %c0_227] : memref<32x32xbf16, #tpu.memory_space<vmem>>, vector<32x32xbf16>
    %602 = arith.truncf %600 : vector<32x32xf32> to vector<32x32xbf16>
    %cst_228 = arith.constant dense<0.000000e+00> : vector<32x32xf32>
    %603 = tpu.matmul %602, %601, %cst_228 {dimension_numbers = #tpu.dot_dimension_numbers<[1], [0], [0], [1], [0, 0, 1, 1], [], []>} : vector<32x32xbf16>, vector<32x32xbf16>, vector<32x32xf32> -> vector<32x32xf32>
    %c0_229 = arith.constant 0 : index
    %c0_230 = arith.constant 0 : index
    %604 = vector.load %arg12[%c0_229, %c0_230] : memref<1x32xf32, #tpu.memory_space<vmem>>, vector<1x32xf32>
    %605 = vector.broadcast %604 : vector<1x32xf32> to vector<32x32xf32>
    %606 = arith.addf %603, %605 : vector<32x32xf32>
    %c0_231 = arith.constant 0 : index
    %c0_232 = arith.constant 0 : index
    %607 = vector.load %arg13[%c0_231, %c0_232] : memref<32x64xbf16, #tpu.memory_space<vmem>>, vector<32x64xbf16>
    %608 = arith.truncf %424 : vector<32x32xf32> to vector<32x32xbf16>
    %cst_233 = arith.constant dense<0.000000e+00> : vector<32x64xf32>
    %609 = tpu.matmul %608, %607, %cst_233 {dimension_numbers = #tpu.dot_dimension_numbers<[1], [0], [0], [1], [0, 0, 1, 1], [], []>} : vector<32x32xbf16>, vector<32x64xbf16>, vector<32x64xf32> -> vector<32x64xf32>
    %c0_234 = arith.constant 0 : index
    %c0_235 = arith.constant 0 : index
    %610 = vector.load %arg10[%c0_234, %c0_235] : memref<1x64xf32, #tpu.memory_space<vmem>>, vector<1x64xf32>
    %611 = vector.broadcast %610 : vector<1x64xf32> to vector<32x64xf32>
    %612 = arith.addf %609, %611 : vector<32x64xf32>
    %613 = vector.extract_strided_slice %606 {offsets = [0, 0], sizes = [32, 8], strides = [1, 1]} : vector<32x32xf32> to vector<32x8xf32>
    %614 = vector.extract_strided_slice %606 {offsets = [0, 8], sizes = [32, 8], strides = [1, 1]} : vector<32x32xf32> to vector<32x8xf32>
    %615 = vector.extract_strided_slice %606 {offsets = [0, 16], sizes = [32, 8], strides = [1, 1]} : vector<32x32xf32> to vector<32x8xf32>
    %616 = vector.extract_strided_slice %606 {offsets = [0, 24], sizes = [32, 8], strides = [1, 1]} : vector<32x32xf32> to vector<32x8xf32>
    %617 = vector.extract_strided_slice %612 {offsets = [0, 0], sizes = [32, 8], strides = [1, 1]} : vector<32x64xf32> to vector<32x8xf32>
    %618 = vector.extract_strided_slice %612 {offsets = [0, 8], sizes = [32, 8], strides = [1, 1]} : vector<32x64xf32> to vector<32x8xf32>
    %619 = vector.extract_strided_slice %612 {offsets = [0, 16], sizes = [32, 8], strides = [1, 1]} : vector<32x64xf32> to vector<32x8xf32>
    %620 = vector.extract_strided_slice %612 {offsets = [0, 24], sizes = [32, 8], strides = [1, 1]} : vector<32x64xf32> to vector<32x8xf32>
    %621 = vector.extract_strided_slice %612 {offsets = [0, 32], sizes = [32, 8], strides = [1, 1]} : vector<32x64xf32> to vector<32x8xf32>
    %622 = vector.extract_strided_slice %612 {offsets = [0, 40], sizes = [32, 8], strides = [1, 1]} : vector<32x64xf32> to vector<32x8xf32>
    %623 = vector.extract_strided_slice %612 {offsets = [0, 48], sizes = [32, 8], strides = [1, 1]} : vector<32x64xf32> to vector<32x8xf32>
    %624 = vector.extract_strided_slice %612 {offsets = [0, 56], sizes = [32, 8], strides = [1, 1]} : vector<32x64xf32> to vector<32x8xf32>
    %625 = vector.shape_cast %613 : vector<32x8xf32> to vector<2x16x8xf32>
    %626 = vector.shape_cast %617 : vector<32x8xf32> to vector<2x16x8xf32>
    %627 = vector.shape_cast %621 : vector<32x8xf32> to vector<2x16x8xf32>
    %628 = arith.truncf %625 : vector<2x16x8xf32> to vector<2x16x8xbf16>
    %629 = arith.truncf %626 : vector<2x16x8xf32> to vector<2x16x8xbf16>
    "tpu.trace_start"() <{level = 10 : i32, message = "ble,bse->bls"}> : () -> ()
    %cst_236 = arith.constant dense<0.000000e+00> : vector<2x16x16xf32>
    %630 = tpu.matmul %628, %629, %cst_236 {dimension_numbers = #tpu.dot_dimension_numbers<[2], [2], [1], [1], [0, 0, 0, 1, 1, 1], [0], [0]>} : vector<2x16x8xbf16>, vector<2x16x8xbf16>, vector<2x16x16xf32> -> vector<2x16x16xf32>
    "tpu.trace_stop"() : () -> ()
    %cst_237 = arith.constant 0.353553385 : f32
    %631 = vector.broadcast %cst_237 : f32 to vector<2x16x16xf32>
    %632 = arith.mulf %630, %631 : vector<2x16x16xf32>
    %cst_238 = arith.constant dense<0xFF800000> : vector<2x16xf32>
    %633 = vector.multi_reduction <maximumf>, %632, %cst_238 [2] : vector<2x16x16xf32> to vector<2x16xf32>
    %634 = vector.shape_cast %633 : vector<2x16xf32> to vector<2x16x1xf32>
    %635 = vector.broadcast %634 : vector<2x16x1xf32> to vector<2x16x16xf32>
    %636 = arith.subf %632, %635 : vector<2x16x16xf32>
    %637 = math.exp %636 : vector<2x16x16xf32>
    %cst_239 = arith.constant dense<0.000000e+00> : vector<2x16xf32>
    %638 = vector.multi_reduction <add>, %637, %cst_239 [2] : vector<2x16x16xf32> to vector<2x16xf32>
    %639 = vector.shape_cast %638 : vector<2x16xf32> to vector<2x16x1xf32>
    %640 = tpu.reciprocal %639 {approx = true} : vector<2x16x1xf32> -> vector<2x16x1xf32>
    %641 = vector.broadcast %640 : vector<2x16x1xf32> to vector<2x16x16xf32>
    %642 = arith.mulf %637, %641 : vector<2x16x16xf32>
    %643 = arith.truncf %642 : vector<2x16x16xf32> to vector<2x16x16xbf16>
    %644 = arith.truncf %627 : vector<2x16x8xf32> to vector<2x16x8xbf16>
    "tpu.trace_start"() <{level = 10 : i32, message = "bls,bse->ble"}> : () -> ()
    %cst_240 = arith.constant dense<0.000000e+00> : vector<2x16x8xf32>
    %645 = tpu.matmul %643, %644, %cst_240 {dimension_numbers = #tpu.dot_dimension_numbers<[2], [1], [1], [2], [0, 0, 0, 1, 1, 2], [0], [0]>} : vector<2x16x16xbf16>, vector<2x16x8xbf16>, vector<2x16x8xf32> -> vector<2x16x8xf32>
    "tpu.trace_stop"() : () -> ()
    %646 = vector.shape_cast %645 : vector<2x16x8xf32> to vector<32x8xf32>
    %c0_241 = arith.constant 0 : index
    %c0_242 = arith.constant 0 : index
    %c0_243 = arith.constant 0 : index
    %647 = vector.load %arg14[%c0_241, %c0_242, %c0_243] : memref<4x8x32xbf16, #tpu.memory_space<vmem>>, vector<1x8x32xbf16>
    %648 = vector.shape_cast %647 : vector<1x8x32xbf16> to vector<8x32xbf16>
    %649 = arith.truncf %646 : vector<32x8xf32> to vector<32x8xbf16>
    %cst_244 = arith.constant dense<0.000000e+00> : vector<32x32xf32>
    %650 = tpu.matmul %649, %648, %cst_244 {dimension_numbers = #tpu.dot_dimension_numbers<[1], [0], [0], [1], [0, 0, 1, 1], [], []>} : vector<32x8xbf16>, vector<8x32xbf16>, vector<32x32xf32> -> vector<32x32xf32>
    %651 = vector.shape_cast %614 : vector<32x8xf32> to vector<2x16x8xf32>
    %652 = vector.shape_cast %618 : vector<32x8xf32> to vector<2x16x8xf32>
    %653 = vector.shape_cast %622 : vector<32x8xf32> to vector<2x16x8xf32>
    %654 = arith.truncf %651 : vector<2x16x8xf32> to vector<2x16x8xbf16>
    %655 = arith.truncf %652 : vector<2x16x8xf32> to vector<2x16x8xbf16>
    "tpu.trace_start"() <{level = 10 : i32, message = "ble,bse->bls"}> : () -> ()
    %cst_245 = arith.constant dense<0.000000e+00> : vector<2x16x16xf32>
    %656 = tpu.matmul %654, %655, %cst_245 {dimension_numbers = #tpu.dot_dimension_numbers<[2], [2], [1], [1], [0, 0, 0, 1, 1, 1], [0], [0]>} : vector<2x16x8xbf16>, vector<2x16x8xbf16>, vector<2x16x16xf32> -> vector<2x16x16xf32>
    "tpu.trace_stop"() : () -> ()
    %cst_246 = arith.constant 0.353553385 : f32
    %657 = vector.broadcast %cst_246 : f32 to vector<2x16x16xf32>
    %658 = arith.mulf %656, %657 : vector<2x16x16xf32>
    %cst_247 = arith.constant dense<0xFF800000> : vector<2x16xf32>
    %659 = vector.multi_reduction <maximumf>, %658, %cst_247 [2] : vector<2x16x16xf32> to vector<2x16xf32>
    %660 = vector.shape_cast %659 : vector<2x16xf32> to vector<2x16x1xf32>
    %661 = vector.broadcast %660 : vector<2x16x1xf32> to vector<2x16x16xf32>
    %662 = arith.subf %658, %661 : vector<2x16x16xf32>
    %663 = math.exp %662 : vector<2x16x16xf32>
    %cst_248 = arith.constant dense<0.000000e+00> : vector<2x16xf32>
    %664 = vector.multi_reduction <add>, %663, %cst_248 [2] : vector<2x16x16xf32> to vector<2x16xf32>
    %665 = vector.shape_cast %664 : vector<2x16xf32> to vector<2x16x1xf32>
    %666 = tpu.reciprocal %665 {approx = true} : vector<2x16x1xf32> -> vector<2x16x1xf32>
    %667 = vector.broadcast %666 : vector<2x16x1xf32> to vector<2x16x16xf32>
    %668 = arith.mulf %663, %667 : vector<2x16x16xf32>
    %669 = arith.truncf %668 : vector<2x16x16xf32> to vector<2x16x16xbf16>
    %670 = arith.truncf %653 : vector<2x16x8xf32> to vector<2x16x8xbf16>
    "tpu.trace_start"() <{level = 10 : i32, message = "bls,bse->ble"}> : () -> ()
    %cst_249 = arith.constant dense<0.000000e+00> : vector<2x16x8xf32>
    %671 = tpu.matmul %669, %670, %cst_249 {dimension_numbers = #tpu.dot_dimension_numbers<[2], [1], [1], [2], [0, 0, 0, 1, 1, 2], [0], [0]>} : vector<2x16x16xbf16>, vector<2x16x8xbf16>, vector<2x16x8xf32> -> vector<2x16x8xf32>
    "tpu.trace_stop"() : () -> ()
    %672 = vector.shape_cast %671 : vector<2x16x8xf32> to vector<32x8xf32>
    %c1_250 = arith.constant 1 : index
    %c0_251 = arith.constant 0 : index
    %c0_252 = arith.constant 0 : index
    %673 = vector.load %arg14[%c1_250, %c0_251, %c0_252] : memref<4x8x32xbf16, #tpu.memory_space<vmem>>, vector<1x8x32xbf16>
    %674 = vector.shape_cast %673 : vector<1x8x32xbf16> to vector<8x32xbf16>
    %675 = arith.truncf %672 : vector<32x8xf32> to vector<32x8xbf16>
    %cst_253 = arith.constant dense<0.000000e+00> : vector<32x32xf32>
    %676 = tpu.matmul %675, %674, %cst_253 {dimension_numbers = #tpu.dot_dimension_numbers<[1], [0], [0], [1], [0, 0, 1, 1], [], []>} : vector<32x8xbf16>, vector<8x32xbf16>, vector<32x32xf32> -> vector<32x32xf32>
    %677 = arith.addf %650, %676 : vector<32x32xf32>
    %678 = vector.shape_cast %615 : vector<32x8xf32> to vector<2x16x8xf32>
    %679 = vector.shape_cast %619 : vector<32x8xf32> to vector<2x16x8xf32>
    %680 = vector.shape_cast %623 : vector<32x8xf32> to vector<2x16x8xf32>
    %681 = arith.truncf %678 : vector<2x16x8xf32> to vector<2x16x8xbf16>
    %682 = arith.truncf %679 : vector<2x16x8xf32> to vector<2x16x8xbf16>
    "tpu.trace_start"() <{level = 10 : i32, message = "ble,bse->bls"}> : () -> ()
    %cst_254 = arith.constant dense<0.000000e+00> : vector<2x16x16xf32>
    %683 = tpu.matmul %681, %682, %cst_254 {dimension_numbers = #tpu.dot_dimension_numbers<[2], [2], [1], [1], [0, 0, 0, 1, 1, 1], [0], [0]>} : vector<2x16x8xbf16>, vector<2x16x8xbf16>, vector<2x16x16xf32> -> vector<2x16x16xf32>
    "tpu.trace_stop"() : () -> ()
    %cst_255 = arith.constant 0.353553385 : f32
    %684 = vector.broadcast %cst_255 : f32 to vector<2x16x16xf32>
    %685 = arith.mulf %683, %684 : vector<2x16x16xf32>
    %cst_256 = arith.constant dense<0xFF800000> : vector<2x16xf32>
    %686 = vector.multi_reduction <maximumf>, %685, %cst_256 [2] : vector<2x16x16xf32> to vector<2x16xf32>
    %687 = vector.shape_cast %686 : vector<2x16xf32> to vector<2x16x1xf32>
    %688 = vector.broadcast %687 : vector<2x16x1xf32> to vector<2x16x16xf32>
    %689 = arith.subf %685, %688 : vector<2x16x16xf32>
    %690 = math.exp %689 : vector<2x16x16xf32>
    %cst_257 = arith.constant dense<0.000000e+00> : vector<2x16xf32>
    %691 = vector.multi_reduction <add>, %690, %cst_257 [2] : vector<2x16x16xf32> to vector<2x16xf32>
    %692 = vector.shape_cast %691 : vector<2x16xf32> to vector<2x16x1xf32>
    %693 = tpu.reciprocal %692 {approx = true} : vector<2x16x1xf32> -> vector<2x16x1xf32>
    %694 = vector.broadcast %693 : vector<2x16x1xf32> to vector<2x16x16xf32>
    %695 = arith.mulf %690, %694 : vector<2x16x16xf32>
    %696 = arith.truncf %695 : vector<2x16x16xf32> to vector<2x16x16xbf16>
    %697 = arith.truncf %680 : vector<2x16x8xf32> to vector<2x16x8xbf16>
    "tpu.trace_start"() <{level = 10 : i32, message = "bls,bse->ble"}> : () -> ()
    %cst_258 = arith.constant dense<0.000000e+00> : vector<2x16x8xf32>
    %698 = tpu.matmul %696, %697, %cst_258 {dimension_numbers = #tpu.dot_dimension_numbers<[2], [1], [1], [2], [0, 0, 0, 1, 1, 2], [0], [0]>} : vector<2x16x16xbf16>, vector<2x16x8xbf16>, vector<2x16x8xf32> -> vector<2x16x8xf32>
    "tpu.trace_stop"() : () -> ()
    %699 = vector.shape_cast %698 : vector<2x16x8xf32> to vector<32x8xf32>
    %c2_259 = arith.constant 2 : index
    %c0_260 = arith.constant 0 : index
    %c0_261 = arith.constant 0 : index
    %700 = vector.load %arg14[%c2_259, %c0_260, %c0_261] : memref<4x8x32xbf16, #tpu.memory_space<vmem>>, vector<1x8x32xbf16>
    %701 = vector.shape_cast %700 : vector<1x8x32xbf16> to vector<8x32xbf16>
    %702 = arith.truncf %699 : vector<32x8xf32> to vector<32x8xbf16>
    %cst_262 = arith.constant dense<0.000000e+00> : vector<32x32xf32>
    %703 = tpu.matmul %702, %701, %cst_262 {dimension_numbers = #tpu.dot_dimension_numbers<[1], [0], [0], [1], [0, 0, 1, 1], [], []>} : vector<32x8xbf16>, vector<8x32xbf16>, vector<32x32xf32> -> vector<32x32xf32>
    %704 = arith.addf %677, %703 : vector<32x32xf32>
    %705 = vector.shape_cast %616 : vector<32x8xf32> to vector<2x16x8xf32>
    %706 = vector.shape_cast %620 : vector<32x8xf32> to vector<2x16x8xf32>
    %707 = vector.shape_cast %624 : vector<32x8xf32> to vector<2x16x8xf32>
    %708 = arith.truncf %705 : vector<2x16x8xf32> to vector<2x16x8xbf16>
    %709 = arith.truncf %706 : vector<2x16x8xf32> to vector<2x16x8xbf16>
    "tpu.trace_start"() <{level = 10 : i32, message = "ble,bse->bls"}> : () -> ()
    %cst_263 = arith.constant dense<0.000000e+00> : vector<2x16x16xf32>
    %710 = tpu.matmul %708, %709, %cst_263 {dimension_numbers = #tpu.dot_dimension_numbers<[2], [2], [1], [1], [0, 0, 0, 1, 1, 1], [0], [0]>} : vector<2x16x8xbf16>, vector<2x16x8xbf16>, vector<2x16x16xf32> -> vector<2x16x16xf32>
    "tpu.trace_stop"() : () -> ()
    %cst_264 = arith.constant 0.353553385 : f32
    %711 = vector.broadcast %cst_264 : f32 to vector<2x16x16xf32>
    %712 = arith.mulf %710, %711 : vector<2x16x16xf32>
    %cst_265 = arith.constant dense<0xFF800000> : vector<2x16xf32>
    %713 = vector.multi_reduction <maximumf>, %712, %cst_265 [2] : vector<2x16x16xf32> to vector<2x16xf32>
    %714 = vector.shape_cast %713 : vector<2x16xf32> to vector<2x16x1xf32>
    %715 = vector.broadcast %714 : vector<2x16x1xf32> to vector<2x16x16xf32>
    %716 = arith.subf %712, %715 : vector<2x16x16xf32>
    %717 = math.exp %716 : vector<2x16x16xf32>
    %cst_266 = arith.constant dense<0.000000e+00> : vector<2x16xf32>
    %718 = vector.multi_reduction <add>, %717, %cst_266 [2] : vector<2x16x16xf32> to vector<2x16xf32>
    %719 = vector.shape_cast %718 : vector<2x16xf32> to vector<2x16x1xf32>
    %720 = tpu.reciprocal %719 {approx = true} : vector<2x16x1xf32> -> vector<2x16x1xf32>
    %721 = vector.broadcast %720 : vector<2x16x1xf32> to vector<2x16x16xf32>
    %722 = arith.mulf %717, %721 : vector<2x16x16xf32>
    %723 = arith.truncf %722 : vector<2x16x16xf32> to vector<2x16x16xbf16>
    %724 = arith.truncf %707 : vector<2x16x8xf32> to vector<2x16x8xbf16>
    "tpu.trace_start"() <{level = 10 : i32, message = "bls,bse->ble"}> : () -> ()
    %cst_267 = arith.constant dense<0.000000e+00> : vector<2x16x8xf32>
    %725 = tpu.matmul %723, %724, %cst_267 {dimension_numbers = #tpu.dot_dimension_numbers<[2], [1], [1], [2], [0, 0, 0, 1, 1, 2], [0], [0]>} : vector<2x16x16xbf16>, vector<2x16x8xbf16>, vector<2x16x8xf32> -> vector<2x16x8xf32>
    "tpu.trace_stop"() : () -> ()
    %726 = vector.shape_cast %725 : vector<2x16x8xf32> to vector<32x8xf32>
    %c3_268 = arith.constant 3 : index
    %c0_269 = arith.constant 0 : index
    %c0_270 = arith.constant 0 : index
    %727 = vector.load %arg14[%c3_268, %c0_269, %c0_270] : memref<4x8x32xbf16, #tpu.memory_space<vmem>>, vector<1x8x32xbf16>
    %728 = vector.shape_cast %727 : vector<1x8x32xbf16> to vector<8x32xbf16>
    %729 = arith.truncf %726 : vector<32x8xf32> to vector<32x8xbf16>
    %cst_271 = arith.constant dense<0.000000e+00> : vector<32x32xf32>
    %730 = tpu.matmul %729, %728, %cst_271 {dimension_numbers = #tpu.dot_dimension_numbers<[1], [0], [0], [1], [0, 0, 1, 1], [], []>} : vector<32x8xbf16>, vector<8x32xbf16>, vector<32x32xf32> -> vector<32x32xf32>
    %731 = arith.addf %704, %730 : vector<32x32xf32>
    %c0_272 = arith.constant 0 : index
    %c0_273 = arith.constant 0 : index
    %732 = vector.load %arg11[%c0_272, %c0_273] : memref<1x32xf32, #tpu.memory_space<vmem>>, vector<1x32xf32>
    %733 = vector.broadcast %732 : vector<1x32xf32> to vector<32x32xf32>
    %734 = arith.addf %731, %733 : vector<32x32xf32>
    %735 = arith.addf %600, %734 : vector<32x32xf32>
    %cst_274 = arith.constant dense<0.000000e+00> : vector<32xf32>
    %736 = vector.multi_reduction <add>, %735, %cst_274 [1] : vector<32x32xf32> to vector<32xf32>
    %737 = vector.shape_cast %736 : vector<32xf32> to vector<32x1xf32>
    %cst_275 = arith.constant 3.200000e+01 : f32
    %738 = vector.broadcast %cst_275 : f32 to vector<32x1xf32>
    %739 = arith.divf %737, %738 : vector<32x1xf32>
    %740 = vector.broadcast %739 : vector<32x1xf32> to vector<32x32xf32>
    %741 = arith.subf %735, %740 : vector<32x32xf32>
    %742 = arith.mulf %741, %741 : vector<32x32xf32>
    %cst_276 = arith.constant dense<0.000000e+00> : vector<32xf32>
    %743 = vector.multi_reduction <add>, %742, %cst_276 [1] : vector<32x32xf32> to vector<32xf32>
    %744 = vector.shape_cast %743 : vector<32xf32> to vector<32x1xf32>
    %cst_277 = arith.constant 3.200000e+01 : f32
    %745 = vector.broadcast %cst_277 : f32 to vector<32x1xf32>
    %746 = arith.divf %744, %745 : vector<32x1xf32>
    %747 = vector.broadcast %739 : vector<32x1xf32> to vector<32x32xf32>
    %748 = arith.subf %735, %747 : vector<32x32xf32>
    %cst_278 = arith.constant 9.99999974E-6 : f32
    %749 = vector.broadcast %cst_278 : f32 to vector<32x1xf32>
    %750 = arith.addf %746, %749 : vector<32x1xf32>
    %751 = math.rsqrt %750 : vector<32x1xf32>
    %752 = vector.broadcast %751 : vector<32x1xf32> to vector<32x32xf32>
    %753 = arith.mulf %748, %752 : vector<32x32xf32>
    %c0_279 = arith.constant 0 : index
    %c0_280 = arith.constant 0 : index
    %754 = vector.load %arg19[%c0_279, %c0_280] : memref<1x32xf32, #tpu.memory_space<vmem>>, vector<1x32xf32>
    %755 = vector.broadcast %754 : vector<1x32xf32> to vector<32x32xf32>
    %756 = arith.mulf %753, %755 : vector<32x32xf32>
    %c0_281 = arith.constant 0 : index
    %c0_282 = arith.constant 0 : index
    %757 = vector.load %arg18[%c0_281, %c0_282] : memref<1x32xf32, #tpu.memory_space<vmem>>, vector<1x32xf32>
    %758 = vector.broadcast %757 : vector<1x32xf32> to vector<32x32xf32>
    %759 = arith.addf %756, %758 : vector<32x32xf32>
    %c0_283 = arith.constant 0 : index
    %c0_284 = arith.constant 0 : index
    %760 = vector.load %arg26[%c0_283, %c0_284] : memref<32x64xbf16, #tpu.memory_space<vmem>>, vector<32x64xbf16>
    %761 = arith.truncf %759 : vector<32x32xf32> to vector<32x32xbf16>
    %cst_285 = arith.constant dense<0.000000e+00> : vector<32x64xf32>
    %762 = tpu.matmul %761, %760, %cst_285 {dimension_numbers = #tpu.dot_dimension_numbers<[1], [0], [0], [1], [0, 0, 1, 1], [], []>} : vector<32x32xbf16>, vector<32x64xbf16>, vector<32x64xf32> -> vector<32x64xf32>
    %c0_286 = arith.constant 0 : index
    %c0_287 = arith.constant 0 : index
    %763 = vector.load %arg8[%c0_286, %c0_287] : memref<1x64xf32, #tpu.memory_space<vmem>>, vector<1x64xf32>
    %764 = vector.broadcast %763 : vector<1x64xf32> to vector<32x64xf32>
    %765 = arith.addf %762, %764 : vector<32x64xf32>
    %cst_288 = arith.constant 0.000000e+00 : f32
    %766 = vector.broadcast %cst_288 : f32 to vector<32x64xf32>
    %767 = arith.maximumf %765, %766 : vector<32x64xf32>
    %c0_289 = arith.constant 0 : index
    %c0_290 = arith.constant 0 : index
    %768 = vector.load %arg27[%c0_289, %c0_290] : memref<64x32xbf16, #tpu.memory_space<vmem>>, vector<64x32xbf16>
    %769 = arith.truncf %767 : vector<32x64xf32> to vector<32x64xbf16>
    %cst_291 = arith.constant dense<0.000000e+00> : vector<32x32xf32>
    %770 = tpu.matmul %769, %768, %cst_291 {dimension_numbers = #tpu.dot_dimension_numbers<[1], [0], [0], [1], [0, 0, 1, 1], [], []>} : vector<32x64xbf16>, vector<64x32xbf16>, vector<32x32xf32> -> vector<32x32xf32>
    %c0_292 = arith.constant 0 : index
    %c0_293 = arith.constant 0 : index
    %771 = vector.load %arg9[%c0_292, %c0_293] : memref<1x32xf32, #tpu.memory_space<vmem>>, vector<1x32xf32>
    %772 = vector.broadcast %771 : vector<1x32xf32> to vector<32x32xf32>
    %773 = arith.addf %770, %772 : vector<32x32xf32>
    %774 = arith.addf %759, %773 : vector<32x32xf32>
    %cst_294 = arith.constant dense<0.000000e+00> : vector<32xf32>
    %775 = vector.multi_reduction <add>, %774, %cst_294 [1] : vector<32x32xf32> to vector<32xf32>
    %776 = vector.shape_cast %775 : vector<32xf32> to vector<32x1xf32>
    %cst_295 = arith.constant 3.200000e+01 : f32
    %777 = vector.broadcast %cst_295 : f32 to vector<32x1xf32>
    %778 = arith.divf %776, %777 : vector<32x1xf32>
    %779 = vector.broadcast %778 : vector<32x1xf32> to vector<32x32xf32>
    %780 = arith.subf %774, %779 : vector<32x32xf32>
    %781 = arith.mulf %780, %780 : vector<32x32xf32>
    %cst_296 = arith.constant dense<0.000000e+00> : vector<32xf32>
    %782 = vector.multi_reduction <add>, %781, %cst_296 [1] : vector<32x32xf32> to vector<32xf32>
    %783 = vector.shape_cast %782 : vector<32xf32> to vector<32x1xf32>
    %cst_297 = arith.constant 3.200000e+01 : f32
    %784 = vector.broadcast %cst_297 : f32 to vector<32x1xf32>
    %785 = arith.divf %783, %784 : vector<32x1xf32>
    %786 = vector.broadcast %778 : vector<32x1xf32> to vector<32x32xf32>
    %787 = arith.subf %774, %786 : vector<32x32xf32>
    %cst_298 = arith.constant 9.99999974E-6 : f32
    %788 = vector.broadcast %cst_298 : f32 to vector<32x1xf32>
    %789 = arith.addf %785, %788 : vector<32x1xf32>
    %790 = math.rsqrt %789 : vector<32x1xf32>
    %791 = vector.broadcast %790 : vector<32x1xf32> to vector<32x32xf32>
    %792 = arith.mulf %787, %791 : vector<32x32xf32>
    %c0_299 = arith.constant 0 : index
    %c0_300 = arith.constant 0 : index
    %793 = vector.load %arg21[%c0_299, %c0_300] : memref<1x32xf32, #tpu.memory_space<vmem>>, vector<1x32xf32>
    %794 = vector.broadcast %793 : vector<1x32xf32> to vector<32x32xf32>
    %795 = arith.mulf %792, %794 : vector<32x32xf32>
    %c0_301 = arith.constant 0 : index
    %c0_302 = arith.constant 0 : index
    %796 = vector.load %arg20[%c0_301, %c0_302] : memref<1x32xf32, #tpu.memory_space<vmem>>, vector<1x32xf32>
    %797 = vector.broadcast %796 : vector<1x32xf32> to vector<32x32xf32>
    %798 = arith.addf %795, %797 : vector<32x32xf32>
    %cst_303 = arith.constant dense<0.000000e+00> : vector<32xf32>
    %799 = vector.multi_reduction <add>, %798, %cst_303 [1] : vector<32x32xf32> to vector<32xf32>
    %800 = vector.shape_cast %799 : vector<32xf32> to vector<32x1xf32>
    %cst_304 = arith.constant 3.200000e+01 : f32
    %801 = vector.broadcast %cst_304 : f32 to vector<32x1xf32>
    %802 = arith.divf %800, %801 : vector<32x1xf32>
    %803 = vector.broadcast %802 : vector<32x1xf32> to vector<32x32xf32>
    %804 = arith.subf %798, %803 : vector<32x32xf32>
    %805 = arith.mulf %804, %804 : vector<32x32xf32>
    %cst_305 = arith.constant dense<0.000000e+00> : vector<32xf32>
    %806 = vector.multi_reduction <add>, %805, %cst_305 [1] : vector<32x32xf32> to vector<32xf32>
    %807 = vector.shape_cast %806 : vector<32xf32> to vector<32x1xf32>
    %cst_306 = arith.constant 3.200000e+01 : f32
    %808 = vector.broadcast %cst_306 : f32 to vector<32x1xf32>
    %809 = arith.divf %807, %808 : vector<32x1xf32>
    %810 = vector.broadcast %802 : vector<32x1xf32> to vector<32x32xf32>
    %811 = arith.subf %798, %810 : vector<32x32xf32>
    %cst_307 = arith.constant 9.99999974E-6 : f32
    %812 = vector.broadcast %cst_307 : f32 to vector<32x1xf32>
    %813 = arith.addf %809, %812 : vector<32x1xf32>
    %814 = math.rsqrt %813 : vector<32x1xf32>
    %815 = vector.broadcast %814 : vector<32x1xf32> to vector<32x32xf32>
    %816 = arith.mulf %811, %815 : vector<32x32xf32>
    %c0_308 = arith.constant 0 : index
    %c0_309 = arith.constant 0 : index
    %817 = vector.load %arg29[%c0_308, %c0_309] : memref<1x32xf32, #tpu.memory_space<vmem>>, vector<1x32xf32>
    %818 = vector.broadcast %817 : vector<1x32xf32> to vector<32x32xf32>
    %819 = arith.mulf %816, %818 : vector<32x32xf32>
    %c0_310 = arith.constant 0 : index
    %c0_311 = arith.constant 0 : index
    %820 = vector.load %arg28[%c0_310, %c0_311] : memref<1x32xf32, #tpu.memory_space<vmem>>, vector<1x32xf32>
    %821 = vector.broadcast %820 : vector<1x32xf32> to vector<32x32xf32>
    %822 = arith.addf %819, %821 : vector<32x32xf32>
    %c0_312 = arith.constant 0 : index
    %c0_313 = arith.constant 0 : index
    %823 = vector.load %arg31[%c0_312, %c0_313] : memref<32x4xbf16, #tpu.memory_space<vmem>>, vector<32x4xbf16>
    %824 = arith.truncf %822 : vector<32x32xf32> to vector<32x32xbf16>
    %cst_314 = arith.constant dense<0.000000e+00> : vector<32x4xf32>
    %825 = tpu.matmul %824, %823, %cst_314 {dimension_numbers = #tpu.dot_dimension_numbers<[1], [0], [0], [1], [0, 0, 1, 1], [], []>} : vector<32x32xbf16>, vector<32x4xbf16>, vector<32x4xf32> -> vector<32x4xf32>
    %c0_315 = arith.constant 0 : index
    %c0_316 = arith.constant 0 : index
    %826 = vector.load %arg30[%c0_315, %c0_316] : memref<1x4xf32, #tpu.memory_space<vmem>>, vector<1x4xf32>
    %827 = vector.broadcast %826 : vector<1x4xf32> to vector<32x4xf32>
    %828 = arith.addf %825, %827 : vector<32x4xf32>
    %c0_317 = arith.constant 0 : index
    %c0_318 = arith.constant 0 : index
    %829 = vector.load %arg60[%c0_317, %c0_318] : memref<32x4xf32, #tpu.memory_space<vmem>>, vector<32x4xf32>
    tpu.vector_store %arg60[%c0_317, %c0_318], %828 {strides = array<i32>} : memref<32x4xf32, #tpu.memory_space<vmem>>, vector<32x4xf32>,
    return
  }
}

</mosaic_0001>

<llo_original>
// kernel: proformer_forward.1
$region0: #{proformer_forward.1}
  #allocation0 [shape = 'u32[]', space=smem, size = 0x4, offset = 0x4, fixed_abs, tag = 'smem constant byte address 0x4 - core index']
  #allocation1 [shape = 'u32[72,128]{1,0:T(1,128)}', space=vmem, size = 0x9000, scoped, tag = 'internal scratch']
  %s0 = inlined_call_operand.smem [shape: u32[61], index: -1, kind: input, shape index: {}]
  %s1 = sld [smem:[%s0]]
  %s2 = scalar_lea.smem %s0, 1
  %s3 = sld [smem:[%s2]]
  %s4 = scalar_lea.smem %s0, 2
  %s5 = sld [smem:[%s4]]
  %s6 = scalar_lea.smem %s0, 3
  %s7 = sld [smem:[%s6]]
  %s8 = scalar_lea.smem %s0, 4
  %s9 = sld [smem:[%s8]]
  %s10 = scalar_lea.smem %s0, 5
  %s11 = sld [smem:[%s10]]
  %s12 = scalar_lea.smem %s0, 6
  %s13 = sld [smem:[%s12]]
  %s14 = scalar_lea.smem %s0, 7
  %s15 = sld [smem:[%s14]]
  %s16 = scalar_lea.smem %s0, 8
  %s17 = sld [smem:[%s16]]
  %s18 = scalar_lea.smem %s0, 9
  %s19 = sld [smem:[%s18]]
  %s20 = scalar_lea.smem %s0, 10
  %s21 = sld [smem:[%s20]]
  %s22 = scalar_lea.smem %s0, 11
  %s23 = sld [smem:[%s22]]
  %s24 = scalar_lea.smem %s0, 12
  %s25 = sld [smem:[%s24]]
  %s26 = scalar_lea.smem %s0, 13
  %s27 = sld [smem:[%s26]]
  %s28 = scalar_lea.smem %s0, 14
  %s29 = sld [smem:[%s28]]
  %s30 = scalar_lea.smem %s0, 15
  %s31 = sld [smem:[%s30]]
  %s32 = scalar_lea.smem %s0, 16
  %s33 = sld [smem:[%s32]]
  %s34 = scalar_lea.smem %s0, 17
  %s35 = sld [smem:[%s34]]
  %s36 = scalar_lea.smem %s0, 18
  %s37 = sld [smem:[%s36]]
  %s38 = scalar_lea.smem %s0, 19
  %s39 = sld [smem:[%s38]]
  %s40 = scalar_lea.smem %s0, 20
  %s41 = sld [smem:[%s40]]
  %s42 = scalar_lea.smem %s0, 21
  %s43 = sld [smem:[%s42]]
  %s44 = scalar_lea.smem %s0, 22
  %s45 = sld [smem:[%s44]]
  %s46 = scalar_lea.smem %s0, 23
  %s47 = sld [smem:[%s46]]
  %s48 = scalar_lea.smem %s0, 24
  %s49 = sld [smem:[%s48]]
  %s50 = scalar_lea.smem %s0, 25
  %s51 = sld [smem:[%s50]]
  %s52 = scalar_lea.smem %s0, 26
  %s53 = sld [smem:[%s52]]
  %s54 = scalar_lea.smem %s0, 27
  %s55 = sld [smem:[%s54]]
  %s56 = scalar_lea.smem %s0, 28
  %s57 = sld [smem:[%s56]]
  %s58 = scalar_lea.smem %s0, 29
  %s59 = sld [smem:[%s58]]
  %s60 = scalar_lea.smem %s0, 30
  %s61 = sld [smem:[%s60]]
  %s62 = scalar_lea.smem %s0, 31
  %s63 = sld [smem:[%s62]]
  %s64 = scalar_lea.smem %s0, 32
  %s65 = sld [smem:[%s64]]
  %s66 = scalar_lea.smem %s0, 33
  %s67 = sld [smem:[%s66]]
  %s68 = scalar_lea.smem %s0, 34
  %s69 = sld [smem:[%s68]]
  %s70 = scalar_lea.smem %s0, 35
  %s71 = sld [smem:[%s70]]
  %s72 = scalar_lea.smem %s0, 36
  %s73 = sld [smem:[%s72]]
  %s74 = scalar_lea.smem %s0, 37
  %s75 = sld [smem:[%s74]]
  %s76 = scalar_lea.smem %s0, 38
  %s77 = sld [smem:[%s76]]
  %s78 = scalar_lea.smem %s0, 39
  %s79 = sld [smem:[%s78]]
  %s80 = scalar_lea.smem %s0, 40
  %s81 = sld [smem:[%s80]]
  %s82 = scalar_lea.smem %s0, 41
  %s83 = sld [smem:[%s82]]
  %s84 = scalar_lea.smem %s0, 42
  %s85 = sld [smem:[%s84]]
  %s86 = scalar_lea.smem %s0, 43
  %s87 = sld [smem:[%s86]]
  %s88 = scalar_lea.smem %s0, 44
  %s89 = sld [smem:[%s88]]
  %s90 = scalar_lea.smem %s0, 45
  %s91 = sld [smem:[%s90]]
  %s92 = scalar_lea.smem %s0, 46
  %s93 = sld [smem:[%s92]]
  %s94 = scalar_lea.smem %s0, 47
  %s95 = sld [smem:[%s94]]
  %s96 = scalar_lea.smem %s0, 48
  %s97 = sld [smem:[%s96]]
  %s98 = scalar_lea.smem %s0, 49
  %s99 = sld [smem:[%s98]]
  %s100 = scalar_lea.smem %s0, 50
  %s101 = sld [smem:[%s100]]
  %s102 = scalar_lea.smem %s0, 51
  %s103 = sld [smem:[%s102]]
  %s104 = scalar_lea.smem %s0, 52
  %s105 = sld [smem:[%s104]]
  %s106 = scalar_lea.smem %s0, 53
  %s107 = sld [smem:[%s106]]
  %s108 = scalar_lea.smem %s0, 54
  %s109 = sld [smem:[%s108]]
  %s110 = scalar_lea.smem %s0, 55
  %s111 = sld [smem:[%s110]]
  %s112 = scalar_lea.smem %s0, 56
  %s113 = sld [smem:[%s112]]
  %s114 = scalar_lea.smem %s0, 57
  %s115 = sld [smem:[%s114]]
  %s116 = scalar_lea.smem %s0, 58
  %s117 = sld [smem:[%s116]]
  %s118 = scalar_lea.smem %s0, 59
  %s119 = sld [smem:[%s118]]
  %s120 = scalar_lea.smem %s0, 60
  %s121 = sld [smem:[%s120]]
  %s122 = sld [smem:[#allocation0]]
  $region250: #{proformer_forward.1} parent=0
    _
  %s124 = ssub.s32 1, %s122
  %s125 = scalar_select 0, %s124, %s122
  // Predicated region
  $region2: #{proformer_forward.1} parent=0 // pred_check
    _
  $region3: #{proformer_forward.1} parent=0 // pred_check_branch
    %127 = sbr.rel (0) target = $region5
  $region4: #{proformer_forward.1} parent=0 // pred_region
    _
  $region5: #{proformer_forward.1} parent=0 // pred_fallthru
    _
  // Predicated region
  $region6: #{proformer_forward.1} parent=0 // pred_check
    _
  $region7: #{proformer_forward.1} parent=0 // pred_check_branch
    %129 = sbr.rel (0) target = $region9
  $region8: #{proformer_forward.1} parent=0 // pred_region
    _
  $region9: #{proformer_forward.1} parent=0 // pred_fallthru
    _
  // Predicated region
  $region10: #{proformer_forward.1} parent=0 // pred_check
    _
  $region11: #{proformer_forward.1} parent=0 // pred_check_branch
    %131 = sbr.rel (0) target = $region13
  $region12: #{proformer_forward.1} parent=0 // pred_region
    _
  $region13: #{proformer_forward.1} parent=0 // pred_fallthru
    _
  // Predicated region
  $region14: #{proformer_forward.1} parent=0 // pred_check
    _
  $region15: #{proformer_forward.1} parent=0 // pred_check_branch
    %133 = sbr.rel (0) target = $region17
  $region16: #{proformer_forward.1} parent=0 // pred_region
    _
  $region17: #{proformer_forward.1} parent=0 // pred_fallthru
    _
  // Predicated region
  $region18: #{proformer_forward.1} parent=0 // pred_check
    _
  $region19: #{proformer_forward.1} parent=0 // pred_check_branch
    %135 = sbr.rel (0) target = $region21
  $region20: #{proformer_forward.1} parent=0 // pred_region
    _
  $region21: #{proformer_forward.1} parent=0 // pred_fallthru
    _
  // Predicated region
  $region22: #{proformer_forward.1} parent=0 // pred_check
    _
  $region23: #{proformer_forward.1} parent=0 // pred_check_branch
    %137 = sbr.rel (0) target = $region25
  $region24: #{proformer_forward.1} parent=0 // pred_region
    _
  $region25: #{proformer_forward.1} parent=0 // pred_fallthru
    _
  // Predicated region
  $region26: #{proformer_forward.1} parent=0 // pred_check
    _
  $region27: #{proformer_forward.1} parent=0 // pred_check_branch
    %139 = sbr.rel (0) target = $region29
  $region28: #{proformer_forward.1} parent=0 // pred_region
    _
  $region29: #{proformer_forward.1} parent=0 // pred_fallthru
    _
  // Predicated region
  $region30: #{proformer_forward.1} parent=0 // pred_check
    _
  $region31: #{proformer_forward.1} parent=0 // pred_check_branch
    %141 = sbr.rel (0) target = $region33
  $region32: #{proformer_forward.1} parent=0 // pred_region
    _
  $region33: #{proformer_forward.1} parent=0 // pred_fallthru
    _
  // Predicated region
  $region34: #{proformer_forward.1} parent=0 // pred_check
    _
  $region35: #{proformer_forward.1} parent=0 // pred_check_branch
    %143 = sbr.rel (0) target = $region37
  $region36: #{proformer_forward.1} parent=0 // pred_region
    _
  $region37: #{proformer_forward.1} parent=0 // pred_fallthru
    _
  // Predicated region
  $region38: #{proformer_forward.1} parent=0 // pred_check
    _
  $region39: #{proformer_forward.1} parent=0 // pred_check_branch
    %145 = sbr.rel (0) target = $region41
  $region40: #{proformer_forward.1} parent=0 // pred_region
    _
  $region41: #{proformer_forward.1} parent=0 // pred_fallthru
    _
  // Predicated region
  $region42: #{proformer_forward.1} parent=0 // pred_check
    _
  $region43: #{proformer_forward.1} parent=0 // pred_check_branch
    %147 = sbr.rel (0) target = $region45
  $region44: #{proformer_forward.1} parent=0 // pred_region
    _
  $region45: #{proformer_forward.1} parent=0 // pred_fallthru
    _
  // Predicated region
  $region46: #{proformer_forward.1} parent=0 // pred_check
    _
  $region47: #{proformer_forward.1} parent=0 // pred_check_branch
    %149 = sbr.rel (0) target = $region49
  $region48: #{proformer_forward.1} parent=0 // pred_region
    _
  $region49: #{proformer_forward.1} parent=0 // pred_fallthru
    _
  // Predicated region
  $region50: #{proformer_forward.1} parent=0 // pred_check
    _
  $region51: #{proformer_forward.1} parent=0 // pred_check_branch
    %151 = sbr.rel (0) target = $region53
  $region52: #{proformer_forward.1} parent=0 // pred_region
    _
  $region53: #{proformer_forward.1} parent=0 // pred_fallthru
    _
  // Predicated region
  $region54: #{proformer_forward.1} parent=0 // pred_check
    _
  $region55: #{proformer_forward.1} parent=0 // pred_check_branch
    %153 = sbr.rel (0) target = $region57
  $region56: #{proformer_forward.1} parent=0 // pred_region
    _
  $region57: #{proformer_forward.1} parent=0 // pred_fallthru
    _
  // Predicated region
  $region58: #{proformer_forward.1} parent=0 // pred_check
    _
  $region59: #{proformer_forward.1} parent=0 // pred_check_branch
    %155 = sbr.rel (0) target = $region61
  $region60: #{proformer_forward.1} parent=0 // pred_region
    _
  $region61: #{proformer_forward.1} parent=0 // pred_fallthru
    _
  // Predicated region
  $region62: #{proformer_forward.1} parent=0 // pred_check
    _
  $region63: #{proformer_forward.1} parent=0 // pred_check_branch
    %157 = sbr.rel (0) target = $region65
  $region64: #{proformer_forward.1} parent=0 // pred_region
    _
  $region65: #{proformer_forward.1} parent=0 // pred_fallthru
    _
  // Predicated region
  $region66: #{proformer_forward.1} parent=0 // pred_check
    _
  $region67: #{proformer_forward.1} parent=0 // pred_check_branch
    %159 = sbr.rel (0) target = $region69
  $region68: #{proformer_forward.1} parent=0 // pred_region
    _
  $region69: #{proformer_forward.1} parent=0 // pred_fallthru
    _
  // Predicated region
  $region70: #{proformer_forward.1} parent=0 // pred_check
    _
  $region71: #{proformer_forward.1} parent=0 // pred_check_branch
    %161 = sbr.rel (0) target = $region73
  $region72: #{proformer_forward.1} parent=0 // pred_region
    _
  $region73: #{proformer_forward.1} parent=0 // pred_fallthru
    _
  // Predicated region
  $region74: #{proformer_forward.1} parent=0 // pred_check
    _
  $region75: #{proformer_forward.1} parent=0 // pred_check_branch
    %163 = sbr.rel (0) target = $region77
  $region76: #{proformer_forward.1} parent=0 // pred_region
    _
  $region77: #{proformer_forward.1} parent=0 // pred_fallthru
    _
  // Predicated region
  $region78: #{proformer_forward.1} parent=0 // pred_check
    _
  $region79: #{proformer_forward.1} parent=0 // pred_check_branch
    %165 = sbr.rel (0) target = $region81
  $region80: #{proformer_forward.1} parent=0 // pred_region
    _
  $region81: #{proformer_forward.1} parent=0 // pred_fallthru
    _
  // Predicated region
  $region82: #{proformer_forward.1} parent=0 // pred_check
    _
  $region83: #{proformer_forward.1} parent=0 // pred_check_branch
    %167 = sbr.rel (0) target = $region85
  $region84: #{proformer_forward.1} parent=0 // pred_region
    _
  $region85: #{proformer_forward.1} parent=0 // pred_fallthru
    _
  // Predicated region
  $region86: #{proformer_forward.1} parent=0 // pred_check
    _
  $region87: #{proformer_forward.1} parent=0 // pred_check_branch
    %169 = sbr.rel (0) target = $region89
  $region88: #{proformer_forward.1} parent=0 // pred_region
    _
  $region89: #{proformer_forward.1} parent=0 // pred_fallthru
    _
  // Predicated region
  $region90: #{proformer_forward.1} parent=0 // pred_check
    _
  $region91: #{proformer_forward.1} parent=0 // pred_check_branch
    %171 = sbr.rel (0) target = $region93
  $region92: #{proformer_forward.1} parent=0 // pred_region
    _
  $region93: #{proformer_forward.1} parent=0 // pred_fallthru
    _
  // Predicated region
  $region94: #{proformer_forward.1} parent=0 // pred_check
    _
  $region95: #{proformer_forward.1} parent=0 // pred_check_branch
    %173 = sbr.rel (0) target = $region97
  $region96: #{proformer_forward.1} parent=0 // pred_region
    _
  $region97: #{proformer_forward.1} parent=0 // pred_fallthru
    _
  // Predicated region
  $region98: #{proformer_forward.1} parent=0 // pred_check
    _
  $region99: #{proformer_forward.1} parent=0 // pred_check_branch
    %175 = sbr.rel (0) target = $region101
  $region100: #{proformer_forward.1} parent=0 // pred_region
    _
  $region101: #{proformer_forward.1} parent=0 // pred_fallthru
    _
  // Predicated region
  $region102: #{proformer_forward.1} parent=0 // pred_check
    _
  $region103: #{proformer_forward.1} parent=0 // pred_check_branch
    %177 = sbr.rel (0) target = $region105
  $region104: #{proformer_forward.1} parent=0 // pred_region
    _
  $region105: #{proformer_forward.1} parent=0 // pred_fallthru
    _
  // Predicated region
  $region106: #{proformer_forward.1} parent=0 // pred_check
    _
  $region107: #{proformer_forward.1} parent=0 // pred_check_branch
    %179 = sbr.rel (0) target = $region109
  $region108: #{proformer_forward.1} parent=0 // pred_region
    _
  $region109: #{proformer_forward.1} parent=0 // pred_fallthru
    _
  // Predicated region
  $region110: #{proformer_forward.1} parent=0 // pred_check
    _
  $region111: #{proformer_forward.1} parent=0 // pred_check_branch
    %181 = sbr.rel (0) target = $region113
  $region112: #{proformer_forward.1} parent=0 // pred_region
    _
  $region113: #{proformer_forward.1} parent=0 // pred_fallthru
    _
  // Predicated region
  $region114: #{proformer_forward.1} parent=0 // pred_check
    _
  $region115: #{proformer_forward.1} parent=0 // pred_check_branch
    %183 = sbr.rel (0) target = $region117
  $region116: #{proformer_forward.1} parent=0 // pred_region
    _
  $region117: #{proformer_forward.1} parent=0 // pred_fallthru
    _
  // Predicated region
  $region118: #{proformer_forward.1} parent=0 // pred_check
    _
  $region119: #{proformer_forward.1} parent=0 // pred_check_branch
    %185 = sbr.rel (0) target = $region121
  $region120: #{proformer_forward.1} parent=0 // pred_region
    _
  $region121: #{proformer_forward.1} parent=0 // pred_fallthru
    _
  // Predicated region
  $region122: #{proformer_forward.1} parent=0 // pred_check
    _
  $region123: #{proformer_forward.1} parent=0 // pred_check_branch
    %187 = sbr.rel (0) target = $region125
  $region124: #{proformer_forward.1} parent=0 // pred_region
    _
  $region125: #{proformer_forward.1} parent=0 // pred_fallthru
    _
  // Predicated region
  $region126: #{proformer_forward.1} parent=0 // pred_check
    _
  $region127: #{proformer_forward.1} parent=0 // pred_check_branch
    %189 = sbr.rel (0) target = $region129
  $region128: #{proformer_forward.1} parent=0 // pred_region
    _
  $region129: #{proformer_forward.1} parent=0 // pred_fallthru
    _
  // Predicated region
  $region130: #{proformer_forward.1} parent=0 // pred_check
    _
  $region131: #{proformer_forward.1} parent=0 // pred_check_branch
    %191 = sbr.rel (0) target = $region133
  $region132: #{proformer_forward.1} parent=0 // pred_region
    _
  $region133: #{proformer_forward.1} parent=0 // pred_fallthru
    _
  // Predicated region
  $region134: #{proformer_forward.1} parent=0 // pred_check
    _
  $region135: #{proformer_forward.1} parent=0 // pred_check_branch
    %193 = sbr.rel (0) target = $region137
  $region136: #{proformer_forward.1} parent=0 // pred_region
    _
  $region137: #{proformer_forward.1} parent=0 // pred_fallthru
    _
  // Predicated region
  $region138: #{proformer_forward.1} parent=0 // pred_check
    _
  $region139: #{proformer_forward.1} parent=0 // pred_check_branch
    %195 = sbr.rel (0) target = $region141
  $region140: #{proformer_forward.1} parent=0 // pred_region
    _
  $region141: #{proformer_forward.1} parent=0 // pred_fallthru
    _
  // Predicated region
  $region142: #{proformer_forward.1} parent=0 // pred_check
    _
  $region143: #{proformer_forward.1} parent=0 // pred_check_branch
    %197 = sbr.rel (0) target = $region145
  $region144: #{proformer_forward.1} parent=0 // pred_region
    _
  $region145: #{proformer_forward.1} parent=0 // pred_fallthru
    _
  // Predicated region
  $region146: #{proformer_forward.1} parent=0 // pred_check
    _
  $region147: #{proformer_forward.1} parent=0 // pred_check_branch
    %199 = sbr.rel (0) target = $region149
  $region148: #{proformer_forward.1} parent=0 // pred_region
    _
  $region149: #{proformer_forward.1} parent=0 // pred_fallthru
    _
  // Predicated region
  $region150: #{proformer_forward.1} parent=0 // pred_check
    _
  $region151: #{proformer_forward.1} parent=0 // pred_check_branch
    %201 = sbr.rel (0) target = $region153
  $region152: #{proformer_forward.1} parent=0 // pred_region
    _
  $region153: #{proformer_forward.1} parent=0 // pred_fallthru
    _
  // Predicated region
  $region154: #{proformer_forward.1} parent=0 // pred_check
    _
  $region155: #{proformer_forward.1} parent=0 // pred_check_branch
    %203 = sbr.rel (0) target = $region157
  $region156: #{proformer_forward.1} parent=0 // pred_region
    _
  $region157: #{proformer_forward.1} parent=0 // pred_fallthru
    _
  // Predicated region
  $region158: #{proformer_forward.1} parent=0 // pred_check
    _
  $region159: #{proformer_forward.1} parent=0 // pred_check_branch
    %205 = sbr.rel (0) target = $region161
  $region160: #{proformer_forward.1} parent=0 // pred_region
    _
  $region161: #{proformer_forward.1} parent=0 // pred_fallthru
    _
  // Predicated region
  $region162: #{proformer_forward.1} parent=0 // pred_check
    _
  $region163: #{proformer_forward.1} parent=0 // pred_check_branch
    %207 = sbr.rel (0) target = $region165
  $region164: #{proformer_forward.1} parent=0 // pred_region
    _
  $region165: #{proformer_forward.1} parent=0 // pred_fallthru
    _
  // Predicated region
  $region166: #{proformer_forward.1} parent=0 // pred_check
    _
  $region167: #{proformer_forward.1} parent=0 // pred_check_branch
    %209 = sbr.rel (0) target = $region169
  $region168: #{proformer_forward.1} parent=0 // pred_region
    _
  $region169: #{proformer_forward.1} parent=0 // pred_fallthru
    _
  // Predicated region
  $region170: #{proformer_forward.1} parent=0 // pred_check
    _
  $region171: #{proformer_forward.1} parent=0 // pred_check_branch
    %211 = sbr.rel (0) target = $region173
  $region172: #{proformer_forward.1} parent=0 // pred_region
    _
  $region173: #{proformer_forward.1} parent=0 // pred_fallthru
    _
  // Predicated region
  $region174: #{proformer_forward.1} parent=0 // pred_check
    _
  $region175: #{proformer_forward.1} parent=0 // pred_check_branch
    %213 = sbr.rel (0) target = $region177
  $region176: #{proformer_forward.1} parent=0 // pred_region
    _
  $region177: #{proformer_forward.1} parent=0 // pred_fallthru
    _
  // Predicated region
  $region178: #{proformer_forward.1} parent=0 // pred_check
    _
  $region179: #{proformer_forward.1} parent=0 // pred_check_branch
    %215 = sbr.rel (0) target = $region181
  $region180: #{proformer_forward.1} parent=0 // pred_region
    _
  $region181: #{proformer_forward.1} parent=0 // pred_fallthru
    _
  // Predicated region
  $region182: #{proformer_forward.1} parent=0 // pred_check
    _
  $region183: #{proformer_forward.1} parent=0 // pred_check_branch
    %217 = sbr.rel (0) target = $region185
  $region184: #{proformer_forward.1} parent=0 // pred_region
    _
  $region185: #{proformer_forward.1} parent=0 // pred_fallthru
    _
  // Predicated region
  $region186: #{proformer_forward.1} parent=0 // pred_check
    _
  $region187: #{proformer_forward.1} parent=0 // pred_check_branch
    %219 = sbr.rel (0) target = $region189
  $region188: #{proformer_forward.1} parent=0 // pred_region
    _
  $region189: #{proformer_forward.1} parent=0 // pred_fallthru
    _
  // Predicated region
  $region190: #{proformer_forward.1} parent=0 // pred_check
    _
  $region191: #{proformer_forward.1} parent=0 // pred_check_branch
    %221 = sbr.rel (0) target = $region193
  $region192: #{proformer_forward.1} parent=0 // pred_region
    _
  $region193: #{proformer_forward.1} parent=0 // pred_fallthru
    _
  // Predicated region
  $region194: #{proformer_forward.1} parent=0 // pred_check
    _
  $region195: #{proformer_forward.1} parent=0 // pred_check_branch
    %223 = sbr.rel (0) target = $region197
  $region196: #{proformer_forward.1} parent=0 // pred_region
    _
  $region197: #{proformer_forward.1} parent=0 // pred_fallthru
    _
  // Predicated region
  $region198: #{proformer_forward.1} parent=0 // pred_check
    _
  $region199: #{proformer_forward.1} parent=0 // pred_check_branch
    %225 = sbr.rel (0) target = $region201
  $region200: #{proformer_forward.1} parent=0 // pred_region
    _
  $region201: #{proformer_forward.1} parent=0 // pred_fallthru
    _
  // Predicated region
  $region202: #{proformer_forward.1} parent=0 // pred_check
    _
  $region203: #{proformer_forward.1} parent=0 // pred_check_branch
    %227 = sbr.rel (0) target = $region205
  $region204: #{proformer_forward.1} parent=0 // pred_region
    _
  $region205: #{proformer_forward.1} parent=0 // pred_fallthru
    _
  // Predicated region
  $region206: #{proformer_forward.1} parent=0 // pred_check
    _
  $region207: #{proformer_forward.1} parent=0 // pred_check_branch
    %229 = sbr.rel (0) target = $region209
  $region208: #{proformer_forward.1} parent=0 // pred_region
    _
  $region209: #{proformer_forward.1} parent=0 // pred_fallthru
    _
  // Predicated region
  $region210: #{proformer_forward.1} parent=0 // pred_check
    _
  $region211: #{proformer_forward.1} parent=0 // pred_check_branch
    %231 = sbr.rel (0) target = $region213
  $region212: #{proformer_forward.1} parent=0 // pred_region
    _
  $region213: #{proformer_forward.1} parent=0 // pred_fallthru
    _
  // Predicated region
  $region214: #{proformer_forward.1} parent=0 // pred_check
    _
  $region215: #{proformer_forward.1} parent=0 // pred_check_branch
    %233 = sbr.rel (0) target = $region217
  $region216: #{proformer_forward.1} parent=0 // pred_region
    _
  $region217: #{proformer_forward.1} parent=0 // pred_fallthru
    _
  // Predicated region
  $region218: #{proformer_forward.1} parent=0 // pred_check
    _
  $region219: #{proformer_forward.1} parent=0 // pred_check_branch
    %235 = sbr.rel (0) target = $region221
  $region220: #{proformer_forward.1} parent=0 // pred_region
    _
  $region221: #{proformer_forward.1} parent=0 // pred_fallthru
    _
  // Predicated region
  $region222: #{proformer_forward.1} parent=0 // pred_check
    _
  $region223: #{proformer_forward.1} parent=0 // pred_check_branch
    %237 = sbr.rel (0) target = $region225
  $region224: #{proformer_forward.1} parent=0 // pred_region
    _
  $region225: #{proformer_forward.1} parent=0 // pred_fallthru
    _
  // Predicated region
  $region226: #{proformer_forward.1} parent=0 // pred_check
    _
  $region227: #{proformer_forward.1} parent=0 // pred_check_branch
    %239 = sbr.rel (0) target = $region229
  $region228: #{proformer_forward.1} parent=0 // pred_region
    _
  $region229: #{proformer_forward.1} parent=0 // pred_fallthru
    _
  // Predicated region
  $region230: #{proformer_forward.1} parent=0 // pred_check
    _
  $region231: #{proformer_forward.1} parent=0 // pred_check_branch
    %241 = sbr.rel (0) target = $region233
  $region232: #{proformer_forward.1} parent=0 // pred_region
    _
  $region233: #{proformer_forward.1} parent=0 // pred_fallthru
    _
  // Predicated region
  $region234: #{proformer_forward.1} parent=0 // pred_check
    _
  $region235: #{proformer_forward.1} parent=0 // pred_check_branch
    %243 = sbr.rel (0) target = $region237
  $region236: #{proformer_forward.1} parent=0 // pred_region
    _
  $region237: #{proformer_forward.1} parent=0 // pred_fallthru
    _
  // Predicated region
  $region238: #{proformer_forward.1} parent=0 // pred_check
    _
  $region239: #{proformer_forward.1} parent=0 // pred_check_branch
    %245 = sbr.rel (0) target = $region241
  $region240: #{proformer_forward.1} parent=0 // pred_region
    _
  $region241: #{proformer_forward.1} parent=0 // pred_fallthru
    _
  %v247 = vlaneseq
  %v248 = vshrl.u32 %v247, 7
  %v249 = vadd.s32 %v248, 8
  %v250 = vlaneseq
  %v251 = vand.u32 %v250, 127
  %vm252 = vcmp.gt.s32.totalorder %v251, %v248
  %vm253 = vcmp.gt.s32.totalorder %v251, %v249
  %v254 = vsel %vm252, -1e+30, 0.0
  %v255 = vsel %vm253, -1e+30, 0.0
  %v256 = vld [vmem:[%s1] sm:$0xff]
  %v257 = vld [vmem:[%s1 + $0x8] sm:$0xff]
  %v258 = vld [vmem:[%s1 + $0x10] sm:$0xff]
  %v259 = vld [vmem:[%s1 + $0x18] sm:$0xff]
  %v260 = vld [vmem:[%s67] sm:$0xf]
  %v261 = vld [vmem:[%s67 + $0x4] sm:$0x3]
  %v262 = vpack.c.bf16 %v257, %v256
  %v263 = vpack.c.bf16 %v259, %v258
  %v264 = vld [vmem:[%s3] sm:$0xff]
  %v265 = vld [vmem:[%s3 + $0x8] sm:$0xff]
  %v266 = vld [vmem:[%s3 + $0x10] sm:$0xff]
  %v267 = vld [vmem:[%s3 + $0x18] sm:$0xff]
  %v268 = vld [vmem:[%s65] sm:$0x3]
  %v269 = vpack.c.bf16 %v265, %v264
  %v270 = vpack.c.bf16 %v267, %v266
  %vm271 = vcmask 31744
  %v273 = vsel %vm271, %v269, 0
  %v276 = vsel %vm271, %v270, 0
  %vm278 = vcmask 1041408
  %v280 = vsel %vm278, %v268, 0
  %282 = vmatpush.bf16.msra.mxu0 0
  %283 = vmatpush.bf16.msra.mxu0 0
  %284 = vmatpush.bf16.msra.mxu0 0
  %285 = vmatpush.bf16.msra.mxu0 0
  %286 = vmatpush.bf16.msra.mxu0 0
  %287 = vmatpush.bf16.msra.mxu0 0
  %288 = vmatpush.bf16.msra.mxu0 0
  %289 = vmatpush.bf16.msra.mxu0 %v280
  %290 = vmatmul.bf16.gmra.mxu0 %v273
  %v291 = vpop.f32.mrf.mxu0
  %v292 = vadd.f32 0.0, %v291
  %v293 = vpop.f32.mrf.mxu0
  %v294 = vadd.f32 0.0, %v293
  %295 = vmatmul.bf16.gmra.mxu0 %v276
  %v296 = vpop.f32.mrf.mxu0
  %v297 = vadd.f32 0.0, %v296
  %v298 = vpop.f32.mrf.mxu0
  %v299 = vadd.f32 0.0, %v298
  %300 = vdwg.mxu0
  %v303 = vunpack.c.l.b16 %v260
  %v304 = vunpack.c.l.b16 %v261
  %v305 = vpack.c.b16 %v304, %v303
  %vm306 = vcmask 97280
  %v308 = vsel %vm306, %v262, 0
  %v311 = vsel %vm306, %v263, 0
  %vm313 = vcmask 1045504
  %v315 = vsel %vm313, %v305, 0
  %317 = vmatpush.bf16.msra.mxu0 0
  %318 = vmatpush.bf16.msra.mxu0 0
  %319 = vmatpush.bf16.msra.mxu0 0
  %320 = vmatpush.bf16.msra.mxu0 0
  %321 = vmatpush.bf16.msra.mxu0 0
  %322 = vmatpush.bf16.msra.mxu0 0
  %323 = vmatpush.bf16.msra.mxu0 0
  %324 = vmatpush.bf16.msra.mxu0 %v315
  %325 = vmatmul.bf16.gmra.mxu0 %v308
  %v326 = vpop.f32.mrf.mxu0
  %v327 = vadd.f32 %v292, %v326
  %v328 = vpop.f32.mrf.mxu0
  %v329 = vadd.f32 %v294, %v328
  %330 = vmatmul.bf16.gmra.mxu0 %v311
  %v331 = vpop.f32.mrf.mxu0
  %v332 = vadd.f32 %v297, %v331
  %v333 = vpop.f32.mrf.mxu0
  %v334 = vadd.f32 %v299, %v333
  %335 = vdwg.mxu0
  %v336 = vld [vmem:[%s5] sm:$0xff]
  %v337 = vld [vmem:[%s5 + $0x8] sm:$0xff]
  %v338 = vld [vmem:[%s5 + $0x10] sm:$0xff]
  %v339 = vld [vmem:[%s5 + $0x18] sm:$0xff]
  %v340 = vadd.f32 %v327, %v336
  %v341 = vadd.f32 %v329, %v337
  %v342 = vadd.f32 %v332, %v338
  %v343 = vadd.f32 %v334, %v339
  %v344 = vld [vmem:[%s75] sm:$0xf]
  %v345 = vld [vmem:[%s75 + $0x4] sm:$0xf]
  %v346 = vld [vmem:[%s75 + $0x8] sm:$0xf]
  %v347 = vld [vmem:[%s75 + $0xc] sm:$0xf]
  %v348 = vpack.c.bf16 %v341, %v340
  %v349 = vpack.c.bf16 %v343, %v342
  %v350 = vld [vmem:[%s71] sm:$0x1]
  %v352 = vperm.slane %v350, 0
  %v358 = vunpack.c.l.b16 %v344
  %v359 = vunpack.c.l.b16 %v345
  %v360 = vunpack.c.l.b16 %v346
  %v361 = vunpack.c.l.b16 %v347
  %v362 = vpack.c.b16 %v359, %v358
  %v363 = vpack.c.b16 %v361, %v360
  %vm366 = vcmask 261120
  %v368 = vsel %vm366, %v348, 0
  %v371 = vsel %vm366, %v349, 0
  %373 = vmatpush.bf16.msra.mxu0 0
  %374 = vmatpush.bf16.msra.mxu0 0
  %375 = vmatpush.bf16.msra.mxu0 0
  %376 = vmatpush.bf16.msra.mxu0 0
  %377 = vmatpush.bf16.msra.mxu0 0
  %378 = vmatpush.bf16.msra.mxu0 0
  %379 = vmatpush.bf16.msra.mxu0 %v363
  %380 = vmatpush.bf16.msra.mxu0 %v362
  %381 = vmatmul.bf16.gmra.mxu0 %v368
  %v382 = vpop.f32.mrf.mxu0
  %v383 = vadd.f32 %v352, %v382
  %v384 = vpop.f32.mrf.mxu0
  %v385 = vadd.f32 %v352, %v384
  %386 = vmatmul.bf16.gmra.mxu0 %v371
  %v387 = vpop.f32.mrf.mxu0
  %v388 = vadd.f32 %v352, %v387
  %v389 = vpop.f32.mrf.mxu0
  %v390 = vadd.f32 %v352, %v389
  %391 = vdwg.mxu0
  %v392 = vpack.c.bf16 %v383, %v383
  %v393 = vpack.c.bf16 %v385, %v385
  %v394 = vpack.c.bf16 %v388, %v388
  %v395 = vpack.c.bf16 %v390, %v390
  %v398 = vunpack.c.l.b16 %v392
  %v399 = vunpack.c.l.b16 %v393
  %v400 = vpack.c.b16 %v399, %v398
  %401 = vrot.lane.b32.xlu0 %v400, 96
  %v402 = vpop.permute.xlu0 %401
  %vm403 = vcmask 64512
  %v405 = vsel %vm403, %v400, 0
  %v408 = vsel %vm403, %v402, 0
  %410 = vmatpush.bf16.xpose.msra.mxu0 0
  %411 = vmatpush.bf16.xpose.msra.mxu0 0
  %412 = vmatpush.bf16.xpose.msra.mxu0 0
  %413 = vmatpush.bf16.xpose.msra.mxu0 0
  %414 = vmatpush.bf16.xpose.msra.mxu0 0
  %415 = vmatpush.bf16.xpose.msra.mxu0 0
  %416 = vmatpush.bf16.xpose.msra.mxu0 0
  %417 = vmatpush.bf16.xpose.msra.mxu0 %v408
  %418 = vmatmul.bf16.gmra.mxu0 %v405
  %v419 = vpop.f32.mrf.mxu0
  %v420 = vadd.f32 0.0, %v419
  %v421 = vpop.f32.mrf.mxu0
  %v422 = vadd.f32 0.0, %v421
  %423 = vdwg.mxu0
  %v426 = vunpack.c.l.b16 %v394
  %v427 = vunpack.c.l.b16 %v395
  %v428 = vpack.c.b16 %v427, %v426
  %429 = vrot.lane.b32.xlu0 %v428, 96
  %v430 = vpop.permute.xlu0 %429
  %v432 = vsel %vm403, %v428, 0
  %v435 = vsel %vm403, %v430, 0
  %437 = vmatpush.bf16.xpose.msra.mxu0 0
  %438 = vmatpush.bf16.xpose.msra.mxu0 0
  %439 = vmatpush.bf16.xpose.msra.mxu0 0
  %440 = vmatpush.bf16.xpose.msra.mxu0 0
  %441 = vmatpush.bf16.xpose.msra.mxu0 0
  %442 = vmatpush.bf16.xpose.msra.mxu0 0
  %443 = vmatpush.bf16.xpose.msra.mxu0 0
  %444 = vmatpush.bf16.xpose.msra.mxu0 %v435
  %445 = vmatmul.bf16.gmra.mxu0 %v432
  %v446 = vpop.f32.mrf.mxu0
  %v447 = vadd.f32 0.0, %v446
  %v448 = vpop.f32.mrf.mxu0
  %v449 = vadd.f32 0.0, %v448
  %450 = vdwg.mxu0
  %v451 = vmul.f32 %v420, 0.35355338
  %v452 = vmul.f32 %v422, 0.35355338
  %v453 = vmul.f32 %v447, 0.35355338
  %v454 = vmul.f32 %v449, 0.35355338
  %vm455 = vcmask 130048
  %v456 = vsel %vm455, %v451, -inf
  %457 = vmax.xlane.f32.xlu0 %v456
  %v458 = vpop.xlane.xlu0 %457
  %v459 = vsel %vm455, %v452, -inf
  %460 = vmax.xlane.f32.xlu0 %v459
  %v461 = vpop.xlane.xlu0 %460
  %v462 = vsel %vm455, %v453, -inf
  %463 = vmax.xlane.f32.xlu0 %v462
  %v464 = vpop.xlane.xlu0 %463
  %v465 = vsel %vm455, %v454, -inf
  %466 = vmax.xlane.f32.xlu0 %v465
  %v467 = vpop.xlane.xlu0 %466
  %v468 = vsub.f32 %v451, %v458
  %v469 = vsub.f32 %v452, %v461
  %v470 = vsub.f32 %v453, %v464
  %v471 = vsub.f32 %v454, %v467
  %v472 = vmul.f32 %v468, 1.442695
  %v473 = vpow.pop %v472
  %v474 = vmul.f32 %v469, 1.442695
  %v475 = vpow.pop %v474
  %v476 = vmul.f32 %v470, 1.442695
  %v477 = vpow.pop %v476
  %v478 = vmul.f32 %v471, 1.442695
  %v479 = vpow.pop %v478
  %v480 = vsel %vm455, %v473, 0.0
  %481 = vadd.xlane.f32.xlu0 %v480
  %v482 = vpop.xlane.xlu0 %481
  %v483 = vsel %vm455, %v475, 0.0
  %484 = vadd.xlane.f32.xlu0 %v483
  %v485 = vpop.xlane.xlu0 %484
  %v486 = vsel %vm455, %v477, 0.0
  %487 = vadd.xlane.f32.xlu0 %v486
  %v488 = vpop.xlane.xlu0 %487
  %v489 = vsel %vm455, %v479, 0.0
  %490 = vadd.xlane.f32.xlu0 %v489
  %v491 = vpop.xlane.xlu0 %490
  %v492 = vrcp.pop %v482
  %v493 = vrcp.pop %v485
  %v494 = vrcp.pop %v488
  %v495 = vrcp.pop %v491
  %v496 = vmul.f32 %v473, %v492
  %v497 = vmul.f32 %v475, %v493
  %v498 = vmul.f32 %v477, %v494
  %v499 = vmul.f32 %v479, %v495
  %v500 = vpack.c.bf16 %v496, %v496
  %v501 = vpack.c.bf16 %v497, %v497
  %v502 = vpack.c.bf16 %v498, %v498
  %v503 = vpack.c.bf16 %v499, %v499
  %v506 = vunpack.c.l.b16 %v500
  %v507 = vunpack.c.l.b16 %v501
  %v508 = vpack.c.b16 %v507, %v506
  %509 = vrot.lane.b32.xlu0 %v400, 64
  %v510 = vpop.permute.xlu0 %509
  %v513 = vsel %vm455, %v508, 0
  %515 = vmatpush.bf16.msra.mxu0 0
  %516 = vmatpush.bf16.msra.mxu0 0
  %517 = vmatpush.bf16.msra.mxu0 0
  %518 = vmatpush.bf16.msra.mxu0 0
  %519 = vmatpush.bf16.msra.mxu0 0
  %520 = vmatpush.bf16.msra.mxu0 0
  %521 = vmatpush.bf16.msra.mxu0 0
  %522 = vmatpush.bf16.msra.mxu0 %v510
  %523 = vmatmul.bf16.gmra.mxu0 %v513
  %v524 = vpop.f32.mrf.mxu0
  %v525 = vadd.f32 0.0, %v524
  %v526 = vpop.f32.mrf.mxu0
  %v527 = vadd.f32 0.0, %v526
  %528 = vdwg.mxu0
  %v531 = vunpack.c.l.b16 %v502
  %v532 = vunpack.c.l.b16 %v503
  %v533 = vpack.c.b16 %v532, %v531
  %534 = vrot.lane.b32.xlu0 %v428, 64
  %v535 = vpop.permute.xlu0 %534
  %v538 = vsel %vm455, %v533, 0
  %540 = vmatpush.bf16.msra.mxu0 0
  %541 = vmatpush.bf16.msra.mxu0 0
  %542 = vmatpush.bf16.msra.mxu0 0
  %543 = vmatpush.bf16.msra.mxu0 0
  %544 = vmatpush.bf16.msra.mxu0 0
  %545 = vmatpush.bf16.msra.mxu0 0
  %546 = vmatpush.bf16.msra.mxu0 0
  %547 = vmatpush.bf16.msra.mxu0 %v535
  %548 = vmatmul.bf16.gmra.mxu0 %v538
  %v549 = vpop.f32.mrf.mxu0
  %v550 = vadd.f32 0.0, %v549
  %v551 = vpop.f32.mrf.mxu0
  %v552 = vadd.f32 0.0, %v551
  %553 = vdwg.mxu0
  %v554 = vld [vmem:[%s73] sm:$0xf]
  %v555 = vpack.c.bf16 %v527, %v525
  %v556 = vpack.c.bf16 %v552, %v550
  %557 = vrot.lane.b32.xlu0 %v400, 120
  %v558 = vpop.permute.xlu0 %557
  %559 = vrot.lane.b32.xlu0 %v400, 88
  %v560 = vpop.permute.xlu0 %559
  %v562 = vsel %vm403, %v558, 0
  %v565 = vsel %vm403, %v560, 0
  %567 = vmatpush.bf16.xpose.msra.mxu0 0
  %568 = vmatpush.bf16.xpose.msra.mxu0 0
  %569 = vmatpush.bf16.xpose.msra.mxu0 0
  %570 = vmatpush.bf16.xpose.msra.mxu0 0
  %571 = vmatpush.bf16.xpose.msra.mxu0 0
  %572 = vmatpush.bf16.xpose.msra.mxu0 0
  %573 = vmatpush.bf16.xpose.msra.mxu0 0
  %574 = vmatpush.bf16.xpose.msra.mxu0 %v565
  %575 = vmatmul.bf16.gmra.mxu0 %v562
  %v576 = vpop.f32.mrf.mxu0
  %v577 = vadd.f32 0.0, %v576
  %v578 = vpop.f32.mrf.mxu0
  %v579 = vadd.f32 0.0, %v578
  %580 = vdwg.mxu0
  %581 = vrot.lane.b32.xlu0 %v428, 120
  %v582 = vpop.permute.xlu0 %581
  %583 = vrot.lane.b32.xlu0 %v428, 88
  %v584 = vpop.permute.xlu0 %583
  %v586 = vsel %vm403, %v582, 0
  %v589 = vsel %vm403, %v584, 0
  %591 = vmatpush.bf16.xpose.msra.mxu0 0
  %592 = vmatpush.bf16.xpose.msra.mxu0 0
  %593 = vmatpush.bf16.xpose.msra.mxu0 0
  %594 = vmatpush.bf16.xpose.msra.mxu0 0
  %595 = vmatpush.bf16.xpose.msra.mxu0 0
  %596 = vmatpush.bf16.xpose.msra.mxu0 0
  %597 = vmatpush.bf16.xpose.msra.mxu0 0
  %598 = vmatpush.bf16.xpose.msra.mxu0 %v589
  %599 = vmatmul.bf16.gmra.mxu0 %v586
  %v600 = vpop.f32.mrf.mxu0
  %v601 = vadd.f32 0.0, %v600
  %v602 = vpop.f32.mrf.mxu0
  %v603 = vadd.f32 0.0, %v602
  %604 = vdwg.mxu0
  %v605 = vmul.f32 %v577, 0.35355338
  %v606 = vmul.f32 %v579, 0.35355338
  %v607 = vmul.f32 %v601, 0.35355338
  %v608 = vmul.f32 %v603, 0.35355338
  %v609 = vsel %vm455, %v605, -inf
  %610 = vmax.xlane.f32.xlu0 %v609
  %v611 = vpop.xlane.xlu0 %610
  %v612 = vsel %vm455, %v606, -inf
  %613 = vmax.xlane.f32.xlu0 %v612
  %v614 = vpop.xlane.xlu0 %613
  %v615 = vsel %vm455, %v607, -inf
  %616 = vmax.xlane.f32.xlu0 %v615
  %v617 = vpop.xlane.xlu0 %616
  %v618 = vsel %vm455, %v608, -inf
  %619 = vmax.xlane.f32.xlu0 %v618
  %v620 = vpop.xlane.xlu0 %619
  %v621 = vsub.f32 %v605, %v611
  %v622 = vsub.f32 %v606, %v614
  %v623 = vsub.f32 %v607, %v617
  %v624 = vsub.f32 %v608, %v620
  %v625 = vmul.f32 %v621, 1.442695
  %v626 = vpow.pop %v625
  %v627 = vmul.f32 %v622, 1.442695
  %v628 = vpow.pop %v627
  %v629 = vmul.f32 %v623, 1.442695
  %v630 = vpow.pop %v629
  %v631 = vmul.f32 %v624, 1.442695
  %v632 = vpow.pop %v631
  %v633 = vsel %vm455, %v626, 0.0
  %634 = vadd.xlane.f32.xlu0 %v633
  %v635 = vpop.xlane.xlu0 %634
  %v636 = vsel %vm455, %v628, 0.0
  %637 = vadd.xlane.f32.xlu0 %v636
  %v638 = vpop.xlane.xlu0 %637
  %v639 = vsel %vm455, %v630, 0.0
  %640 = vadd.xlane.f32.xlu0 %v639
  %v641 = vpop.xlane.xlu0 %640
  %v642 = vsel %vm455, %v632, 0.0
  %643 = vadd.xlane.f32.xlu0 %v642
  %v644 = vpop.xlane.xlu0 %643
  %v645 = vrcp.pop %v635
  %v646 = vrcp.pop %v638
  %v647 = vrcp.pop %v641
  %v648 = vrcp.pop %v644
  %v649 = vmul.f32 %v626, %v645
  %v650 = vmul.f32 %v628, %v646
  %v651 = vmul.f32 %v630, %v647
  %v652 = vmul.f32 %v632, %v648
  %v653 = vpack.c.bf16 %v649, %v649
  %v654 = vpack.c.bf16 %v650, %v650
  %v655 = vpack.c.bf16 %v651, %v651
  %v656 = vpack.c.bf16 %v652, %v652
  %v659 = vunpack.c.l.b16 %v653
  %v660 = vunpack.c.l.b16 %v654
  %v661 = vpack.c.b16 %v660, %v659
  %662 = vrot.lane.b32.xlu0 %v400, 56
  %v663 = vpop.permute.xlu0 %662
  %v666 = vsel %vm455, %v661, 0
  %668 = vmatpush.bf16.msra.mxu0 0
  %669 = vmatpush.bf16.msra.mxu0 0
  %670 = vmatpush.bf16.msra.mxu0 0
  %671 = vmatpush.bf16.msra.mxu0 0
  %672 = vmatpush.bf16.msra.mxu0 0
  %673 = vmatpush.bf16.msra.mxu0 0
  %674 = vmatpush.bf16.msra.mxu0 0
  %675 = vmatpush.bf16.msra.mxu0 %v663
  %676 = vmatmul.bf16.gmra.mxu0 %v666
  %v677 = vpop.f32.mrf.mxu0
  %v678 = vadd.f32 0.0, %v677
  %v679 = vpop.f32.mrf.mxu0
  %v680 = vadd.f32 0.0, %v679
  %681 = vdwg.mxu0
  %v684 = vunpack.c.l.b16 %v655
  %v685 = vunpack.c.l.b16 %v656
  %v686 = vpack.c.b16 %v685, %v684
  %687 = vrot.lane.b32.xlu0 %v428, 56
  %v688 = vpop.permute.xlu0 %687
  %v691 = vsel %vm455, %v686, 0
  %693 = vmatpush.bf16.msra.mxu0 0
  %694 = vmatpush.bf16.msra.mxu0 0
  %695 = vmatpush.bf16.msra.mxu0 0
  %696 = vmatpush.bf16.msra.mxu0 0
  %697 = vmatpush.bf16.msra.mxu0 0
  %698 = vmatpush.bf16.msra.mxu0 0
  %699 = vmatpush.bf16.msra.mxu0 0
  %700 = vmatpush.bf16.msra.mxu0 %v688
  %701 = vmatmul.bf16.gmra.mxu0 %v691
  %v702 = vpop.f32.mrf.mxu0
  %v703 = vadd.f32 0.0, %v702
  %v704 = vpop.f32.mrf.mxu0
  %v705 = vadd.f32 0.0, %v704
  %706 = vdwg.mxu0
  %s707 = scalar_lea.vmem %s73, 4
  %v708 = vld [vmem:[%s707] sm:$0xf]
  %v709 = vpack.c.bf16 %v680, %v678
  %v710 = vpack.c.bf16 %v705, %v703
  %v712 = vsel %vm403, %v709, 0
  %v715 = vsel %vm403, %v710, 0
  %vm717 = vcmask 1043456
  %v719 = vsel %vm717, %v708, 0
  %721 = vmatpush.bf16.msra.mxu0 0
  %722 = vmatpush.bf16.msra.mxu0 0
  %723 = vmatpush.bf16.msra.mxu0 0
  %724 = vmatpush.bf16.msra.mxu0 0
  %725 = vmatpush.bf16.msra.mxu0 0
  %726 = vmatpush.bf16.msra.mxu0 0
  %727 = vmatpush.bf16.msra.mxu0 0
  %728 = vmatpush.bf16.msra.mxu0 %v719
  %729 = vmatmul.bf16.gmra.mxu0 %v712
  %v730 = vpop.f32.mrf.mxu0
  %v731 = vadd.f32 0.0, %v730
  %v732 = vpop.f32.mrf.mxu0
  %v733 = vadd.f32 0.0, %v732
  %734 = vmatmul.bf16.gmra.mxu0 %v715
  %v735 = vpop.f32.mrf.mxu0
  %v736 = vadd.f32 0.0, %v735
  %v737 = vpop.f32.mrf.mxu0
  %v738 = vadd.f32 0.0, %v737
  %739 = vdwg.mxu0
  %v741 = vsel %vm403, %v555, 0
  %v744 = vsel %vm403, %v556, 0
  %v747 = vsel %vm717, %v554, 0
  %749 = vmatpush.bf16.msra.mxu0 0
  %750 = vmatpush.bf16.msra.mxu0 0
  %751 = vmatpush.bf16.msra.mxu0 0
  %752 = vmatpush.bf16.msra.mxu0 0
  %753 = vmatpush.bf16.msra.mxu0 0
  %754 = vmatpush.bf16.msra.mxu0 0
  %755 = vmatpush.bf16.msra.mxu0 0
  %756 = vmatpush.bf16.msra.mxu0 %v747
  %757 = vmatmul.bf16.gmra.mxu0 %v741
  %v758 = vpop.f32.mrf.mxu0
  %v759 = vadd.f32 %v731, %v758
  %v760 = vpop.f32.mrf.mxu0
  %v761 = vadd.f32 %v733, %v760
  %762 = vmatmul.bf16.gmra.mxu0 %v744
  %v763 = vpop.f32.mrf.mxu0
  %v764 = vadd.f32 %v736, %v763
  %v765 = vpop.f32.mrf.mxu0
  %v766 = vadd.f32 %v738, %v765
  %767 = vdwg.mxu0
  %768 = vrot.lane.b32.xlu0 %v400, 112
  %v769 = vpop.permute.xlu0 %768
  %770 = vrot.lane.b32.xlu0 %v400, 80
  %v771 = vpop.permute.xlu0 %770
  %v773 = vsel %vm403, %v769, 0
  %v776 = vsel %vm403, %v771, 0
  %778 = vmatpush.bf16.xpose.msra.mxu0 0
  %779 = vmatpush.bf16.xpose.msra.mxu0 0
  %780 = vmatpush.bf16.xpose.msra.mxu0 0
  %781 = vmatpush.bf16.xpose.msra.mxu0 0
  %782 = vmatpush.bf16.xpose.msra.mxu0 0
  %783 = vmatpush.bf16.xpose.msra.mxu0 0
  %784 = vmatpush.bf16.xpose.msra.mxu0 0
  %785 = vmatpush.bf16.xpose.msra.mxu0 %v776
  %786 = vmatmul.bf16.gmra.mxu0 %v773
  %v787 = vpop.f32.mrf.mxu0
  %v788 = vadd.f32 0.0, %v787
  %v789 = vpop.f32.mrf.mxu0
  %v790 = vadd.f32 0.0, %v789
  %791 = vdwg.mxu0
  %792 = vrot.lane.b32.xlu0 %v428, 112
  %v793 = vpop.permute.xlu0 %792
  %794 = vrot.lane.b32.xlu0 %v428, 80
  %v795 = vpop.permute.xlu0 %794
  %v797 = vsel %vm403, %v793, 0
  %v800 = vsel %vm403, %v795, 0
  %802 = vmatpush.bf16.xpose.msra.mxu0 0
  %803 = vmatpush.bf16.xpose.msra.mxu0 0
  %804 = vmatpush.bf16.xpose.msra.mxu0 0
  %805 = vmatpush.bf16.xpose.msra.mxu0 0
  %806 = vmatpush.bf16.xpose.msra.mxu0 0
  %807 = vmatpush.bf16.xpose.msra.mxu0 0
  %808 = vmatpush.bf16.xpose.msra.mxu0 0
  %809 = vmatpush.bf16.xpose.msra.mxu0 %v800
  %810 = vmatmul.bf16.gmra.mxu0 %v797
  %v811 = vpop.f32.mrf.mxu0
  %v812 = vadd.f32 0.0, %v811
  %v813 = vpop.f32.mrf.mxu0
  %v814 = vadd.f32 0.0, %v813
  %815 = vdwg.mxu0
  %v816 = vmul.f32 %v788, 0.35355338
  %v817 = vmul.f32 %v790, 0.35355338
  %v818 = vmul.f32 %v812, 0.35355338
  %v819 = vmul.f32 %v814, 0.35355338
  %v820 = vsel %vm455, %v816, -inf
  %821 = vmax.xlane.f32.xlu0 %v820
  %v822 = vpop.xlane.xlu0 %821
  %v823 = vsel %vm455, %v817, -inf
  %824 = vmax.xlane.f32.xlu0 %v823
  %v825 = vpop.xlane.xlu0 %824
  %v826 = vsel %vm455, %v818, -inf
  %827 = vmax.xlane.f32.xlu0 %v826
  %v828 = vpop.xlane.xlu0 %827
  %v829 = vsel %vm455, %v819, -inf
  %830 = vmax.xlane.f32.xlu0 %v829
  %v831 = vpop.xlane.xlu0 %830
  %v832 = vsub.f32 %v816, %v822
  %v833 = vsub.f32 %v817, %v825
  %v834 = vsub.f32 %v818, %v828
  %v835 = vsub.f32 %v819, %v831
  %v836 = vmul.f32 %v832, 1.442695
  %v837 = vpow.pop %v836
  %v838 = vmul.f32 %v833, 1.442695
  %v839 = vpow.pop %v838
  %v840 = vmul.f32 %v834, 1.442695
  %v841 = vpow.pop %v840
  %v842 = vmul.f32 %v835, 1.442695
  %v843 = vpow.pop %v842
  %v844 = vsel %vm455, %v837, 0.0
  %845 = vadd.xlane.f32.xlu0 %v844
  %v846 = vpop.xlane.xlu0 %845
  %v847 = vsel %vm455, %v839, 0.0
  %848 = vadd.xlane.f32.xlu0 %v847
  %v849 = vpop.xlane.xlu0 %848
  %v850 = vsel %vm455, %v841, 0.0
  %851 = vadd.xlane.f32.xlu0 %v850
  %v852 = vpop.xlane.xlu0 %851
  %v853 = vsel %vm455, %v843, 0.0
  %854 = vadd.xlane.f32.xlu0 %v853
  %v855 = vpop.xlane.xlu0 %854
  %v856 = vrcp.pop %v846
  %v857 = vrcp.pop %v849
  %v858 = vrcp.pop %v852
  %v859 = vrcp.pop %v855
  %v860 = vmul.f32 %v837, %v856
  %v861 = vmul.f32 %v839, %v857
  %v862 = vmul.f32 %v841, %v858
  %v863 = vmul.f32 %v843, %v859
  %v864 = vpack.c.bf16 %v860, %v860
  %v865 = vpack.c.bf16 %v861, %v861
  %v866 = vpack.c.bf16 %v862, %v862
  %v867 = vpack.c.bf16 %v863, %v863
  %v870 = vunpack.c.l.b16 %v864
  %v871 = vunpack.c.l.b16 %v865
  %v872 = vpack.c.b16 %v871, %v870
  %873 = vrot.lane.b32.xlu0 %v400, 48
  %v874 = vpop.permute.xlu0 %873
  %v877 = vsel %vm455, %v872, 0
  %879 = vmatpush.bf16.msra.mxu0 0
  %880 = vmatpush.bf16.msra.mxu0 0
  %881 = vmatpush.bf16.msra.mxu0 0
  %882 = vmatpush.bf16.msra.mxu0 0
  %883 = vmatpush.bf16.msra.mxu0 0
  %884 = vmatpush.bf16.msra.mxu0 0
  %885 = vmatpush.bf16.msra.mxu0 0
  %886 = vmatpush.bf16.msra.mxu0 %v874
  %887 = vmatmul.bf16.gmra.mxu0 %v877
  %v888 = vpop.f32.mrf.mxu0
  %v889 = vadd.f32 0.0, %v888
  %v890 = vpop.f32.mrf.mxu0
  %v891 = vadd.f32 0.0, %v890
  %892 = vdwg.mxu0
  %v895 = vunpack.c.l.b16 %v866
  %v896 = vunpack.c.l.b16 %v867
  %v897 = vpack.c.b16 %v896, %v895
  %898 = vrot.lane.b32.xlu0 %v428, 48
  %v899 = vpop.permute.xlu0 %898
  %v902 = vsel %vm455, %v897, 0
  %904 = vmatpush.bf16.msra.mxu0 0
  %905 = vmatpush.bf16.msra.mxu0 0
  %906 = vmatpush.bf16.msra.mxu0 0
  %907 = vmatpush.bf16.msra.mxu0 0
  %908 = vmatpush.bf16.msra.mxu0 0
  %909 = vmatpush.bf16.msra.mxu0 0
  %910 = vmatpush.bf16.msra.mxu0 0
  %911 = vmatpush.bf16.msra.mxu0 %v899
  %912 = vmatmul.bf16.gmra.mxu0 %v902
  %v913 = vpop.f32.mrf.mxu0
  %v914 = vadd.f32 0.0, %v913
  %v915 = vpop.f32.mrf.mxu0
  %v916 = vadd.f32 0.0, %v915
  %917 = vdwg.mxu0
  %s918 = scalar_lea.vmem %s73, 8
  %v919 = vld [vmem:[%s918] sm:$0xf]
  %v920 = vpack.c.bf16 %v891, %v889
  %v921 = vpack.c.bf16 %v916, %v914
  %v923 = vsel %vm403, %v920, 0
  %v926 = vsel %vm403, %v921, 0
  %v929 = vsel %vm717, %v919, 0
  %931 = vmatpush.bf16.msra.mxu0 0
  %932 = vmatpush.bf16.msra.mxu0 0
  %933 = vmatpush.bf16.msra.mxu0 0
  %934 = vmatpush.bf16.msra.mxu0 0
  %935 = vmatpush.bf16.msra.mxu0 0
  %936 = vmatpush.bf16.msra.mxu0 0
  %937 = vmatpush.bf16.msra.mxu0 0
  %938 = vmatpush.bf16.msra.mxu0 %v929
  %939 = vmatmul.bf16.gmra.mxu0 %v923
  %v940 = vpop.f32.mrf.mxu0
  %v941 = vadd.f32 0.0, %v940
  %v942 = vpop.f32.mrf.mxu0
  %v943 = vadd.f32 0.0, %v942
  %944 = vmatmul.bf16.gmra.mxu0 %v926
  %v945 = vpop.f32.mrf.mxu0
  %v946 = vadd.f32 0.0, %v945
  %v947 = vpop.f32.mrf.mxu0
  %v948 = vadd.f32 0.0, %v947
  %949 = vdwg.mxu0
  %v950 = vadd.f32 %v759, %v941
  %v951 = vadd.f32 %v761, %v943
  %v952 = vadd.f32 %v764, %v946
  %v953 = vadd.f32 %v766, %v948
  %954 = vrot.lane.b32.xlu0 %v400, 104
  %v955 = vpop.permute.xlu0 %954
  %956 = vrot.lane.b32.xlu0 %v400, 72
  %v957 = vpop.permute.xlu0 %956
  %v959 = vsel %vm403, %v955, 0
  %v962 = vsel %vm403, %v957, 0
  %964 = vmatpush.bf16.xpose.msra.mxu0 0
  %965 = vmatpush.bf16.xpose.msra.mxu0 0
  %966 = vmatpush.bf16.xpose.msra.mxu0 0
  %967 = vmatpush.bf16.xpose.msra.mxu0 0
  %968 = vmatpush.bf16.xpose.msra.mxu0 0
  %969 = vmatpush.bf16.xpose.msra.mxu0 0
  %970 = vmatpush.bf16.xpose.msra.mxu0 0
  %971 = vmatpush.bf16.xpose.msra.mxu0 %v962
  %972 = vmatmul.bf16.gmra.mxu0 %v959
  %v973 = vpop.f32.mrf.mxu0
  %v974 = vadd.f32 0.0, %v973
  %v975 = vpop.f32.mrf.mxu0
  %v976 = vadd.f32 0.0, %v975
  %977 = vdwg.mxu0
  %978 = vrot.lane.b32.xlu0 %v428, 104
  %v979 = vpop.permute.xlu0 %978
  %980 = vrot.lane.b32.xlu0 %v428, 72
  %v981 = vpop.permute.xlu0 %980
  %v983 = vsel %vm403, %v979, 0
  %v986 = vsel %vm403, %v981, 0
  %988 = vmatpush.bf16.xpose.msra.mxu0 0
  %989 = vmatpush.bf16.xpose.msra.mxu0 0
  %990 = vmatpush.bf16.xpose.msra.mxu0 0
  %991 = vmatpush.bf16.xpose.msra.mxu0 0
  %992 = vmatpush.bf16.xpose.msra.mxu0 0
  %993 = vmatpush.bf16.xpose.msra.mxu0 0
  %994 = vmatpush.bf16.xpose.msra.mxu0 0
  %995 = vmatpush.bf16.xpose.msra.mxu0 %v986
  %996 = vmatmul.bf16.gmra.mxu0 %v983
  %v997 = vpop.f32.mrf.mxu0
  %v998 = vadd.f32 0.0, %v997
  %v999 = vpop.f32.mrf.mxu0
  %v1000 = vadd.f32 0.0, %v999
  %1001 = vdwg.mxu0
  %v1002 = vmul.f32 %v974, 0.35355338
  %v1003 = vmul.f32 %v976, 0.35355338
  %v1004 = vmul.f32 %v998, 0.35355338
  %v1005 = vmul.f32 %v1000, 0.35355338
  %v1006 = vsel %vm455, %v1002, -inf
  %1007 = vmax.xlane.f32.xlu0 %v1006
  %v1008 = vpop.xlane.xlu0 %1007
  %v1009 = vsel %vm455, %v1003, -inf
  %1010 = vmax.xlane.f32.xlu0 %v1009
  %v1011 = vpop.xlane.xlu0 %1010
  %v1012 = vsel %vm455, %v1004, -inf
  %1013 = vmax.xlane.f32.xlu0 %v1012
  %v1014 = vpop.xlane.xlu0 %1013
  %v1015 = vsel %vm455, %v1005, -inf
  %1016 = vmax.xlane.f32.xlu0 %v1015
  %v1017 = vpop.xlane.xlu0 %1016
  %v1018 = vsub.f32 %v1002, %v1008
  %v1019 = vsub.f32 %v1003, %v1011
  %v1020 = vsub.f32 %v1004, %v1014
  %v1021 = vsub.f32 %v1005, %v1017
  %v1022 = vmul.f32 %v1018, 1.442695
  %v1023 = vpow.pop %v1022
  %v1024 = vmul.f32 %v1019, 1.442695
  %v1025 = vpow.pop %v1024
  %v1026 = vmul.f32 %v1020, 1.442695
  %v1027 = vpow.pop %v1026
  %v1028 = vmul.f32 %v1021, 1.442695
  %v1029 = vpow.pop %v1028
  %v1030 = vsel %vm455, %v1023, 0.0
  %1031 = vadd.xlane.f32.xlu0 %v1030
  %v1032 = vpop.xlane.xlu0 %1031
  %v1033 = vsel %vm455, %v1025, 0.0
  %1034 = vadd.xlane.f32.xlu0 %v1033
  %v1035 = vpop.xlane.xlu0 %1034
  %v1036 = vsel %vm455, %v1027, 0.0
  %1037 = vadd.xlane.f32.xlu0 %v1036
  %v1038 = vpop.xlane.xlu0 %1037
  %v1039 = vsel %vm455, %v1029, 0.0
  %1040 = vadd.xlane.f32.xlu0 %v1039
  %v1041 = vpop.xlane.xlu0 %1040
  %v1042 = vrcp.pop %v1032
  %v1043 = vrcp.pop %v1035
  %v1044 = vrcp.pop %v1038
  %v1045 = vrcp.pop %v1041
  %v1046 = vmul.f32 %v1023, %v1042
  %v1047 = vmul.f32 %v1025, %v1043
  %v1048 = vmul.f32 %v1027, %v1044
  %v1049 = vmul.f32 %v1029, %v1045
  %v1050 = vpack.c.bf16 %v1046, %v1046
  %v1051 = vpack.c.bf16 %v1047, %v1047
  %v1052 = vpack.c.bf16 %v1048, %v1048
  %v1053 = vpack.c.bf16 %v1049, %v1049
  %v1056 = vunpack.c.l.b16 %v1050
  %v1057 = vunpack.c.l.b16 %v1051
  %v1058 = vpack.c.b16 %v1057, %v1056
  %1059 = vrot.lane.b32.xlu0 %v400, 40
  %v1060 = vpop.permute.xlu0 %1059
  %v1063 = vsel %vm455, %v1058, 0
  %1065 = vmatpush.bf16.msra.mxu0 0
  %1066 = vmatpush.bf16.msra.mxu0 0
  %1067 = vmatpush.bf16.msra.mxu0 0
  %1068 = vmatpush.bf16.msra.mxu0 0
  %1069 = vmatpush.bf16.msra.mxu0 0
  %1070 = vmatpush.bf16.msra.mxu0 0
  %1071 = vmatpush.bf16.msra.mxu0 0
  %1072 = vmatpush.bf16.msra.mxu0 %v1060
  %1073 = vmatmul.bf16.gmra.mxu0 %v1063
  %v1074 = vpop.f32.mrf.mxu0
  %v1075 = vadd.f32 0.0, %v1074
  %v1076 = vpop.f32.mrf.mxu0
  %v1077 = vadd.f32 0.0, %v1076
  %1078 = vdwg.mxu0
  %v1081 = vunpack.c.l.b16 %v1052
  %v1082 = vunpack.c.l.b16 %v1053
  %v1083 = vpack.c.b16 %v1082, %v1081
  %1084 = vrot.lane.b32.xlu0 %v428, 40
  %v1085 = vpop.permute.xlu0 %1084
  %v1088 = vsel %vm455, %v1083, 0
  %1090 = vmatpush.bf16.msra.mxu0 0
  %1091 = vmatpush.bf16.msra.mxu0 0
  %1092 = vmatpush.bf16.msra.mxu0 0
  %1093 = vmatpush.bf16.msra.mxu0 0
  %1094 = vmatpush.bf16.msra.mxu0 0
  %1095 = vmatpush.bf16.msra.mxu0 0
  %1096 = vmatpush.bf16.msra.mxu0 0
  %1097 = vmatpush.bf16.msra.mxu0 %v1085
  %1098 = vmatmul.bf16.gmra.mxu0 %v1088
  %v1099 = vpop.f32.mrf.mxu0
  %v1100 = vadd.f32 0.0, %v1099
  %v1101 = vpop.f32.mrf.mxu0
  %v1102 = vadd.f32 0.0, %v1101
  %1103 = vdwg.mxu0
  %s1104 = scalar_lea.vmem %s73, 12
  %v1105 = vld [vmem:[%s1104] sm:$0xf]
  %v1106 = vpack.c.bf16 %v1077, %v1075
  %v1107 = vpack.c.bf16 %v1102, %v1100
  %v1109 = vsel %vm403, %v1106, 0
  %v1112 = vsel %vm403, %v1107, 0
  %v1115 = vsel %vm717, %v1105, 0
  %1117 = vmatpush.bf16.msra.mxu0 0
  %1118 = vmatpush.bf16.msra.mxu0 0
  %1119 = vmatpush.bf16.msra.mxu0 0
  %1120 = vmatpush.bf16.msra.mxu0 0
  %1121 = vmatpush.bf16.msra.mxu0 0
  %1122 = vmatpush.bf16.msra.mxu0 0
  %1123 = vmatpush.bf16.msra.mxu0 0
  %1124 = vmatpush.bf16.msra.mxu0 %v1115
  %1125 = vmatmul.bf16.gmra.mxu0 %v1109
  %v1126 = vpop.f32.mrf.mxu0
  %v1127 = vadd.f32 0.0, %v1126
  %v1128 = vpop.f32.mrf.mxu0
  %v1129 = vadd.f32 0.0, %v1128
  %1130 = vmatmul.bf16.gmra.mxu0 %v1112
  %v1131 = vpop.f32.mrf.mxu0
  %v1132 = vadd.f32 0.0, %v1131
  %v1133 = vpop.f32.mrf.mxu0
  %v1134 = vadd.f32 0.0, %v1133
  %1135 = vdwg.mxu0
  %v1136 = vadd.f32 %v950, %v1127
  %v1137 = vadd.f32 %v951, %v1129
  %v1138 = vadd.f32 %v952, %v1132
  %v1139 = vadd.f32 %v953, %v1134
  %v1140 = vld [vmem:[%s69] sm:$0x1]
  %v1142 = vperm.slane %v1140, 0
  %v1144 = vadd.f32 %v1136, %v1142
  %v1145 = vadd.f32 %v1137, %v1142
  %v1146 = vadd.f32 %v1138, %v1142
  %v1147 = vadd.f32 %v1139, %v1142
  %v1148 = vadd.f32 %v340, %v1144
  %v1149 = vadd.f32 %v341, %v1145
  %v1150 = vadd.f32 %v342, %v1146
  %v1151 = vadd.f32 %v343, %v1147
  %v1152 = vsel %vm366, %v1148, 0.0
  %1153 = vadd.xlane.f32.xlu0 %v1152
  %v1154 = vpop.xlane.xlu0 %1153
  %v1155 = vsel %vm366, %v1149, 0.0
  %1156 = vadd.xlane.f32.xlu0 %v1155
  %v1157 = vpop.xlane.xlu0 %1156
  %v1158 = vsel %vm366, %v1150, 0.0
  %1159 = vadd.xlane.f32.xlu0 %v1158
  %v1160 = vpop.xlane.xlu0 %1159
  %v1161 = vsel %vm366, %v1151, 0.0
  %1162 = vadd.xlane.f32.xlu0 %v1161
  %v1163 = vpop.xlane.xlu0 %1162
  %v1164 = vrcp.pop 32.0
  %v1165 = vmul.f32 32.0, %v1164
  %v1166 = vsub.f32 1.0, %v1165
  %v1167 = vmul.f32 %v1164, %v1166
  %v1168 = vadd.f32 %v1164, %v1167
  %vm1169 = vweird.f32 %v1164
  %v1170 = vsel %vm1169, %v1164, %v1168
  %v1171 = vmul.f32 %v1154, %v1170
  %v1172 = vmul.f32 %v1157, %v1170
  %v1173 = vmul.f32 %v1160, %v1170
  %v1174 = vmul.f32 %v1163, %v1170
  %v1175 = vsub.f32 %v1148, %v1171
  %v1176 = vsub.f32 %v1149, %v1172
  %v1177 = vsub.f32 %v1150, %v1173
  %v1178 = vsub.f32 %v1151, %v1174
  %v1179 = vmul.f32 %v1175, %v1175
  %v1180 = vmul.f32 %v1176, %v1176
  %v1181 = vmul.f32 %v1177, %v1177
  %v1182 = vmul.f32 %v1178, %v1178
  %v1183 = vsel %vm366, %v1179, 0.0
  %1184 = vadd.xlane.f32.xlu0 %v1183
  %v1185 = vpop.xlane.xlu0 %1184
  %v1186 = vsel %vm366, %v1180, 0.0
  %1187 = vadd.xlane.f32.xlu0 %v1186
  %v1188 = vpop.xlane.xlu0 %1187
  %v1189 = vsel %vm366, %v1181, 0.0
  %1190 = vadd.xlane.f32.xlu0 %v1189
  %v1191 = vpop.xlane.xlu0 %1190
  %v1192 = vsel %vm366, %v1182, 0.0
  %1193 = vadd.xlane.f32.xlu0 %v1192
  %v1194 = vpop.xlane.xlu0 %1193
  %v1195 = vmul.f32 %v1185, %v1170
  %v1196 = vmul.f32 %v1188, %v1170
  %v1197 = vmul.f32 %v1191, %v1170
  %v1198 = vmul.f32 %v1194, %v1170
  %v1199 = vadd.f32 %v1195, 1e-05
  %v1200 = vadd.f32 %v1196, 1e-05
  %v1201 = vadd.f32 %v1197, 1e-05
  %v1202 = vadd.f32 %v1198, 1e-05
  %v1203 = vrsqrt.pop %v1199
  %v1204 = vmul.f32 %v1203, %v1199
  %v1205 = vmul.f32 %v1204, %v1203
  %v1206 = vmul.f32 0.5, %v1205
  %v1207 = vsub.f32 1.5, %v1206
  %v1208 = vmul.f32 %v1203, %v1207
  %vm1209 = vweird.f32 %v1199
  %vm1210 = vweird.f32 %v1203
  %vm1211 = vmor %vm1209, %vm1210
  %v1212 = vsel %vm1211, %v1203, %v1208
  %v1213 = vrsqrt.pop %v1200
  %v1214 = vmul.f32 %v1213, %v1200
  %v1215 = vmul.f32 %v1214, %v1213
  %v1216 = vmul.f32 0.5, %v1215
  %v1217 = vsub.f32 1.5, %v1216
  %v1218 = vmul.f32 %v1213, %v1217
  %vm1219 = vweird.f32 %v1200
  %vm1220 = vweird.f32 %v1213
  %vm1221 = vmor %vm1219, %vm1220
  %v1222 = vsel %vm1221, %v1213, %v1218
  %v1223 = vrsqrt.pop %v1201
  %v1224 = vmul.f32 %v1223, %v1201
  %v1225 = vmul.f32 %v1224, %v1223
  %v1226 = vmul.f32 0.5, %v1225
  %v1227 = vsub.f32 1.5, %v1226
  %v1228 = vmul.f32 %v1223, %v1227
  %vm1229 = vweird.f32 %v1201
  %vm1230 = vweird.f32 %v1223
  %vm1231 = vmor %vm1229, %vm1230
  %v1232 = vsel %vm1231, %v1223, %v1228
  %v1233 = vrsqrt.pop %v1202
  %v1234 = vmul.f32 %v1233, %v1202
  %v1235 = vmul.f32 %v1234, %v1233
  %v1236 = vmul.f32 0.5, %v1235
  %v1237 = vsub.f32 1.5, %v1236
  %v1238 = vmul.f32 %v1233, %v1237
  %vm1239 = vweird.f32 %v1202
  %vm1240 = vweird.f32 %v1233
  %vm1241 = vmor %vm1239, %vm1240
  %v1242 = vsel %vm1241, %v1233, %v1238
  %v1243 = vmul.f32 %v1175, %v1212
  %v1244 = vmul.f32 %v1176, %v1222
  %v1245 = vmul.f32 %v1177, %v1232
  %v1246 = vmul.f32 %v1178, %v1242
  %v1247 = vld [vmem:[%s83] sm:$0x1]
  %v1249 = vperm.slane %v1247, 0
  %v1251 = vmul.f32 %v1243, %v1249
  %v1252 = vmul.f32 %v1244, %v1249
  %v1253 = vmul.f32 %v1245, %v1249
  %v1254 = vmul.f32 %v1246, %v1249
  %v1255 = vld [vmem:[%s81] sm:$0x1]
  %v1257 = vperm.slane %v1255, 0
  %v1259 = vadd.f32 %v1251, %v1257
  %v1260 = vadd.f32 %v1252, %v1257
  %v1261 = vadd.f32 %v1253, %v1257
  %v1262 = vadd.f32 %v1254, %v1257
  %v1263 = vld [vmem:[%s89] sm:$0xf]
  %v1264 = vld [vmem:[%s89 + $0x4] sm:$0xf]
  %v1265 = vld [vmem:[%s89 + $0x8] sm:$0xf]
  %v1266 = vld [vmem:[%s89 + $0xc] sm:$0xf]
  %v1267 = vpack.c.bf16 %v1260, %v1259
  %v1268 = vpack.c.bf16 %v1262, %v1261
  %v1269 = vld [vmem:[%s77] sm:$0x1]
  %v1271 = vperm.slane %v1269, 0
  %v1277 = vunpack.c.l.b16 %v1263
  %v1278 = vunpack.c.l.b16 %v1264
  %v1279 = vunpack.c.l.b16 %v1265
  %v1280 = vunpack.c.l.b16 %v1266
  %v1281 = vpack.c.b16 %v1278, %v1277
  %v1282 = vpack.c.b16 %v1280, %v1279
  %v1286 = vsel %vm366, %v1267, 0
  %v1289 = vsel %vm366, %v1268, 0
  %1291 = vmatpush.bf16.msra.mxu0 0
  %1292 = vmatpush.bf16.msra.mxu0 0
  %1293 = vmatpush.bf16.msra.mxu0 0
  %1294 = vmatpush.bf16.msra.mxu0 0
  %1295 = vmatpush.bf16.msra.mxu0 0
  %1296 = vmatpush.bf16.msra.mxu0 0
  %1297 = vmatpush.bf16.msra.mxu0 %v1282
  %1298 = vmatpush.bf16.msra.mxu0 %v1281
  %1299 = vmatmul.bf16.gmra.mxu0 %v1286
  %v1300 = vpop.f32.mrf.mxu0
  %v1301 = vadd.f32 %v1271, %v1300
  %v1302 = vpop.f32.mrf.mxu0
  %v1303 = vadd.f32 %v1271, %v1302
  %1304 = vmatmul.bf16.gmra.mxu0 %v1289
  %v1305 = vpop.f32.mrf.mxu0
  %v1306 = vadd.f32 %v1271, %v1305
  %v1307 = vpop.f32.mrf.mxu0
  %v1308 = vadd.f32 %v1271, %v1307
  %1309 = vdwg.mxu0
  %v1310 = vmax.f32 %v1301, 0.0
  %v1311 = vmax.f32 %v1303, 0.0
  %v1312 = vmax.f32 %v1306, 0.0
  %v1313 = vmax.f32 %v1308, 0.0
  %v1314 = vld [vmem:[%s91] sm:$0xf]
  %v1315 = vld [vmem:[%s91 + $0x4] sm:$0xf]
  %v1316 = vld [vmem:[%s91 + $0x8] sm:$0xf]
  %v1317 = vld [vmem:[%s91 + $0xc] sm:$0xf]
  %v1318 = vld [vmem:[%s91 + $0x10] sm:$0xf]
  %v1319 = vld [vmem:[%s91 + $0x14] sm:$0xf]
  %v1320 = vld [vmem:[%s91 + $0x18] sm:$0xf]
  %v1321 = vld [vmem:[%s91 + $0x1c] sm:$0xf]
  %v1322 = vpack.c.bf16 %v1311, %v1310
  %v1323 = vpack.c.bf16 %v1313, %v1312
  %v1324 = vld [vmem:[%s79] sm:$0x1]
  %v1326 = vperm.slane %v1324, 0
  %v1336 = vunpack.c.l.b16 %v1314
  %v1337 = vunpack.c.l.b16 %v1315
  %v1338 = vunpack.c.l.b16 %v1316
  %v1339 = vunpack.c.l.b16 %v1317
  %v1340 = vunpack.c.l.b16 %v1318
  %v1341 = vunpack.c.l.b16 %v1319
  %v1342 = vunpack.c.l.b16 %v1320
  %v1343 = vunpack.c.l.b16 %v1321
  %v1344 = vpack.c.b16 %v1337, %v1336
  %v1345 = vpack.c.b16 %v1339, %v1338
  %v1346 = vpack.c.b16 %v1341, %v1340
  %v1347 = vpack.c.b16 %v1343, %v1342
  %vm1352 = vcmask 523264
  %v1354 = vsel %vm1352, %v1322, 0
  %v1357 = vsel %vm1352, %v1323, 0
  %1359 = vmatpush.bf16.msra.mxu0 0
  %1360 = vmatpush.bf16.msra.mxu0 0
  %1361 = vmatpush.bf16.msra.mxu0 0
  %1362 = vmatpush.bf16.msra.mxu0 0
  %1363 = vmatpush.bf16.msra.mxu0 %v1347
  %1364 = vmatpush.bf16.msra.mxu0 %v1346
  %1365 = vmatpush.bf16.msra.mxu0 %v1345
  %1366 = vmatpush.bf16.msra.mxu0 %v1344
  %1367 = vmatmul.bf16.gmra.mxu0 %v1354
  %v1368 = vpop.f32.mrf.mxu0
  %v1369 = vadd.f32 %v1326, %v1368
  %v1370 = vpop.f32.mrf.mxu0
  %v1371 = vadd.f32 %v1326, %v1370
  %1372 = vmatmul.bf16.gmra.mxu0 %v1357
  %v1373 = vpop.f32.mrf.mxu0
  %v1374 = vadd.f32 %v1326, %v1373
  %v1375 = vpop.f32.mrf.mxu0
  %v1376 = vadd.f32 %v1326, %v1375
  %1377 = vdwg.mxu0
  %v1378 = vadd.f32 %v1259, %v1369
  %v1379 = vadd.f32 %v1260, %v1371
  %v1380 = vadd.f32 %v1261, %v1374
  %v1381 = vadd.f32 %v1262, %v1376
  %v1382 = vsel %vm366, %v1378, 0.0
  %1383 = vadd.xlane.f32.xlu0 %v1382
  %v1384 = vpop.xlane.xlu0 %1383
  %v1385 = vsel %vm366, %v1379, 0.0
  %1386 = vadd.xlane.f32.xlu0 %v1385
  %v1387 = vpop.xlane.xlu0 %1386
  %v1388 = vsel %vm366, %v1380, 0.0
  %1389 = vadd.xlane.f32.xlu0 %v1388
  %v1390 = vpop.xlane.xlu0 %1389
  %v1391 = vsel %vm366, %v1381, 0.0
  %1392 = vadd.xlane.f32.xlu0 %v1391
  %v1393 = vpop.xlane.xlu0 %1392
  %v1394 = vmul.f32 %v1384, %v1170
  %v1395 = vmul.f32 %v1387, %v1170
  %v1396 = vmul.f32 %v1390, %v1170
  %v1397 = vmul.f32 %v1393, %v1170
  %v1398 = vsub.f32 %v1378, %v1394
  %v1399 = vsub.f32 %v1379, %v1395
  %v1400 = vsub.f32 %v1380, %v1396
  %v1401 = vsub.f32 %v1381, %v1397
  %v1402 = vmul.f32 %v1398, %v1398
  %v1403 = vmul.f32 %v1399, %v1399
  %v1404 = vmul.f32 %v1400, %v1400
  %v1405 = vmul.f32 %v1401, %v1401
  %v1406 = vsel %vm366, %v1402, 0.0
  %1407 = vadd.xlane.f32.xlu0 %v1406
  %v1408 = vpop.xlane.xlu0 %1407
  %v1409 = vsel %vm366, %v1403, 0.0
  %1410 = vadd.xlane.f32.xlu0 %v1409
  %v1411 = vpop.xlane.xlu0 %1410
  %v1412 = vsel %vm366, %v1404, 0.0
  %1413 = vadd.xlane.f32.xlu0 %v1412
  %v1414 = vpop.xlane.xlu0 %1413
  %v1415 = vsel %vm366, %v1405, 0.0
  %1416 = vadd.xlane.f32.xlu0 %v1415
  %v1417 = vpop.xlane.xlu0 %1416
  %v1418 = vmul.f32 %v1408, %v1170
  %v1419 = vmul.f32 %v1411, %v1170
  %v1420 = vmul.f32 %v1414, %v1170
  %v1421 = vmul.f32 %v1417, %v1170
  %v1422 = vadd.f32 %v1418, 1e-05
  %v1423 = vadd.f32 %v1419, 1e-05
  %v1424 = vadd.f32 %v1420, 1e-05
  %v1425 = vadd.f32 %v1421, 1e-05
  %v1426 = vrsqrt.pop %v1422
  %v1427 = vmul.f32 %v1426, %v1422
  %v1428 = vmul.f32 %v1427, %v1426
  %v1429 = vmul.f32 0.5, %v1428
  %v1430 = vsub.f32 1.5, %v1429
  %v1431 = vmul.f32 %v1426, %v1430
  %vm1432 = vweird.f32 %v1422
  %vm1433 = vweird.f32 %v1426
  %vm1434 = vmor %vm1432, %vm1433
  %v1435 = vsel %vm1434, %v1426, %v1431
  %v1436 = vrsqrt.pop %v1423
  %v1437 = vmul.f32 %v1436, %v1423
  %v1438 = vmul.f32 %v1437, %v1436
  %v1439 = vmul.f32 0.5, %v1438
  %v1440 = vsub.f32 1.5, %v1439
  %v1441 = vmul.f32 %v1436, %v1440
  %vm1442 = vweird.f32 %v1423
  %vm1443 = vweird.f32 %v1436
  %vm1444 = vmor %vm1442, %vm1443
  %v1445 = vsel %vm1444, %v1436, %v1441
  %v1446 = vrsqrt.pop %v1424
  %v1447 = vmul.f32 %v1446, %v1424
  %v1448 = vmul.f32 %v1447, %v1446
  %v1449 = vmul.f32 0.5, %v1448
  %v1450 = vsub.f32 1.5, %v1449
  %v1451 = vmul.f32 %v1446, %v1450
  %vm1452 = vweird.f32 %v1424
  %vm1453 = vweird.f32 %v1446
  %vm1454 = vmor %vm1452, %vm1453
  %v1455 = vsel %vm1454, %v1446, %v1451
  %v1456 = vrsqrt.pop %v1425
  %v1457 = vmul.f32 %v1456, %v1425
  %v1458 = vmul.f32 %v1457, %v1456
  %v1459 = vmul.f32 0.5, %v1458
  %v1460 = vsub.f32 1.5, %v1459
  %v1461 = vmul.f32 %v1456, %v1460
  %vm1462 = vweird.f32 %v1425
  %vm1463 = vweird.f32 %v1456
  %vm1464 = vmor %vm1462, %vm1463
  %v1465 = vsel %vm1464, %v1456, %v1461
  %v1466 = vmul.f32 %v1398, %v1435
  %v1467 = vmul.f32 %v1399, %v1445
  %v1468 = vmul.f32 %v1400, %v1455
  %v1469 = vmul.f32 %v1401, %v1465
  %v1470 = vld [vmem:[%s87] sm:$0x1]
  %v1472 = vperm.slane %v1470, 0
  %v1474 = vmul.f32 %v1466, %v1472
  %v1475 = vmul.f32 %v1467, %v1472
  %v1476 = vmul.f32 %v1468, %v1472
  %v1477 = vmul.f32 %v1469, %v1472
  %v1478 = vld [vmem:[%s85] sm:$0x1]
  %v1480 = vperm.slane %v1478, 0
  %v1482 = vadd.f32 %v1474, %v1480
  %v1483 = vadd.f32 %v1475, %v1480
  %v1484 = vadd.f32 %v1476, %v1480
  %v1485 = vadd.f32 %v1477, %v1480
  %v1486 = vld [vmem:[%s99] sm:$0xf]
  %v1487 = vld [vmem:[%s99 + $0x4] sm:$0xf]
  %v1488 = vld [vmem:[%s99 + $0x8] sm:$0xf]
  %v1489 = vld [vmem:[%s99 + $0xc] sm:$0xf]
  %v1490 = vpack.c.bf16 %v1483, %v1482
  %v1491 = vpack.c.bf16 %v1485, %v1484
  %v1492 = vld [vmem:[%s95] sm:$0x1]
  %v1494 = vperm.slane %v1492, 0
  %v1500 = vunpack.c.l.b16 %v1486
  %v1501 = vunpack.c.l.b16 %v1487
  %v1502 = vunpack.c.l.b16 %v1488
  %v1503 = vunpack.c.l.b16 %v1489
  %v1504 = vpack.c.b16 %v1501, %v1500
  %v1505 = vpack.c.b16 %v1503, %v1502
  %v1509 = vsel %vm366, %v1490, 0
  %v1512 = vsel %vm366, %v1491, 0
  %1514 = vmatpush.bf16.msra.mxu0 0
  %1515 = vmatpush.bf16.msra.mxu0 0
  %1516 = vmatpush.bf16.msra.mxu0 0
  %1517 = vmatpush.bf16.msra.mxu0 0
  %1518 = vmatpush.bf16.msra.mxu0 0
  %1519 = vmatpush.bf16.msra.mxu0 0
  %1520 = vmatpush.bf16.msra.mxu0 %v1505
  %1521 = vmatpush.bf16.msra.mxu0 %v1504
  %1522 = vmatmul.bf16.gmra.mxu0 %v1509
  %v1523 = vpop.f32.mrf.mxu0
  %v1524 = vadd.f32 %v1494, %v1523
  %v1525 = vpop.f32.mrf.mxu0
  %v1526 = vadd.f32 %v1494, %v1525
  %1527 = vmatmul.bf16.gmra.mxu0 %v1512
  %v1528 = vpop.f32.mrf.mxu0
  %v1529 = vadd.f32 %v1494, %v1528
  %v1530 = vpop.f32.mrf.mxu0
  %v1531 = vadd.f32 %v1494, %v1530
  %1532 = vdwg.mxu0
  %v1533 = vpack.c.bf16 %v1524, %v1524
  %v1534 = vpack.c.bf16 %v1526, %v1526
  %v1535 = vpack.c.bf16 %v1529, %v1529
  %v1536 = vpack.c.bf16 %v1531, %v1531
  %v1539 = vunpack.c.l.b16 %v1533
  %v1540 = vunpack.c.l.b16 %v1534
  %v1541 = vpack.c.b16 %v1540, %v1539
  %1542 = vrot.lane.b32.xlu0 %v1541, 96
  %v1543 = vpop.permute.xlu0 %1542
  %v1545 = vsel %vm403, %v1541, 0
  %v1548 = vsel %vm403, %v1543, 0
  %1550 = vmatpush.bf16.xpose.msra.mxu0 0
  %1551 = vmatpush.bf16.xpose.msra.mxu0 0
  %1552 = vmatpush.bf16.xpose.msra.mxu0 0
  %1553 = vmatpush.bf16.xpose.msra.mxu0 0
  %1554 = vmatpush.bf16.xpose.msra.mxu0 0
  %1555 = vmatpush.bf16.xpose.msra.mxu0 0
  %1556 = vmatpush.bf16.xpose.msra.mxu0 0
  %1557 = vmatpush.bf16.xpose.msra.mxu0 %v1548
  %1558 = vmatmul.bf16.gmra.mxu0 %v1545
  %v1559 = vpop.f32.mrf.mxu0
  %v1560 = vadd.f32 0.0, %v1559
  %v1561 = vpop.f32.mrf.mxu0
  %v1562 = vadd.f32 0.0, %v1561
  %1563 = vdwg.mxu0
  %v1566 = vunpack.c.l.b16 %v1535
  %v1567 = vunpack.c.l.b16 %v1536
  %v1568 = vpack.c.b16 %v1567, %v1566
  %1569 = vrot.lane.b32.xlu0 %v1568, 96
  %v1570 = vpop.permute.xlu0 %1569
  %v1572 = vsel %vm403, %v1568, 0
  %v1575 = vsel %vm403, %v1570, 0
  %1577 = vmatpush.bf16.xpose.msra.mxu0 0
  %1578 = vmatpush.bf16.xpose.msra.mxu0 0
  %1579 = vmatpush.bf16.xpose.msra.mxu0 0
  %1580 = vmatpush.bf16.xpose.msra.mxu0 0
  %1581 = vmatpush.bf16.xpose.msra.mxu0 0
  %1582 = vmatpush.bf16.xpose.msra.mxu0 0
  %1583 = vmatpush.bf16.xpose.msra.mxu0 0
  %1584 = vmatpush.bf16.xpose.msra.mxu0 %v1575
  %1585 = vmatmul.bf16.gmra.mxu0 %v1572
  %v1586 = vpop.f32.mrf.mxu0
  %v1587 = vadd.f32 0.0, %v1586
  %v1588 = vpop.f32.mrf.mxu0
  %v1589 = vadd.f32 0.0, %v1588
  %1590 = vdwg.mxu0
  %v1591 = vmul.f32 %v1560, 0.35355338
  %v1592 = vmul.f32 %v1562, 0.35355338
  %v1593 = vmul.f32 %v1587, 0.35355338
  %v1594 = vmul.f32 %v1589, 0.35355338
  %v1595 = vsel %vm455, %v1591, -inf
  %1596 = vmax.xlane.f32.xlu0 %v1595
  %v1597 = vpop.xlane.xlu0 %1596
  %v1598 = vsel %vm455, %v1592, -inf
  %1599 = vmax.xlane.f32.xlu0 %v1598
  %v1600 = vpop.xlane.xlu0 %1599
  %v1601 = vsel %vm455, %v1593, -inf
  %1602 = vmax.xlane.f32.xlu0 %v1601
  %v1603 = vpop.xlane.xlu0 %1602
  %v1604 = vsel %vm455, %v1594, -inf
  %1605 = vmax.xlane.f32.xlu0 %v1604
  %v1606 = vpop.xlane.xlu0 %1605
  %v1607 = vsub.f32 %v1591, %v1597
  %v1608 = vsub.f32 %v1592, %v1600
  %v1609 = vsub.f32 %v1593, %v1603
  %v1610 = vsub.f32 %v1594, %v1606
  %v1611 = vmul.f32 %v1607, 1.442695
  %v1612 = vpow.pop %v1611
  %v1613 = vmul.f32 %v1608, 1.442695
  %v1614 = vpow.pop %v1613
  %v1615 = vmul.f32 %v1609, 1.442695
  %v1616 = vpow.pop %v1615
  %v1617 = vmul.f32 %v1610, 1.442695
  %v1618 = vpow.pop %v1617
  %v1619 = vsel %vm455, %v1612, 0.0
  %1620 = vadd.xlane.f32.xlu0 %v1619
  %v1621 = vpop.xlane.xlu0 %1620
  %v1622 = vsel %vm455, %v1614, 0.0
  %1623 = vadd.xlane.f32.xlu0 %v1622
  %v1624 = vpop.xlane.xlu0 %1623
  %v1625 = vsel %vm455, %v1616, 0.0
  %1626 = vadd.xlane.f32.xlu0 %v1625
  %v1627 = vpop.xlane.xlu0 %1626
  %v1628 = vsel %vm455, %v1618, 0.0
  %1629 = vadd.xlane.f32.xlu0 %v1628
  %v1630 = vpop.xlane.xlu0 %1629
  %v1631 = vrcp.pop %v1621
  %v1632 = vrcp.pop %v1624
  %v1633 = vrcp.pop %v1627
  %v1634 = vrcp.pop %v1630
  %v1635 = vmul.f32 %v1612, %v1631
  %v1636 = vmul.f32 %v1614, %v1632
  %v1637 = vmul.f32 %v1616, %v1633
  %v1638 = vmul.f32 %v1618, %v1634
  %v1639 = vpack.c.bf16 %v1635, %v1635
  %v1640 = vpack.c.bf16 %v1636, %v1636
  %v1641 = vpack.c.bf16 %v1637, %v1637
  %v1642 = vpack.c.bf16 %v1638, %v1638
  %v1645 = vunpack.c.l.b16 %v1639
  %v1646 = vunpack.c.l.b16 %v1640
  %v1647 = vpack.c.b16 %v1646, %v1645
  %1648 = vrot.lane.b32.xlu0 %v1541, 64
  %v1649 = vpop.permute.xlu0 %1648
  %v1652 = vsel %vm455, %v1647, 0
  %1654 = vmatpush.bf16.msra.mxu0 0
  %1655 = vmatpush.bf16.msra.mxu0 0
  %1656 = vmatpush.bf16.msra.mxu0 0
  %1657 = vmatpush.bf16.msra.mxu0 0
  %1658 = vmatpush.bf16.msra.mxu0 0
  %1659 = vmatpush.bf16.msra.mxu0 0
  %1660 = vmatpush.bf16.msra.mxu0 0
  %1661 = vmatpush.bf16.msra.mxu0 %v1649
  %1662 = vmatmul.bf16.gmra.mxu0 %v1652
  %v1663 = vpop.f32.mrf.mxu0
  %v1664 = vadd.f32 0.0, %v1663
  %v1665 = vpop.f32.mrf.mxu0
  %v1666 = vadd.f32 0.0, %v1665
  %1667 = vdwg.mxu0
  %v1670 = vunpack.c.l.b16 %v1641
  %v1671 = vunpack.c.l.b16 %v1642
  %v1672 = vpack.c.b16 %v1671, %v1670
  %1673 = vrot.lane.b32.xlu0 %v1568, 64
  %v1674 = vpop.permute.xlu0 %1673
  %v1677 = vsel %vm455, %v1672, 0
  %1679 = vmatpush.bf16.msra.mxu0 0
  %1680 = vmatpush.bf16.msra.mxu0 0
  %1681 = vmatpush.bf16.msra.mxu0 0
  %1682 = vmatpush.bf16.msra.mxu0 0
  %1683 = vmatpush.bf16.msra.mxu0 0
  %1684 = vmatpush.bf16.msra.mxu0 0
  %1685 = vmatpush.bf16.msra.mxu0 0
  %1686 = vmatpush.bf16.msra.mxu0 %v1674
  %1687 = vmatmul.bf16.gmra.mxu0 %v1677
  %v1688 = vpop.f32.mrf.mxu0
  %v1689 = vadd.f32 0.0, %v1688
  %v1690 = vpop.f32.mrf.mxu0
  %v1691 = vadd.f32 0.0, %v1690
  %1692 = vdwg.mxu0
  %v1693 = vld [vmem:[%s97] sm:$0xf]
  %v1694 = vpack.c.bf16 %v1666, %v1664
  %v1695 = vpack.c.bf16 %v1691, %v1689
  %1696 = vrot.lane.b32.xlu0 %v1541, 120
  %v1697 = vpop.permute.xlu0 %1696
  %1698 = vrot.lane.b32.xlu0 %v1541, 88
  %v1699 = vpop.permute.xlu0 %1698
  %v1701 = vsel %vm403, %v1697, 0
  %v1704 = vsel %vm403, %v1699, 0
  %1706 = vmatpush.bf16.xpose.msra.mxu0 0
  %1707 = vmatpush.bf16.xpose.msra.mxu0 0
  %1708 = vmatpush.bf16.xpose.msra.mxu0 0
  %1709 = vmatpush.bf16.xpose.msra.mxu0 0
  %1710 = vmatpush.bf16.xpose.msra.mxu0 0
  %1711 = vmatpush.bf16.xpose.msra.mxu0 0
  %1712 = vmatpush.bf16.xpose.msra.mxu0 0
  %1713 = vmatpush.bf16.xpose.msra.mxu0 %v1704
  %1714 = vmatmul.bf16.gmra.mxu0 %v1701
  %v1715 = vpop.f32.mrf.mxu0
  %v1716 = vadd.f32 0.0, %v1715
  %v1717 = vpop.f32.mrf.mxu0
  %v1718 = vadd.f32 0.0, %v1717
  %1719 = vdwg.mxu0
  %1720 = vrot.lane.b32.xlu0 %v1568, 120
  %v1721 = vpop.permute.xlu0 %1720
  %1722 = vrot.lane.b32.xlu0 %v1568, 88
  %v1723 = vpop.permute.xlu0 %1722
  %v1725 = vsel %vm403, %v1721, 0
  %v1728 = vsel %vm403, %v1723, 0
  %1730 = vmatpush.bf16.xpose.msra.mxu0 0
  %1731 = vmatpush.bf16.xpose.msra.mxu0 0
  %1732 = vmatpush.bf16.xpose.msra.mxu0 0
  %1733 = vmatpush.bf16.xpose.msra.mxu0 0
  %1734 = vmatpush.bf16.xpose.msra.mxu0 0
  %1735 = vmatpush.bf16.xpose.msra.mxu0 0
  %1736 = vmatpush.bf16.xpose.msra.mxu0 0
  %1737 = vmatpush.bf16.xpose.msra.mxu0 %v1728
  %1738 = vmatmul.bf16.gmra.mxu0 %v1725
  %v1739 = vpop.f32.mrf.mxu0
  %v1740 = vadd.f32 0.0, %v1739
  %v1741 = vpop.f32.mrf.mxu0
  %v1742 = vadd.f32 0.0, %v1741
  %1743 = vdwg.mxu0
  %v1744 = vmul.f32 %v1716, 0.35355338
  %v1745 = vmul.f32 %v1718, 0.35355338
  %v1746 = vmul.f32 %v1740, 0.35355338
  %v1747 = vmul.f32 %v1742, 0.35355338
  %v1748 = vsel %vm455, %v1744, -inf
  %1749 = vmax.xlane.f32.xlu0 %v1748
  %v1750 = vpop.xlane.xlu0 %1749
  %v1751 = vsel %vm455, %v1745, -inf
  %1752 = vmax.xlane.f32.xlu0 %v1751
  %v1753 = vpop.xlane.xlu0 %1752
  %v1754 = vsel %vm455, %v1746, -inf
  %1755 = vmax.xlane.f32.xlu0 %v1754
  %v1756 = vpop.xlane.xlu0 %1755
  %v1757 = vsel %vm455, %v1747, -inf
  %1758 = vmax.xlane.f32.xlu0 %v1757
  %v1759 = vpop.xlane.xlu0 %1758
  %v1760 = vsub.f32 %v1744, %v1750
  %v1761 = vsub.f32 %v1745, %v1753
  %v1762 = vsub.f32 %v1746, %v1756
  %v1763 = vsub.f32 %v1747, %v1759
  %v1764 = vmul.f32 %v1760, 1.442695
  %v1765 = vpow.pop %v1764
  %v1766 = vmul.f32 %v1761, 1.442695
  %v1767 = vpow.pop %v1766
  %v1768 = vmul.f32 %v1762, 1.442695
  %v1769 = vpow.pop %v1768
  %v1770 = vmul.f32 %v1763, 1.442695
  %v1771 = vpow.pop %v1770
  %v1772 = vsel %vm455, %v1765, 0.0
  %1773 = vadd.xlane.f32.xlu0 %v1772
  %v1774 = vpop.xlane.xlu0 %1773
  %v1775 = vsel %vm455, %v1767, 0.0
  %1776 = vadd.xlane.f32.xlu0 %v1775
  %v1777 = vpop.xlane.xlu0 %1776
  %v1778 = vsel %vm455, %v1769, 0.0
  %1779 = vadd.xlane.f32.xlu0 %v1778
  %v1780 = vpop.xlane.xlu0 %1779
  %v1781 = vsel %vm455, %v1771, 0.0
  %1782 = vadd.xlane.f32.xlu0 %v1781
  %v1783 = vpop.xlane.xlu0 %1782
  %v1784 = vrcp.pop %v1774
  %v1785 = vrcp.pop %v1777
  %v1786 = vrcp.pop %v1780
  %v1787 = vrcp.pop %v1783
  %v1788 = vmul.f32 %v1765, %v1784
  %v1789 = vmul.f32 %v1767, %v1785
  %v1790 = vmul.f32 %v1769, %v1786
  %v1791 = vmul.f32 %v1771, %v1787
  %v1792 = vpack.c.bf16 %v1788, %v1788
  %v1793 = vpack.c.bf16 %v1789, %v1789
  %v1794 = vpack.c.bf16 %v1790, %v1790
  %v1795 = vpack.c.bf16 %v1791, %v1791
  %v1798 = vunpack.c.l.b16 %v1792
  %v1799 = vunpack.c.l.b16 %v1793
  %v1800 = vpack.c.b16 %v1799, %v1798
  %1801 = vrot.lane.b32.xlu0 %v1541, 56
  %v1802 = vpop.permute.xlu0 %1801
  %v1805 = vsel %vm455, %v1800, 0
  %1807 = vmatpush.bf16.msra.mxu0 0
  %1808 = vmatpush.bf16.msra.mxu0 0
  %1809 = vmatpush.bf16.msra.mxu0 0
  %1810 = vmatpush.bf16.msra.mxu0 0
  %1811 = vmatpush.bf16.msra.mxu0 0
  %1812 = vmatpush.bf16.msra.mxu0 0
  %1813 = vmatpush.bf16.msra.mxu0 0
  %1814 = vmatpush.bf16.msra.mxu0 %v1802
  %1815 = vmatmul.bf16.gmra.mxu0 %v1805
  %v1816 = vpop.f32.mrf.mxu0
  %v1817 = vadd.f32 0.0, %v1816
  %v1818 = vpop.f32.mrf.mxu0
  %v1819 = vadd.f32 0.0, %v1818
  %1820 = vdwg.mxu0
  %v1823 = vunpack.c.l.b16 %v1794
  %v1824 = vunpack.c.l.b16 %v1795
  %v1825 = vpack.c.b16 %v1824, %v1823
  %1826 = vrot.lane.b32.xlu0 %v1568, 56
  %v1827 = vpop.permute.xlu0 %1826
  %v1830 = vsel %vm455, %v1825, 0
  %1832 = vmatpush.bf16.msra.mxu0 0
  %1833 = vmatpush.bf16.msra.mxu0 0
  %1834 = vmatpush.bf16.msra.mxu0 0
  %1835 = vmatpush.bf16.msra.mxu0 0
  %1836 = vmatpush.bf16.msra.mxu0 0
  %1837 = vmatpush.bf16.msra.mxu0 0
  %1838 = vmatpush.bf16.msra.mxu0 0
  %1839 = vmatpush.bf16.msra.mxu0 %v1827
  %1840 = vmatmul.bf16.gmra.mxu0 %v1830
  %v1841 = vpop.f32.mrf.mxu0
  %v1842 = vadd.f32 0.0, %v1841
  %v1843 = vpop.f32.mrf.mxu0
  %v1844 = vadd.f32 0.0, %v1843
  %1845 = vdwg.mxu0
  %s1846 = scalar_lea.vmem %s97, 4
  %v1847 = vld [vmem:[%s1846] sm:$0xf]
  %v1848 = vpack.c.bf16 %v1819, %v1817
  %v1849 = vpack.c.bf16 %v1844, %v1842
  %v1851 = vsel %vm403, %v1848, 0
  %v1854 = vsel %vm403, %v1849, 0
  %v1857 = vsel %vm717, %v1847, 0
  %1859 = vmatpush.bf16.msra.mxu0 0
  %1860 = vmatpush.bf16.msra.mxu0 0
  %1861 = vmatpush.bf16.msra.mxu0 0
  %1862 = vmatpush.bf16.msra.mxu0 0
  %1863 = vmatpush.bf16.msra.mxu0 0
  %1864 = vmatpush.bf16.msra.mxu0 0
  %1865 = vmatpush.bf16.msra.mxu0 0
  %1866 = vmatpush.bf16.msra.mxu0 %v1857
  %1867 = vmatmul.bf16.gmra.mxu0 %v1851
  %v1868 = vpop.f32.mrf.mxu0
  %v1869 = vadd.f32 0.0, %v1868
  %v1870 = vpop.f32.mrf.mxu0
  %v1871 = vadd.f32 0.0, %v1870
  %1872 = vmatmul.bf16.gmra.mxu0 %v1854
  %v1873 = vpop.f32.mrf.mxu0
  %v1874 = vadd.f32 0.0, %v1873
  %v1875 = vpop.f32.mrf.mxu0
  %v1876 = vadd.f32 0.0, %v1875
  %1877 = vdwg.mxu0
  %v1879 = vsel %vm403, %v1694, 0
  %v1882 = vsel %vm403, %v1695, 0
  %v1885 = vsel %vm717, %v1693, 0
  %1887 = vmatpush.bf16.msra.mxu0 0
  %1888 = vmatpush.bf16.msra.mxu0 0
  %1889 = vmatpush.bf16.msra.mxu0 0
  %1890 = vmatpush.bf16.msra.mxu0 0
  %1891 = vmatpush.bf16.msra.mxu0 0
  %1892 = vmatpush.bf16.msra.mxu0 0
  %1893 = vmatpush.bf16.msra.mxu0 0
  %1894 = vmatpush.bf16.msra.mxu0 %v1885
  %1895 = vmatmul.bf16.gmra.mxu0 %v1879
  %v1896 = vpop.f32.mrf.mxu0
  %v1897 = vadd.f32 %v1869, %v1896
  %v1898 = vpop.f32.mrf.mxu0
  %v1899 = vadd.f32 %v1871, %v1898
  %1900 = vmatmul.bf16.gmra.mxu0 %v1882
  %v1901 = vpop.f32.mrf.mxu0
  %v1902 = vadd.f32 %v1874, %v1901
  %v1903 = vpop.f32.mrf.mxu0
  %v1904 = vadd.f32 %v1876, %v1903
  %1905 = vdwg.mxu0
  %1906 = vrot.lane.b32.xlu0 %v1541, 112
  %v1907 = vpop.permute.xlu0 %1906
  %1908 = vrot.lane.b32.xlu0 %v1541, 80
  %v1909 = vpop.permute.xlu0 %1908
  %v1911 = vsel %vm403, %v1907, 0
  %v1914 = vsel %vm403, %v1909, 0
  %1916 = vmatpush.bf16.xpose.msra.mxu0 0
  %1917 = vmatpush.bf16.xpose.msra.mxu0 0
  %1918 = vmatpush.bf16.xpose.msra.mxu0 0
  %1919 = vmatpush.bf16.xpose.msra.mxu0 0
  %1920 = vmatpush.bf16.xpose.msra.mxu0 0
  %1921 = vmatpush.bf16.xpose.msra.mxu0 0
  %1922 = vmatpush.bf16.xpose.msra.mxu0 0
  %1923 = vmatpush.bf16.xpose.msra.mxu0 %v1914
  %1924 = vmatmul.bf16.gmra.mxu0 %v1911
  %v1925 = vpop.f32.mrf.mxu0
  %v1926 = vadd.f32 0.0, %v1925
  %v1927 = vpop.f32.mrf.mxu0
  %v1928 = vadd.f32 0.0, %v1927
  %1929 = vdwg.mxu0
  %1930 = vrot.lane.b32.xlu0 %v1568, 112
  %v1931 = vpop.permute.xlu0 %1930
  %1932 = vrot.lane.b32.xlu0 %v1568, 80
  %v1933 = vpop.permute.xlu0 %1932
  %v1935 = vsel %vm403, %v1931, 0
  %v1938 = vsel %vm403, %v1933, 0
  %1940 = vmatpush.bf16.xpose.msra.mxu0 0
  %1941 = vmatpush.bf16.xpose.msra.mxu0 0
  %1942 = vmatpush.bf16.xpose.msra.mxu0 0
  %1943 = vmatpush.bf16.xpose.msra.mxu0 0
  %1944 = vmatpush.bf16.xpose.msra.mxu0 0
  %1945 = vmatpush.bf16.xpose.msra.mxu0 0
  %1946 = vmatpush.bf16.xpose.msra.mxu0 0
  %1947 = vmatpush.bf16.xpose.msra.mxu0 %v1938
  %1948 = vmatmul.bf16.gmra.mxu0 %v1935
  %v1949 = vpop.f32.mrf.mxu0
  %v1950 = vadd.f32 0.0, %v1949
  %v1951 = vpop.f32.mrf.mxu0
  %v1952 = vadd.f32 0.0, %v1951
  %1953 = vdwg.mxu0
  %v1954 = vmul.f32 %v1926, 0.35355338
  %v1955 = vmul.f32 %v1928, 0.35355338
  %v1956 = vmul.f32 %v1950, 0.35355338
  %v1957 = vmul.f32 %v1952, 0.35355338
  %v1958 = vsel %vm455, %v1954, -inf
  %1959 = vmax.xlane.f32.xlu0 %v1958
  %v1960 = vpop.xlane.xlu0 %1959
  %v1961 = vsel %vm455, %v1955, -inf
  %1962 = vmax.xlane.f32.xlu0 %v1961
  %v1963 = vpop.xlane.xlu0 %1962
  %v1964 = vsel %vm455, %v1956, -inf
  %1965 = vmax.xlane.f32.xlu0 %v1964
  %v1966 = vpop.xlane.xlu0 %1965
  %v1967 = vsel %vm455, %v1957, -inf
  %1968 = vmax.xlane.f32.xlu0 %v1967
  %v1969 = vpop.xlane.xlu0 %1968
  %v1970 = vsub.f32 %v1954, %v1960
  %v1971 = vsub.f32 %v1955, %v1963
  %v1972 = vsub.f32 %v1956, %v1966
  %v1973 = vsub.f32 %v1957, %v1969
  %v1974 = vmul.f32 %v1970, 1.442695
  %v1975 = vpow.pop %v1974
  %v1976 = vmul.f32 %v1971, 1.442695
  %v1977 = vpow.pop %v1976
  %v1978 = vmul.f32 %v1972, 1.442695
  %v1979 = vpow.pop %v1978
  %v1980 = vmul.f32 %v1973, 1.442695
  %v1981 = vpow.pop %v1980
  %v1982 = vsel %vm455, %v1975, 0.0
  %1983 = vadd.xlane.f32.xlu0 %v1982
  %v1984 = vpop.xlane.xlu0 %1983
  %v1985 = vsel %vm455, %v1977, 0.0
  %1986 = vadd.xlane.f32.xlu0 %v1985
  %v1987 = vpop.xlane.xlu0 %1986
  %v1988 = vsel %vm455, %v1979, 0.0
  %1989 = vadd.xlane.f32.xlu0 %v1988
  %v1990 = vpop.xlane.xlu0 %1989
  %v1991 = vsel %vm455, %v1981, 0.0
  %1992 = vadd.xlane.f32.xlu0 %v1991
  %v1993 = vpop.xlane.xlu0 %1992
  %v1994 = vrcp.pop %v1984
  %v1995 = vrcp.pop %v1987
  %v1996 = vrcp.pop %v1990
  %v1997 = vrcp.pop %v1993
  %v1998 = vmul.f32 %v1975, %v1994
  %v1999 = vmul.f32 %v1977, %v1995
  %v2000 = vmul.f32 %v1979, %v1996
  %v2001 = vmul.f32 %v1981, %v1997
  %v2002 = vpack.c.bf16 %v1998, %v1998
  %v2003 = vpack.c.bf16 %v1999, %v1999
  %v2004 = vpack.c.bf16 %v2000, %v2000
  %v2005 = vpack.c.bf16 %v2001, %v2001
  %v2008 = vunpack.c.l.b16 %v2002
  %v2009 = vunpack.c.l.b16 %v2003
  %v2010 = vpack.c.b16 %v2009, %v2008
  %2011 = vrot.lane.b32.xlu0 %v1541, 48
  %v2012 = vpop.permute.xlu0 %2011
  %v2015 = vsel %vm455, %v2010, 0
  %2017 = vmatpush.bf16.msra.mxu0 0
  %2018 = vmatpush.bf16.msra.mxu0 0
  %2019 = vmatpush.bf16.msra.mxu0 0
  %2020 = vmatpush.bf16.msra.mxu0 0
  %2021 = vmatpush.bf16.msra.mxu0 0
  %2022 = vmatpush.bf16.msra.mxu0 0
  %2023 = vmatpush.bf16.msra.mxu0 0
  %2024 = vmatpush.bf16.msra.mxu0 %v2012
  %2025 = vmatmul.bf16.gmra.mxu0 %v2015
  %v2026 = vpop.f32.mrf.mxu0
  %v2027 = vadd.f32 0.0, %v2026
  %v2028 = vpop.f32.mrf.mxu0
  %v2029 = vadd.f32 0.0, %v2028
  %2030 = vdwg.mxu0
  %v2033 = vunpack.c.l.b16 %v2004
  %v2034 = vunpack.c.l.b16 %v2005
  %v2035 = vpack.c.b16 %v2034, %v2033
  %2036 = vrot.lane.b32.xlu0 %v1568, 48
  %v2037 = vpop.permute.xlu0 %2036
  %v2040 = vsel %vm455, %v2035, 0
  %2042 = vmatpush.bf16.msra.mxu0 0
  %2043 = vmatpush.bf16.msra.mxu0 0
  %2044 = vmatpush.bf16.msra.mxu0 0
  %2045 = vmatpush.bf16.msra.mxu0 0
  %2046 = vmatpush.bf16.msra.mxu0 0
  %2047 = vmatpush.bf16.msra.mxu0 0
  %2048 = vmatpush.bf16.msra.mxu0 0
  %2049 = vmatpush.bf16.msra.mxu0 %v2037
  %2050 = vmatmul.bf16.gmra.mxu0 %v2040
  %v2051 = vpop.f32.mrf.mxu0
  %v2052 = vadd.f32 0.0, %v2051
  %v2053 = vpop.f32.mrf.mxu0
  %v2054 = vadd.f32 0.0, %v2053
  %2055 = vdwg.mxu0
  %s2056 = scalar_lea.vmem %s97, 8
  %v2057 = vld [vmem:[%s2056] sm:$0xf]
  %v2058 = vpack.c.bf16 %v2029, %v2027
  %v2059 = vpack.c.bf16 %v2054, %v2052
  %v2061 = vsel %vm403, %v2058, 0
  %v2064 = vsel %vm403, %v2059, 0
  %v2067 = vsel %vm717, %v2057, 0
  %2069 = vmatpush.bf16.msra.mxu0 0
  %2070 = vmatpush.bf16.msra.mxu0 0
  %2071 = vmatpush.bf16.msra.mxu0 0
  %2072 = vmatpush.bf16.msra.mxu0 0
  %2073 = vmatpush.bf16.msra.mxu0 0
  %2074 = vmatpush.bf16.msra.mxu0 0
  %2075 = vmatpush.bf16.msra.mxu0 0
  %2076 = vmatpush.bf16.msra.mxu0 %v2067
  %2077 = vmatmul.bf16.gmra.mxu0 %v2061
  %v2078 = vpop.f32.mrf.mxu0
  %v2079 = vadd.f32 0.0, %v2078
  %v2080 = vpop.f32.mrf.mxu0
  %v2081 = vadd.f32 0.0, %v2080
  %2082 = vmatmul.bf16.gmra.mxu0 %v2064
  %v2083 = vpop.f32.mrf.mxu0
  %v2084 = vadd.f32 0.0, %v2083
  %v2085 = vpop.f32.mrf.mxu0
  %v2086 = vadd.f32 0.0, %v2085
  %2087 = vdwg.mxu0
  %v2088 = vadd.f32 %v1897, %v2079
  %v2089 = vadd.f32 %v1899, %v2081
  %v2090 = vadd.f32 %v1902, %v2084
  %v2091 = vadd.f32 %v1904, %v2086
  %2092 = vrot.lane.b32.xlu0 %v1541, 104
  %v2093 = vpop.permute.xlu0 %2092
  %2094 = vrot.lane.b32.xlu0 %v1541, 72
  %v2095 = vpop.permute.xlu0 %2094
  %v2097 = vsel %vm403, %v2093, 0
  %v2100 = vsel %vm403, %v2095, 0
  %2102 = vmatpush.bf16.xpose.msra.mxu0 0
  %2103 = vmatpush.bf16.xpose.msra.mxu0 0
  %2104 = vmatpush.bf16.xpose.msra.mxu0 0
  %2105 = vmatpush.bf16.xpose.msra.mxu0 0
  %2106 = vmatpush.bf16.xpose.msra.mxu0 0
  %2107 = vmatpush.bf16.xpose.msra.mxu0 0
  %2108 = vmatpush.bf16.xpose.msra.mxu0 0
  %2109 = vmatpush.bf16.xpose.msra.mxu0 %v2100
  %2110 = vmatmul.bf16.gmra.mxu0 %v2097
  %v2111 = vpop.f32.mrf.mxu0
  %v2112 = vadd.f32 0.0, %v2111
  %v2113 = vpop.f32.mrf.mxu0
  %v2114 = vadd.f32 0.0, %v2113
  %2115 = vdwg.mxu0
  %2116 = vrot.lane.b32.xlu0 %v1568, 104
  %v2117 = vpop.permute.xlu0 %2116
  %2118 = vrot.lane.b32.xlu0 %v1568, 72
  %v2119 = vpop.permute.xlu0 %2118
  %v2121 = vsel %vm403, %v2117, 0
  %v2124 = vsel %vm403, %v2119, 0
  %2126 = vmatpush.bf16.xpose.msra.mxu0 0
  %2127 = vmatpush.bf16.xpose.msra.mxu0 0
  %2128 = vmatpush.bf16.xpose.msra.mxu0 0
  %2129 = vmatpush.bf16.xpose.msra.mxu0 0
  %2130 = vmatpush.bf16.xpose.msra.mxu0 0
  %2131 = vmatpush.bf16.xpose.msra.mxu0 0
  %2132 = vmatpush.bf16.xpose.msra.mxu0 0
  %2133 = vmatpush.bf16.xpose.msra.mxu0 %v2124
  %2134 = vmatmul.bf16.gmra.mxu0 %v2121
  %v2135 = vpop.f32.mrf.mxu0
  %v2136 = vadd.f32 0.0, %v2135
  %v2137 = vpop.f32.mrf.mxu0
  %v2138 = vadd.f32 0.0, %v2137
  %2139 = vdwg.mxu0
  %v2140 = vmul.f32 %v2112, 0.35355338
  %v2141 = vmul.f32 %v2114, 0.35355338
  %v2142 = vmul.f32 %v2136, 0.35355338
  %v2143 = vmul.f32 %v2138, 0.35355338
  %v2144 = vsel %vm455, %v2140, -inf
  %2145 = vmax.xlane.f32.xlu0 %v2144
  %v2146 = vpop.xlane.xlu0 %2145
  %v2147 = vsel %vm455, %v2141, -inf
  %2148 = vmax.xlane.f32.xlu0 %v2147
  %v2149 = vpop.xlane.xlu0 %2148
  %v2150 = vsel %vm455, %v2142, -inf
  %2151 = vmax.xlane.f32.xlu0 %v2150
  %v2152 = vpop.xlane.xlu0 %2151
  %v2153 = vsel %vm455, %v2143, -inf
  %2154 = vmax.xlane.f32.xlu0 %v2153
  %v2155 = vpop.xlane.xlu0 %2154
  %v2156 = vsub.f32 %v2140, %v2146
  %v2157 = vsub.f32 %v2141, %v2149
  %v2158 = vsub.f32 %v2142, %v2152
  %v2159 = vsub.f32 %v2143, %v2155
  %v2160 = vmul.f32 %v2156, 1.442695
  %v2161 = vpow.pop %v2160
  %v2162 = vmul.f32 %v2157, 1.442695
  %v2163 = vpow.pop %v2162
  %v2164 = vmul.f32 %v2158, 1.442695
  %v2165 = vpow.pop %v2164
  %v2166 = vmul.f32 %v2159, 1.442695
  %v2167 = vpow.pop %v2166
  %v2168 = vsel %vm455, %v2161, 0.0
  %2169 = vadd.xlane.f32.xlu0 %v2168
  %v2170 = vpop.xlane.xlu0 %2169
  %v2171 = vsel %vm455, %v2163, 0.0
  %2172 = vadd.xlane.f32.xlu0 %v2171
  %v2173 = vpop.xlane.xlu0 %2172
  %v2174 = vsel %vm455, %v2165, 0.0
  %2175 = vadd.xlane.f32.xlu0 %v2174
  %v2176 = vpop.xlane.xlu0 %2175
  %v2177 = vsel %vm455, %v2167, 0.0
  %2178 = vadd.xlane.f32.xlu0 %v2177
  %v2179 = vpop.xlane.xlu0 %2178
  %v2180 = vrcp.pop %v2170
  %v2181 = vrcp.pop %v2173
  %v2182 = vrcp.pop %v2176
  %v2183 = vrcp.pop %v2179
  %v2184 = vmul.f32 %v2161, %v2180
  %v2185 = vmul.f32 %v2163, %v2181
  %v2186 = vmul.f32 %v2165, %v2182
  %v2187 = vmul.f32 %v2167, %v2183
  %v2188 = vpack.c.bf16 %v2184, %v2184
  %v2189 = vpack.c.bf16 %v2185, %v2185
  %v2190 = vpack.c.bf16 %v2186, %v2186
  %v2191 = vpack.c.bf16 %v2187, %v2187
  %v2194 = vunpack.c.l.b16 %v2188
  %v2195 = vunpack.c.l.b16 %v2189
  %v2196 = vpack.c.b16 %v2195, %v2194
  %2197 = vrot.lane.b32.xlu0 %v1541, 40
  %v2198 = vpop.permute.xlu0 %2197
  %v2201 = vsel %vm455, %v2196, 0
  %2203 = vmatpush.bf16.msra.mxu0 0
  %2204 = vmatpush.bf16.msra.mxu0 0
  %2205 = vmatpush.bf16.msra.mxu0 0
  %2206 = vmatpush.bf16.msra.mxu0 0
  %2207 = vmatpush.bf16.msra.mxu0 0
  %2208 = vmatpush.bf16.msra.mxu0 0
  %2209 = vmatpush.bf16.msra.mxu0 0
  %2210 = vmatpush.bf16.msra.mxu0 %v2198
  %2211 = vmatmul.bf16.gmra.mxu0 %v2201
  %v2212 = vpop.f32.mrf.mxu0
  %v2213 = vadd.f32 0.0, %v2212
  %v2214 = vpop.f32.mrf.mxu0
  %v2215 = vadd.f32 0.0, %v2214
  %2216 = vdwg.mxu0
  %v2219 = vunpack.c.l.b16 %v2190
  %v2220 = vunpack.c.l.b16 %v2191
  %v2221 = vpack.c.b16 %v2220, %v2219
  %2222 = vrot.lane.b32.xlu0 %v1568, 40
  %v2223 = vpop.permute.xlu0 %2222
  %v2226 = vsel %vm455, %v2221, 0
  %2228 = vmatpush.bf16.msra.mxu0 0
  %2229 = vmatpush.bf16.msra.mxu0 0
  %2230 = vmatpush.bf16.msra.mxu0 0
  %2231 = vmatpush.bf16.msra.mxu0 0
  %2232 = vmatpush.bf16.msra.mxu0 0
  %2233 = vmatpush.bf16.msra.mxu0 0
  %2234 = vmatpush.bf16.msra.mxu0 0
  %2235 = vmatpush.bf16.msra.mxu0 %v2223
  %2236 = vmatmul.bf16.gmra.mxu0 %v2226
  %v2237 = vpop.f32.mrf.mxu0
  %v2238 = vadd.f32 0.0, %v2237
  %v2239 = vpop.f32.mrf.mxu0
  %v2240 = vadd.f32 0.0, %v2239
  %2241 = vdwg.mxu0
  %s2242 = scalar_lea.vmem %s97, 12
  %v2243 = vld [vmem:[%s2242] sm:$0xf]
  %v2244 = vpack.c.bf16 %v2215, %v2213
  %v2245 = vpack.c.bf16 %v2240, %v2238
  %v2247 = vsel %vm403, %v2244, 0
  %v2250 = vsel %vm403, %v2245, 0
  %v2253 = vsel %vm717, %v2243, 0
  %2255 = vmatpush.bf16.msra.mxu0 0
  %2256 = vmatpush.bf16.msra.mxu0 0
  %2257 = vmatpush.bf16.msra.mxu0 0
  %2258 = vmatpush.bf16.msra.mxu0 0
  %2259 = vmatpush.bf16.msra.mxu0 0
  %2260 = vmatpush.bf16.msra.mxu0 0
  %2261 = vmatpush.bf16.msra.mxu0 0
  %2262 = vmatpush.bf16.msra.mxu0 %v2253
  %2263 = vmatmul.bf16.gmra.mxu0 %v2247
  %v2264 = vpop.f32.mrf.mxu0
  %v2265 = vadd.f32 0.0, %v2264
  %v2266 = vpop.f32.mrf.mxu0
  %v2267 = vadd.f32 0.0, %v2266
  %2268 = vmatmul.bf16.gmra.mxu0 %v2250
  %v2269 = vpop.f32.mrf.mxu0
  %v2270 = vadd.f32 0.0, %v2269
  %v2271 = vpop.f32.mrf.mxu0
  %v2272 = vadd.f32 0.0, %v2271
  %2273 = vdwg.mxu0
  %v2274 = vadd.f32 %v2088, %v2265
  %v2275 = vadd.f32 %v2089, %v2267
  %v2276 = vadd.f32 %v2090, %v2270
  %v2277 = vadd.f32 %v2091, %v2272
  %v2278 = vld [vmem:[%s93] sm:$0x1]
  %v2280 = vperm.slane %v2278, 0
  %v2282 = vadd.f32 %v2274, %v2280
  %v2283 = vadd.f32 %v2275, %v2280
  %v2284 = vadd.f32 %v2276, %v2280
  %v2285 = vadd.f32 %v2277, %v2280
  %v2286 = vadd.f32 %v1482, %v2282
  %v2287 = vadd.f32 %v1483, %v2283
  %v2288 = vadd.f32 %v1484, %v2284
  %v2289 = vadd.f32 %v1485, %v2285
  %v2290 = vsel %vm366, %v2286, 0.0
  %2291 = vadd.xlane.f32.xlu0 %v2290
  %v2292 = vpop.xlane.xlu0 %2291
  %v2293 = vsel %vm366, %v2287, 0.0
  %2294 = vadd.xlane.f32.xlu0 %v2293
  %v2295 = vpop.xlane.xlu0 %2294
  %v2296 = vsel %vm366, %v2288, 0.0
  %2297 = vadd.xlane.f32.xlu0 %v2296
  %v2298 = vpop.xlane.xlu0 %2297
  %v2299 = vsel %vm366, %v2289, 0.0
  %2300 = vadd.xlane.f32.xlu0 %v2299
  %v2301 = vpop.xlane.xlu0 %2300
  %v2302 = vmul.f32 %v2292, %v1170
  %v2303 = vmul.f32 %v2295, %v1170
  %v2304 = vmul.f32 %v2298, %v1170
  %v2305 = vmul.f32 %v2301, %v1170
  %v2306 = vsub.f32 %v2286, %v2302
  %v2307 = vsub.f32 %v2287, %v2303
  %v2308 = vsub.f32 %v2288, %v2304
  %v2309 = vsub.f32 %v2289, %v2305
  %v2310 = vmul.f32 %v2306, %v2306
  %v2311 = vmul.f32 %v2307, %v2307
  %v2312 = vmul.f32 %v2308, %v2308
  %v2313 = vmul.f32 %v2309, %v2309
  %v2314 = vsel %vm366, %v2310, 0.0
  %2315 = vadd.xlane.f32.xlu0 %v2314
  %v2316 = vpop.xlane.xlu0 %2315
  %v2317 = vsel %vm366, %v2311, 0.0
  %2318 = vadd.xlane.f32.xlu0 %v2317
  %v2319 = vpop.xlane.xlu0 %2318
  %v2320 = vsel %vm366, %v2312, 0.0
  %2321 = vadd.xlane.f32.xlu0 %v2320
  %v2322 = vpop.xlane.xlu0 %2321
  %v2323 = vsel %vm366, %v2313, 0.0
  %2324 = vadd.xlane.f32.xlu0 %v2323
  %v2325 = vpop.xlane.xlu0 %2324
  %v2326 = vmul.f32 %v2316, %v1170
  %v2327 = vmul.f32 %v2319, %v1170
  %v2328 = vmul.f32 %v2322, %v1170
  %v2329 = vmul.f32 %v2325, %v1170
  %v2330 = vadd.f32 %v2326, 1e-05
  %v2331 = vadd.f32 %v2327, 1e-05
  %v2332 = vadd.f32 %v2328, 1e-05
  %v2333 = vadd.f32 %v2329, 1e-05
  %v2334 = vrsqrt.pop %v2330
  %v2335 = vmul.f32 %v2334, %v2330
  %v2336 = vmul.f32 %v2335, %v2334
  %v2337 = vmul.f32 0.5, %v2336
  %v2338 = vsub.f32 1.5, %v2337
  %v2339 = vmul.f32 %v2334, %v2338
  %vm2340 = vweird.f32 %v2330
  %vm2341 = vweird.f32 %v2334
  %vm2342 = vmor %vm2340, %vm2341
  %v2343 = vsel %vm2342, %v2334, %v2339
  %v2344 = vrsqrt.pop %v2331
  %v2345 = vmul.f32 %v2344, %v2331
  %v2346 = vmul.f32 %v2345, %v2344
  %v2347 = vmul.f32 0.5, %v2346
  %v2348 = vsub.f32 1.5, %v2347
  %v2349 = vmul.f32 %v2344, %v2348
  %vm2350 = vweird.f32 %v2331
  %vm2351 = vweird.f32 %v2344
  %vm2352 = vmor %vm2350, %vm2351
  %v2353 = vsel %vm2352, %v2344, %v2349
  %v2354 = vrsqrt.pop %v2332
  %v2355 = vmul.f32 %v2354, %v2332
  %v2356 = vmul.f32 %v2355, %v2354
  %v2357 = vmul.f32 0.5, %v2356
  %v2358 = vsub.f32 1.5, %v2357
  %v2359 = vmul.f32 %v2354, %v2358
  %vm2360 = vweird.f32 %v2332
  %vm2361 = vweird.f32 %v2354
  %vm2362 = vmor %vm2360, %vm2361
  %v2363 = vsel %vm2362, %v2354, %v2359
  %v2364 = vrsqrt.pop %v2333
  %v2365 = vmul.f32 %v2364, %v2333
  %v2366 = vmul.f32 %v2365, %v2364
  %v2367 = vmul.f32 0.5, %v2366
  %v2368 = vsub.f32 1.5, %v2367
  %v2369 = vmul.f32 %v2364, %v2368
  %vm2370 = vweird.f32 %v2333
  %vm2371 = vweird.f32 %v2364
  %vm2372 = vmor %vm2370, %vm2371
  %v2373 = vsel %vm2372, %v2364, %v2369
  %v2374 = vmul.f32 %v2306, %v2343
  %v2375 = vmul.f32 %v2307, %v2353
  %v2376 = vmul.f32 %v2308, %v2363
  %v2377 = vmul.f32 %v2309, %v2373
  %v2378 = vld [vmem:[%s107] sm:$0x1]
  %v2380 = vperm.slane %v2378, 0
  %v2382 = vmul.f32 %v2374, %v2380
  %v2383 = vmul.f32 %v2375, %v2380
  %v2384 = vmul.f32 %v2376, %v2380
  %v2385 = vmul.f32 %v2377, %v2380
  %v2386 = vld [vmem:[%s105] sm:$0x1]
  %v2388 = vperm.slane %v2386, 0
  %v2390 = vadd.f32 %v2382, %v2388
  %v2391 = vadd.f32 %v2383, %v2388
  %v2392 = vadd.f32 %v2384, %v2388
  %v2393 = vadd.f32 %v2385, %v2388
  %v2394 = vld [vmem:[%s113] sm:$0xf]
  %v2395 = vld [vmem:[%s113 + $0x4] sm:$0xf]
  %v2396 = vld [vmem:[%s113 + $0x8] sm:$0xf]
  %v2397 = vld [vmem:[%s113 + $0xc] sm:$0xf]
  %v2398 = vpack.c.bf16 %v2391, %v2390
  %v2399 = vpack.c.bf16 %v2393, %v2392
  %v2400 = vld [vmem:[%s101] sm:$0x1]
  %v2402 = vperm.slane %v2400, 0
  %v2408 = vunpack.c.l.b16 %v2394
  %v2409 = vunpack.c.l.b16 %v2395
  %v2410 = vunpack.c.l.b16 %v2396
  %v2411 = vunpack.c.l.b16 %v2397
  %v2412 = vpack.c.b16 %v2409, %v2408
  %v2413 = vpack.c.b16 %v2411, %v2410
  %v2417 = vsel %vm366, %v2398, 0
  %v2420 = vsel %vm366, %v2399, 0
  %2422 = vmatpush.bf16.msra.mxu0 0
  %2423 = vmatpush.bf16.msra.mxu0 0
  %2424 = vmatpush.bf16.msra.mxu0 0
  %2425 = vmatpush.bf16.msra.mxu0 0
  %2426 = vmatpush.bf16.msra.mxu0 0
  %2427 = vmatpush.bf16.msra.mxu0 0
  %2428 = vmatpush.bf16.msra.mxu0 %v2413
  %2429 = vmatpush.bf16.msra.mxu0 %v2412
  %2430 = vmatmul.bf16.gmra.mxu0 %v2417
  %v2431 = vpop.f32.mrf.mxu0
  %v2432 = vadd.f32 %v2402, %v2431
  %v2433 = vpop.f32.mrf.mxu0
  %v2434 = vadd.f32 %v2402, %v2433
  %2435 = vmatmul.bf16.gmra.mxu0 %v2420
  %v2436 = vpop.f32.mrf.mxu0
  %v2437 = vadd.f32 %v2402, %v2436
  %v2438 = vpop.f32.mrf.mxu0
  %v2439 = vadd.f32 %v2402, %v2438
  %2440 = vdwg.mxu0
  %v2441 = vmax.f32 %v2432, 0.0
  %v2442 = vmax.f32 %v2434, 0.0
  %v2443 = vmax.f32 %v2437, 0.0
  %v2444 = vmax.f32 %v2439, 0.0
  %v2445 = vld [vmem:[%s115] sm:$0xf]
  %v2446 = vld [vmem:[%s115 + $0x4] sm:$0xf]
  %v2447 = vld [vmem:[%s115 + $0x8] sm:$0xf]
  %v2448 = vld [vmem:[%s115 + $0xc] sm:$0xf]
  %v2449 = vld [vmem:[%s115 + $0x10] sm:$0xf]
  %v2450 = vld [vmem:[%s115 + $0x14] sm:$0xf]
  %v2451 = vld [vmem:[%s115 + $0x18] sm:$0xf]
  %v2452 = vld [vmem:[%s115 + $0x1c] sm:$0xf]
  %v2453 = vpack.c.bf16 %v2442, %v2441
  %v2454 = vpack.c.bf16 %v2444, %v2443
  %v2455 = vld [vmem:[%s103] sm:$0x1]
  %v2457 = vperm.slane %v2455, 0
  %v2467 = vunpack.c.l.b16 %v2445
  %v2468 = vunpack.c.l.b16 %v2446
  %v2469 = vunpack.c.l.b16 %v2447
  %v2470 = vunpack.c.l.b16 %v2448
  %v2471 = vunpack.c.l.b16 %v2449
  %v2472 = vunpack.c.l.b16 %v2450
  %v2473 = vunpack.c.l.b16 %v2451
  %v2474 = vunpack.c.l.b16 %v2452
  %v2475 = vpack.c.b16 %v2468, %v2467
  %v2476 = vpack.c.b16 %v2470, %v2469
  %v2477 = vpack.c.b16 %v2472, %v2471
  %v2478 = vpack.c.b16 %v2474, %v2473
  %v2484 = vsel %vm1352, %v2453, 0
  %v2487 = vsel %vm1352, %v2454, 0
  %2489 = vmatpush.bf16.msra.mxu0 0
  %2490 = vmatpush.bf16.msra.mxu0 0
  %2491 = vmatpush.bf16.msra.mxu0 0
  %2492 = vmatpush.bf16.msra.mxu0 0
  %2493 = vmatpush.bf16.msra.mxu0 %v2478
  %2494 = vmatpush.bf16.msra.mxu0 %v2477
  %2495 = vmatpush.bf16.msra.mxu0 %v2476
  %2496 = vmatpush.bf16.msra.mxu0 %v2475
  %2497 = vmatmul.bf16.gmra.mxu0 %v2484
  %v2498 = vpop.f32.mrf.mxu0
  %v2499 = vadd.f32 %v2457, %v2498
  %v2500 = vpop.f32.mrf.mxu0
  %v2501 = vadd.f32 %v2457, %v2500
  %2502 = vmatmul.bf16.gmra.mxu0 %v2487
  %v2503 = vpop.f32.mrf.mxu0
  %v2504 = vadd.f32 %v2457, %v2503
  %v2505 = vpop.f32.mrf.mxu0
  %v2506 = vadd.f32 %v2457, %v2505
  %2507 = vdwg.mxu0
  %v2508 = vadd.f32 %v2390, %v2499
  %v2509 = vadd.f32 %v2391, %v2501
  %v2510 = vadd.f32 %v2392, %v2504
  %v2511 = vadd.f32 %v2393, %v2506
  %v2512 = vsel %vm366, %v2508, 0.0
  %2513 = vadd.xlane.f32.xlu0 %v2512
  %v2514 = vpop.xlane.xlu0 %2513
  %v2515 = vsel %vm366, %v2509, 0.0
  %2516 = vadd.xlane.f32.xlu0 %v2515
  %v2517 = vpop.xlane.xlu0 %2516
  %v2518 = vsel %vm366, %v2510, 0.0
  %2519 = vadd.xlane.f32.xlu0 %v2518
  %v2520 = vpop.xlane.xlu0 %2519
  %v2521 = vsel %vm366, %v2511, 0.0
  %2522 = vadd.xlane.f32.xlu0 %v2521
  %v2523 = vpop.xlane.xlu0 %2522
  %v2524 = vmul.f32 %v2514, %v1170
  %v2525 = vmul.f32 %v2517, %v1170
  %v2526 = vmul.f32 %v2520, %v1170
  %v2527 = vmul.f32 %v2523, %v1170
  %v2528 = vsub.f32 %v2508, %v2524
  %v2529 = vsub.f32 %v2509, %v2525
  %v2530 = vsub.f32 %v2510, %v2526
  %v2531 = vsub.f32 %v2511, %v2527
  %v2532 = vmul.f32 %v2528, %v2528
  %v2533 = vmul.f32 %v2529, %v2529
  %v2534 = vmul.f32 %v2530, %v2530
  %v2535 = vmul.f32 %v2531, %v2531
  %v2536 = vsel %vm366, %v2532, 0.0
  %2537 = vadd.xlane.f32.xlu0 %v2536
  %v2538 = vpop.xlane.xlu0 %2537
  %v2539 = vsel %vm366, %v2533, 0.0
  %2540 = vadd.xlane.f32.xlu0 %v2539
  %v2541 = vpop.xlane.xlu0 %2540
  %v2542 = vsel %vm366, %v2534, 0.0
  %2543 = vadd.xlane.f32.xlu0 %v2542
  %v2544 = vpop.xlane.xlu0 %2543
  %v2545 = vsel %vm366, %v2535, 0.0
  %2546 = vadd.xlane.f32.xlu0 %v2545
  %v2547 = vpop.xlane.xlu0 %2546
  %v2548 = vmul.f32 %v2538, %v1170
  %v2549 = vmul.f32 %v2541, %v1170
  %v2550 = vmul.f32 %v2544, %v1170
  %v2551 = vmul.f32 %v2547, %v1170
  %v2552 = vadd.f32 %v2548, 1e-05
  %v2553 = vadd.f32 %v2549, 1e-05
  %v2554 = vadd.f32 %v2550, 1e-05
  %v2555 = vadd.f32 %v2551, 1e-05
  %v2556 = vrsqrt.pop %v2552
  %v2557 = vmul.f32 %v2556, %v2552
  %v2558 = vmul.f32 %v2557, %v2556
  %v2559 = vmul.f32 0.5, %v2558
  %v2560 = vsub.f32 1.5, %v2559
  %v2561 = vmul.f32 %v2556, %v2560
  %vm2562 = vweird.f32 %v2552
  %vm2563 = vweird.f32 %v2556
  %vm2564 = vmor %vm2562, %vm2563
  %v2565 = vsel %vm2564, %v2556, %v2561
  %v2566 = vrsqrt.pop %v2553
  %v2567 = vmul.f32 %v2566, %v2553
  %v2568 = vmul.f32 %v2567, %v2566
  %v2569 = vmul.f32 0.5, %v2568
  %v2570 = vsub.f32 1.5, %v2569
  %v2571 = vmul.f32 %v2566, %v2570
  %vm2572 = vweird.f32 %v2553
  %vm2573 = vweird.f32 %v2566
  %vm2574 = vmor %vm2572, %vm2573
  %v2575 = vsel %vm2574, %v2566, %v2571
  %v2576 = vrsqrt.pop %v2554
  %v2577 = vmul.f32 %v2576, %v2554
  %v2578 = vmul.f32 %v2577, %v2576
  %v2579 = vmul.f32 0.5, %v2578
  %v2580 = vsub.f32 1.5, %v2579
  %v2581 = vmul.f32 %v2576, %v2580
  %vm2582 = vweird.f32 %v2554
  %vm2583 = vweird.f32 %v2576
  %vm2584 = vmor %vm2582, %vm2583
  %v2585 = vsel %vm2584, %v2576, %v2581
  %v2586 = vrsqrt.pop %v2555
  %v2587 = vmul.f32 %v2586, %v2555
  %v2588 = vmul.f32 %v2587, %v2586
  %v2589 = vmul.f32 0.5, %v2588
  %v2590 = vsub.f32 1.5, %v2589
  %v2591 = vmul.f32 %v2586, %v2590
  %vm2592 = vweird.f32 %v2555
  %vm2593 = vweird.f32 %v2586
  %vm2594 = vmor %vm2592, %vm2593
  %v2595 = vsel %vm2594, %v2586, %v2591
  %v2596 = vmul.f32 %v2528, %v2565
  %v2597 = vmul.f32 %v2529, %v2575
  %v2598 = vmul.f32 %v2530, %v2585
  %v2599 = vmul.f32 %v2531, %v2595
  %v2600 = vld [vmem:[%s111] sm:$0x1]
  %v2602 = vperm.slane %v2600, 0
  %v2604 = vmul.f32 %v2596, %v2602
  %v2605 = vmul.f32 %v2597, %v2602
  %v2606 = vmul.f32 %v2598, %v2602
  %v2607 = vmul.f32 %v2599, %v2602
  %v2608 = vld [vmem:[%s109] sm:$0x1]
  %v2610 = vperm.slane %v2608, 0
  %v2612 = vadd.f32 %v2604, %v2610
  %v2613 = vadd.f32 %v2605, %v2610
  %v2614 = vadd.f32 %v2606, %v2610
  %v2615 = vadd.f32 %v2607, %v2610
  %v2616 = vsel %vm366, %v2612, 0.0
  %2617 = vadd.xlane.f32.xlu0 %v2616
  %v2618 = vpop.xlane.xlu0 %2617
  %v2619 = vsel %vm366, %v2613, 0.0
  %2620 = vadd.xlane.f32.xlu0 %v2619
  %v2621 = vpop.xlane.xlu0 %2620
  %v2622 = vsel %vm366, %v2614, 0.0
  %2623 = vadd.xlane.f32.xlu0 %v2622
  %v2624 = vpop.xlane.xlu0 %2623
  %v2625 = vsel %vm366, %v2615, 0.0
  %2626 = vadd.xlane.f32.xlu0 %v2625
  %v2627 = vpop.xlane.xlu0 %2626
  %v2628 = vmul.f32 %v2618, %v1170
  %v2629 = vmul.f32 %v2621, %v1170
  %v2630 = vmul.f32 %v2624, %v1170
  %v2631 = vmul.f32 %v2627, %v1170
  %v2632 = vsub.f32 %v2612, %v2628
  %v2633 = vsub.f32 %v2613, %v2629
  %v2634 = vsub.f32 %v2614, %v2630
  %v2635 = vsub.f32 %v2615, %v2631
  %v2636 = vmul.f32 %v2632, %v2632
  %v2637 = vmul.f32 %v2633, %v2633
  %v2638 = vmul.f32 %v2634, %v2634
  %v2639 = vmul.f32 %v2635, %v2635
  %v2640 = vsel %vm366, %v2636, 0.0
  %2641 = vadd.xlane.f32.xlu0 %v2640
  %v2642 = vpop.xlane.xlu0 %2641
  %v2643 = vsel %vm366, %v2637, 0.0
  %2644 = vadd.xlane.f32.xlu0 %v2643
  %v2645 = vpop.xlane.xlu0 %2644
  %v2646 = vsel %vm366, %v2638, 0.0
  %2647 = vadd.xlane.f32.xlu0 %v2646
  %v2648 = vpop.xlane.xlu0 %2647
  %v2649 = vsel %vm366, %v2639, 0.0
  %2650 = vadd.xlane.f32.xlu0 %v2649
  %v2651 = vpop.xlane.xlu0 %2650
  %v2652 = vmul.f32 %v2642, %v1170
  %v2653 = vmul.f32 %v2645, %v1170
  %v2654 = vmul.f32 %v2648, %v1170
  %v2655 = vmul.f32 %v2651, %v1170
  %v2656 = vadd.f32 %v2652, 1e-05
  %v2657 = vadd.f32 %v2653, 1e-05
  %v2658 = vadd.f32 %v2654, 1e-05
  %v2659 = vadd.f32 %v2655, 1e-05
  %v2660 = vrsqrt.pop %v2656
  %v2661 = vmul.f32 %v2660, %v2656
  %v2662 = vmul.f32 %v2661, %v2660
  %v2663 = vmul.f32 0.5, %v2662
  %v2664 = vsub.f32 1.5, %v2663
  %v2665 = vmul.f32 %v2660, %v2664
  %vm2666 = vweird.f32 %v2656
  %vm2667 = vweird.f32 %v2660
  %vm2668 = vmor %vm2666, %vm2667
  %v2669 = vsel %vm2668, %v2660, %v2665
  %v2670 = vrsqrt.pop %v2657
  %v2671 = vmul.f32 %v2670, %v2657
  %v2672 = vmul.f32 %v2671, %v2670
  %v2673 = vmul.f32 0.5, %v2672
  %v2674 = vsub.f32 1.5, %v2673
  %v2675 = vmul.f32 %v2670, %v2674
  %vm2676 = vweird.f32 %v2657
  %vm2677 = vweird.f32 %v2670
  %vm2678 = vmor %vm2676, %vm2677
  %v2679 = vsel %vm2678, %v2670, %v2675
  %v2680 = vrsqrt.pop %v2658
  %v2681 = vmul.f32 %v2680, %v2658
  %v2682 = vmul.f32 %v2681, %v2680
  %v2683 = vmul.f32 0.5, %v2682
  %v2684 = vsub.f32 1.5, %v2683
  %v2685 = vmul.f32 %v2680, %v2684
  %vm2686 = vweird.f32 %v2658
  %vm2687 = vweird.f32 %v2680
  %vm2688 = vmor %vm2686, %vm2687
  %v2689 = vsel %vm2688, %v2680, %v2685
  %v2690 = vrsqrt.pop %v2659
  %v2691 = vmul.f32 %v2690, %v2659
  %v2692 = vmul.f32 %v2691, %v2690
  %v2693 = vmul.f32 0.5, %v2692
  %v2694 = vsub.f32 1.5, %v2693
  %v2695 = vmul.f32 %v2690, %v2694
  %vm2696 = vweird.f32 %v2659
  %vm2697 = vweird.f32 %v2690
  %vm2698 = vmor %vm2696, %vm2697
  %v2699 = vsel %vm2698, %v2690, %v2695
  %v2700 = vmul.f32 %v2632, %v2669
  %v2701 = vmul.f32 %v2633, %v2679
  %v2702 = vmul.f32 %v2634, %v2689
  %v2703 = vmul.f32 %v2635, %v2699
  %v2704 = vld [vmem:[%s119] sm:$0x1]
  %v2706 = vperm.slane %v2704, 0
  %v2708 = vmul.f32 %v2700, %v2706
  %v2709 = vmul.f32 %v2701, %v2706
  %v2710 = vmul.f32 %v2702, %v2706
  %v2711 = vmul.f32 %v2703, %v2706
  %v2712 = vld [vmem:[%s117] sm:$0x1]
  %v2714 = vperm.slane %v2712, 0
  %v2716 = vadd.f32 %v2708, %v2714
  %v2717 = vadd.f32 %v2709, %v2714
  %v2718 = vadd.f32 %v2710, %v2714
  %v2719 = vadd.f32 %v2711, %v2714
  %v2720 = vld [vmem:[%s7] sm:$0xff]
  %v2721 = vld [vmem:[%s7 + $0x8] sm:$0xff]
  %v2722 = vld [vmem:[%s7 + $0x10] sm:$0xff]
  %v2723 = vld [vmem:[%s7 + $0x18] sm:$0xff]
  %v2724 = vld [vmem:[%s15] sm:$0xf]
  %v2725 = vld [vmem:[%s15 + $0x4] sm:$0x3]
  %v2726 = vpack.c.bf16 %v2721, %v2720
  %v2727 = vpack.c.bf16 %v2723, %v2722
  %v2728 = vld [vmem:[%s9] sm:$0xff]
  %v2729 = vld [vmem:[%s9 + $0x8] sm:$0xff]
  %v2730 = vld [vmem:[%s9 + $0x10] sm:$0xff]
  %v2731 = vld [vmem:[%s9 + $0x18] sm:$0xff]
  %v2732 = vld [vmem:[%s13] sm:$0x3]
  %v2733 = vpack.c.bf16 %v2729, %v2728
  %v2734 = vpack.c.bf16 %v2731, %v2730
  %v2736 = vsel %vm271, %v2733, 0
  %v2739 = vsel %vm271, %v2734, 0
  %v2742 = vsel %vm278, %v2732, 0
  %2744 = vmatpush.bf16.msra.mxu0 0
  %2745 = vmatpush.bf16.msra.mxu0 0
  %2746 = vmatpush.bf16.msra.mxu0 0
  %2747 = vmatpush.bf16.msra.mxu0 0
  %2748 = vmatpush.bf16.msra.mxu0 0
  %2749 = vmatpush.bf16.msra.mxu0 0
  %2750 = vmatpush.bf16.msra.mxu0 0
  %2751 = vmatpush.bf16.msra.mxu0 %v2742
  %2752 = vmatmul.bf16.gmra.mxu0 %v2736
  %v2753 = vpop.f32.mrf.mxu0
  %v2754 = vadd.f32 0.0, %v2753
  %v2755 = vpop.f32.mrf.mxu0
  %v2756 = vadd.f32 0.0, %v2755
  %2757 = vmatmul.bf16.gmra.mxu0 %v2739
  %v2758 = vpop.f32.mrf.mxu0
  %v2759 = vadd.f32 0.0, %v2758
  %v2760 = vpop.f32.mrf.mxu0
  %v2761 = vadd.f32 0.0, %v2760
  %2762 = vdwg.mxu0
  %v2765 = vunpack.c.l.b16 %v2724
  %v2766 = vunpack.c.l.b16 %v2725
  %v2767 = vpack.c.b16 %v2766, %v2765
  %v2769 = vsel %vm306, %v2726, 0
  %v2772 = vsel %vm306, %v2727, 0
  %v2775 = vsel %vm313, %v2767, 0
  %2777 = vmatpush.bf16.msra.mxu0 0
  %2778 = vmatpush.bf16.msra.mxu0 0
  %2779 = vmatpush.bf16.msra.mxu0 0
  %2780 = vmatpush.bf16.msra.mxu0 0
  %2781 = vmatpush.bf16.msra.mxu0 0
  %2782 = vmatpush.bf16.msra.mxu0 0
  %2783 = vmatpush.bf16.msra.mxu0 0
  %2784 = vmatpush.bf16.msra.mxu0 %v2775
  %2785 = vmatmul.bf16.gmra.mxu0 %v2769
  %v2786 = vpop.f32.mrf.mxu0
  %v2787 = vadd.f32 %v2754, %v2786
  %v2788 = vpop.f32.mrf.mxu0
  %v2789 = vadd.f32 %v2756, %v2788
  %2790 = vmatmul.bf16.gmra.mxu0 %v2772
  %v2791 = vpop.f32.mrf.mxu0
  %v2792 = vadd.f32 %v2759, %v2791
  %v2793 = vpop.f32.mrf.mxu0
  %v2794 = vadd.f32 %v2761, %v2793
  %2795 = vdwg.mxu0
  %v2796 = vld [vmem:[%s11] sm:$0xff]
  %v2797 = vld [vmem:[%s11 + $0x8] sm:$0xff]
  %v2798 = vld [vmem:[%s11 + $0x10] sm:$0xff]
  %v2799 = vld [vmem:[%s11 + $0x18] sm:$0xff]
  %v2800 = vadd.f32 %v2787, %v2796
  %v2801 = vadd.f32 %v2789, %v2797
  %v2802 = vadd.f32 %v2792, %v2798
  %v2803 = vadd.f32 %v2794, %v2799
  %v2804 = vld [vmem:[%s51] sm:$0xf]
  %v2805 = vld [vmem:[%s51 + $0x4] sm:$0xf]
  %v2806 = vld [vmem:[%s51 + $0x8] sm:$0xf]
  %v2807 = vld [vmem:[%s51 + $0xc] sm:$0xf]
  %v2808 = vpack.c.bf16 %v2801, %v2800
  %v2809 = vpack.c.bf16 %v2803, %v2802
  %v2810 = vld [vmem:[%s47] sm:$0x1]
  %v2812 = vperm.slane %v2810, 0
  %v2818 = vunpack.c.l.b16 %v2804
  %v2819 = vunpack.c.l.b16 %v2805
  %v2820 = vunpack.c.l.b16 %v2806
  %v2821 = vunpack.c.l.b16 %v2807
  %v2822 = vpack.c.b16 %v2819, %v2818
  %v2823 = vpack.c.b16 %v2821, %v2820
  %v2827 = vsel %vm366, %v2808, 0
  %v2830 = vsel %vm366, %v2809, 0
  %2832 = vmatpush.bf16.msra.mxu0 0
  %2833 = vmatpush.bf16.msra.mxu0 0
  %2834 = vmatpush.bf16.msra.mxu0 0
  %2835 = vmatpush.bf16.msra.mxu0 0
  %2836 = vmatpush.bf16.msra.mxu0 0
  %2837 = vmatpush.bf16.msra.mxu0 0
  %2838 = vmatpush.bf16.msra.mxu0 %v2823
  %2839 = vmatpush.bf16.msra.mxu0 %v2822
  %2840 = vmatmul.bf16.gmra.mxu0 %v2827
  %v2841 = vpop.f32.mrf.mxu0
  %v2842 = vadd.f32 %v2812, %v2841
  %v2843 = vpop.f32.mrf.mxu0
  %v2844 = vadd.f32 %v2812, %v2843
  %2845 = vmatmul.bf16.gmra.mxu0 %v2830
  %v2846 = vpop.f32.mrf.mxu0
  %v2847 = vadd.f32 %v2812, %v2846
  %v2848 = vpop.f32.mrf.mxu0
  %v2849 = vadd.f32 %v2812, %v2848
  %2850 = vdwg.mxu0
  %v2851 = vpack.c.bf16 %v2842, %v2842
  %v2852 = vpack.c.bf16 %v2844, %v2844
  %v2853 = vpack.c.bf16 %v2847, %v2847
  %v2854 = vpack.c.bf16 %v2849, %v2849
  %v2857 = vunpack.c.l.b16 %v2851
  %v2858 = vunpack.c.l.b16 %v2852
  %v2859 = vpack.c.b16 %v2858, %v2857
  %2860 = vrot.lane.b32.xlu0 %v2859, 96
  %v2861 = vpop.permute.xlu0 %2860
  %v2863 = vsel %vm403, %v2859, 0
  %v2866 = vsel %vm403, %v2861, 0
  %2868 = vmatpush.bf16.xpose.msra.mxu0 0
  %2869 = vmatpush.bf16.xpose.msra.mxu0 0
  %2870 = vmatpush.bf16.xpose.msra.mxu0 0
  %2871 = vmatpush.bf16.xpose.msra.mxu0 0
  %2872 = vmatpush.bf16.xpose.msra.mxu0 0
  %2873 = vmatpush.bf16.xpose.msra.mxu0 0
  %2874 = vmatpush.bf16.xpose.msra.mxu0 0
  %2875 = vmatpush.bf16.xpose.msra.mxu0 %v2866
  %2876 = vmatmul.bf16.gmra.mxu0 %v2863
  %v2877 = vpop.f32.mrf.mxu0
  %v2878 = vadd.f32 0.0, %v2877
  %v2879 = vpop.f32.mrf.mxu0
  %v2880 = vadd.f32 0.0, %v2879
  %2881 = vdwg.mxu0
  %v2884 = vunpack.c.l.b16 %v2853
  %v2885 = vunpack.c.l.b16 %v2854
  %v2886 = vpack.c.b16 %v2885, %v2884
  %2887 = vrot.lane.b32.xlu0 %v2886, 96
  %v2888 = vpop.permute.xlu0 %2887
  %v2890 = vsel %vm403, %v2886, 0
  %v2893 = vsel %vm403, %v2888, 0
  %2895 = vmatpush.bf16.xpose.msra.mxu0 0
  %2896 = vmatpush.bf16.xpose.msra.mxu0 0
  %2897 = vmatpush.bf16.xpose.msra.mxu0 0
  %2898 = vmatpush.bf16.xpose.msra.mxu0 0
  %2899 = vmatpush.bf16.xpose.msra.mxu0 0
  %2900 = vmatpush.bf16.xpose.msra.mxu0 0
  %2901 = vmatpush.bf16.xpose.msra.mxu0 0
  %2902 = vmatpush.bf16.xpose.msra.mxu0 %v2893
  %2903 = vmatmul.bf16.gmra.mxu0 %v2890
  %v2904 = vpop.f32.mrf.mxu0
  %v2905 = vadd.f32 0.0, %v2904
  %v2906 = vpop.f32.mrf.mxu0
  %v2907 = vadd.f32 0.0, %v2906
  %2908 = vdwg.mxu0
  %v2909 = vmul.f32 %v2878, 0.35355338
  %v2910 = vmul.f32 %v2880, 0.35355338
  %v2911 = vmul.f32 %v2905, 0.35355338
  %v2912 = vmul.f32 %v2907, 0.35355338
  %v2913 = vadd.f32 %v2909, %v254
  %v2914 = vadd.f32 %v2910, %v255
  %v2915 = vadd.f32 %v2911, %v254
  %v2916 = vadd.f32 %v2912, %v255
  %v2917 = vsel %vm455, %v2913, -inf
  %2918 = vmax.xlane.f32.xlu0 %v2917
  %v2919 = vpop.xlane.xlu0 %2918
  %v2920 = vsel %vm455, %v2914, -inf
  %2921 = vmax.xlane.f32.xlu0 %v2920
  %v2922 = vpop.xlane.xlu0 %2921
  %v2923 = vsel %vm455, %v2915, -inf
  %2924 = vmax.xlane.f32.xlu0 %v2923
  %v2925 = vpop.xlane.xlu0 %2924
  %v2926 = vsel %vm455, %v2916, -inf
  %2927 = vmax.xlane.f32.xlu0 %v2926
  %v2928 = vpop.xlane.xlu0 %2927
  %v2929 = vsub.f32 %v2913, %v2919
  %v2930 = vsub.f32 %v2914, %v2922
  %v2931 = vsub.f32 %v2915, %v2925
  %v2932 = vsub.f32 %v2916, %v2928
  %v2933 = vmul.f32 %v2929, 1.442695
  %v2934 = vpow.pop %v2933
  %v2935 = vmul.f32 %v2930, 1.442695
  %v2936 = vpow.pop %v2935
  %v2937 = vmul.f32 %v2931, 1.442695
  %v2938 = vpow.pop %v2937
  %v2939 = vmul.f32 %v2932, 1.442695
  %v2940 = vpow.pop %v2939
  %v2941 = vsel %vm455, %v2934, 0.0
  %2942 = vadd.xlane.f32.xlu0 %v2941
  %v2943 = vpop.xlane.xlu0 %2942
  %v2944 = vsel %vm455, %v2936, 0.0
  %2945 = vadd.xlane.f32.xlu0 %v2944
  %v2946 = vpop.xlane.xlu0 %2945
  %v2947 = vsel %vm455, %v2938, 0.0
  %2948 = vadd.xlane.f32.xlu0 %v2947
  %v2949 = vpop.xlane.xlu0 %2948
  %v2950 = vsel %vm455, %v2940, 0.0
  %2951 = vadd.xlane.f32.xlu0 %v2950
  %v2952 = vpop.xlane.xlu0 %2951
  %v2953 = vrcp.pop %v2943
  %v2954 = vrcp.pop %v2946
  %v2955 = vrcp.pop %v2949
  %v2956 = vrcp.pop %v2952
  %v2957 = vmul.f32 %v2934, %v2953
  %v2958 = vmul.f32 %v2936, %v2954
  %v2959 = vmul.f32 %v2938, %v2955
  %v2960 = vmul.f32 %v2940, %v2956
  %v2961 = vpack.c.bf16 %v2957, %v2957
  %v2962 = vpack.c.bf16 %v2958, %v2958
  %v2963 = vpack.c.bf16 %v2959, %v2959
  %v2964 = vpack.c.bf16 %v2960, %v2960
  %v2967 = vunpack.c.l.b16 %v2961
  %v2968 = vunpack.c.l.b16 %v2962
  %v2969 = vpack.c.b16 %v2968, %v2967
  %2970 = vrot.lane.b32.xlu0 %v2859, 64
  %v2971 = vpop.permute.xlu0 %2970
  %v2974 = vsel %vm455, %v2969, 0
  %2976 = vmatpush.bf16.msra.mxu0 0
  %2977 = vmatpush.bf16.msra.mxu0 0
  %2978 = vmatpush.bf16.msra.mxu0 0
  %2979 = vmatpush.bf16.msra.mxu0 0
  %2980 = vmatpush.bf16.msra.mxu0 0
  %2981 = vmatpush.bf16.msra.mxu0 0
  %2982 = vmatpush.bf16.msra.mxu0 0
  %2983 = vmatpush.bf16.msra.mxu0 %v2971
  %2984 = vmatmul.bf16.gmra.mxu0 %v2974
  %v2985 = vpop.f32.mrf.mxu0
  %v2986 = vadd.f32 0.0, %v2985
  %v2987 = vpop.f32.mrf.mxu0
  %v2988 = vadd.f32 0.0, %v2987
  %2989 = vdwg.mxu0
  %v2992 = vunpack.c.l.b16 %v2963
  %v2993 = vunpack.c.l.b16 %v2964
  %v2994 = vpack.c.b16 %v2993, %v2992
  %2995 = vrot.lane.b32.xlu0 %v2886, 64
  %v2996 = vpop.permute.xlu0 %2995
  %v2999 = vsel %vm455, %v2994, 0
  %3001 = vmatpush.bf16.msra.mxu0 0
  %3002 = vmatpush.bf16.msra.mxu0 0
  %3003 = vmatpush.bf16.msra.mxu0 0
  %3004 = vmatpush.bf16.msra.mxu0 0
  %3005 = vmatpush.bf16.msra.mxu0 0
  %3006 = vmatpush.bf16.msra.mxu0 0
  %3007 = vmatpush.bf16.msra.mxu0 0
  %3008 = vmatpush.bf16.msra.mxu0 %v2996
  %3009 = vmatmul.bf16.gmra.mxu0 %v2999
  %v3010 = vpop.f32.mrf.mxu0
  %v3011 = vadd.f32 0.0, %v3010
  %v3012 = vpop.f32.mrf.mxu0
  %v3013 = vadd.f32 0.0, %v3012
  %3014 = vdwg.mxu0
  %v3015 = vld [vmem:[%s49] sm:$0xf]
  %v3016 = vpack.c.bf16 %v2988, %v2986
  %v3017 = vpack.c.bf16 %v3013, %v3011
  %3018 = vrot.lane.b32.xlu0 %v2859, 120
  %v3019 = vpop.permute.xlu0 %3018
  %3020 = vrot.lane.b32.xlu0 %v2859, 88
  %v3021 = vpop.permute.xlu0 %3020
  %v3023 = vsel %vm403, %v3019, 0
  %v3026 = vsel %vm403, %v3021, 0
  %3028 = vmatpush.bf16.xpose.msra.mxu0 0
  %3029 = vmatpush.bf16.xpose.msra.mxu0 0
  %3030 = vmatpush.bf16.xpose.msra.mxu0 0
  %3031 = vmatpush.bf16.xpose.msra.mxu0 0
  %3032 = vmatpush.bf16.xpose.msra.mxu0 0
  %3033 = vmatpush.bf16.xpose.msra.mxu0 0
  %3034 = vmatpush.bf16.xpose.msra.mxu0 0
  %3035 = vmatpush.bf16.xpose.msra.mxu0 %v3026
  %3036 = vmatmul.bf16.gmra.mxu0 %v3023
  %v3037 = vpop.f32.mrf.mxu0
  %v3038 = vadd.f32 0.0, %v3037
  %v3039 = vpop.f32.mrf.mxu0
  %v3040 = vadd.f32 0.0, %v3039
  %3041 = vdwg.mxu0
  %3042 = vrot.lane.b32.xlu0 %v2886, 120
  %v3043 = vpop.permute.xlu0 %3042
  %3044 = vrot.lane.b32.xlu0 %v2886, 88
  %v3045 = vpop.permute.xlu0 %3044
  %v3047 = vsel %vm403, %v3043, 0
  %v3050 = vsel %vm403, %v3045, 0
  %3052 = vmatpush.bf16.xpose.msra.mxu0 0
  %3053 = vmatpush.bf16.xpose.msra.mxu0 0
  %3054 = vmatpush.bf16.xpose.msra.mxu0 0
  %3055 = vmatpush.bf16.xpose.msra.mxu0 0
  %3056 = vmatpush.bf16.xpose.msra.mxu0 0
  %3057 = vmatpush.bf16.xpose.msra.mxu0 0
  %3058 = vmatpush.bf16.xpose.msra.mxu0 0
  %3059 = vmatpush.bf16.xpose.msra.mxu0 %v3050
  %3060 = vmatmul.bf16.gmra.mxu0 %v3047
  %v3061 = vpop.f32.mrf.mxu0
  %v3062 = vadd.f32 0.0, %v3061
  %v3063 = vpop.f32.mrf.mxu0
  %v3064 = vadd.f32 0.0, %v3063
  %3065 = vdwg.mxu0
  %v3066 = vmul.f32 %v3038, 0.35355338
  %v3067 = vmul.f32 %v3040, 0.35355338
  %v3068 = vmul.f32 %v3062, 0.35355338
  %v3069 = vmul.f32 %v3064, 0.35355338
  %v3070 = vadd.f32 %v3066, %v254
  %v3071 = vadd.f32 %v3067, %v255
  %v3072 = vadd.f32 %v3068, %v254
  %v3073 = vadd.f32 %v3069, %v255
  %v3074 = vsel %vm455, %v3070, -inf
  %3075 = vmax.xlane.f32.xlu0 %v3074
  %v3076 = vpop.xlane.xlu0 %3075
  %v3077 = vsel %vm455, %v3071, -inf
  %3078 = vmax.xlane.f32.xlu0 %v3077
  %v3079 = vpop.xlane.xlu0 %3078
  %v3080 = vsel %vm455, %v3072, -inf
  %3081 = vmax.xlane.f32.xlu0 %v3080
  %v3082 = vpop.xlane.xlu0 %3081
  %v3083 = vsel %vm455, %v3073, -inf
  %3084 = vmax.xlane.f32.xlu0 %v3083
  %v3085 = vpop.xlane.xlu0 %3084
  %v3086 = vsub.f32 %v3070, %v3076
  %v3087 = vsub.f32 %v3071, %v3079
  %v3088 = vsub.f32 %v3072, %v3082
  %v3089 = vsub.f32 %v3073, %v3085
  %v3090 = vmul.f32 %v3086, 1.442695
  %v3091 = vpow.pop %v3090
  %v3092 = vmul.f32 %v3087, 1.442695
  %v3093 = vpow.pop %v3092
  %v3094 = vmul.f32 %v3088, 1.442695
  %v3095 = vpow.pop %v3094
  %v3096 = vmul.f32 %v3089, 1.442695
  %v3097 = vpow.pop %v3096
  %v3098 = vsel %vm455, %v3091, 0.0
  %3099 = vadd.xlane.f32.xlu0 %v3098
  %v3100 = vpop.xlane.xlu0 %3099
  %v3101 = vsel %vm455, %v3093, 0.0
  %3102 = vadd.xlane.f32.xlu0 %v3101
  %v3103 = vpop.xlane.xlu0 %3102
  %v3104 = vsel %vm455, %v3095, 0.0
  %3105 = vadd.xlane.f32.xlu0 %v3104
  %v3106 = vpop.xlane.xlu0 %3105
  %v3107 = vsel %vm455, %v3097, 0.0
  %3108 = vadd.xlane.f32.xlu0 %v3107
  %v3109 = vpop.xlane.xlu0 %3108
  %v3110 = vrcp.pop %v3100
  %v3111 = vrcp.pop %v3103
  %v3112 = vrcp.pop %v3106
  %v3113 = vrcp.pop %v3109
  %v3114 = vmul.f32 %v3091, %v3110
  %v3115 = vmul.f32 %v3093, %v3111
  %v3116 = vmul.f32 %v3095, %v3112
  %v3117 = vmul.f32 %v3097, %v3113
  %v3118 = vpack.c.bf16 %v3114, %v3114
  %v3119 = vpack.c.bf16 %v3115, %v3115
  %v3120 = vpack.c.bf16 %v3116, %v3116
  %v3121 = vpack.c.bf16 %v3117, %v3117
  %v3124 = vunpack.c.l.b16 %v3118
  %v3125 = vunpack.c.l.b16 %v3119
  %v3126 = vpack.c.b16 %v3125, %v3124
  %3127 = vrot.lane.b32.xlu0 %v2859, 56
  %v3128 = vpop.permute.xlu0 %3127
  %v3131 = vsel %vm455, %v3126, 0
  %3133 = vmatpush.bf16.msra.mxu0 0
  %3134 = vmatpush.bf16.msra.mxu0 0
  %3135 = vmatpush.bf16.msra.mxu0 0
  %3136 = vmatpush.bf16.msra.mxu0 0
  %3137 = vmatpush.bf16.msra.mxu0 0
  %3138 = vmatpush.bf16.msra.mxu0 0
  %3139 = vmatpush.bf16.msra.mxu0 0
  %3140 = vmatpush.bf16.msra.mxu0 %v3128
  %3141 = vmatmul.bf16.gmra.mxu0 %v3131
  %v3142 = vpop.f32.mrf.mxu0
  %v3143 = vadd.f32 0.0, %v3142
  %v3144 = vpop.f32.mrf.mxu0
  %v3145 = vadd.f32 0.0, %v3144
  %3146 = vdwg.mxu0
  %v3149 = vunpack.c.l.b16 %v3120
  %v3150 = vunpack.c.l.b16 %v3121
  %v3151 = vpack.c.b16 %v3150, %v3149
  %3152 = vrot.lane.b32.xlu0 %v2886, 56
  %v3153 = vpop.permute.xlu0 %3152
  %v3156 = vsel %vm455, %v3151, 0
  %3158 = vmatpush.bf16.msra.mxu0 0
  %3159 = vmatpush.bf16.msra.mxu0 0
  %3160 = vmatpush.bf16.msra.mxu0 0
  %3161 = vmatpush.bf16.msra.mxu0 0
  %3162 = vmatpush.bf16.msra.mxu0 0
  %3163 = vmatpush.bf16.msra.mxu0 0
  %3164 = vmatpush.bf16.msra.mxu0 0
  %3165 = vmatpush.bf16.msra.mxu0 %v3153
  %3166 = vmatmul.bf16.gmra.mxu0 %v3156
  %v3167 = vpop.f32.mrf.mxu0
  %v3168 = vadd.f32 0.0, %v3167
  %v3169 = vpop.f32.mrf.mxu0
  %v3170 = vadd.f32 0.0, %v3169
  %3171 = vdwg.mxu0
  %s3172 = scalar_lea.vmem %s49, 4
  %v3173 = vld [vmem:[%s3172] sm:$0xf]
  %v3174 = vpack.c.bf16 %v3145, %v3143
  %v3175 = vpack.c.bf16 %v3170, %v3168
  %v3177 = vsel %vm403, %v3174, 0
  %v3180 = vsel %vm403, %v3175, 0
  %v3183 = vsel %vm717, %v3173, 0
  %3185 = vmatpush.bf16.msra.mxu0 0
  %3186 = vmatpush.bf16.msra.mxu0 0
  %3187 = vmatpush.bf16.msra.mxu0 0
  %3188 = vmatpush.bf16.msra.mxu0 0
  %3189 = vmatpush.bf16.msra.mxu0 0
  %3190 = vmatpush.bf16.msra.mxu0 0
  %3191 = vmatpush.bf16.msra.mxu0 0
  %3192 = vmatpush.bf16.msra.mxu0 %v3183
  %3193 = vmatmul.bf16.gmra.mxu0 %v3177
  %v3194 = vpop.f32.mrf.mxu0
  %v3195 = vadd.f32 0.0, %v3194
  %v3196 = vpop.f32.mrf.mxu0
  %v3197 = vadd.f32 0.0, %v3196
  %3198 = vmatmul.bf16.gmra.mxu0 %v3180
  %v3199 = vpop.f32.mrf.mxu0
  %v3200 = vadd.f32 0.0, %v3199
  %v3201 = vpop.f32.mrf.mxu0
  %v3202 = vadd.f32 0.0, %v3201
  %3203 = vdwg.mxu0
  %v3205 = vsel %vm403, %v3016, 0
  %v3208 = vsel %vm403, %v3017, 0
  %v3211 = vsel %vm717, %v3015, 0
  %3213 = vmatpush.bf16.msra.mxu0 0
  %3214 = vmatpush.bf16.msra.mxu0 0
  %3215 = vmatpush.bf16.msra.mxu0 0
  %3216 = vmatpush.bf16.msra.mxu0 0
  %3217 = vmatpush.bf16.msra.mxu0 0
  %3218 = vmatpush.bf16.msra.mxu0 0
  %3219 = vmatpush.bf16.msra.mxu0 0
  %3220 = vmatpush.bf16.msra.mxu0 %v3211
  %3221 = vmatmul.bf16.gmra.mxu0 %v3205
  %v3222 = vpop.f32.mrf.mxu0
  %v3223 = vadd.f32 %v3195, %v3222
  %v3224 = vpop.f32.mrf.mxu0
  %v3225 = vadd.f32 %v3197, %v3224
  %3226 = vmatmul.bf16.gmra.mxu0 %v3208
  %v3227 = vpop.f32.mrf.mxu0
  %v3228 = vadd.f32 %v3200, %v3227
  %v3229 = vpop.f32.mrf.mxu0
  %v3230 = vadd.f32 %v3202, %v3229
  %3231 = vdwg.mxu0
  %3232 = vrot.lane.b32.xlu0 %v2859, 112
  %v3233 = vpop.permute.xlu0 %3232
  %3234 = vrot.lane.b32.xlu0 %v2859, 80
  %v3235 = vpop.permute.xlu0 %3234
  %v3237 = vsel %vm403, %v3233, 0
  %v3240 = vsel %vm403, %v3235, 0
  %3242 = vmatpush.bf16.xpose.msra.mxu0 0
  %3243 = vmatpush.bf16.xpose.msra.mxu0 0
  %3244 = vmatpush.bf16.xpose.msra.mxu0 0
  %3245 = vmatpush.bf16.xpose.msra.mxu0 0
  %3246 = vmatpush.bf16.xpose.msra.mxu0 0
  %3247 = vmatpush.bf16.xpose.msra.mxu0 0
  %3248 = vmatpush.bf16.xpose.msra.mxu0 0
  %3249 = vmatpush.bf16.xpose.msra.mxu0 %v3240
  %3250 = vmatmul.bf16.gmra.mxu0 %v3237
  %v3251 = vpop.f32.mrf.mxu0
  %v3252 = vadd.f32 0.0, %v3251
  %v3253 = vpop.f32.mrf.mxu0
  %v3254 = vadd.f32 0.0, %v3253
  %3255 = vdwg.mxu0
  %3256 = vrot.lane.b32.xlu0 %v2886, 112
  %v3257 = vpop.permute.xlu0 %3256
  %3258 = vrot.lane.b32.xlu0 %v2886, 80
  %v3259 = vpop.permute.xlu0 %3258
  %v3261 = vsel %vm403, %v3257, 0
  %v3264 = vsel %vm403, %v3259, 0
  %3266 = vmatpush.bf16.xpose.msra.mxu0 0
  %3267 = vmatpush.bf16.xpose.msra.mxu0 0
  %3268 = vmatpush.bf16.xpose.msra.mxu0 0
  %3269 = vmatpush.bf16.xpose.msra.mxu0 0
  %3270 = vmatpush.bf16.xpose.msra.mxu0 0
  %3271 = vmatpush.bf16.xpose.msra.mxu0 0
  %3272 = vmatpush.bf16.xpose.msra.mxu0 0
  %3273 = vmatpush.bf16.xpose.msra.mxu0 %v3264
  %3274 = vmatmul.bf16.gmra.mxu0 %v3261
  %v3275 = vpop.f32.mrf.mxu0
  %v3276 = vadd.f32 0.0, %v3275
  %v3277 = vpop.f32.mrf.mxu0
  %v3278 = vadd.f32 0.0, %v3277
  %3279 = vdwg.mxu0
  %v3280 = vmul.f32 %v3252, 0.35355338
  %v3281 = vmul.f32 %v3254, 0.35355338
  %v3282 = vmul.f32 %v3276, 0.35355338
  %v3283 = vmul.f32 %v3278, 0.35355338
  %v3284 = vadd.f32 %v3280, %v254
  %v3285 = vadd.f32 %v3281, %v255
  %v3286 = vadd.f32 %v3282, %v254
  %v3287 = vadd.f32 %v3283, %v255
  %v3288 = vsel %vm455, %v3284, -inf
  %3289 = vmax.xlane.f32.xlu0 %v3288
  %v3290 = vpop.xlane.xlu0 %3289
  %v3291 = vsel %vm455, %v3285, -inf
  %3292 = vmax.xlane.f32.xlu0 %v3291
  %v3293 = vpop.xlane.xlu0 %3292
  %v3294 = vsel %vm455, %v3286, -inf
  %3295 = vmax.xlane.f32.xlu0 %v3294
  %v3296 = vpop.xlane.xlu0 %3295
  %v3297 = vsel %vm455, %v3287, -inf
  %3298 = vmax.xlane.f32.xlu0 %v3297
  %v3299 = vpop.xlane.xlu0 %3298
  %v3300 = vsub.f32 %v3284, %v3290
  %v3301 = vsub.f32 %v3285, %v3293
  %v3302 = vsub.f32 %v3286, %v3296
  %v3303 = vsub.f32 %v3287, %v3299
  %v3304 = vmul.f32 %v3300, 1.442695
  %v3305 = vpow.pop %v3304
  %v3306 = vmul.f32 %v3301, 1.442695
  %v3307 = vpow.pop %v3306
  %v3308 = vmul.f32 %v3302, 1.442695
  %v3309 = vpow.pop %v3308
  %v3310 = vmul.f32 %v3303, 1.442695
  %v3311 = vpow.pop %v3310
  %v3312 = vsel %vm455, %v3305, 0.0
  %3313 = vadd.xlane.f32.xlu0 %v3312
  %v3314 = vpop.xlane.xlu0 %3313
  %v3315 = vsel %vm455, %v3307, 0.0
  %3316 = vadd.xlane.f32.xlu0 %v3315
  %v3317 = vpop.xlane.xlu0 %3316
  %v3318 = vsel %vm455, %v3309, 0.0
  %3319 = vadd.xlane.f32.xlu0 %v3318
  %v3320 = vpop.xlane.xlu0 %3319
  %v3321 = vsel %vm455, %v3311, 0.0
  %3322 = vadd.xlane.f32.xlu0 %v3321
  %v3323 = vpop.xlane.xlu0 %3322
  %v3324 = vrcp.pop %v3314
  %v3325 = vrcp.pop %v3317
  %v3326 = vrcp.pop %v3320
  %v3327 = vrcp.pop %v3323
  %v3328 = vmul.f32 %v3305, %v3324
  %v3329 = vmul.f32 %v3307, %v3325
  %v3330 = vmul.f32 %v3309, %v3326
  %v3331 = vmul.f32 %v3311, %v3327
  %v3332 = vpack.c.bf16 %v3328, %v3328
  %v3333 = vpack.c.bf16 %v3329, %v3329
  %v3334 = vpack.c.bf16 %v3330, %v3330
  %v3335 = vpack.c.bf16 %v3331, %v3331
  %v3338 = vunpack.c.l.b16 %v3332
  %v3339 = vunpack.c.l.b16 %v3333
  %v3340 = vpack.c.b16 %v3339, %v3338
  %3341 = vrot.lane.b32.xlu0 %v2859, 48
  %v3342 = vpop.permute.xlu0 %3341
  %v3345 = vsel %vm455, %v3340, 0
  %3347 = vmatpush.bf16.msra.mxu0 0
  %3348 = vmatpush.bf16.msra.mxu0 0
  %3349 = vmatpush.bf16.msra.mxu0 0
  %3350 = vmatpush.bf16.msra.mxu0 0
  %3351 = vmatpush.bf16.msra.mxu0 0
  %3352 = vmatpush.bf16.msra.mxu0 0
  %3353 = vmatpush.bf16.msra.mxu0 0
  %3354 = vmatpush.bf16.msra.mxu0 %v3342
  %3355 = vmatmul.bf16.gmra.mxu0 %v3345
  %v3356 = vpop.f32.mrf.mxu0
  %v3357 = vadd.f32 0.0, %v3356
  %v3358 = vpop.f32.mrf.mxu0
  %v3359 = vadd.f32 0.0, %v3358
  %3360 = vdwg.mxu0
  %v3363 = vunpack.c.l.b16 %v3334
  %v3364 = vunpack.c.l.b16 %v3335
  %v3365 = vpack.c.b16 %v3364, %v3363
  %3366 = vrot.lane.b32.xlu0 %v2886, 48
  %v3367 = vpop.permute.xlu0 %3366
  %v3370 = vsel %vm455, %v3365, 0
  %3372 = vmatpush.bf16.msra.mxu0 0
  %3373 = vmatpush.bf16.msra.mxu0 0
  %3374 = vmatpush.bf16.msra.mxu0 0
  %3375 = vmatpush.bf16.msra.mxu0 0
  %3376 = vmatpush.bf16.msra.mxu0 0
  %3377 = vmatpush.bf16.msra.mxu0 0
  %3378 = vmatpush.bf16.msra.mxu0 0
  %3379 = vmatpush.bf16.msra.mxu0 %v3367
  %3380 = vmatmul.bf16.gmra.mxu0 %v3370
  %v3381 = vpop.f32.mrf.mxu0
  %v3382 = vadd.f32 0.0, %v3381
  %v3383 = vpop.f32.mrf.mxu0
  %v3384 = vadd.f32 0.0, %v3383
  %3385 = vdwg.mxu0
  %s3386 = scalar_lea.vmem %s49, 8
  %v3387 = vld [vmem:[%s3386] sm:$0xf]
  %v3388 = vpack.c.bf16 %v3359, %v3357
  %v3389 = vpack.c.bf16 %v3384, %v3382
  %v3391 = vsel %vm403, %v3388, 0
  %v3394 = vsel %vm403, %v3389, 0
  %v3397 = vsel %vm717, %v3387, 0
  %3399 = vmatpush.bf16.msra.mxu0 0
  %3400 = vmatpush.bf16.msra.mxu0 0
  %3401 = vmatpush.bf16.msra.mxu0 0
  %3402 = vmatpush.bf16.msra.mxu0 0
  %3403 = vmatpush.bf16.msra.mxu0 0
  %3404 = vmatpush.bf16.msra.mxu0 0
  %3405 = vmatpush.bf16.msra.mxu0 0
  %3406 = vmatpush.bf16.msra.mxu0 %v3397
  %3407 = vmatmul.bf16.gmra.mxu0 %v3391
  %v3408 = vpop.f32.mrf.mxu0
  %v3409 = vadd.f32 0.0, %v3408
  %v3410 = vpop.f32.mrf.mxu0
  %v3411 = vadd.f32 0.0, %v3410
  %3412 = vmatmul.bf16.gmra.mxu0 %v3394
  %v3413 = vpop.f32.mrf.mxu0
  %v3414 = vadd.f32 0.0, %v3413
  %v3415 = vpop.f32.mrf.mxu0
  %v3416 = vadd.f32 0.0, %v3415
  %3417 = vdwg.mxu0
  %v3418 = vadd.f32 %v3223, %v3409
  %v3419 = vadd.f32 %v3225, %v3411
  %v3420 = vadd.f32 %v3228, %v3414
  %v3421 = vadd.f32 %v3230, %v3416
  %3422 = vrot.lane.b32.xlu0 %v2859, 104
  %v3423 = vpop.permute.xlu0 %3422
  %3424 = vrot.lane.b32.xlu0 %v2859, 72
  %v3425 = vpop.permute.xlu0 %3424
  %v3427 = vsel %vm403, %v3423, 0
  %v3430 = vsel %vm403, %v3425, 0
  %3432 = vmatpush.bf16.xpose.msra.mxu0 0
  %3433 = vmatpush.bf16.xpose.msra.mxu0 0
  %3434 = vmatpush.bf16.xpose.msra.mxu0 0
  %3435 = vmatpush.bf16.xpose.msra.mxu0 0
  %3436 = vmatpush.bf16.xpose.msra.mxu0 0
  %3437 = vmatpush.bf16.xpose.msra.mxu0 0
  %3438 = vmatpush.bf16.xpose.msra.mxu0 0
  %3439 = vmatpush.bf16.xpose.msra.mxu0 %v3430
  %3440 = vmatmul.bf16.gmra.mxu0 %v3427
  %v3441 = vpop.f32.mrf.mxu0
  %v3442 = vadd.f32 0.0, %v3441
  %v3443 = vpop.f32.mrf.mxu0
  %v3444 = vadd.f32 0.0, %v3443
  %3445 = vdwg.mxu0
  %3446 = vrot.lane.b32.xlu0 %v2886, 104
  %v3447 = vpop.permute.xlu0 %3446
  %3448 = vrot.lane.b32.xlu0 %v2886, 72
  %v3449 = vpop.permute.xlu0 %3448
  %v3451 = vsel %vm403, %v3447, 0
  %v3454 = vsel %vm403, %v3449, 0
  %3456 = vmatpush.bf16.xpose.msra.mxu0 0
  %3457 = vmatpush.bf16.xpose.msra.mxu0 0
  %3458 = vmatpush.bf16.xpose.msra.mxu0 0
  %3459 = vmatpush.bf16.xpose.msra.mxu0 0
  %3460 = vmatpush.bf16.xpose.msra.mxu0 0
  %3461 = vmatpush.bf16.xpose.msra.mxu0 0
  %3462 = vmatpush.bf16.xpose.msra.mxu0 0
  %3463 = vmatpush.bf16.xpose.msra.mxu0 %v3454
  %3464 = vmatmul.bf16.gmra.mxu0 %v3451
  %v3465 = vpop.f32.mrf.mxu0
  %v3466 = vadd.f32 0.0, %v3465
  %v3467 = vpop.f32.mrf.mxu0
  %v3468 = vadd.f32 0.0, %v3467
  %3469 = vdwg.mxu0
  %v3470 = vmul.f32 %v3442, 0.35355338
  %v3471 = vmul.f32 %v3444, 0.35355338
  %v3472 = vmul.f32 %v3466, 0.35355338
  %v3473 = vmul.f32 %v3468, 0.35355338
  %v3474 = vadd.f32 %v3470, %v254
  %v3475 = vadd.f32 %v3471, %v255
  %v3476 = vadd.f32 %v3472, %v254
  %v3477 = vadd.f32 %v3473, %v255
  %v3478 = vsel %vm455, %v3474, -inf
  %3479 = vmax.xlane.f32.xlu0 %v3478
  %v3480 = vpop.xlane.xlu0 %3479
  %v3481 = vsel %vm455, %v3475, -inf
  %3482 = vmax.xlane.f32.xlu0 %v3481
  %v3483 = vpop.xlane.xlu0 %3482
  %v3484 = vsel %vm455, %v3476, -inf
  %3485 = vmax.xlane.f32.xlu0 %v3484
  %v3486 = vpop.xlane.xlu0 %3485
  %v3487 = vsel %vm455, %v3477, -inf
  %3488 = vmax.xlane.f32.xlu0 %v3487
  %v3489 = vpop.xlane.xlu0 %3488
  %v3490 = vsub.f32 %v3474, %v3480
  %v3491 = vsub.f32 %v3475, %v3483
  %v3492 = vsub.f32 %v3476, %v3486
  %v3493 = vsub.f32 %v3477, %v3489
  %v3494 = vmul.f32 %v3490, 1.442695
  %v3495 = vpow.pop %v3494
  %v3496 = vmul.f32 %v3491, 1.442695
  %v3497 = vpow.pop %v3496
  %v3498 = vmul.f32 %v3492, 1.442695
  %v3499 = vpow.pop %v3498
  %v3500 = vmul.f32 %v3493, 1.442695
  %v3501 = vpow.pop %v3500
  %v3502 = vsel %vm455, %v3495, 0.0
  %3503 = vadd.xlane.f32.xlu0 %v3502
  %v3504 = vpop.xlane.xlu0 %3503
  %v3505 = vsel %vm455, %v3497, 0.0
  %3506 = vadd.xlane.f32.xlu0 %v3505
  %v3507 = vpop.xlane.xlu0 %3506
  %v3508 = vsel %vm455, %v3499, 0.0
  %3509 = vadd.xlane.f32.xlu0 %v3508
  %v3510 = vpop.xlane.xlu0 %3509
  %v3511 = vsel %vm455, %v3501, 0.0
  %3512 = vadd.xlane.f32.xlu0 %v3511
  %v3513 = vpop.xlane.xlu0 %3512
  %v3514 = vrcp.pop %v3504
  %v3515 = vrcp.pop %v3507
  %v3516 = vrcp.pop %v3510
  %v3517 = vrcp.pop %v3513
  %v3518 = vmul.f32 %v3495, %v3514
  %v3519 = vmul.f32 %v3497, %v3515
  %v3520 = vmul.f32 %v3499, %v3516
  %v3521 = vmul.f32 %v3501, %v3517
  %v3522 = vpack.c.bf16 %v3518, %v3518
  %v3523 = vpack.c.bf16 %v3519, %v3519
  %v3524 = vpack.c.bf16 %v3520, %v3520
  %v3525 = vpack.c.bf16 %v3521, %v3521
  %v3528 = vunpack.c.l.b16 %v3522
  %v3529 = vunpack.c.l.b16 %v3523
  %v3530 = vpack.c.b16 %v3529, %v3528
  %3531 = vrot.lane.b32.xlu0 %v2859, 40
  %v3532 = vpop.permute.xlu0 %3531
  %v3535 = vsel %vm455, %v3530, 0
  %3537 = vmatpush.bf16.msra.mxu0 0
  %3538 = vmatpush.bf16.msra.mxu0 0
  %3539 = vmatpush.bf16.msra.mxu0 0
  %3540 = vmatpush.bf16.msra.mxu0 0
  %3541 = vmatpush.bf16.msra.mxu0 0
  %3542 = vmatpush.bf16.msra.mxu0 0
  %3543 = vmatpush.bf16.msra.mxu0 0
  %3544 = vmatpush.bf16.msra.mxu0 %v3532
  %3545 = vmatmul.bf16.gmra.mxu0 %v3535
  %v3546 = vpop.f32.mrf.mxu0
  %v3547 = vadd.f32 0.0, %v3546
  %v3548 = vpop.f32.mrf.mxu0
  %v3549 = vadd.f32 0.0, %v3548
  %3550 = vdwg.mxu0
  %v3553 = vunpack.c.l.b16 %v3524
  %v3554 = vunpack.c.l.b16 %v3525
  %v3555 = vpack.c.b16 %v3554, %v3553
  %3556 = vrot.lane.b32.xlu0 %v2886, 40
  %v3557 = vpop.permute.xlu0 %3556
  %v3560 = vsel %vm455, %v3555, 0
  %3562 = vmatpush.bf16.msra.mxu0 0
  %3563 = vmatpush.bf16.msra.mxu0 0
  %3564 = vmatpush.bf16.msra.mxu0 0
  %3565 = vmatpush.bf16.msra.mxu0 0
  %3566 = vmatpush.bf16.msra.mxu0 0
  %3567 = vmatpush.bf16.msra.mxu0 0
  %3568 = vmatpush.bf16.msra.mxu0 0
  %3569 = vmatpush.bf16.msra.mxu0 %v3557
  %3570 = vmatmul.bf16.gmra.mxu0 %v3560
  %v3571 = vpop.f32.mrf.mxu0
  %v3572 = vadd.f32 0.0, %v3571
  %v3573 = vpop.f32.mrf.mxu0
  %v3574 = vadd.f32 0.0, %v3573
  %3575 = vdwg.mxu0
  %s3576 = scalar_lea.vmem %s49, 12
  %v3577 = vld [vmem:[%s3576] sm:$0xf]
  %v3578 = vpack.c.bf16 %v3549, %v3547
  %v3579 = vpack.c.bf16 %v3574, %v3572
  %v3581 = vsel %vm403, %v3578, 0
  %v3584 = vsel %vm403, %v3579, 0
  %v3587 = vsel %vm717, %v3577, 0
  %3589 = vmatpush.bf16.msra.mxu0 0
  %3590 = vmatpush.bf16.msra.mxu0 0
  %3591 = vmatpush.bf16.msra.mxu0 0
  %3592 = vmatpush.bf16.msra.mxu0 0
  %3593 = vmatpush.bf16.msra.mxu0 0
  %3594 = vmatpush.bf16.msra.mxu0 0
  %3595 = vmatpush.bf16.msra.mxu0 0
  %3596 = vmatpush.bf16.msra.mxu0 %v3587
  %3597 = vmatmul.bf16.gmra.mxu0 %v3581
  %v3598 = vpop.f32.mrf.mxu0
  %v3599 = vadd.f32 0.0, %v3598
  %v3600 = vpop.f32.mrf.mxu0
  %v3601 = vadd.f32 0.0, %v3600
  %3602 = vmatmul.bf16.gmra.mxu0 %v3584
  %v3603 = vpop.f32.mrf.mxu0
  %v3604 = vadd.f32 0.0, %v3603
  %v3605 = vpop.f32.mrf.mxu0
  %v3606 = vadd.f32 0.0, %v3605
  %3607 = vdwg.mxu0
  %v3608 = vadd.f32 %v3418, %v3599
  %v3609 = vadd.f32 %v3419, %v3601
  %v3610 = vadd.f32 %v3420, %v3604
  %v3611 = vadd.f32 %v3421, %v3606
  %v3612 = vld [vmem:[%s45] sm:$0x1]
  %v3614 = vperm.slane %v3612, 0
  %v3616 = vadd.f32 %v3608, %v3614
  %v3617 = vadd.f32 %v3609, %v3614
  %v3618 = vadd.f32 %v3610, %v3614
  %v3619 = vadd.f32 %v3611, %v3614
  %v3620 = vadd.f32 %v2800, %v3616
  %v3621 = vadd.f32 %v2801, %v3617
  %v3622 = vadd.f32 %v2802, %v3618
  %v3623 = vadd.f32 %v2803, %v3619
  %v3624 = vsel %vm366, %v3620, 0.0
  %3625 = vadd.xlane.f32.xlu0 %v3624
  %v3626 = vpop.xlane.xlu0 %3625
  %v3627 = vsel %vm366, %v3621, 0.0
  %3628 = vadd.xlane.f32.xlu0 %v3627
  %v3629 = vpop.xlane.xlu0 %3628
  %v3630 = vsel %vm366, %v3622, 0.0
  %3631 = vadd.xlane.f32.xlu0 %v3630
  %v3632 = vpop.xlane.xlu0 %3631
  %v3633 = vsel %vm366, %v3623, 0.0
  %3634 = vadd.xlane.f32.xlu0 %v3633
  %v3635 = vpop.xlane.xlu0 %3634
  %v3636 = vmul.f32 %v3626, %v1170
  %v3637 = vmul.f32 %v3629, %v1170
  %v3638 = vmul.f32 %v3632, %v1170
  %v3639 = vmul.f32 %v3635, %v1170
  %v3640 = vsub.f32 %v3620, %v3636
  %v3641 = vsub.f32 %v3621, %v3637
  %v3642 = vsub.f32 %v3622, %v3638
  %v3643 = vsub.f32 %v3623, %v3639
  %v3644 = vmul.f32 %v3640, %v3640
  %v3645 = vmul.f32 %v3641, %v3641
  %v3646 = vmul.f32 %v3642, %v3642
  %v3647 = vmul.f32 %v3643, %v3643
  %v3648 = vsel %vm366, %v3644, 0.0
  %3649 = vadd.xlane.f32.xlu0 %v3648
  %v3650 = vpop.xlane.xlu0 %3649
  %v3651 = vsel %vm366, %v3645, 0.0
  %3652 = vadd.xlane.f32.xlu0 %v3651
  %v3653 = vpop.xlane.xlu0 %3652
  %v3654 = vsel %vm366, %v3646, 0.0
  %3655 = vadd.xlane.f32.xlu0 %v3654
  %v3656 = vpop.xlane.xlu0 %3655
  %v3657 = vsel %vm366, %v3647, 0.0
  %3658 = vadd.xlane.f32.xlu0 %v3657
  %v3659 = vpop.xlane.xlu0 %3658
  %v3660 = vmul.f32 %v3650, %v1170
  %v3661 = vmul.f32 %v3653, %v1170
  %v3662 = vmul.f32 %v3656, %v1170
  %v3663 = vmul.f32 %v3659, %v1170
  %v3664 = vadd.f32 %v3660, 1e-05
  %v3665 = vadd.f32 %v3661, 1e-05
  %v3666 = vadd.f32 %v3662, 1e-05
  %v3667 = vadd.f32 %v3663, 1e-05
  %v3668 = vrsqrt.pop %v3664
  %v3669 = vmul.f32 %v3668, %v3664
  %v3670 = vmul.f32 %v3669, %v3668
  %v3671 = vmul.f32 0.5, %v3670
  %v3672 = vsub.f32 1.5, %v3671
  %v3673 = vmul.f32 %v3668, %v3672
  %vm3674 = vweird.f32 %v3664
  %vm3675 = vweird.f32 %v3668
  %vm3676 = vmor %vm3674, %vm3675
  %v3677 = vsel %vm3676, %v3668, %v3673
  %v3678 = vrsqrt.pop %v3665
  %v3679 = vmul.f32 %v3678, %v3665
  %v3680 = vmul.f32 %v3679, %v3678
  %v3681 = vmul.f32 0.5, %v3680
  %v3682 = vsub.f32 1.5, %v3681
  %v3683 = vmul.f32 %v3678, %v3682
  %vm3684 = vweird.f32 %v3665
  %vm3685 = vweird.f32 %v3678
  %vm3686 = vmor %vm3684, %vm3685
  %v3687 = vsel %vm3686, %v3678, %v3683
  %v3688 = vrsqrt.pop %v3666
  %v3689 = vmul.f32 %v3688, %v3666
  %v3690 = vmul.f32 %v3689, %v3688
  %v3691 = vmul.f32 0.5, %v3690
  %v3692 = vsub.f32 1.5, %v3691
  %v3693 = vmul.f32 %v3688, %v3692
  %vm3694 = vweird.f32 %v3666
  %vm3695 = vweird.f32 %v3688
  %vm3696 = vmor %vm3694, %vm3695
  %v3697 = vsel %vm3696, %v3688, %v3693
  %v3698 = vrsqrt.pop %v3667
  %v3699 = vmul.f32 %v3698, %v3667
  %v3700 = vmul.f32 %v3699, %v3698
  %v3701 = vmul.f32 0.5, %v3700
  %v3702 = vsub.f32 1.5, %v3701
  %v3703 = vmul.f32 %v3698, %v3702
  %vm3704 = vweird.f32 %v3667
  %vm3705 = vweird.f32 %v3698
  %vm3706 = vmor %vm3704, %vm3705
  %v3707 = vsel %vm3706, %v3698, %v3703
  %v3708 = vmul.f32 %v3640, %v3677
  %v3709 = vmul.f32 %v3641, %v3687
  %v3710 = vmul.f32 %v3642, %v3697
  %v3711 = vmul.f32 %v3643, %v3707
  %v3712 = vld [vmem:[%s35] sm:$0x1]
  %v3714 = vperm.slane %v3712, 0
  %v3716 = vmul.f32 %v3708, %v3714
  %v3717 = vmul.f32 %v3709, %v3714
  %v3718 = vmul.f32 %v3710, %v3714
  %v3719 = vmul.f32 %v3711, %v3714
  %v3720 = vld [vmem:[%s33] sm:$0x1]
  %v3722 = vperm.slane %v3720, 0
  %v3724 = vadd.f32 %v3716, %v3722
  %v3725 = vadd.f32 %v3717, %v3722
  %v3726 = vadd.f32 %v3718, %v3722
  %v3727 = vadd.f32 %v3719, %v3722
  %v3728 = vld [vmem:[%s31] sm:$0xf]
  %v3729 = vld [vmem:[%s31 + $0x4] sm:$0xf]
  %v3730 = vld [vmem:[%s31 + $0x8] sm:$0xf]
  %v3731 = vld [vmem:[%s31 + $0xc] sm:$0xf]
  %v3732 = vpack.c.bf16 %v3725, %v3724
  %v3733 = vpack.c.bf16 %v3727, %v3726
  %v3734 = vld [vmem:[%s25] sm:$0x1]
  %v3736 = vperm.slane %v3734, 0
  %v3742 = vunpack.c.l.b16 %v3728
  %v3743 = vunpack.c.l.b16 %v3729
  %v3744 = vunpack.c.l.b16 %v3730
  %v3745 = vunpack.c.l.b16 %v3731
  %v3746 = vpack.c.b16 %v3743, %v3742
  %v3747 = vpack.c.b16 %v3745, %v3744
  %v3751 = vsel %vm366, %v3732, 0
  %v3754 = vsel %vm366, %v3733, 0
  %3756 = vmatpush.bf16.msra.mxu0 0
  %3757 = vmatpush.bf16.msra.mxu0 0
  %3758 = vmatpush.bf16.msra.mxu0 0
  %3759 = vmatpush.bf16.msra.mxu0 0
  %3760 = vmatpush.bf16.msra.mxu0 0
  %3761 = vmatpush.bf16.msra.mxu0 0
  %3762 = vmatpush.bf16.msra.mxu0 %v3747
  %3763 = vmatpush.bf16.msra.mxu0 %v3746
  %3764 = vmatmul.bf16.gmra.mxu0 %v3751
  %v3765 = vpop.f32.mrf.mxu0
  %v3766 = vadd.f32 %v3736, %v3765
  %v3767 = vpop.f32.mrf.mxu0
  %v3768 = vadd.f32 %v3736, %v3767
  %3769 = vmatmul.bf16.gmra.mxu0 %v3754
  %v3770 = vpop.f32.mrf.mxu0
  %v3771 = vadd.f32 %v3736, %v3770
  %v3772 = vpop.f32.mrf.mxu0
  %v3773 = vadd.f32 %v3736, %v3772
  %3774 = vdwg.mxu0
  %v3775 = vld [vmem:[%s27] sm:$0xf]
  %v3776 = vld [vmem:[%s27 + $0x4] sm:$0xf]
  %v3777 = vld [vmem:[%s27 + $0x8] sm:$0xf]
  %v3778 = vld [vmem:[%s27 + $0xc] sm:$0xf]
  %v3779 = vpack.c.bf16 %v2717, %v2716
  %v3780 = vpack.c.bf16 %v2719, %v2718
  %v3781 = vld [vmem:[%s21] sm:$0x1]
  %v3783 = vperm.slane %v3781, 0
  %v3789 = vunpack.c.l.b16 %v3775
  %v3790 = vunpack.c.l.b16 %v3776
  %v3791 = vunpack.c.l.b16 %v3777
  %v3792 = vunpack.c.l.b16 %v3778
  %v3793 = vpack.c.b16 %v3790, %v3789
  %v3794 = vpack.c.b16 %v3792, %v3791
  %v3798 = vsel %vm366, %v3779, 0
  %v3801 = vsel %vm366, %v3780, 0
  %3803 = vmatpush.bf16.msra.mxu0 0
  %3804 = vmatpush.bf16.msra.mxu0 0
  %3805 = vmatpush.bf16.msra.mxu0 0
  %3806 = vmatpush.bf16.msra.mxu0 0
  %3807 = vmatpush.bf16.msra.mxu0 0
  %3808 = vmatpush.bf16.msra.mxu0 0
  %3809 = vmatpush.bf16.msra.mxu0 %v3794
  %3810 = vmatpush.bf16.msra.mxu0 %v3793
  %3811 = vmatmul.bf16.gmra.mxu0 %v3798
  %v3812 = vpop.f32.mrf.mxu0
  %v3813 = vadd.f32 %v3783, %v3812
  %v3814 = vpop.f32.mrf.mxu0
  %v3815 = vadd.f32 %v3783, %v3814
  %3816 = vmatmul.bf16.gmra.mxu0 %v3801
  %v3817 = vpop.f32.mrf.mxu0
  %v3818 = vadd.f32 %v3783, %v3817
  %v3819 = vpop.f32.mrf.mxu0
  %v3820 = vadd.f32 %v3783, %v3819
  %3821 = vdwg.mxu0
  %v3822 = vpack.c.bf16 %v3766, %v3766
  %v3823 = vpack.c.bf16 %v3768, %v3768
  %v3824 = vpack.c.bf16 %v3771, %v3771
  %v3825 = vpack.c.bf16 %v3773, %v3773
  %v3826 = vpack.c.bf16 %v3813, %v3813
  %v3827 = vpack.c.bf16 %v3815, %v3815
  %v3828 = vpack.c.bf16 %v3818, %v3818
  %v3829 = vpack.c.bf16 %v3820, %v3820
  %v3832 = vunpack.c.l.b16 %v3822
  %v3833 = vunpack.c.l.b16 %v3823
  %v3834 = vpack.c.b16 %v3833, %v3832
  %v3837 = vunpack.c.l.b16 %v3826
  %v3838 = vunpack.c.l.b16 %v3827
  %v3839 = vpack.c.b16 %v3838, %v3837
  %v3841 = vsel %vm403, %v3834, 0
  %v3844 = vsel %vm403, %v3839, 0
  %3846 = vmatpush.bf16.xpose.msra.mxu0 0
  %3847 = vmatpush.bf16.xpose.msra.mxu0 0
  %3848 = vmatpush.bf16.xpose.msra.mxu0 0
  %3849 = vmatpush.bf16.xpose.msra.mxu0 0
  %3850 = vmatpush.bf16.xpose.msra.mxu0 0
  %3851 = vmatpush.bf16.xpose.msra.mxu0 0
  %3852 = vmatpush.bf16.xpose.msra.mxu0 0
  %3853 = vmatpush.bf16.xpose.msra.mxu0 %v3844
  %3854 = vmatmul.bf16.gmra.mxu0 %v3841
  %v3855 = vpop.f32.mrf.mxu0
  %v3856 = vadd.f32 0.0, %v3855
  %v3857 = vpop.f32.mrf.mxu0
  %v3858 = vadd.f32 0.0, %v3857
  %3859 = vdwg.mxu0
  %v3862 = vunpack.c.l.b16 %v3824
  %v3863 = vunpack.c.l.b16 %v3825
  %v3864 = vpack.c.b16 %v3863, %v3862
  %v3867 = vunpack.c.l.b16 %v3828
  %v3868 = vunpack.c.l.b16 %v3829
  %v3869 = vpack.c.b16 %v3868, %v3867
  %v3871 = vsel %vm403, %v3864, 0
  %v3874 = vsel %vm403, %v3869, 0
  %3876 = vmatpush.bf16.xpose.msra.mxu0 0
  %3877 = vmatpush.bf16.xpose.msra.mxu0 0
  %3878 = vmatpush.bf16.xpose.msra.mxu0 0
  %3879 = vmatpush.bf16.xpose.msra.mxu0 0
  %3880 = vmatpush.bf16.xpose.msra.mxu0 0
  %3881 = vmatpush.bf16.xpose.msra.mxu0 0
  %3882 = vmatpush.bf16.xpose.msra.mxu0 0
  %3883 = vmatpush.bf16.xpose.msra.mxu0 %v3874
  %3884 = vmatmul.bf16.gmra.mxu0 %v3871
  %v3885 = vpop.f32.mrf.mxu0
  %v3886 = vadd.f32 0.0, %v3885
  %v3887 = vpop.f32.mrf.mxu0
  %v3888 = vadd.f32 0.0, %v3887
  %3889 = vdwg.mxu0
  %v3890 = vmul.f32 %v3856, 0.35355338
  %v3891 = vmul.f32 %v3858, 0.35355338
  %v3892 = vmul.f32 %v3886, 0.35355338
  %v3893 = vmul.f32 %v3888, 0.35355338
  %v3894 = vsel %vm455, %v3890, -inf
  %3895 = vmax.xlane.f32.xlu0 %v3894
  %v3896 = vpop.xlane.xlu0 %3895
  %v3897 = vsel %vm455, %v3891, -inf
  %3898 = vmax.xlane.f32.xlu0 %v3897
  %v3899 = vpop.xlane.xlu0 %3898
  %v3900 = vsel %vm455, %v3892, -inf
  %3901 = vmax.xlane.f32.xlu0 %v3900
  %v3902 = vpop.xlane.xlu0 %3901
  %v3903 = vsel %vm455, %v3893, -inf
  %3904 = vmax.xlane.f32.xlu0 %v3903
  %v3905 = vpop.xlane.xlu0 %3904
  %v3906 = vsub.f32 %v3890, %v3896
  %v3907 = vsub.f32 %v3891, %v3899
  %v3908 = vsub.f32 %v3892, %v3902
  %v3909 = vsub.f32 %v3893, %v3905
  %v3910 = vmul.f32 %v3906, 1.442695
  %v3911 = vpow.pop %v3910
  %v3912 = vmul.f32 %v3907, 1.442695
  %v3913 = vpow.pop %v3912
  %v3914 = vmul.f32 %v3908, 1.442695
  %v3915 = vpow.pop %v3914
  %v3916 = vmul.f32 %v3909, 1.442695
  %v3917 = vpow.pop %v3916
  %v3918 = vsel %vm455, %v3911, 0.0
  %3919 = vadd.xlane.f32.xlu0 %v3918
  %v3920 = vpop.xlane.xlu0 %3919
  %v3921 = vsel %vm455, %v3913, 0.0
  %3922 = vadd.xlane.f32.xlu0 %v3921
  %v3923 = vpop.xlane.xlu0 %3922
  %v3924 = vsel %vm455, %v3915, 0.0
  %3925 = vadd.xlane.f32.xlu0 %v3924
  %v3926 = vpop.xlane.xlu0 %3925
  %v3927 = vsel %vm455, %v3917, 0.0
  %3928 = vadd.xlane.f32.xlu0 %v3927
  %v3929 = vpop.xlane.xlu0 %3928
  %v3930 = vrcp.pop %v3920
  %v3931 = vrcp.pop %v3923
  %v3932 = vrcp.pop %v3926
  %v3933 = vrcp.pop %v3929
  %v3934 = vmul.f32 %v3911, %v3930
  %v3935 = vmul.f32 %v3913, %v3931
  %v3936 = vmul.f32 %v3915, %v3932
  %v3937 = vmul.f32 %v3917, %v3933
  %v3938 = vpack.c.bf16 %v3934, %v3934
  %v3939 = vpack.c.bf16 %v3935, %v3935
  %v3940 = vpack.c.bf16 %v3936, %v3936
  %v3941 = vpack.c.bf16 %v3937, %v3937
  %v3944 = vunpack.c.l.b16 %v3938
  %v3945 = vunpack.c.l.b16 %v3939
  %v3946 = vpack.c.b16 %v3945, %v3944
  %3947 = vrot.lane.b32.xlu0 %v3839, 96
  %v3948 = vpop.permute.xlu0 %3947
  %v3951 = vsel %vm455, %v3946, 0
  %3953 = vmatpush.bf16.msra.mxu0 0
  %3954 = vmatpush.bf16.msra.mxu0 0
  %3955 = vmatpush.bf16.msra.mxu0 0
  %3956 = vmatpush.bf16.msra.mxu0 0
  %3957 = vmatpush.bf16.msra.mxu0 0
  %3958 = vmatpush.bf16.msra.mxu0 0
  %3959 = vmatpush.bf16.msra.mxu0 0
  %3960 = vmatpush.bf16.msra.mxu0 %v3948
  %3961 = vmatmul.bf16.gmra.mxu0 %v3951
  %v3962 = vpop.f32.mrf.mxu0
  %v3963 = vadd.f32 0.0, %v3962
  %v3964 = vpop.f32.mrf.mxu0
  %v3965 = vadd.f32 0.0, %v3964
  %3966 = vdwg.mxu0
  %v3969 = vunpack.c.l.b16 %v3940
  %v3970 = vunpack.c.l.b16 %v3941
  %v3971 = vpack.c.b16 %v3970, %v3969
  %3972 = vrot.lane.b32.xlu0 %v3869, 96
  %v3973 = vpop.permute.xlu0 %3972
  %v3976 = vsel %vm455, %v3971, 0
  %3978 = vmatpush.bf16.msra.mxu0 0
  %3979 = vmatpush.bf16.msra.mxu0 0
  %3980 = vmatpush.bf16.msra.mxu0 0
  %3981 = vmatpush.bf16.msra.mxu0 0
  %3982 = vmatpush.bf16.msra.mxu0 0
  %3983 = vmatpush.bf16.msra.mxu0 0
  %3984 = vmatpush.bf16.msra.mxu0 0
  %3985 = vmatpush.bf16.msra.mxu0 %v3973
  %3986 = vmatmul.bf16.gmra.mxu0 %v3976
  %v3987 = vpop.f32.mrf.mxu0
  %v3988 = vadd.f32 0.0, %v3987
  %v3989 = vpop.f32.mrf.mxu0
  %v3990 = vadd.f32 0.0, %v3989
  %3991 = vdwg.mxu0
  %v3992 = vld [vmem:[%s29] sm:$0xf]
  %v3993 = vpack.c.bf16 %v3965, %v3963
  %v3994 = vpack.c.bf16 %v3990, %v3988
  %3995 = vrot.lane.b32.xlu0 %v3834, 120
  %v3996 = vpop.permute.xlu0 %3995
  %3997 = vrot.lane.b32.xlu0 %v3839, 120
  %v3998 = vpop.permute.xlu0 %3997
  %v4000 = vsel %vm403, %v3996, 0
  %v4003 = vsel %vm403, %v3998, 0
  %4005 = vmatpush.bf16.xpose.msra.mxu0 0
  %4006 = vmatpush.bf16.xpose.msra.mxu0 0
  %4007 = vmatpush.bf16.xpose.msra.mxu0 0
  %4008 = vmatpush.bf16.xpose.msra.mxu0 0
  %4009 = vmatpush.bf16.xpose.msra.mxu0 0
  %4010 = vmatpush.bf16.xpose.msra.mxu0 0
  %4011 = vmatpush.bf16.xpose.msra.mxu0 0
  %4012 = vmatpush.bf16.xpose.msra.mxu0 %v4003
  %4013 = vmatmul.bf16.gmra.mxu0 %v4000
  %v4014 = vpop.f32.mrf.mxu0
  %v4015 = vadd.f32 0.0, %v4014
  %v4016 = vpop.f32.mrf.mxu0
  %v4017 = vadd.f32 0.0, %v4016
  %4018 = vdwg.mxu0
  %4019 = vrot.lane.b32.xlu0 %v3864, 120
  %v4020 = vpop.permute.xlu0 %4019
  %4021 = vrot.lane.b32.xlu0 %v3869, 120
  %v4022 = vpop.permute.xlu0 %4021
  %v4024 = vsel %vm403, %v4020, 0
  %v4027 = vsel %vm403, %v4022, 0
  %4029 = vmatpush.bf16.xpose.msra.mxu0 0
  %4030 = vmatpush.bf16.xpose.msra.mxu0 0
  %4031 = vmatpush.bf16.xpose.msra.mxu0 0
  %4032 = vmatpush.bf16.xpose.msra.mxu0 0
  %4033 = vmatpush.bf16.xpose.msra.mxu0 0
  %4034 = vmatpush.bf16.xpose.msra.mxu0 0
  %4035 = vmatpush.bf16.xpose.msra.mxu0 0
  %4036 = vmatpush.bf16.xpose.msra.mxu0 %v4027
  %4037 = vmatmul.bf16.gmra.mxu0 %v4024
  %v4038 = vpop.f32.mrf.mxu0
  %v4039 = vadd.f32 0.0, %v4038
  %v4040 = vpop.f32.mrf.mxu0
  %v4041 = vadd.f32 0.0, %v4040
  %4042 = vdwg.mxu0
  %v4043 = vmul.f32 %v4015, 0.35355338
  %v4044 = vmul.f32 %v4017, 0.35355338
  %v4045 = vmul.f32 %v4039, 0.35355338
  %v4046 = vmul.f32 %v4041, 0.35355338
  %v4047 = vsel %vm455, %v4043, -inf
  %4048 = vmax.xlane.f32.xlu0 %v4047
  %v4049 = vpop.xlane.xlu0 %4048
  %v4050 = vsel %vm455, %v4044, -inf
  %4051 = vmax.xlane.f32.xlu0 %v4050
  %v4052 = vpop.xlane.xlu0 %4051
  %v4053 = vsel %vm455, %v4045, -inf
  %4054 = vmax.xlane.f32.xlu0 %v4053
  %v4055 = vpop.xlane.xlu0 %4054
  %v4056 = vsel %vm455, %v4046, -inf
  %4057 = vmax.xlane.f32.xlu0 %v4056
  %v4058 = vpop.xlane.xlu0 %4057
  %v4059 = vsub.f32 %v4043, %v4049
  %v4060 = vsub.f32 %v4044, %v4052
  %v4061 = vsub.f32 %v4045, %v4055
  %v4062 = vsub.f32 %v4046, %v4058
  %v4063 = vmul.f32 %v4059, 1.442695
  %v4064 = vpow.pop %v4063
  %v4065 = vmul.f32 %v4060, 1.442695
  %v4066 = vpow.pop %v4065
  %v4067 = vmul.f32 %v4061, 1.442695
  %v4068 = vpow.pop %v4067
  %v4069 = vmul.f32 %v4062, 1.442695
  %v4070 = vpow.pop %v4069
  %v4071 = vsel %vm455, %v4064, 0.0
  %4072 = vadd.xlane.f32.xlu0 %v4071
  %v4073 = vpop.xlane.xlu0 %4072
  %v4074 = vsel %vm455, %v4066, 0.0
  %4075 = vadd.xlane.f32.xlu0 %v4074
  %v4076 = vpop.xlane.xlu0 %4075
  %v4077 = vsel %vm455, %v4068, 0.0
  %4078 = vadd.xlane.f32.xlu0 %v4077
  %v4079 = vpop.xlane.xlu0 %4078
  %v4080 = vsel %vm455, %v4070, 0.0
  %4081 = vadd.xlane.f32.xlu0 %v4080
  %v4082 = vpop.xlane.xlu0 %4081
  %v4083 = vrcp.pop %v4073
  %v4084 = vrcp.pop %v4076
  %v4085 = vrcp.pop %v4079
  %v4086 = vrcp.pop %v4082
  %v4087 = vmul.f32 %v4064, %v4083
  %v4088 = vmul.f32 %v4066, %v4084
  %v4089 = vmul.f32 %v4068, %v4085
  %v4090 = vmul.f32 %v4070, %v4086
  %v4091 = vpack.c.bf16 %v4087, %v4087
  %v4092 = vpack.c.bf16 %v4088, %v4088
  %v4093 = vpack.c.bf16 %v4089, %v4089
  %v4094 = vpack.c.bf16 %v4090, %v4090
  %v4097 = vunpack.c.l.b16 %v4091
  %v4098 = vunpack.c.l.b16 %v4092
  %v4099 = vpack.c.b16 %v4098, %v4097
  %4100 = vrot.lane.b32.xlu0 %v3839, 88
  %v4101 = vpop.permute.xlu0 %4100
  %v4104 = vsel %vm455, %v4099, 0
  %4106 = vmatpush.bf16.msra.mxu0 0
  %4107 = vmatpush.bf16.msra.mxu0 0
  %4108 = vmatpush.bf16.msra.mxu0 0
  %4109 = vmatpush.bf16.msra.mxu0 0
  %4110 = vmatpush.bf16.msra.mxu0 0
  %4111 = vmatpush.bf16.msra.mxu0 0
  %4112 = vmatpush.bf16.msra.mxu0 0
  %4113 = vmatpush.bf16.msra.mxu0 %v4101
  %4114 = vmatmul.bf16.gmra.mxu0 %v4104
  %v4115 = vpop.f32.mrf.mxu0
  %v4116 = vadd.f32 0.0, %v4115
  %v4117 = vpop.f32.mrf.mxu0
  %v4118 = vadd.f32 0.0, %v4117
  %4119 = vdwg.mxu0
  %v4122 = vunpack.c.l.b16 %v4093
  %v4123 = vunpack.c.l.b16 %v4094
  %v4124 = vpack.c.b16 %v4123, %v4122
  %4125 = vrot.lane.b32.xlu0 %v3869, 88
  %v4126 = vpop.permute.xlu0 %4125
  %v4129 = vsel %vm455, %v4124, 0
  %4131 = vmatpush.bf16.msra.mxu0 0
  %4132 = vmatpush.bf16.msra.mxu0 0
  %4133 = vmatpush.bf16.msra.mxu0 0
  %4134 = vmatpush.bf16.msra.mxu0 0
  %4135 = vmatpush.bf16.msra.mxu0 0
  %4136 = vmatpush.bf16.msra.mxu0 0
  %4137 = vmatpush.bf16.msra.mxu0 0
  %4138 = vmatpush.bf16.msra.mxu0 %v4126
  %4139 = vmatmul.bf16.gmra.mxu0 %v4129
  %v4140 = vpop.f32.mrf.mxu0
  %v4141 = vadd.f32 0.0, %v4140
  %v4142 = vpop.f32.mrf.mxu0
  %v4143 = vadd.f32 0.0, %v4142
  %4144 = vdwg.mxu0
  %s4145 = scalar_lea.vmem %s29, 4
  %v4146 = vld [vmem:[%s4145] sm:$0xf]
  %v4147 = vpack.c.bf16 %v4118, %v4116
  %v4148 = vpack.c.bf16 %v4143, %v4141
  %v4150 = vsel %vm403, %v4147, 0
  %v4153 = vsel %vm403, %v4148, 0
  %v4156 = vsel %vm717, %v4146, 0
  %4158 = vmatpush.bf16.msra.mxu0 0
  %4159 = vmatpush.bf16.msra.mxu0 0
  %4160 = vmatpush.bf16.msra.mxu0 0
  %4161 = vmatpush.bf16.msra.mxu0 0
  %4162 = vmatpush.bf16.msra.mxu0 0
  %4163 = vmatpush.bf16.msra.mxu0 0
  %4164 = vmatpush.bf16.msra.mxu0 0
  %4165 = vmatpush.bf16.msra.mxu0 %v4156
  %4166 = vmatmul.bf16.gmra.mxu0 %v4150
  %v4167 = vpop.f32.mrf.mxu0
  %v4168 = vadd.f32 0.0, %v4167
  %v4169 = vpop.f32.mrf.mxu0
  %v4170 = vadd.f32 0.0, %v4169
  %4171 = vmatmul.bf16.gmra.mxu0 %v4153
  %v4172 = vpop.f32.mrf.mxu0
  %v4173 = vadd.f32 0.0, %v4172
  %v4174 = vpop.f32.mrf.mxu0
  %v4175 = vadd.f32 0.0, %v4174
  %4176 = vdwg.mxu0
  %v4178 = vsel %vm403, %v3993, 0
  %v4181 = vsel %vm403, %v3994, 0
  %v4184 = vsel %vm717, %v3992, 0
  %4186 = vmatpush.bf16.msra.mxu0 0
  %4187 = vmatpush.bf16.msra.mxu0 0
  %4188 = vmatpush.bf16.msra.mxu0 0
  %4189 = vmatpush.bf16.msra.mxu0 0
  %4190 = vmatpush.bf16.msra.mxu0 0
  %4191 = vmatpush.bf16.msra.mxu0 0
  %4192 = vmatpush.bf16.msra.mxu0 0
  %4193 = vmatpush.bf16.msra.mxu0 %v4184
  %4194 = vmatmul.bf16.gmra.mxu0 %v4178
  %v4195 = vpop.f32.mrf.mxu0
  %v4196 = vadd.f32 %v4168, %v4195
  %v4197 = vpop.f32.mrf.mxu0
  %v4198 = vadd.f32 %v4170, %v4197
  %4199 = vmatmul.bf16.gmra.mxu0 %v4181
  %v4200 = vpop.f32.mrf.mxu0
  %v4201 = vadd.f32 %v4173, %v4200
  %v4202 = vpop.f32.mrf.mxu0
  %v4203 = vadd.f32 %v4175, %v4202
  %4204 = vdwg.mxu0
  %4205 = vrot.lane.b32.xlu0 %v3834, 112
  %v4206 = vpop.permute.xlu0 %4205
  %4207 = vrot.lane.b32.xlu0 %v3839, 112
  %v4208 = vpop.permute.xlu0 %4207
  %v4210 = vsel %vm403, %v4206, 0
  %v4213 = vsel %vm403, %v4208, 0
  %4215 = vmatpush.bf16.xpose.msra.mxu0 0
  %4216 = vmatpush.bf16.xpose.msra.mxu0 0
  %4217 = vmatpush.bf16.xpose.msra.mxu0 0
  %4218 = vmatpush.bf16.xpose.msra.mxu0 0
  %4219 = vmatpush.bf16.xpose.msra.mxu0 0
  %4220 = vmatpush.bf16.xpose.msra.mxu0 0
  %4221 = vmatpush.bf16.xpose.msra.mxu0 0
  %4222 = vmatpush.bf16.xpose.msra.mxu0 %v4213
  %4223 = vmatmul.bf16.gmra.mxu0 %v4210
  %v4224 = vpop.f32.mrf.mxu0
  %v4225 = vadd.f32 0.0, %v4224
  %v4226 = vpop.f32.mrf.mxu0
  %v4227 = vadd.f32 0.0, %v4226
  %4228 = vdwg.mxu0
  %4229 = vrot.lane.b32.xlu0 %v3864, 112
  %v4230 = vpop.permute.xlu0 %4229
  %4231 = vrot.lane.b32.xlu0 %v3869, 112
  %v4232 = vpop.permute.xlu0 %4231
  %v4234 = vsel %vm403, %v4230, 0
  %v4237 = vsel %vm403, %v4232, 0
  %4239 = vmatpush.bf16.xpose.msra.mxu0 0
  %4240 = vmatpush.bf16.xpose.msra.mxu0 0
  %4241 = vmatpush.bf16.xpose.msra.mxu0 0
  %4242 = vmatpush.bf16.xpose.msra.mxu0 0
  %4243 = vmatpush.bf16.xpose.msra.mxu0 0
  %4244 = vmatpush.bf16.xpose.msra.mxu0 0
  %4245 = vmatpush.bf16.xpose.msra.mxu0 0
  %4246 = vmatpush.bf16.xpose.msra.mxu0 %v4237
  %4247 = vmatmul.bf16.gmra.mxu0 %v4234
  %v4248 = vpop.f32.mrf.mxu0
  %v4249 = vadd.f32 0.0, %v4248
  %v4250 = vpop.f32.mrf.mxu0
  %v4251 = vadd.f32 0.0, %v4250
  %4252 = vdwg.mxu0
  %v4253 = vmul.f32 %v4225, 0.35355338
  %v4254 = vmul.f32 %v4227, 0.35355338
  %v4255 = vmul.f32 %v4249, 0.35355338
  %v4256 = vmul.f32 %v4251, 0.35355338
  %v4257 = vsel %vm455, %v4253, -inf
  %4258 = vmax.xlane.f32.xlu0 %v4257
  %v4259 = vpop.xlane.xlu0 %4258
  %v4260 = vsel %vm455, %v4254, -inf
  %4261 = vmax.xlane.f32.xlu0 %v4260
  %v4262 = vpop.xlane.xlu0 %4261
  %v4263 = vsel %vm455, %v4255, -inf
  %4264 = vmax.xlane.f32.xlu0 %v4263
  %v4265 = vpop.xlane.xlu0 %4264
  %v4266 = vsel %vm455, %v4256, -inf
  %4267 = vmax.xlane.f32.xlu0 %v4266
  %v4268 = vpop.xlane.xlu0 %4267
  %v4269 = vsub.f32 %v4253, %v4259
  %v4270 = vsub.f32 %v4254, %v4262
  %v4271 = vsub.f32 %v4255, %v4265
  %v4272 = vsub.f32 %v4256, %v4268
  %v4273 = vmul.f32 %v4269, 1.442695
  %v4274 = vpow.pop %v4273
  %v4275 = vmul.f32 %v4270, 1.442695
  %v4276 = vpow.pop %v4275
  %v4277 = vmul.f32 %v4271, 1.442695
  %v4278 = vpow.pop %v4277
  %v4279 = vmul.f32 %v4272, 1.442695
  %v4280 = vpow.pop %v4279
  %v4281 = vsel %vm455, %v4274, 0.0
  %4282 = vadd.xlane.f32.xlu0 %v4281
  %v4283 = vpop.xlane.xlu0 %4282
  %v4284 = vsel %vm455, %v4276, 0.0
  %4285 = vadd.xlane.f32.xlu0 %v4284
  %v4286 = vpop.xlane.xlu0 %4285
  %v4287 = vsel %vm455, %v4278, 0.0
  %4288 = vadd.xlane.f32.xlu0 %v4287
  %v4289 = vpop.xlane.xlu0 %4288
  %v4290 = vsel %vm455, %v4280, 0.0
  %4291 = vadd.xlane.f32.xlu0 %v4290
  %v4292 = vpop.xlane.xlu0 %4291
  %v4293 = vrcp.pop %v4283
  %v4294 = vrcp.pop %v4286
  %v4295 = vrcp.pop %v4289
  %v4296 = vrcp.pop %v4292
  %v4297 = vmul.f32 %v4274, %v4293
  %v4298 = vmul.f32 %v4276, %v4294
  %v4299 = vmul.f32 %v4278, %v4295
  %v4300 = vmul.f32 %v4280, %v4296
  %v4301 = vpack.c.bf16 %v4297, %v4297
  %v4302 = vpack.c.bf16 %v4298, %v4298
  %v4303 = vpack.c.bf16 %v4299, %v4299
  %v4304 = vpack.c.bf16 %v4300, %v4300
  %v4307 = vunpack.c.l.b16 %v4301
  %v4308 = vunpack.c.l.b16 %v4302
  %v4309 = vpack.c.b16 %v4308, %v4307
  %4310 = vrot.lane.b32.xlu0 %v3839, 80
  %v4311 = vpop.permute.xlu0 %4310
  %v4314 = vsel %vm455, %v4309, 0
  %4316 = vmatpush.bf16.msra.mxu0 0
  %4317 = vmatpush.bf16.msra.mxu0 0
  %4318 = vmatpush.bf16.msra.mxu0 0
  %4319 = vmatpush.bf16.msra.mxu0 0
  %4320 = vmatpush.bf16.msra.mxu0 0
  %4321 = vmatpush.bf16.msra.mxu0 0
  %4322 = vmatpush.bf16.msra.mxu0 0
  %4323 = vmatpush.bf16.msra.mxu0 %v4311
  %4324 = vmatmul.bf16.gmra.mxu0 %v4314
  %v4325 = vpop.f32.mrf.mxu0
  %v4326 = vadd.f32 0.0, %v4325
  %v4327 = vpop.f32.mrf.mxu0
  %v4328 = vadd.f32 0.0, %v4327
  %4329 = vdwg.mxu0
  %v4332 = vunpack.c.l.b16 %v4303
  %v4333 = vunpack.c.l.b16 %v4304
  %v4334 = vpack.c.b16 %v4333, %v4332
  %4335 = vrot.lane.b32.xlu0 %v3869, 80
  %v4336 = vpop.permute.xlu0 %4335
  %v4339 = vsel %vm455, %v4334, 0
  %4341 = vmatpush.bf16.msra.mxu0 0
  %4342 = vmatpush.bf16.msra.mxu0 0
  %4343 = vmatpush.bf16.msra.mxu0 0
  %4344 = vmatpush.bf16.msra.mxu0 0
  %4345 = vmatpush.bf16.msra.mxu0 0
  %4346 = vmatpush.bf16.msra.mxu0 0
  %4347 = vmatpush.bf16.msra.mxu0 0
  %4348 = vmatpush.bf16.msra.mxu0 %v4336
  %4349 = vmatmul.bf16.gmra.mxu0 %v4339
  %v4350 = vpop.f32.mrf.mxu0
  %v4351 = vadd.f32 0.0, %v4350
  %v4352 = vpop.f32.mrf.mxu0
  %v4353 = vadd.f32 0.0, %v4352
  %4354 = vdwg.mxu0
  %s4355 = scalar_lea.vmem %s29, 8
  %v4356 = vld [vmem:[%s4355] sm:$0xf]
  %v4357 = vpack.c.bf16 %v4328, %v4326
  %v4358 = vpack.c.bf16 %v4353, %v4351
  %v4360 = vsel %vm403, %v4357, 0
  %v4363 = vsel %vm403, %v4358, 0
  %v4366 = vsel %vm717, %v4356, 0
  %4368 = vmatpush.bf16.msra.mxu0 0
  %4369 = vmatpush.bf16.msra.mxu0 0
  %4370 = vmatpush.bf16.msra.mxu0 0
  %4371 = vmatpush.bf16.msra.mxu0 0
  %4372 = vmatpush.bf16.msra.mxu0 0
  %4373 = vmatpush.bf16.msra.mxu0 0
  %4374 = vmatpush.bf16.msra.mxu0 0
  %4375 = vmatpush.bf16.msra.mxu0 %v4366
  %4376 = vmatmul.bf16.gmra.mxu0 %v4360
  %v4377 = vpop.f32.mrf.mxu0
  %v4378 = vadd.f32 0.0, %v4377
  %v4379 = vpop.f32.mrf.mxu0
  %v4380 = vadd.f32 0.0, %v4379
  %4381 = vmatmul.bf16.gmra.mxu0 %v4363
  %v4382 = vpop.f32.mrf.mxu0
  %v4383 = vadd.f32 0.0, %v4382
  %v4384 = vpop.f32.mrf.mxu0
  %v4385 = vadd.f32 0.0, %v4384
  %4386 = vdwg.mxu0
  %v4387 = vadd.f32 %v4196, %v4378
  %v4388 = vadd.f32 %v4198, %v4380
  %v4389 = vadd.f32 %v4201, %v4383
  %v4390 = vadd.f32 %v4203, %v4385
  %4391 = vrot.lane.b32.xlu0 %v3834, 104
  %v4392 = vpop.permute.xlu0 %4391
  %4393 = vrot.lane.b32.xlu0 %v3839, 104
  %v4394 = vpop.permute.xlu0 %4393
  %v4396 = vsel %vm403, %v4392, 0
  %v4399 = vsel %vm403, %v4394, 0
  %4401 = vmatpush.bf16.xpose.msra.mxu0 0
  %4402 = vmatpush.bf16.xpose.msra.mxu0 0
  %4403 = vmatpush.bf16.xpose.msra.mxu0 0
  %4404 = vmatpush.bf16.xpose.msra.mxu0 0
  %4405 = vmatpush.bf16.xpose.msra.mxu0 0
  %4406 = vmatpush.bf16.xpose.msra.mxu0 0
  %4407 = vmatpush.bf16.xpose.msra.mxu0 0
  %4408 = vmatpush.bf16.xpose.msra.mxu0 %v4399
  %4409 = vmatmul.bf16.gmra.mxu0 %v4396
  %v4410 = vpop.f32.mrf.mxu0
  %v4411 = vadd.f32 0.0, %v4410
  %v4412 = vpop.f32.mrf.mxu0
  %v4413 = vadd.f32 0.0, %v4412
  %4414 = vdwg.mxu0
  %4415 = vrot.lane.b32.xlu0 %v3864, 104
  %v4416 = vpop.permute.xlu0 %4415
  %4417 = vrot.lane.b32.xlu0 %v3869, 104
  %v4418 = vpop.permute.xlu0 %4417
  %v4420 = vsel %vm403, %v4416, 0
  %v4423 = vsel %vm403, %v4418, 0
  %4425 = vmatpush.bf16.xpose.msra.mxu0 0
  %4426 = vmatpush.bf16.xpose.msra.mxu0 0
  %4427 = vmatpush.bf16.xpose.msra.mxu0 0
  %4428 = vmatpush.bf16.xpose.msra.mxu0 0
  %4429 = vmatpush.bf16.xpose.msra.mxu0 0
  %4430 = vmatpush.bf16.xpose.msra.mxu0 0
  %4431 = vmatpush.bf16.xpose.msra.mxu0 0
  %4432 = vmatpush.bf16.xpose.msra.mxu0 %v4423
  %4433 = vmatmul.bf16.gmra.mxu0 %v4420
  %v4434 = vpop.f32.mrf.mxu0
  %v4435 = vadd.f32 0.0, %v4434
  %v4436 = vpop.f32.mrf.mxu0
  %v4437 = vadd.f32 0.0, %v4436
  %4438 = vdwg.mxu0
  %v4439 = vmul.f32 %v4411, 0.35355338
  %v4440 = vmul.f32 %v4413, 0.35355338
  %v4441 = vmul.f32 %v4435, 0.35355338
  %v4442 = vmul.f32 %v4437, 0.35355338
  %v4443 = vsel %vm455, %v4439, -inf
  %4444 = vmax.xlane.f32.xlu0 %v4443
  %v4445 = vpop.xlane.xlu0 %4444
  %v4446 = vsel %vm455, %v4440, -inf
  %4447 = vmax.xlane.f32.xlu0 %v4446
  %v4448 = vpop.xlane.xlu0 %4447
  %v4449 = vsel %vm455, %v4441, -inf
  %4450 = vmax.xlane.f32.xlu0 %v4449
  %v4451 = vpop.xlane.xlu0 %4450
  %v4452 = vsel %vm455, %v4442, -inf
  %4453 = vmax.xlane.f32.xlu0 %v4452
  %v4454 = vpop.xlane.xlu0 %4453
  %v4455 = vsub.f32 %v4439, %v4445
  %v4456 = vsub.f32 %v4440, %v4448
  %v4457 = vsub.f32 %v4441, %v4451
  %v4458 = vsub.f32 %v4442, %v4454
  %v4459 = vmul.f32 %v4455, 1.442695
  %v4460 = vpow.pop %v4459
  %v4461 = vmul.f32 %v4456, 1.442695
  %v4462 = vpow.pop %v4461
  %v4463 = vmul.f32 %v4457, 1.442695
  %v4464 = vpow.pop %v4463
  %v4465 = vmul.f32 %v4458, 1.442695
  %v4466 = vpow.pop %v4465
  %v4467 = vsel %vm455, %v4460, 0.0
  %4468 = vadd.xlane.f32.xlu0 %v4467
  %v4469 = vpop.xlane.xlu0 %4468
  %v4470 = vsel %vm455, %v4462, 0.0
  %4471 = vadd.xlane.f32.xlu0 %v4470
  %v4472 = vpop.xlane.xlu0 %4471
  %v4473 = vsel %vm455, %v4464, 0.0
  %4474 = vadd.xlane.f32.xlu0 %v4473
  %v4475 = vpop.xlane.xlu0 %4474
  %v4476 = vsel %vm455, %v4466, 0.0
  %4477 = vadd.xlane.f32.xlu0 %v4476
  %v4478 = vpop.xlane.xlu0 %4477
  %v4479 = vrcp.pop %v4469
  %v4480 = vrcp.pop %v4472
  %v4481 = vrcp.pop %v4475
  %v4482 = vrcp.pop %v4478
  %v4483 = vmul.f32 %v4460, %v4479
  %v4484 = vmul.f32 %v4462, %v4480
  %v4485 = vmul.f32 %v4464, %v4481
  %v4486 = vmul.f32 %v4466, %v4482
  %v4487 = vpack.c.bf16 %v4483, %v4483
  %v4488 = vpack.c.bf16 %v4484, %v4484
  %v4489 = vpack.c.bf16 %v4485, %v4485
  %v4490 = vpack.c.bf16 %v4486, %v4486
  %v4493 = vunpack.c.l.b16 %v4487
  %v4494 = vunpack.c.l.b16 %v4488
  %v4495 = vpack.c.b16 %v4494, %v4493
  %4496 = vrot.lane.b32.xlu0 %v3839, 72
  %v4497 = vpop.permute.xlu0 %4496
  %v4500 = vsel %vm455, %v4495, 0
  %4502 = vmatpush.bf16.msra.mxu0 0
  %4503 = vmatpush.bf16.msra.mxu0 0
  %4504 = vmatpush.bf16.msra.mxu0 0
  %4505 = vmatpush.bf16.msra.mxu0 0
  %4506 = vmatpush.bf16.msra.mxu0 0
  %4507 = vmatpush.bf16.msra.mxu0 0
  %4508 = vmatpush.bf16.msra.mxu0 0
  %4509 = vmatpush.bf16.msra.mxu0 %v4497
  %4510 = vmatmul.bf16.gmra.mxu0 %v4500
  %v4511 = vpop.f32.mrf.mxu0
  %v4512 = vadd.f32 0.0, %v4511
  %v4513 = vpop.f32.mrf.mxu0
  %v4514 = vadd.f32 0.0, %v4513
  %4515 = vdwg.mxu0
  %v4518 = vunpack.c.l.b16 %v4489
  %v4519 = vunpack.c.l.b16 %v4490
  %v4520 = vpack.c.b16 %v4519, %v4518
  %4521 = vrot.lane.b32.xlu0 %v3869, 72
  %v4522 = vpop.permute.xlu0 %4521
  %v4525 = vsel %vm455, %v4520, 0
  %4527 = vmatpush.bf16.msra.mxu0 0
  %4528 = vmatpush.bf16.msra.mxu0 0
  %4529 = vmatpush.bf16.msra.mxu0 0
  %4530 = vmatpush.bf16.msra.mxu0 0
  %4531 = vmatpush.bf16.msra.mxu0 0
  %4532 = vmatpush.bf16.msra.mxu0 0
  %4533 = vmatpush.bf16.msra.mxu0 0
  %4534 = vmatpush.bf16.msra.mxu0 %v4522
  %4535 = vmatmul.bf16.gmra.mxu0 %v4525
  %v4536 = vpop.f32.mrf.mxu0
  %v4537 = vadd.f32 0.0, %v4536
  %v4538 = vpop.f32.mrf.mxu0
  %v4539 = vadd.f32 0.0, %v4538
  %4540 = vdwg.mxu0
  %s4541 = scalar_lea.vmem %s29, 12
  %v4542 = vld [vmem:[%s4541] sm:$0xf]
  %v4543 = vpack.c.bf16 %v4514, %v4512
  %v4544 = vpack.c.bf16 %v4539, %v4537
  %v4546 = vsel %vm403, %v4543, 0
  %v4549 = vsel %vm403, %v4544, 0
  %v4552 = vsel %vm717, %v4542, 0
  %4554 = vmatpush.bf16.msra.mxu0 0
  %4555 = vmatpush.bf16.msra.mxu0 0
  %4556 = vmatpush.bf16.msra.mxu0 0
  %4557 = vmatpush.bf16.msra.mxu0 0
  %4558 = vmatpush.bf16.msra.mxu0 0
  %4559 = vmatpush.bf16.msra.mxu0 0
  %4560 = vmatpush.bf16.msra.mxu0 0
  %4561 = vmatpush.bf16.msra.mxu0 %v4552
  %4562 = vmatmul.bf16.gmra.mxu0 %v4546
  %v4563 = vpop.f32.mrf.mxu0
  %v4564 = vadd.f32 0.0, %v4563
  %v4565 = vpop.f32.mrf.mxu0
  %v4566 = vadd.f32 0.0, %v4565
  %4567 = vmatmul.bf16.gmra.mxu0 %v4549
  %v4568 = vpop.f32.mrf.mxu0
  %v4569 = vadd.f32 0.0, %v4568
  %v4570 = vpop.f32.mrf.mxu0
  %v4571 = vadd.f32 0.0, %v4570
  %4572 = vdwg.mxu0
  %v4573 = vadd.f32 %v4387, %v4564
  %v4574 = vadd.f32 %v4388, %v4566
  %v4575 = vadd.f32 %v4389, %v4569
  %v4576 = vadd.f32 %v4390, %v4571
  %v4577 = vld [vmem:[%s23] sm:$0x1]
  %v4579 = vperm.slane %v4577, 0
  %v4581 = vadd.f32 %v4573, %v4579
  %v4582 = vadd.f32 %v4574, %v4579
  %v4583 = vadd.f32 %v4575, %v4579
  %v4584 = vadd.f32 %v4576, %v4579
  %v4585 = vadd.f32 %v3724, %v4581
  %v4586 = vadd.f32 %v3725, %v4582
  %v4587 = vadd.f32 %v3726, %v4583
  %v4588 = vadd.f32 %v3727, %v4584
  %v4589 = vsel %vm366, %v4585, 0.0
  %4590 = vadd.xlane.f32.xlu0 %v4589
  %v4591 = vpop.xlane.xlu0 %4590
  %v4592 = vsel %vm366, %v4586, 0.0
  %4593 = vadd.xlane.f32.xlu0 %v4592
  %v4594 = vpop.xlane.xlu0 %4593
  %v4595 = vsel %vm366, %v4587, 0.0
  %4596 = vadd.xlane.f32.xlu0 %v4595
  %v4597 = vpop.xlane.xlu0 %4596
  %v4598 = vsel %vm366, %v4588, 0.0
  %4599 = vadd.xlane.f32.xlu0 %v4598
  %v4600 = vpop.xlane.xlu0 %4599
  %v4601 = vmul.f32 %v4591, %v1170
  %v4602 = vmul.f32 %v4594, %v1170
  %v4603 = vmul.f32 %v4597, %v1170
  %v4604 = vmul.f32 %v4600, %v1170
  %v4605 = vsub.f32 %v4585, %v4601
  %v4606 = vsub.f32 %v4586, %v4602
  %v4607 = vsub.f32 %v4587, %v4603
  %v4608 = vsub.f32 %v4588, %v4604
  %v4609 = vmul.f32 %v4605, %v4605
  %v4610 = vmul.f32 %v4606, %v4606
  %v4611 = vmul.f32 %v4607, %v4607
  %v4612 = vmul.f32 %v4608, %v4608
  %v4613 = vsel %vm366, %v4609, 0.0
  %4614 = vadd.xlane.f32.xlu0 %v4613
  %v4615 = vpop.xlane.xlu0 %4614
  %v4616 = vsel %vm366, %v4610, 0.0
  %4617 = vadd.xlane.f32.xlu0 %v4616
  %v4618 = vpop.xlane.xlu0 %4617
  %v4619 = vsel %vm366, %v4611, 0.0
  %4620 = vadd.xlane.f32.xlu0 %v4619
  %v4621 = vpop.xlane.xlu0 %4620
  %v4622 = vsel %vm366, %v4612, 0.0
  %4623 = vadd.xlane.f32.xlu0 %v4622
  %v4624 = vpop.xlane.xlu0 %4623
  %v4625 = vmul.f32 %v4615, %v1170
  %v4626 = vmul.f32 %v4618, %v1170
  %v4627 = vmul.f32 %v4621, %v1170
  %v4628 = vmul.f32 %v4624, %v1170
  %v4629 = vadd.f32 %v4625, 1e-05
  %v4630 = vadd.f32 %v4626, 1e-05
  %v4631 = vadd.f32 %v4627, 1e-05
  %v4632 = vadd.f32 %v4628, 1e-05
  %v4633 = vrsqrt.pop %v4629
  %v4634 = vmul.f32 %v4633, %v4629
  %v4635 = vmul.f32 %v4634, %v4633
  %v4636 = vmul.f32 0.5, %v4635
  %v4637 = vsub.f32 1.5, %v4636
  %v4638 = vmul.f32 %v4633, %v4637
  %vm4639 = vweird.f32 %v4629
  %vm4640 = vweird.f32 %v4633
  %vm4641 = vmor %vm4639, %vm4640
  %v4642 = vsel %vm4641, %v4633, %v4638
  %v4643 = vrsqrt.pop %v4630
  %v4644 = vmul.f32 %v4643, %v4630
  %v4645 = vmul.f32 %v4644, %v4643
  %v4646 = vmul.f32 0.5, %v4645
  %v4647 = vsub.f32 1.5, %v4646
  %v4648 = vmul.f32 %v4643, %v4647
  %vm4649 = vweird.f32 %v4630
  %vm4650 = vweird.f32 %v4643
  %vm4651 = vmor %vm4649, %vm4650
  %v4652 = vsel %vm4651, %v4643, %v4648
  %v4653 = vrsqrt.pop %v4631
  %v4654 = vmul.f32 %v4653, %v4631
  %v4655 = vmul.f32 %v4654, %v4653
  %v4656 = vmul.f32 0.5, %v4655
  %v4657 = vsub.f32 1.5, %v4656
  %v4658 = vmul.f32 %v4653, %v4657
  %vm4659 = vweird.f32 %v4631
  %vm4660 = vweird.f32 %v4653
  %vm4661 = vmor %vm4659, %vm4660
  %v4662 = vsel %vm4661, %v4653, %v4658
  %v4663 = vrsqrt.pop %v4632
  %v4664 = vmul.f32 %v4663, %v4632
  %v4665 = vmul.f32 %v4664, %v4663
  %v4666 = vmul.f32 0.5, %v4665
  %v4667 = vsub.f32 1.5, %v4666
  %v4668 = vmul.f32 %v4663, %v4667
  %vm4669 = vweird.f32 %v4632
  %vm4670 = vweird.f32 %v4663
  %vm4671 = vmor %vm4669, %vm4670
  %v4672 = vsel %vm4671, %v4663, %v4668
  %v4673 = vmul.f32 %v4605, %v4642
  %v4674 = vmul.f32 %v4606, %v4652
  %v4675 = vmul.f32 %v4607, %v4662
  %v4676 = vmul.f32 %v4608, %v4672
  %v4677 = vld [vmem:[%s39] sm:$0x1]
  %v4679 = vperm.slane %v4677, 0
  %v4681 = vmul.f32 %v4673, %v4679
  %v4682 = vmul.f32 %v4674, %v4679
  %v4683 = vmul.f32 %v4675, %v4679
  %v4684 = vmul.f32 %v4676, %v4679
  %v4685 = vld [vmem:[%s37] sm:$0x1]
  %v4687 = vperm.slane %v4685, 0
  %v4689 = vadd.f32 %v4681, %v4687
  %v4690 = vadd.f32 %v4682, %v4687
  %v4691 = vadd.f32 %v4683, %v4687
  %v4692 = vadd.f32 %v4684, %v4687
  %v4693 = vld [vmem:[%s53] sm:$0xf]
  %v4694 = vld [vmem:[%s53 + $0x4] sm:$0xf]
  %v4695 = vld [vmem:[%s53 + $0x8] sm:$0xf]
  %v4696 = vld [vmem:[%s53 + $0xc] sm:$0xf]
  %v4697 = vpack.c.bf16 %v4690, %v4689
  %v4698 = vpack.c.bf16 %v4692, %v4691
  %v4699 = vld [vmem:[%s17] sm:$0x1]
  %v4701 = vperm.slane %v4699, 0
  %v4707 = vunpack.c.l.b16 %v4693
  %v4708 = vunpack.c.l.b16 %v4694
  %v4709 = vunpack.c.l.b16 %v4695
  %v4710 = vunpack.c.l.b16 %v4696
  %v4711 = vpack.c.b16 %v4708, %v4707
  %v4712 = vpack.c.b16 %v4710, %v4709
  %v4716 = vsel %vm366, %v4697, 0
  %v4719 = vsel %vm366, %v4698, 0
  %4721 = vmatpush.bf16.msra.mxu0 0
  %4722 = vmatpush.bf16.msra.mxu0 0
  %4723 = vmatpush.bf16.msra.mxu0 0
  %4724 = vmatpush.bf16.msra.mxu0 0
  %4725 = vmatpush.bf16.msra.mxu0 0
  %4726 = vmatpush.bf16.msra.mxu0 0
  %4727 = vmatpush.bf16.msra.mxu0 %v4712
  %4728 = vmatpush.bf16.msra.mxu0 %v4711
  %4729 = vmatmul.bf16.gmra.mxu0 %v4716
  %v4730 = vpop.f32.mrf.mxu0
  %v4731 = vadd.f32 %v4701, %v4730
  %v4732 = vpop.f32.mrf.mxu0
  %v4733 = vadd.f32 %v4701, %v4732
  %4734 = vmatmul.bf16.gmra.mxu0 %v4719
  %v4735 = vpop.f32.mrf.mxu0
  %v4736 = vadd.f32 %v4701, %v4735
  %v4737 = vpop.f32.mrf.mxu0
  %v4738 = vadd.f32 %v4701, %v4737
  %4739 = vdwg.mxu0
  %v4740 = vmax.f32 %v4731, 0.0
  %v4741 = vmax.f32 %v4733, 0.0
  %v4742 = vmax.f32 %v4736, 0.0
  %v4743 = vmax.f32 %v4738, 0.0
  %v4744 = vld [vmem:[%s55] sm:$0xf]
  %v4745 = vld [vmem:[%s55 + $0x4] sm:$0xf]
  %v4746 = vld [vmem:[%s55 + $0x8] sm:$0xf]
  %v4747 = vld [vmem:[%s55 + $0xc] sm:$0xf]
  %v4748 = vld [vmem:[%s55 + $0x10] sm:$0xf]
  %v4749 = vld [vmem:[%s55 + $0x14] sm:$0xf]
  %v4750 = vld [vmem:[%s55 + $0x18] sm:$0xf]
  %v4751 = vld [vmem:[%s55 + $0x1c] sm:$0xf]
  %v4752 = vpack.c.bf16 %v4741, %v4740
  %v4753 = vpack.c.bf16 %v4743, %v4742
  %v4754 = vld [vmem:[%s19] sm:$0x1]
  %v4756 = vperm.slane %v4754, 0
  %v4766 = vunpack.c.l.b16 %v4744
  %v4767 = vunpack.c.l.b16 %v4745
  %v4768 = vunpack.c.l.b16 %v4746
  %v4769 = vunpack.c.l.b16 %v4747
  %v4770 = vunpack.c.l.b16 %v4748
  %v4771 = vunpack.c.l.b16 %v4749
  %v4772 = vunpack.c.l.b16 %v4750
  %v4773 = vunpack.c.l.b16 %v4751
  %v4774 = vpack.c.b16 %v4767, %v4766
  %v4775 = vpack.c.b16 %v4769, %v4768
  %v4776 = vpack.c.b16 %v4771, %v4770
  %v4777 = vpack.c.b16 %v4773, %v4772
  %v4783 = vsel %vm1352, %v4752, 0
  %v4786 = vsel %vm1352, %v4753, 0
  %4788 = vmatpush.bf16.msra.mxu0 0
  %4789 = vmatpush.bf16.msra.mxu0 0
  %4790 = vmatpush.bf16.msra.mxu0 0
  %4791 = vmatpush.bf16.msra.mxu0 0
  %4792 = vmatpush.bf16.msra.mxu0 %v4777
  %4793 = vmatpush.bf16.msra.mxu0 %v4776
  %4794 = vmatpush.bf16.msra.mxu0 %v4775
  %4795 = vmatpush.bf16.msra.mxu0 %v4774
  %4796 = vmatmul.bf16.gmra.mxu0 %v4783
  %v4797 = vpop.f32.mrf.mxu0
  %v4798 = vadd.f32 %v4756, %v4797
  %v4799 = vpop.f32.mrf.mxu0
  %v4800 = vadd.f32 %v4756, %v4799
  %4801 = vmatmul.bf16.gmra.mxu0 %v4786
  %v4802 = vpop.f32.mrf.mxu0
  %v4803 = vadd.f32 %v4756, %v4802
  %v4804 = vpop.f32.mrf.mxu0
  %v4805 = vadd.f32 %v4756, %v4804
  %4806 = vdwg.mxu0
  %v4807 = vadd.f32 %v4689, %v4798
  %v4808 = vadd.f32 %v4690, %v4800
  %v4809 = vadd.f32 %v4691, %v4803
  %v4810 = vadd.f32 %v4692, %v4805
  %v4811 = vsel %vm366, %v4807, 0.0
  %4812 = vadd.xlane.f32.xlu0 %v4811
  %v4813 = vpop.xlane.xlu0 %4812
  %v4814 = vsel %vm366, %v4808, 0.0
  %4815 = vadd.xlane.f32.xlu0 %v4814
  %v4816 = vpop.xlane.xlu0 %4815
  %v4817 = vsel %vm366, %v4809, 0.0
  %4818 = vadd.xlane.f32.xlu0 %v4817
  %v4819 = vpop.xlane.xlu0 %4818
  %v4820 = vsel %vm366, %v4810, 0.0
  %4821 = vadd.xlane.f32.xlu0 %v4820
  %v4822 = vpop.xlane.xlu0 %4821
  %v4823 = vmul.f32 %v4813, %v1170
  %v4824 = vmul.f32 %v4816, %v1170
  %v4825 = vmul.f32 %v4819, %v1170
  %v4826 = vmul.f32 %v4822, %v1170
  %v4827 = vsub.f32 %v4807, %v4823
  %v4828 = vsub.f32 %v4808, %v4824
  %v4829 = vsub.f32 %v4809, %v4825
  %v4830 = vsub.f32 %v4810, %v4826
  %v4831 = vmul.f32 %v4827, %v4827
  %v4832 = vmul.f32 %v4828, %v4828
  %v4833 = vmul.f32 %v4829, %v4829
  %v4834 = vmul.f32 %v4830, %v4830
  %v4835 = vsel %vm366, %v4831, 0.0
  %4836 = vadd.xlane.f32.xlu0 %v4835
  %v4837 = vpop.xlane.xlu0 %4836
  %v4838 = vsel %vm366, %v4832, 0.0
  %4839 = vadd.xlane.f32.xlu0 %v4838
  %v4840 = vpop.xlane.xlu0 %4839
  %v4841 = vsel %vm366, %v4833, 0.0
  %4842 = vadd.xlane.f32.xlu0 %v4841
  %v4843 = vpop.xlane.xlu0 %4842
  %v4844 = vsel %vm366, %v4834, 0.0
  %4845 = vadd.xlane.f32.xlu0 %v4844
  %v4846 = vpop.xlane.xlu0 %4845
  %v4847 = vmul.f32 %v4837, %v1170
  %v4848 = vmul.f32 %v4840, %v1170
  %v4849 = vmul.f32 %v4843, %v1170
  %v4850 = vmul.f32 %v4846, %v1170
  %v4851 = vadd.f32 %v4847, 1e-05
  %v4852 = vadd.f32 %v4848, 1e-05
  %v4853 = vadd.f32 %v4849, 1e-05
  %v4854 = vadd.f32 %v4850, 1e-05
  %v4855 = vrsqrt.pop %v4851
  %v4856 = vmul.f32 %v4855, %v4851
  %v4857 = vmul.f32 %v4856, %v4855
  %v4858 = vmul.f32 0.5, %v4857
  %v4859 = vsub.f32 1.5, %v4858
  %v4860 = vmul.f32 %v4855, %v4859
  %vm4861 = vweird.f32 %v4851
  %vm4862 = vweird.f32 %v4855
  %vm4863 = vmor %vm4861, %vm4862
  %v4864 = vsel %vm4863, %v4855, %v4860
  %v4865 = vrsqrt.pop %v4852
  %v4866 = vmul.f32 %v4865, %v4852
  %v4867 = vmul.f32 %v4866, %v4865
  %v4868 = vmul.f32 0.5, %v4867
  %v4869 = vsub.f32 1.5, %v4868
  %v4870 = vmul.f32 %v4865, %v4869
  %vm4871 = vweird.f32 %v4852
  %vm4872 = vweird.f32 %v4865
  %vm4873 = vmor %vm4871, %vm4872
  %v4874 = vsel %vm4873, %v4865, %v4870
  %v4875 = vrsqrt.pop %v4853
  %v4876 = vmul.f32 %v4875, %v4853
  %v4877 = vmul.f32 %v4876, %v4875
  %v4878 = vmul.f32 0.5, %v4877
  %v4879 = vsub.f32 1.5, %v4878
  %v4880 = vmul.f32 %v4875, %v4879
  %vm4881 = vweird.f32 %v4853
  %vm4882 = vweird.f32 %v4875
  %vm4883 = vmor %vm4881, %vm4882
  %v4884 = vsel %vm4883, %v4875, %v4880
  %v4885 = vrsqrt.pop %v4854
  %v4886 = vmul.f32 %v4885, %v4854
  %v4887 = vmul.f32 %v4886, %v4885
  %v4888 = vmul.f32 0.5, %v4887
  %v4889 = vsub.f32 1.5, %v4888
  %v4890 = vmul.f32 %v4885, %v4889
  %vm4891 = vweird.f32 %v4854
  %vm4892 = vweird.f32 %v4885
  %vm4893 = vmor %vm4891, %vm4892
  %v4894 = vsel %vm4893, %v4885, %v4890
  %v4895 = vmul.f32 %v4827, %v4864
  %v4896 = vmul.f32 %v4828, %v4874
  %v4897 = vmul.f32 %v4829, %v4884
  %v4898 = vmul.f32 %v4830, %v4894
  %v4899 = vld [vmem:[%s43] sm:$0x1]
  %v4901 = vperm.slane %v4899, 0
  %v4903 = vmul.f32 %v4895, %v4901
  %v4904 = vmul.f32 %v4896, %v4901
  %v4905 = vmul.f32 %v4897, %v4901
  %v4906 = vmul.f32 %v4898, %v4901
  %v4907 = vld [vmem:[%s41] sm:$0x1]
  %v4909 = vperm.slane %v4907, 0
  %v4911 = vadd.f32 %v4903, %v4909
  %v4912 = vadd.f32 %v4904, %v4909
  %v4913 = vadd.f32 %v4905, %v4909
  %v4914 = vadd.f32 %v4906, %v4909
  %v4915 = vsel %vm366, %v4911, 0.0
  %4916 = vadd.xlane.f32.xlu0 %v4915
  %v4917 = vpop.xlane.xlu0 %4916
  %v4918 = vsel %vm366, %v4912, 0.0
  %4919 = vadd.xlane.f32.xlu0 %v4918
  %v4920 = vpop.xlane.xlu0 %4919
  %v4921 = vsel %vm366, %v4913, 0.0
  %4922 = vadd.xlane.f32.xlu0 %v4921
  %v4923 = vpop.xlane.xlu0 %4922
  %v4924 = vsel %vm366, %v4914, 0.0
  %4925 = vadd.xlane.f32.xlu0 %v4924
  %v4926 = vpop.xlane.xlu0 %4925
  %v4927 = vmul.f32 %v4917, %v1170
  %v4928 = vmul.f32 %v4920, %v1170
  %v4929 = vmul.f32 %v4923, %v1170
  %v4930 = vmul.f32 %v4926, %v1170
  %v4931 = vsub.f32 %v4911, %v4927
  %v4932 = vsub.f32 %v4912, %v4928
  %v4933 = vsub.f32 %v4913, %v4929
  %v4934 = vsub.f32 %v4914, %v4930
  %v4935 = vmul.f32 %v4931, %v4931
  %v4936 = vmul.f32 %v4932, %v4932
  %v4937 = vmul.f32 %v4933, %v4933
  %v4938 = vmul.f32 %v4934, %v4934
  %v4939 = vsel %vm366, %v4935, 0.0
  %4940 = vadd.xlane.f32.xlu0 %v4939
  %v4941 = vpop.xlane.xlu0 %4940
  %v4942 = vsel %vm366, %v4936, 0.0
  %4943 = vadd.xlane.f32.xlu0 %v4942
  %v4944 = vpop.xlane.xlu0 %4943
  %v4945 = vsel %vm366, %v4937, 0.0
  %4946 = vadd.xlane.f32.xlu0 %v4945
  %v4947 = vpop.xlane.xlu0 %4946
  %v4948 = vsel %vm366, %v4938, 0.0
  %4949 = vadd.xlane.f32.xlu0 %v4948
  %v4950 = vpop.xlane.xlu0 %4949
  %v4951 = vmul.f32 %v4941, %v1170
  %v4952 = vmul.f32 %v4944, %v1170
  %v4953 = vmul.f32 %v4947, %v1170
  %v4954 = vmul.f32 %v4950, %v1170
  %v4955 = vadd.f32 %v4951, 1e-05
  %v4956 = vadd.f32 %v4952, 1e-05
  %v4957 = vadd.f32 %v4953, 1e-05
  %v4958 = vadd.f32 %v4954, 1e-05
  %v4959 = vrsqrt.pop %v4955
  %v4960 = vmul.f32 %v4959, %v4955
  %v4961 = vmul.f32 %v4960, %v4959
  %v4962 = vmul.f32 0.5, %v4961
  %v4963 = vsub.f32 1.5, %v4962
  %v4964 = vmul.f32 %v4959, %v4963
  %vm4965 = vweird.f32 %v4955
  %vm4966 = vweird.f32 %v4959
  %vm4967 = vmor %vm4965, %vm4966
  %v4968 = vsel %vm4967, %v4959, %v4964
  %v4969 = vrsqrt.pop %v4956
  %v4970 = vmul.f32 %v4969, %v4956
  %v4971 = vmul.f32 %v4970, %v4969
  %v4972 = vmul.f32 0.5, %v4971
  %v4973 = vsub.f32 1.5, %v4972
  %v4974 = vmul.f32 %v4969, %v4973
  %vm4975 = vweird.f32 %v4956
  %vm4976 = vweird.f32 %v4969
  %vm4977 = vmor %vm4975, %vm4976
  %v4978 = vsel %vm4977, %v4969, %v4974
  %v4979 = vrsqrt.pop %v4957
  %v4980 = vmul.f32 %v4979, %v4957
  %v4981 = vmul.f32 %v4980, %v4979
  %v4982 = vmul.f32 0.5, %v4981
  %v4983 = vsub.f32 1.5, %v4982
  %v4984 = vmul.f32 %v4979, %v4983
  %vm4985 = vweird.f32 %v4957
  %vm4986 = vweird.f32 %v4979
  %vm4987 = vmor %vm4985, %vm4986
  %v4988 = vsel %vm4987, %v4979, %v4984
  %v4989 = vrsqrt.pop %v4958
  %v4990 = vmul.f32 %v4989, %v4958
  %v4991 = vmul.f32 %v4990, %v4989
  %v4992 = vmul.f32 0.5, %v4991
  %v4993 = vsub.f32 1.5, %v4992
  %v4994 = vmul.f32 %v4989, %v4993
  %vm4995 = vweird.f32 %v4958
  %vm4996 = vweird.f32 %v4989
  %vm4997 = vmor %vm4995, %vm4996
  %v4998 = vsel %vm4997, %v4989, %v4994
  %v4999 = vmul.f32 %v4931, %v4968
  %v5000 = vmul.f32 %v4932, %v4978
  %v5001 = vmul.f32 %v4933, %v4988
  %v5002 = vmul.f32 %v4934, %v4998
  %v5003 = vld [vmem:[%s59] sm:$0x1]
  %v5005 = vperm.slane %v5003, 0
  %v5007 = vmul.f32 %v4999, %v5005
  %v5008 = vmul.f32 %v5000, %v5005
  %v5009 = vmul.f32 %v5001, %v5005
  %v5010 = vmul.f32 %v5002, %v5005
  %v5011 = vld [vmem:[%s57] sm:$0x1]
  %v5013 = vperm.slane %v5011, 0
  %v5015 = vadd.f32 %v5007, %v5013
  %v5016 = vadd.f32 %v5008, %v5013
  %v5017 = vadd.f32 %v5009, %v5013
  %v5018 = vadd.f32 %v5010, %v5013
  %v5019 = vld [vmem:[%s63] sm:$0xf]
  %v5020 = vld [vmem:[%s63 + $0x4] sm:$0xf]
  %v5021 = vld [vmem:[%s63 + $0x8] sm:$0xf]
  %v5022 = vld [vmem:[%s63 + $0xc] sm:$0xf]
  %v5023 = vpack.c.bf16 %v5016, %v5015
  %v5024 = vpack.c.bf16 %v5018, %v5017
  %v5025 = vld [vmem:[%s61] sm:$0x1]
  %v5027 = vperm.slane %v5025, 0
  %v5033 = vunpack.c.l.b16 %v5019
  %v5034 = vunpack.c.l.b16 %v5020
  %v5035 = vunpack.c.l.b16 %v5021
  %v5036 = vunpack.c.l.b16 %v5022
  %v5037 = vpack.c.b16 %v5034, %v5033
  %v5038 = vpack.c.b16 %v5036, %v5035
  %v5042 = vsel %vm366, %v5023, 0
  %v5045 = vsel %vm366, %v5024, 0
  %5047 = vmatpush.bf16.msra.mxu0 0
  %5048 = vmatpush.bf16.msra.mxu0 0
  %5049 = vmatpush.bf16.msra.mxu0 0
  %5050 = vmatpush.bf16.msra.mxu0 0
  %5051 = vmatpush.bf16.msra.mxu0 0
  %5052 = vmatpush.bf16.msra.mxu0 0
  %5053 = vmatpush.bf16.msra.mxu0 %v5038
  %5054 = vmatpush.bf16.msra.mxu0 %v5037
  %5055 = vmatmul.bf16.gmra.mxu0 %v5042
  %v5056 = vpop.f32.mrf.mxu0
  %v5057 = vadd.f32 %v5027, %v5056
  %v5058 = vpop.f32.mrf.mxu0
  %v5059 = vadd.f32 %v5027, %v5058
  %5060 = vmatmul.bf16.gmra.mxu0 %v5045
  %v5061 = vpop.f32.mrf.mxu0
  %v5062 = vadd.f32 %v5027, %v5061
  %v5063 = vpop.f32.mrf.mxu0
  %v5064 = vadd.f32 %v5027, %v5063
  %5065 = vdwg.mxu0
  %5066 = vst.msk [vmem:[%s121] sm:$0xff] %vm271, %v5057
  %5067 = vst.msk [vmem:[%s121 + $0x8] sm:$0xff] %vm271, %v5059
  %5068 = vst.msk [vmem:[%s121 + $0x10] sm:$0xff] %vm271, %v5062
  %5069 = vst.msk [vmem:[%s121 + $0x18] sm:$0xff] %vm271, %v5064
  // Predicated region
  $region242: #{proformer_forward.1} parent=0 // pred_check
    _
  $region243: #{proformer_forward.1} parent=0 // pred_check_branch
    %5071 = sbr.rel (0) target = $region245
  $region244: #{proformer_forward.1} parent=0 // pred_region
    _
  $region245: #{proformer_forward.1} parent=0 // pred_fallthru
    _
  // Predicated region
  $region246: #{proformer_forward.1} parent=0 // pred_check
    _
  $region247: #{proformer_forward.1} parent=0 // pred_check_branch
    %5073 = sbr.rel (0) target = $region249
  $region248: #{proformer_forward.1} parent=0 // pred_region
    _
  $region249: #{proformer_forward.1} parent=0 // pred_fallthru
    _

</llo_original>
